<compile_context>
chip_gen: v5e
topology: v5e:2x2
jax: 0.10.0
libtpu: 0.0.40
codegen_flags: <defaults>
</compile_context>

<pallas_src>
import math
from functools import partial

import jax
import jax.numpy as jnp
from jax.experimental import pallas as pl
from jax.experimental.pallas import tpu as pltpu

# ---------------- configuration (small shapes consistent with the module) ----------------
B = 2
DIM = 32                      # dim
NUM_HEADS = 4                 # num_heads
H_IMG = 8
W_IMG = 8
N_TOK = H_IMG * W_IMG         # N = H * W
MLP_RATIO = 4.0
MLP_HIDDEN = int(DIM * MLP_RATIO)
SR_RATIO = 1                  # sr_ratio == 1 branch of Attention
SE_RATIO = 16
HEAD_DIM = DIM // NUM_HEADS
ATTN_SCALE = HEAD_DIM ** (-0.5)
LN_EPS = 1e-5
BN_EPS = 1e-5


# =====================================================================================
# Fused Block kernel: one grid step == one batch element, everything VMEM-resident.
# =====================================================================================
def _layernorm(v, g, b):
    mu = jnp.mean(v, axis=-1, keepdims=True)
    var = jnp.mean(jnp.square(v - mu), axis=-1, keepdims=True)
    return (v - mu) * jax.lax.rsqrt(var + LN_EPS) * g + b


def _conv3x3_flat(x_flat, w_ref, mask_l, mask_r, W):
    """3x3 same-padding conv on the flat (N=H*W, Cin) NHWC slab.

    Each of the 9 taps is a row-shifted view of the flat slab (row shift in
    token space) built with in-register zero fill; out-of-image columns are
    removed with a precomputed column mask.  Each tap feeds one MXU matmul
    accumulated in f32 — no padded buffer, no 3-D window slice+reshape copies.
    """
    N, Cin = x_flat.shape
    Cout = w_ref.shape[-1]
    acc = jnp.zeros((N, Cout), jnp.float32)
    for dh in range(3):
        for dw in range(3):
            off = (dh - 1) * W + (dw - 1)
            if off == 0:
                t = x_flat
            elif off > 0:
                t = jnp.concatenate(
                    [x_flat[off:, :], jnp.zeros((off, Cin), jnp.float32)], axis=0)
            else:
                t = jnp.concatenate(
                    [jnp.zeros((-off, Cin), jnp.float32), x_flat[:off, :]], axis=0)
            if dw == 0:                      # tap reads column x-1
                t = jnp.where(mask_l, t, 0.0)
            elif dw == 2:                    # tap reads column x+1
                t = jnp.where(mask_r, t, 0.0)
            acc = acc + jnp.dot(t, w_ref[dh, dw].astype(jnp.float32),
                                preferred_element_type=jnp.float32)
    return acc


def _block_kernel(x_ref, g1_ref, be1_ref, wqkv_ref, wp_ref, bp_ref,
                  g2_ref, be2_ref, w1_ref, bm1_ref, w2_ref, bm2_ref,
                  rbw1_ref, rbs1_ref, rbw2_ref, rbs2_ref,
                  sew1_ref, seb1_ref, sew2_ref, seb2_ref,
                  ccwa_ref, ccwb_ref, o_ref,
                  *, num_heads, head_dim, scale, H, W):
    N = H * W
    C = num_heads * head_dim
    x = x_ref[0].astype(jnp.float32)                                   # (N, C)

    # column-validity masks for the conv taps (hoisted once, shared by 4 convs)
    col = jax.lax.broadcasted_iota(jnp.int32, (N, C), 0) % W
    mask_l = col >= 1
    mask_r = col <= W - 2

    # ---------------- transformer part ----------------
    xn = _layernorm(x, g1_ref[...], be1_ref[...])
    # fused QKV projection: one (N, C) x (C, 3C) matmul (qkv_bias=False)
    qkv = jnp.dot(xn, wqkv_ref[...], preferred_element_type=jnp.float32)    # (N, 3C)
    wp = wp_ref[...].astype(jnp.float32)                                    # (C, C)
    attn = jnp.zeros((N, C), jnp.float32)
    for h in range(num_heads):                                         # statically unrolled
        lo = h * head_dim
        qh = qkv[:, lo:lo + head_dim] * scale
        kh = qkv[:, C + lo:C + lo + head_dim]
        vh = qkv[:, 2 * C + lo:2 * C + lo + head_dim]
        s = jnp.dot(qh, kh.T, preferred_element_type=jnp.float32)      # (N, N)
        s = s - jnp.max(s, axis=-1, keepdims=True)
        p = jnp.exp(s)
        p = p / jnp.sum(p, axis=-1, keepdims=True)
        oh = jnp.dot(p, vh, preferred_element_type=jnp.float32)        # (N, hd)
        # distribute the output projection per head -> no lane-axis concat
        attn = attn + jnp.dot(oh, wp[lo:lo + head_dim, :],
                              preferred_element_type=jnp.float32)
    x1 = x + attn + bp_ref[...]                                        # drop_path/dropout = id

    xn2 = _layernorm(x1, g2_ref[...], be2_ref[...])
    hdn = jnp.dot(xn2, w1_ref[...], preferred_element_type=jnp.float32) + bm1_ref[...]
    hdn = 0.5 * hdn * (1.0 + jax.lax.erf(hdn * (1.0 / math.sqrt(2.0))))     # exact GELU
    x2 = x1 + jnp.dot(hdn, w2_ref[...], preferred_element_type=jnp.float32) + bm2_ref[...]

    # ---------------- resblock(input): SE-ResNet basic block ----------------
    # (BN scale already folded into rbw*; rbs* is the remaining per-channel shift)
    r = _conv3x3_flat(x, rbw1_ref, mask_l, mask_r, W) + rbs1_ref[...]
    r = jnp.maximum(r, 0.0)
    r = _conv3x3_flat(r, rbw2_ref, mask_l, mask_r, W) + rbs2_ref[...]
    pooled = jnp.mean(r, axis=0, keepdims=True)                        # (1, C) global avg pool
    z = jnp.maximum(
        jnp.dot(pooled, sew1_ref[...], preferred_element_type=jnp.float32)
        + seb1_ref[...], 0.0)
    gate = jax.nn.sigmoid(
        jnp.dot(z, sew2_ref[...], preferred_element_type=jnp.float32) + seb2_ref[...])
    r = jnp.maximum(r * gate + x, 0.0)                                 # SE gate + residual + ReLU

    # ---------------- concat_conv(cat([x2, r], channel)) ----------------
    # channel concat eliminated: conv(cat) == conv(x2; Wcc[:, :, :C]) + conv(r; Wcc[:, :, C:])
    out = (_conv3x3_flat(x2, ccwa_ref, mask_l, mask_r, W)
           + _conv3x3_flat(r, ccwb_ref, mask_l, mask_r, W))

    o_ref[0] = out.astype(o_ref.dtype)


def _const_index_map(nd):
    return lambda b: (0,) * nd


def block_forward(x, Himg, Wimg, p):
    Bsz, N, C = x.shape

    # -------- trace-time weight preparation (runs once under jit, zero kernel cost) --------
    wqkv = jnp.concatenate([p["wq"], p["wkv"]], axis=1)                 # (C, 3C): [q | k | v]

    def fold_bn(w_hwio, gamma, beta, mean, var):                        # eval-mode BN folding
        s = gamma / jnp.sqrt(var + BN_EPS)
        return w_hwio * s[None, None, None, :], (beta - mean * s)[None, :]

    rbw1, rbs1 = fold_bn(p["rb_w1"], p["bn1_g"], p["bn1_b"], p["bn1_m"], p["bn1_v"])
    rbw2, rbs2 = fold_bn(p["rb_w2"], p["bn2_g"], p["bn2_b"], p["bn2_m"], p["bn2_v"])
    # split concat_conv weight: first C in-channels see x (transformer out), last C see resblock
    ccwa = p["cc_w"][:, :, :C, :]
    ccwb = p["cc_w"][:, :, C:, :]

    ins = (x, p["ln1_g"], p["ln1_b"], wqkv, p["wp"], p["bp"],
           p["ln2_g"], p["ln2_b"], p["mlp_w1"], p["mlp_b1"], p["mlp_w2"], p["mlp_b2"],
           rbw1, rbs1, rbw2, rbs2,
           p["se_w1"], p["se_b1"], p["se_w2"], p["se_b2"], ccwa, ccwb)

    in_specs = [pl.BlockSpec((1, N, C), lambda b: (b, 0, 0))]
    in_specs += [pl.BlockSpec(a.shape, _const_index_map(a.ndim)) for a in ins[1:]]

    kern = partial(_block_kernel, num_heads=NUM_HEADS, head_dim=HEAD_DIM,
                   scale=ATTN_SCALE, H=Himg, W=Wimg)
    return pl.pallas_call(
        kern,
        out_shape=jax.ShapeDtypeStruct((Bsz, N, C), x.dtype),
        grid_spec=pltpu.PrefetchScalarGridSpec(
            num_scalar_prefetch=0, grid=(Bsz,),
            in_specs=in_specs,
            out_specs=pl.BlockSpec((1, N, C), lambda b: (b, 0, 0))),
        # "parallel" batch axis: each batch element can land on its own TensorCore (v7x).
        compiler_params=pltpu.CompilerParams(dimension_semantics=("parallel",)),
    )(*ins)


# =====================================================================================
# Parameter init (deterministic, synthetic)
# =====================================================================================
def init_params(key):
    ks = jax.random.split(key, 16)
    w = lambda k, shape: jax.random.normal(k, shape, jnp.float32) * 0.02
    cr = max(DIM // SE_RATIO, 1)
    return {
        # norm1 / attention (qkv_bias=False -> no q/kv bias; proj has bias)
        "ln1_g": jnp.ones((1, DIM), jnp.float32),
        "ln1_b": jnp.zeros((1, DIM), jnp.float32),
        "wq":  w(ks[0], (DIM, DIM)),
        "wkv": w(ks[1], (DIM, 2 * DIM)),
        "wp":  w(ks[2], (DIM, DIM)),
        "bp":  w(ks[3], (1, DIM)),
        # norm2 / MLP
        "ln2_g": jnp.ones((1, DIM), jnp.float32),
        "ln2_b": jnp.zeros((1, DIM), jnp.float32),
        "mlp_w1": w(ks[4], (DIM, MLP_HIDDEN)),
        "mlp_b1": w(ks[5], (1, MLP_HIDDEN)),
        "mlp_w2": w(ks[6], (MLP_HIDDEN, DIM)),
        "mlp_b2": w(ks[7], (1, DIM)),
        # BasicBlock (SE-ResNet style), convs bias=False, eval-mode BN stats
        "rb_w1": w(ks[8], (3, 3, DIM, DIM)),
        "rb_w2": w(ks[9], (3, 3, DIM, DIM)),
        "bn1_g": jnp.ones((DIM,), jnp.float32),
        "bn1_b": jnp.zeros((DIM,), jnp.float32),
        "bn1_m": jnp.zeros((DIM,), jnp.float32),
        "bn1_v": jnp.ones((DIM,), jnp.float32),
        "bn2_g": jnp.ones((DIM,), jnp.float32),
        "bn2_b": jnp.zeros((DIM,), jnp.float32),
        "bn2_m": jnp.zeros((DIM,), jnp.float32),
        "bn2_v": jnp.ones((DIM,), jnp.float32),
        "se_w1": w(ks[10], (DIM, cr)),
        "se_b1": w(ks[11], (1, cr)),
        "se_w2": w(ks[12], (cr, DIM)),
        "se_b2": w(ks[13], (1, DIM)),
        # concat_conv: Conv2d(2*dim, dim, 3, padding=1, bias=False), HWIO
        "cc_w": w(ks[14], (3, 3, 2 * DIM, DIM)),
    }


if __name__ == "__main__":
    key = jax.random.PRNGKey(0)
    kx, kp = jax.random.split(key)
    x = jax.random.normal(kx, (B, N_TOK, DIM), jnp.float32)
    params = init_params(kp)
    fwd = jax.jit(block_forward, static_argnums=(1, 2))
    out = fwd(x, H_IMG, W_IMG, params)
    out = jax.block_until_ready(out)
    assert out.shape == (B, N_TOK, DIM) and out.dtype == jnp.float32
    print("KERNEL_OK")
</pallas_src>

<mosaic_0001>
module attributes {stable_mosaic.version = 11 : i64} {
  func.func @_block_kernel(%arg0: i32, %arg1: memref<1x64x32xf32, #tpu.memory_space<vmem>>, %arg2: memref<1x32xf32, #tpu.memory_space<vmem>>, %arg3: memref<1x32xf32, #tpu.memory_space<vmem>>, %arg4: memref<32x96xf32, #tpu.memory_space<vmem>>, %arg5: memref<32x32xf32, #tpu.memory_space<vmem>>, %arg6: memref<1x32xf32, #tpu.memory_space<vmem>>, %arg7: memref<1x32xf32, #tpu.memory_space<vmem>>, %arg8: memref<1x32xf32, #tpu.memory_space<vmem>>, %arg9: memref<32x128xf32, #tpu.memory_space<vmem>>, %arg10: memref<1x128xf32, #tpu.memory_space<vmem>>, %arg11: memref<128x32xf32, #tpu.memory_space<vmem>>, %arg12: memref<1x32xf32, #tpu.memory_space<vmem>>, %arg13: memref<3x3x32x32xf32, #tpu.memory_space<vmem>>, %arg14: memref<1x32xf32, #tpu.memory_space<vmem>>, %arg15: memref<3x3x32x32xf32, #tpu.memory_space<vmem>>, %arg16: memref<1x32xf32, #tpu.memory_space<vmem>>, %arg17: memref<32x2xf32, #tpu.memory_space<vmem>>, %arg18: memref<1x2xf32, #tpu.memory_space<vmem>>, %arg19: memref<2x32xf32, #tpu.memory_space<vmem>>, %arg20: memref<1x32xf32, #tpu.memory_space<vmem>>, %arg21: memref<3x3x32x32xf32, #tpu.memory_space<vmem>>, %arg22: memref<3x3x32x32xf32, #tpu.memory_space<vmem>>, %arg23: memref<1x64x32xf32, #tpu.memory_space<vmem>>) attributes {dimension_semantics = [#tpu.dimension_semantics<parallel>], iteration_bounds = array<i64: 2>, scalar_prefetch = 0 : i64, scratch_operands = 0 : i64, tpu.core_type = #tpu.core_type<tc>, window_params = [{transform_indices = @transform_0, window_bounds = array<i64: 1, 64, 32>}, {pipeline_mode = #tpu.pipeline_mode<synchronous>, transform_indices = @transform_1, window_bounds = array<i64: 1, 32>}, {pipeline_mode = #tpu.pipeline_mode<synchronous>, transform_indices = @transform_2, window_bounds = array<i64: 1, 32>}, {pipeline_mode = #tpu.pipeline_mode<synchronous>, transform_indices = @transform_3, window_bounds = array<i64: 32, 96>}, {pipeline_mode = #tpu.pipeline_mode<synchronous>, transform_indices = @transform_4, window_bounds = array<i64: 32, 32>}, {pipeline_mode = #tpu.pipeline_mode<synchronous>, transform_indices = @transform_5, window_bounds = array<i64: 1, 32>}, {pipeline_mode = #tpu.pipeline_mode<synchronous>, transform_indices = @transform_6, window_bounds = array<i64: 1, 32>}, {pipeline_mode = #tpu.pipeline_mode<synchronous>, transform_indices = @transform_7, window_bounds = array<i64: 1, 32>}, {pipeline_mode = #tpu.pipeline_mode<synchronous>, transform_indices = @transform_8, window_bounds = array<i64: 32, 128>}, {pipeline_mode = #tpu.pipeline_mode<synchronous>, transform_indices = @transform_9, window_bounds = array<i64: 1, 128>}, {pipeline_mode = #tpu.pipeline_mode<synchronous>, transform_indices = @transform_10, window_bounds = array<i64: 128, 32>}, {pipeline_mode = #tpu.pipeline_mode<synchronous>, transform_indices = @transform_11, window_bounds = array<i64: 1, 32>}, {pipeline_mode = #tpu.pipeline_mode<synchronous>, transform_indices = @transform_12, window_bounds = array<i64: 3, 3, 32, 32>}, {pipeline_mode = #tpu.pipeline_mode<synchronous>, transform_indices = @transform_13, window_bounds = array<i64: 1, 32>}, {pipeline_mode = #tpu.pipeline_mode<synchronous>, transform_indices = @transform_14, window_bounds = array<i64: 3, 3, 32, 32>}, {pipeline_mode = #tpu.pipeline_mode<synchronous>, transform_indices = @transform_15, window_bounds = array<i64: 1, 32>}, {pipeline_mode = #tpu.pipeline_mode<synchronous>, transform_indices = @transform_16, window_bounds = array<i64: 32, 2>}, {pipeline_mode = #tpu.pipeline_mode<synchronous>, transform_indices = @transform_17, window_bounds = array<i64: 1, 2>}, {pipeline_mode = #tpu.pipeline_mode<synchronous>, transform_indices = @transform_18, window_bounds = array<i64: 2, 32>}, {pipeline_mode = #tpu.pipeline_mode<synchronous>, transform_indices = @transform_19, window_bounds = array<i64: 1, 32>}, {pipeline_mode = #tpu.pipeline_mode<synchronous>, transform_indices = @transform_20, window_bounds = array<i64: 3, 3, 32, 32>}, {pipeline_mode = #tpu.pipeline_mode<synchronous>, transform_indices = @transform_21, window_bounds = array<i64: 3, 3, 32, 32>}, {transform_indices = @transform_22, window_bounds = array<i64: 1, 64, 32>}]} {
    %c0 = arith.constant 0 : index
    %c0_0 = arith.constant 0 : index
    %c0_1 = arith.constant 0 : index
    %0 = vector.load %arg1[%c0, %c0_0, %c0_1] : memref<1x64x32xf32, #tpu.memory_space<vmem>>, vector<1x64x32xf32>
    %1 = vector.shape_cast %0 : vector<1x64x32xf32> to vector<64x32xf32>
    %2 = tpu.iota {dimensions = array<i32: 0>} : vector<64x32xi32>
    %c8_i32 = arith.constant 8 : i32
    %c0_i32 = arith.constant 0 : i32
    %3 = arith.cmpi eq, %c8_i32, %c0_i32 : i32
    %c1_i32 = arith.constant 1 : i32
    %4 = arith.select %3, %c1_i32, %c8_i32 : i32
    %5 = vector.broadcast %4 : i32 to vector<64x32xi32>
    %6 = arith.remsi %2, %5 : vector<64x32xi32>
    %c0_i32_2 = arith.constant 0 : i32
    %7 = vector.broadcast %c0_i32_2 : i32 to vector<64x32xi32>
    %8 = arith.cmpi ne, %6, %7 : vector<64x32xi32>
    %c0_i32_3 = arith.constant 0 : i32
    %9 = vector.broadcast %c0_i32_3 : i32 to vector<64x32xi32>
    %10 = arith.cmpi slt, %6, %9 : vector<64x32xi32>
    %c0_i32_4 = arith.constant 0 : i32
    %11 = arith.cmpi slt, %4, %c0_i32_4 : i32
    %12 = vector.broadcast %11 : i1 to vector<64x32xi1>
    %13 = vector.broadcast %12 : vector<64x32xi1> to vector<64x32xi1>
    %14 = arith.xori %10, %13 : vector<64x32xi1>
    %15 = arith.andi %14, %8 : vector<64x32xi1>
    %16 = vector.broadcast %4 : i32 to vector<64x32xi32>
    %17 = arith.addi %6, %16 : vector<64x32xi32>
    %18 = arith.select %15, %17, %6 : vector<64x32xi1>, vector<64x32xi32>
    %c1_i32_5 = arith.constant 1 : i32
    %19 = vector.broadcast %c1_i32_5 : i32 to vector<64x32xi32>
    %20 = arith.cmpi sge, %18, %19 : vector<64x32xi32>
    %c6_i32 = arith.constant 6 : i32
    %21 = vector.broadcast %c6_i32 : i32 to vector<64x32xi32>
    %22 = arith.cmpi sle, %18, %21 : vector<64x32xi32>
    %c0_6 = arith.constant 0 : index
    %c0_7 = arith.constant 0 : index
    %23 = vector.load %arg2[%c0_6, %c0_7] : memref<1x32xf32, #tpu.memory_space<vmem>>, vector<1x32xf32>
    %c0_8 = arith.constant 0 : index
    %c0_9 = arith.constant 0 : index
    %24 = vector.load %arg3[%c0_8, %c0_9] : memref<1x32xf32, #tpu.memory_space<vmem>>, vector<1x32xf32>
    %cst = arith.constant dense<0.000000e+00> : vector<64xf32>
    %25 = vector.multi_reduction <add>, %1, %cst [1] : vector<64x32xf32> to vector<64xf32>
    %26 = vector.shape_cast %25 : vector<64xf32> to vector<64x1xf32>
    %cst_10 = arith.constant 3.200000e+01 : f32
    %27 = vector.broadcast %cst_10 : f32 to vector<64x1xf32>
    %28 = arith.divf %26, %27 : vector<64x1xf32>
    %29 = vector.broadcast %28 : vector<64x1xf32> to vector<64x32xf32>
    %30 = arith.subf %1, %29 : vector<64x32xf32>
    %31 = arith.mulf %30, %30 : vector<64x32xf32>
    %cst_11 = arith.constant dense<0.000000e+00> : vector<64xf32>
    %32 = vector.multi_reduction <add>, %31, %cst_11 [1] : vector<64x32xf32> to vector<64xf32>
    %33 = vector.shape_cast %32 : vector<64xf32> to vector<64x1xf32>
    %cst_12 = arith.constant 3.200000e+01 : f32
    %34 = vector.broadcast %cst_12 : f32 to vector<64x1xf32>
    %35 = arith.divf %33, %34 : vector<64x1xf32>
    %36 = vector.broadcast %28 : vector<64x1xf32> to vector<64x32xf32>
    %37 = arith.subf %1, %36 : vector<64x32xf32>
    %cst_13 = arith.constant 9.99999974E-6 : f32
    %38 = vector.broadcast %cst_13 : f32 to vector<64x1xf32>
    %39 = arith.addf %35, %38 : vector<64x1xf32>
    %40 = math.rsqrt %39 : vector<64x1xf32>
    %41 = vector.broadcast %40 : vector<64x1xf32> to vector<64x32xf32>
    %42 = arith.mulf %37, %41 : vector<64x32xf32>
    %43 = vector.broadcast %23 : vector<1x32xf32> to vector<64x32xf32>
    %44 = arith.mulf %42, %43 : vector<64x32xf32>
    %45 = vector.broadcast %24 : vector<1x32xf32> to vector<64x32xf32>
    %46 = arith.addf %44, %45 : vector<64x32xf32>
    %c0_14 = arith.constant 0 : index
    %c0_15 = arith.constant 0 : index
    %47 = vector.load %arg4[%c0_14, %c0_15] : memref<32x96xf32, #tpu.memory_space<vmem>>, vector<32x96xf32>
    %cst_16 = arith.constant dense<0.000000e+00> : vector<64x96xf32>
    %48 = tpu.matmul %46, %47, %cst_16 {dimension_numbers = #tpu.dot_dimension_numbers<[1], [0], [0], [1], [0, 0, 1, 1], [], []>} : vector<64x32xf32>, vector<32x96xf32>, vector<64x96xf32> -> vector<64x96xf32>
    %c0_17 = arith.constant 0 : index
    %c0_18 = arith.constant 0 : index
    %49 = vector.load %arg5[%c0_17, %c0_18] : memref<32x32xf32, #tpu.memory_space<vmem>>, vector<32x32xf32>
    %cst_19 = arith.constant 0.000000e+00 : f32
    %50 = vector.broadcast %cst_19 : f32 to vector<64x32xf32>
    %51 = vector.extract_strided_slice %48 {offsets = [0, 0], sizes = [64, 8], strides = [1, 1]} : vector<64x96xf32> to vector<64x8xf32>
    %cst_20 = arith.constant 0.353553385 : f32
    %52 = vector.broadcast %cst_20 : f32 to vector<64x8xf32>
    %53 = arith.mulf %51, %52 : vector<64x8xf32>
    %54 = vector.extract_strided_slice %48 {offsets = [0, 32], sizes = [64, 8], strides = [1, 1]} : vector<64x96xf32> to vector<64x8xf32>
    %55 = vector.extract_strided_slice %48 {offsets = [0, 64], sizes = [64, 8], strides = [1, 1]} : vector<64x96xf32> to vector<64x8xf32>
    %56 = tpu.transpose %54, [1, 0] : vector<64x8xf32> -> vector<8x64xf32>
    %cst_21 = arith.constant dense<0.000000e+00> : vector<64x64xf32>
    %57 = tpu.matmul %53, %56, %cst_21 {dimension_numbers = #tpu.dot_dimension_numbers<[1], [0], [0], [1], [0, 0, 1, 1], [], []>} : vector<64x8xf32>, vector<8x64xf32>, vector<64x64xf32> -> vector<64x64xf32>
    %cst_22 = arith.constant dense<0xFF800000> : vector<64xf32>
    %58 = vector.multi_reduction <maximumf>, %57, %cst_22 [1] : vector<64x64xf32> to vector<64xf32>
    %59 = vector.shape_cast %58 : vector<64xf32> to vector<64x1xf32>
    %60 = vector.broadcast %59 : vector<64x1xf32> to vector<64x64xf32>
    %61 = arith.subf %57, %60 : vector<64x64xf32>
    %62 = math.exp %61 : vector<64x64xf32>
    %cst_23 = arith.constant dense<0.000000e+00> : vector<64xf32>
    %63 = vector.multi_reduction <add>, %62, %cst_23 [1] : vector<64x64xf32> to vector<64xf32>
    %64 = vector.shape_cast %63 : vector<64xf32> to vector<64x1xf32>
    %65 = vector.broadcast %64 : vector<64x1xf32> to vector<64x64xf32>
    %66 = arith.divf %62, %65 : vector<64x64xf32>
    %cst_24 = arith.constant dense<0.000000e+00> : vector<64x8xf32>
    %67 = tpu.matmul %66, %55, %cst_24 {dimension_numbers = #tpu.dot_dimension_numbers<[1], [0], [0], [1], [0, 0, 1, 1], [], []>} : vector<64x64xf32>, vector<64x8xf32>, vector<64x8xf32> -> vector<64x8xf32>
    %68 = vector.extract_strided_slice %49 {offsets = [0, 0], sizes = [8, 32], strides = [1, 1]} : vector<32x32xf32> to vector<8x32xf32>
    %cst_25 = arith.constant dense<0.000000e+00> : vector<64x32xf32>
    %69 = tpu.matmul %67, %68, %cst_25 {dimension_numbers = #tpu.dot_dimension_numbers<[1], [0], [0], [1], [0, 0, 1, 1], [], []>} : vector<64x8xf32>, vector<8x32xf32>, vector<64x32xf32> -> vector<64x32xf32>
    %70 = arith.addf %50, %69 : vector<64x32xf32>
    %71 = vector.extract_strided_slice %48 {offsets = [0, 8], sizes = [64, 8], strides = [1, 1]} : vector<64x96xf32> to vector<64x8xf32>
    %cst_26 = arith.constant 0.353553385 : f32
    %72 = vector.broadcast %cst_26 : f32 to vector<64x8xf32>
    %73 = arith.mulf %71, %72 : vector<64x8xf32>
    %74 = vector.extract_strided_slice %48 {offsets = [0, 40], sizes = [64, 8], strides = [1, 1]} : vector<64x96xf32> to vector<64x8xf32>
    %75 = vector.extract_strided_slice %48 {offsets = [0, 72], sizes = [64, 8], strides = [1, 1]} : vector<64x96xf32> to vector<64x8xf32>
    %76 = tpu.transpose %74, [1, 0] : vector<64x8xf32> -> vector<8x64xf32>
    %cst_27 = arith.constant dense<0.000000e+00> : vector<64x64xf32>
    %77 = tpu.matmul %73, %76, %cst_27 {dimension_numbers = #tpu.dot_dimension_numbers<[1], [0], [0], [1], [0, 0, 1, 1], [], []>} : vector<64x8xf32>, vector<8x64xf32>, vector<64x64xf32> -> vector<64x64xf32>
    %cst_28 = arith.constant dense<0xFF800000> : vector<64xf32>
    %78 = vector.multi_reduction <maximumf>, %77, %cst_28 [1] : vector<64x64xf32> to vector<64xf32>
    %79 = vector.shape_cast %78 : vector<64xf32> to vector<64x1xf32>
    %80 = vector.broadcast %79 : vector<64x1xf32> to vector<64x64xf32>
    %81 = arith.subf %77, %80 : vector<64x64xf32>
    %82 = math.exp %81 : vector<64x64xf32>
    %cst_29 = arith.constant dense<0.000000e+00> : vector<64xf32>
    %83 = vector.multi_reduction <add>, %82, %cst_29 [1] : vector<64x64xf32> to vector<64xf32>
    %84 = vector.shape_cast %83 : vector<64xf32> to vector<64x1xf32>
    %85 = vector.broadcast %84 : vector<64x1xf32> to vector<64x64xf32>
    %86 = arith.divf %82, %85 : vector<64x64xf32>
    %cst_30 = arith.constant dense<0.000000e+00> : vector<64x8xf32>
    %87 = tpu.matmul %86, %75, %cst_30 {dimension_numbers = #tpu.dot_dimension_numbers<[1], [0], [0], [1], [0, 0, 1, 1], [], []>} : vector<64x64xf32>, vector<64x8xf32>, vector<64x8xf32> -> vector<64x8xf32>
    %88 = vector.extract_strided_slice %49 {offsets = [8, 0], sizes = [8, 32], strides = [1, 1]} : vector<32x32xf32> to vector<8x32xf32>
    %cst_31 = arith.constant dense<0.000000e+00> : vector<64x32xf32>
    %89 = tpu.matmul %87, %88, %cst_31 {dimension_numbers = #tpu.dot_dimension_numbers<[1], [0], [0], [1], [0, 0, 1, 1], [], []>} : vector<64x8xf32>, vector<8x32xf32>, vector<64x32xf32> -> vector<64x32xf32>
    %90 = arith.addf %70, %89 : vector<64x32xf32>
    %91 = vector.extract_strided_slice %48 {offsets = [0, 16], sizes = [64, 8], strides = [1, 1]} : vector<64x96xf32> to vector<64x8xf32>
    %cst_32 = arith.constant 0.353553385 : f32
    %92 = vector.broadcast %cst_32 : f32 to vector<64x8xf32>
    %93 = arith.mulf %91, %92 : vector<64x8xf32>
    %94 = vector.extract_strided_slice %48 {offsets = [0, 48], sizes = [64, 8], strides = [1, 1]} : vector<64x96xf32> to vector<64x8xf32>
    %95 = vector.extract_strided_slice %48 {offsets = [0, 80], sizes = [64, 8], strides = [1, 1]} : vector<64x96xf32> to vector<64x8xf32>
    %96 = tpu.transpose %94, [1, 0] : vector<64x8xf32> -> vector<8x64xf32>
    %cst_33 = arith.constant dense<0.000000e+00> : vector<64x64xf32>
    %97 = tpu.matmul %93, %96, %cst_33 {dimension_numbers = #tpu.dot_dimension_numbers<[1], [0], [0], [1], [0, 0, 1, 1], [], []>} : vector<64x8xf32>, vector<8x64xf32>, vector<64x64xf32> -> vector<64x64xf32>
    %cst_34 = arith.constant dense<0xFF800000> : vector<64xf32>
    %98 = vector.multi_reduction <maximumf>, %97, %cst_34 [1] : vector<64x64xf32> to vector<64xf32>
    %99 = vector.shape_cast %98 : vector<64xf32> to vector<64x1xf32>
    %100 = vector.broadcast %99 : vector<64x1xf32> to vector<64x64xf32>
    %101 = arith.subf %97, %100 : vector<64x64xf32>
    %102 = math.exp %101 : vector<64x64xf32>
    %cst_35 = arith.constant dense<0.000000e+00> : vector<64xf32>
    %103 = vector.multi_reduction <add>, %102, %cst_35 [1] : vector<64x64xf32> to vector<64xf32>
    %104 = vector.shape_cast %103 : vector<64xf32> to vector<64x1xf32>
    %105 = vector.broadcast %104 : vector<64x1xf32> to vector<64x64xf32>
    %106 = arith.divf %102, %105 : vector<64x64xf32>
    %cst_36 = arith.constant dense<0.000000e+00> : vector<64x8xf32>
    %107 = tpu.matmul %106, %95, %cst_36 {dimension_numbers = #tpu.dot_dimension_numbers<[1], [0], [0], [1], [0, 0, 1, 1], [], []>} : vector<64x64xf32>, vector<64x8xf32>, vector<64x8xf32> -> vector<64x8xf32>
    %108 = vector.extract_strided_slice %49 {offsets = [16, 0], sizes = [8, 32], strides = [1, 1]} : vector<32x32xf32> to vector<8x32xf32>
    %cst_37 = arith.constant dense<0.000000e+00> : vector<64x32xf32>
    %109 = tpu.matmul %107, %108, %cst_37 {dimension_numbers = #tpu.dot_dimension_numbers<[1], [0], [0], [1], [0, 0, 1, 1], [], []>} : vector<64x8xf32>, vector<8x32xf32>, vector<64x32xf32> -> vector<64x32xf32>
    %110 = arith.addf %90, %109 : vector<64x32xf32>
    %111 = vector.extract_strided_slice %48 {offsets = [0, 24], sizes = [64, 8], strides = [1, 1]} : vector<64x96xf32> to vector<64x8xf32>
    %cst_38 = arith.constant 0.353553385 : f32
    %112 = vector.broadcast %cst_38 : f32 to vector<64x8xf32>
    %113 = arith.mulf %111, %112 : vector<64x8xf32>
    %114 = vector.extract_strided_slice %48 {offsets = [0, 56], sizes = [64, 8], strides = [1, 1]} : vector<64x96xf32> to vector<64x8xf32>
    %115 = vector.extract_strided_slice %48 {offsets = [0, 88], sizes = [64, 8], strides = [1, 1]} : vector<64x96xf32> to vector<64x8xf32>
    %116 = tpu.transpose %114, [1, 0] : vector<64x8xf32> -> vector<8x64xf32>
    %cst_39 = arith.constant dense<0.000000e+00> : vector<64x64xf32>
    %117 = tpu.matmul %113, %116, %cst_39 {dimension_numbers = #tpu.dot_dimension_numbers<[1], [0], [0], [1], [0, 0, 1, 1], [], []>} : vector<64x8xf32>, vector<8x64xf32>, vector<64x64xf32> -> vector<64x64xf32>
    %cst_40 = arith.constant dense<0xFF800000> : vector<64xf32>
    %118 = vector.multi_reduction <maximumf>, %117, %cst_40 [1] : vector<64x64xf32> to vector<64xf32>
    %119 = vector.shape_cast %118 : vector<64xf32> to vector<64x1xf32>
    %120 = vector.broadcast %119 : vector<64x1xf32> to vector<64x64xf32>
    %121 = arith.subf %117, %120 : vector<64x64xf32>
    %122 = math.exp %121 : vector<64x64xf32>
    %cst_41 = arith.constant dense<0.000000e+00> : vector<64xf32>
    %123 = vector.multi_reduction <add>, %122, %cst_41 [1] : vector<64x64xf32> to vector<64xf32>
    %124 = vector.shape_cast %123 : vector<64xf32> to vector<64x1xf32>
    %125 = vector.broadcast %124 : vector<64x1xf32> to vector<64x64xf32>
    %126 = arith.divf %122, %125 : vector<64x64xf32>
    %cst_42 = arith.constant dense<0.000000e+00> : vector<64x8xf32>
    %127 = tpu.matmul %126, %115, %cst_42 {dimension_numbers = #tpu.dot_dimension_numbers<[1], [0], [0], [1], [0, 0, 1, 1], [], []>} : vector<64x64xf32>, vector<64x8xf32>, vector<64x8xf32> -> vector<64x8xf32>
    %128 = vector.extract_strided_slice %49 {offsets = [24, 0], sizes = [8, 32], strides = [1, 1]} : vector<32x32xf32> to vector<8x32xf32>
    %cst_43 = arith.constant dense<0.000000e+00> : vector<64x32xf32>
    %129 = tpu.matmul %127, %128, %cst_43 {dimension_numbers = #tpu.dot_dimension_numbers<[1], [0], [0], [1], [0, 0, 1, 1], [], []>} : vector<64x8xf32>, vector<8x32xf32>, vector<64x32xf32> -> vector<64x32xf32>
    %130 = arith.addf %110, %129 : vector<64x32xf32>
    %131 = arith.addf %1, %130 : vector<64x32xf32>
    %c0_44 = arith.constant 0 : index
    %c0_45 = arith.constant 0 : index
    %132 = vector.load %arg6[%c0_44, %c0_45] : memref<1x32xf32, #tpu.memory_space<vmem>>, vector<1x32xf32>
    %133 = vector.broadcast %132 : vector<1x32xf32> to vector<64x32xf32>
    %134 = arith.addf %131, %133 : vector<64x32xf32>
    %c0_46 = arith.constant 0 : index
    %c0_47 = arith.constant 0 : index
    %135 = vector.load %arg7[%c0_46, %c0_47] : memref<1x32xf32, #tpu.memory_space<vmem>>, vector<1x32xf32>
    %c0_48 = arith.constant 0 : index
    %c0_49 = arith.constant 0 : index
    %136 = vector.load %arg8[%c0_48, %c0_49] : memref<1x32xf32, #tpu.memory_space<vmem>>, vector<1x32xf32>
    %cst_50 = arith.constant dense<0.000000e+00> : vector<64xf32>
    %137 = vector.multi_reduction <add>, %134, %cst_50 [1] : vector<64x32xf32> to vector<64xf32>
    %138 = vector.shape_cast %137 : vector<64xf32> to vector<64x1xf32>
    %cst_51 = arith.constant 3.200000e+01 : f32
    %139 = vector.broadcast %cst_51 : f32 to vector<64x1xf32>
    %140 = arith.divf %138, %139 : vector<64x1xf32>
    %141 = vector.broadcast %140 : vector<64x1xf32> to vector<64x32xf32>
    %142 = arith.subf %134, %141 : vector<64x32xf32>
    %143 = arith.mulf %142, %142 : vector<64x32xf32>
    %cst_52 = arith.constant dense<0.000000e+00> : vector<64xf32>
    %144 = vector.multi_reduction <add>, %143, %cst_52 [1] : vector<64x32xf32> to vector<64xf32>
    %145 = vector.shape_cast %144 : vector<64xf32> to vector<64x1xf32>
    %cst_53 = arith.constant 3.200000e+01 : f32
    %146 = vector.broadcast %cst_53 : f32 to vector<64x1xf32>
    %147 = arith.divf %145, %146 : vector<64x1xf32>
    %148 = vector.broadcast %140 : vector<64x1xf32> to vector<64x32xf32>
    %149 = arith.subf %134, %148 : vector<64x32xf32>
    %cst_54 = arith.constant 9.99999974E-6 : f32
    %150 = vector.broadcast %cst_54 : f32 to vector<64x1xf32>
    %151 = arith.addf %147, %150 : vector<64x1xf32>
    %152 = math.rsqrt %151 : vector<64x1xf32>
    %153 = vector.broadcast %152 : vector<64x1xf32> to vector<64x32xf32>
    %154 = arith.mulf %149, %153 : vector<64x32xf32>
    %155 = vector.broadcast %135 : vector<1x32xf32> to vector<64x32xf32>
    %156 = arith.mulf %154, %155 : vector<64x32xf32>
    %157 = vector.broadcast %136 : vector<1x32xf32> to vector<64x32xf32>
    %158 = arith.addf %156, %157 : vector<64x32xf32>
    %c0_55 = arith.constant 0 : index
    %c0_56 = arith.constant 0 : index
    %159 = vector.load %arg9[%c0_55, %c0_56] : memref<32x128xf32, #tpu.memory_space<vmem>>, vector<32x128xf32>
    %cst_57 = arith.constant dense<0.000000e+00> : vector<64x128xf32>
    %160 = tpu.matmul %158, %159, %cst_57 {dimension_numbers = #tpu.dot_dimension_numbers<[1], [0], [0], [1], [0, 0, 1, 1], [], []>} : vector<64x32xf32>, vector<32x128xf32>, vector<64x128xf32> -> vector<64x128xf32>
    %c0_58 = arith.constant 0 : index
    %c0_59 = arith.constant 0 : index
    %161 = vector.load %arg10[%c0_58, %c0_59] : memref<1x128xf32, #tpu.memory_space<vmem>>, vector<1x128xf32>
    %162 = vector.broadcast %161 : vector<1x128xf32> to vector<64x128xf32>
    %163 = arith.addf %160, %162 : vector<64x128xf32>
    %cst_60 = arith.constant 5.000000e-01 : f32
    %164 = vector.broadcast %cst_60 : f32 to vector<64x128xf32>
    %165 = arith.mulf %164, %163 : vector<64x128xf32>
    %cst_61 = arith.constant 0.707106769 : f32
    %166 = vector.broadcast %cst_61 : f32 to vector<64x128xf32>
    %167 = arith.mulf %163, %166 : vector<64x128xf32>
    %168 = math.erf %167 : vector<64x128xf32>
    %cst_62 = arith.constant 1.000000e+00 : f32
    %169 = vector.broadcast %cst_62 : f32 to vector<64x128xf32>
    %170 = arith.addf %169, %168 : vector<64x128xf32>
    %171 = arith.mulf %165, %170 : vector<64x128xf32>
    %c0_63 = arith.constant 0 : index
    %c0_64 = arith.constant 0 : index
    %172 = vector.load %arg11[%c0_63, %c0_64] : memref<128x32xf32, #tpu.memory_space<vmem>>, vector<128x32xf32>
    %cst_65 = arith.constant dense<0.000000e+00> : vector<64x32xf32>
    %173 = tpu.matmul %171, %172, %cst_65 {dimension_numbers = #tpu.dot_dimension_numbers<[1], [0], [0], [1], [0, 0, 1, 1], [], []>} : vector<64x128xf32>, vector<128x32xf32>, vector<64x32xf32> -> vector<64x32xf32>
    %174 = arith.addf %134, %173 : vector<64x32xf32>
    %c0_66 = arith.constant 0 : index
    %c0_67 = arith.constant 0 : index
    %175 = vector.load %arg12[%c0_66, %c0_67] : memref<1x32xf32, #tpu.memory_space<vmem>>, vector<1x32xf32>
    %176 = vector.broadcast %175 : vector<1x32xf32> to vector<64x32xf32>
    %177 = arith.addf %174, %176 : vector<64x32xf32>
    %cst_68 = arith.constant 0.000000e+00 : f32
    %178 = vector.broadcast %cst_68 : f32 to vector<64x32xf32>
    %cst_69 = arith.constant 0.000000e+00 : f32
    %179 = vector.broadcast %cst_69 : f32 to vector<9x32xf32>
    %180 = vector.extract_strided_slice %1 {offsets = [0, 0], sizes = [55, 32], strides = [1, 1]} : vector<64x32xf32> to vector<55x32xf32>
    %181 = tpu.concatenate %179, %180 in 0 : vector<9x32xf32>, vector<55x32xf32> -> vector<64x32xf32>
    %cst_70 = arith.constant 0.000000e+00 : f32
    %182 = vector.broadcast %cst_70 : f32 to vector<64x32xf32>
    %183 = arith.select %20, %181, %182 : vector<64x32xi1>, vector<64x32xf32>
    %c0_71 = arith.constant 0 : index
    %c0_72 = arith.constant 0 : index
    %c0_73 = arith.constant 0 : index
    %c0_74 = arith.constant 0 : index
    %184 = vector.load %arg13[%c0_71, %c0_72, %c0_73, %c0_74] : memref<3x3x32x32xf32, #tpu.memory_space<vmem>>, vector<1x1x32x32xf32>
    %185 = vector.shape_cast %184 : vector<1x1x32x32xf32> to vector<32x32xf32>
    %cst_75 = arith.constant dense<0.000000e+00> : vector<64x32xf32>
    %186 = tpu.matmul %183, %185, %cst_75 {dimension_numbers = #tpu.dot_dimension_numbers<[1], [0], [0], [1], [0, 0, 1, 1], [], []>} : vector<64x32xf32>, vector<32x32xf32>, vector<64x32xf32> -> vector<64x32xf32>
    %187 = arith.addf %178, %186 : vector<64x32xf32>
    %cst_76 = arith.constant 0.000000e+00 : f32
    %188 = vector.broadcast %cst_76 : f32 to vector<8x32xf32>
    %189 = vector.extract_strided_slice %1 {offsets = [0, 0], sizes = [56, 32], strides = [1, 1]} : vector<64x32xf32> to vector<56x32xf32>
    %190 = tpu.concatenate %188, %189 in 0 : vector<8x32xf32>, vector<56x32xf32> -> vector<64x32xf32>
    %c0_77 = arith.constant 0 : index
    %c1 = arith.constant 1 : index
    %c0_78 = arith.constant 0 : index
    %c0_79 = arith.constant 0 : index
    %191 = vector.load %arg13[%c0_77, %c1, %c0_78, %c0_79] : memref<3x3x32x32xf32, #tpu.memory_space<vmem>>, vector<1x1x32x32xf32>
    %192 = vector.shape_cast %191 : vector<1x1x32x32xf32> to vector<32x32xf32>
    %cst_80 = arith.constant dense<0.000000e+00> : vector<64x32xf32>
    %193 = tpu.matmul %190, %192, %cst_80 {dimension_numbers = #tpu.dot_dimension_numbers<[1], [0], [0], [1], [0, 0, 1, 1], [], []>} : vector<64x32xf32>, vector<32x32xf32>, vector<64x32xf32> -> vector<64x32xf32>
    %194 = arith.addf %187, %193 : vector<64x32xf32>
    %cst_81 = arith.constant 0.000000e+00 : f32
    %195 = vector.broadcast %cst_81 : f32 to vector<7x32xf32>
    %196 = vector.extract_strided_slice %1 {offsets = [0, 0], sizes = [57, 32], strides = [1, 1]} : vector<64x32xf32> to vector<57x32xf32>
    %197 = tpu.concatenate %195, %196 in 0 : vector<7x32xf32>, vector<57x32xf32> -> vector<64x32xf32>
    %cst_82 = arith.constant 0.000000e+00 : f32
    %198 = vector.broadcast %cst_82 : f32 to vector<64x32xf32>
    %199 = arith.select %22, %197, %198 : vector<64x32xi1>, vector<64x32xf32>
    %c0_83 = arith.constant 0 : index
    %c2 = arith.constant 2 : index
    %c0_84 = arith.constant 0 : index
    %c0_85 = arith.constant 0 : index
    %200 = vector.load %arg13[%c0_83, %c2, %c0_84, %c0_85] : memref<3x3x32x32xf32, #tpu.memory_space<vmem>>, vector<1x1x32x32xf32>
    %201 = vector.shape_cast %200 : vector<1x1x32x32xf32> to vector<32x32xf32>
    %cst_86 = arith.constant dense<0.000000e+00> : vector<64x32xf32>
    %202 = tpu.matmul %199, %201, %cst_86 {dimension_numbers = #tpu.dot_dimension_numbers<[1], [0], [0], [1], [0, 0, 1, 1], [], []>} : vector<64x32xf32>, vector<32x32xf32>, vector<64x32xf32> -> vector<64x32xf32>
    %203 = arith.addf %194, %202 : vector<64x32xf32>
    %cst_87 = arith.constant 0.000000e+00 : f32
    %204 = vector.broadcast %cst_87 : f32 to vector<1x32xf32>
    %205 = vector.extract_strided_slice %1 {offsets = [0, 0], sizes = [63, 32], strides = [1, 1]} : vector<64x32xf32> to vector<63x32xf32>
    %206 = tpu.concatenate %204, %205 in 0 : vector<1x32xf32>, vector<63x32xf32> -> vector<64x32xf32>
    %cst_88 = arith.constant 0.000000e+00 : f32
    %207 = vector.broadcast %cst_88 : f32 to vector<64x32xf32>
    %208 = arith.select %20, %206, %207 : vector<64x32xi1>, vector<64x32xf32>
    %c1_89 = arith.constant 1 : index
    %c0_90 = arith.constant 0 : index
    %c0_91 = arith.constant 0 : index
    %c0_92 = arith.constant 0 : index
    %209 = vector.load %arg13[%c1_89, %c0_90, %c0_91, %c0_92] : memref<3x3x32x32xf32, #tpu.memory_space<vmem>>, vector<1x1x32x32xf32>
    %210 = vector.shape_cast %209 : vector<1x1x32x32xf32> to vector<32x32xf32>
    %cst_93 = arith.constant dense<0.000000e+00> : vector<64x32xf32>
    %211 = tpu.matmul %208, %210, %cst_93 {dimension_numbers = #tpu.dot_dimension_numbers<[1], [0], [0], [1], [0, 0, 1, 1], [], []>} : vector<64x32xf32>, vector<32x32xf32>, vector<64x32xf32> -> vector<64x32xf32>
    %212 = arith.addf %203, %211 : vector<64x32xf32>
    %c1_94 = arith.constant 1 : index
    %c1_95 = arith.constant 1 : index
    %c0_96 = arith.constant 0 : index
    %c0_97 = arith.constant 0 : index
    %213 = vector.load %arg13[%c1_94, %c1_95, %c0_96, %c0_97] : memref<3x3x32x32xf32, #tpu.memory_space<vmem>>, vector<1x1x32x32xf32>
    %214 = vector.shape_cast %213 : vector<1x1x32x32xf32> to vector<32x32xf32>
    %cst_98 = arith.constant dense<0.000000e+00> : vector<64x32xf32>
    %215 = tpu.matmul %1, %214, %cst_98 {dimension_numbers = #tpu.dot_dimension_numbers<[1], [0], [0], [1], [0, 0, 1, 1], [], []>} : vector<64x32xf32>, vector<32x32xf32>, vector<64x32xf32> -> vector<64x32xf32>
    %216 = arith.addf %212, %215 : vector<64x32xf32>
    %217 = vector.extract_strided_slice %1 {offsets = [1, 0], sizes = [63, 32], strides = [1, 1]} : vector<64x32xf32> to vector<63x32xf32>
    %cst_99 = arith.constant 0.000000e+00 : f32
    %218 = vector.broadcast %cst_99 : f32 to vector<1x32xf32>
    %219 = tpu.concatenate %217, %218 in 0 : vector<63x32xf32>, vector<1x32xf32> -> vector<64x32xf32>
    %cst_100 = arith.constant 0.000000e+00 : f32
    %220 = vector.broadcast %cst_100 : f32 to vector<64x32xf32>
    %221 = arith.select %22, %219, %220 : vector<64x32xi1>, vector<64x32xf32>
    %c1_101 = arith.constant 1 : index
    %c2_102 = arith.constant 2 : index
    %c0_103 = arith.constant 0 : index
    %c0_104 = arith.constant 0 : index
    %222 = vector.load %arg13[%c1_101, %c2_102, %c0_103, %c0_104] : memref<3x3x32x32xf32, #tpu.memory_space<vmem>>, vector<1x1x32x32xf32>
    %223 = vector.shape_cast %222 : vector<1x1x32x32xf32> to vector<32x32xf32>
    %cst_105 = arith.constant dense<0.000000e+00> : vector<64x32xf32>
    %224 = tpu.matmul %221, %223, %cst_105 {dimension_numbers = #tpu.dot_dimension_numbers<[1], [0], [0], [1], [0, 0, 1, 1], [], []>} : vector<64x32xf32>, vector<32x32xf32>, vector<64x32xf32> -> vector<64x32xf32>
    %225 = arith.addf %216, %224 : vector<64x32xf32>
    %226 = vector.extract_strided_slice %1 {offsets = [7, 0], sizes = [57, 32], strides = [1, 1]} : vector<64x32xf32> to vector<57x32xf32>
    %cst_106 = arith.constant 0.000000e+00 : f32
    %227 = vector.broadcast %cst_106 : f32 to vector<7x32xf32>
    %228 = tpu.concatenate %226, %227 in 0 : vector<57x32xf32>, vector<7x32xf32> -> vector<64x32xf32>
    %cst_107 = arith.constant 0.000000e+00 : f32
    %229 = vector.broadcast %cst_107 : f32 to vector<64x32xf32>
    %230 = arith.select %20, %228, %229 : vector<64x32xi1>, vector<64x32xf32>
    %c2_108 = arith.constant 2 : index
    %c0_109 = arith.constant 0 : index
    %c0_110 = arith.constant 0 : index
    %c0_111 = arith.constant 0 : index
    %231 = vector.load %arg13[%c2_108, %c0_109, %c0_110, %c0_111] : memref<3x3x32x32xf32, #tpu.memory_space<vmem>>, vector<1x1x32x32xf32>
    %232 = vector.shape_cast %231 : vector<1x1x32x32xf32> to vector<32x32xf32>
    %cst_112 = arith.constant dense<0.000000e+00> : vector<64x32xf32>
    %233 = tpu.matmul %230, %232, %cst_112 {dimension_numbers = #tpu.dot_dimension_numbers<[1], [0], [0], [1], [0, 0, 1, 1], [], []>} : vector<64x32xf32>, vector<32x32xf32>, vector<64x32xf32> -> vector<64x32xf32>
    %234 = arith.addf %225, %233 : vector<64x32xf32>
    %235 = vector.extract_strided_slice %1 {offsets = [8, 0], sizes = [56, 32], strides = [1, 1]} : vector<64x32xf32> to vector<56x32xf32>
    %cst_113 = arith.constant 0.000000e+00 : f32
    %236 = vector.broadcast %cst_113 : f32 to vector<8x32xf32>
    %237 = tpu.concatenate %235, %236 in 0 : vector<56x32xf32>, vector<8x32xf32> -> vector<64x32xf32>
    %c2_114 = arith.constant 2 : index
    %c1_115 = arith.constant 1 : index
    %c0_116 = arith.constant 0 : index
    %c0_117 = arith.constant 0 : index
    %238 = vector.load %arg13[%c2_114, %c1_115, %c0_116, %c0_117] : memref<3x3x32x32xf32, #tpu.memory_space<vmem>>, vector<1x1x32x32xf32>
    %239 = vector.shape_cast %238 : vector<1x1x32x32xf32> to vector<32x32xf32>
    %cst_118 = arith.constant dense<0.000000e+00> : vector<64x32xf32>
    %240 = tpu.matmul %237, %239, %cst_118 {dimension_numbers = #tpu.dot_dimension_numbers<[1], [0], [0], [1], [0, 0, 1, 1], [], []>} : vector<64x32xf32>, vector<32x32xf32>, vector<64x32xf32> -> vector<64x32xf32>
    %241 = arith.addf %234, %240 : vector<64x32xf32>
    %242 = vector.extract_strided_slice %1 {offsets = [9, 0], sizes = [55, 32], strides = [1, 1]} : vector<64x32xf32> to vector<55x32xf32>
    %cst_119 = arith.constant 0.000000e+00 : f32
    %243 = vector.broadcast %cst_119 : f32 to vector<9x32xf32>
    %244 = tpu.concatenate %242, %243 in 0 : vector<55x32xf32>, vector<9x32xf32> -> vector<64x32xf32>
    %cst_120 = arith.constant 0.000000e+00 : f32
    %245 = vector.broadcast %cst_120 : f32 to vector<64x32xf32>
    %246 = arith.select %22, %244, %245 : vector<64x32xi1>, vector<64x32xf32>
    %c2_121 = arith.constant 2 : index
    %c2_122 = arith.constant 2 : index
    %c0_123 = arith.constant 0 : index
    %c0_124 = arith.constant 0 : index
    %247 = vector.load %arg13[%c2_121, %c2_122, %c0_123, %c0_124] : memref<3x3x32x32xf32, #tpu.memory_space<vmem>>, vector<1x1x32x32xf32>
    %248 = vector.shape_cast %247 : vector<1x1x32x32xf32> to vector<32x32xf32>
    %cst_125 = arith.constant dense<0.000000e+00> : vector<64x32xf32>
    %249 = tpu.matmul %246, %248, %cst_125 {dimension_numbers = #tpu.dot_dimension_numbers<[1], [0], [0], [1], [0, 0, 1, 1], [], []>} : vector<64x32xf32>, vector<32x32xf32>, vector<64x32xf32> -> vector<64x32xf32>
    %250 = arith.addf %241, %249 : vector<64x32xf32>
    %c0_126 = arith.constant 0 : index
    %c0_127 = arith.constant 0 : index
    %251 = vector.load %arg14[%c0_126, %c0_127] : memref<1x32xf32, #tpu.memory_space<vmem>>, vector<1x32xf32>
    %252 = vector.broadcast %251 : vector<1x32xf32> to vector<64x32xf32>
    %253 = arith.addf %250, %252 : vector<64x32xf32>
    %cst_128 = arith.constant 0.000000e+00 : f32
    %254 = vector.broadcast %cst_128 : f32 to vector<64x32xf32>
    %255 = arith.maximumf %253, %254 : vector<64x32xf32>
    %cst_129 = arith.constant 0.000000e+00 : f32
    %256 = vector.broadcast %cst_129 : f32 to vector<64x32xf32>
    %cst_130 = arith.constant 0.000000e+00 : f32
    %257 = vector.broadcast %cst_130 : f32 to vector<9x32xf32>
    %258 = vector.extract_strided_slice %255 {offsets = [0, 0], sizes = [55, 32], strides = [1, 1]} : vector<64x32xf32> to vector<55x32xf32>
    %259 = tpu.concatenate %257, %258 in 0 : vector<9x32xf32>, vector<55x32xf32> -> vector<64x32xf32>
    %cst_131 = arith.constant 0.000000e+00 : f32
    %260 = vector.broadcast %cst_131 : f32 to vector<64x32xf32>
    %261 = arith.select %20, %259, %260 : vector<64x32xi1>, vector<64x32xf32>
    %c0_132 = arith.constant 0 : index
    %c0_133 = arith.constant 0 : index
    %c0_134 = arith.constant 0 : index
    %c0_135 = arith.constant 0 : index
    %262 = vector.load %arg15[%c0_132, %c0_133, %c0_134, %c0_135] : memref<3x3x32x32xf32, #tpu.memory_space<vmem>>, vector<1x1x32x32xf32>
    %263 = vector.shape_cast %262 : vector<1x1x32x32xf32> to vector<32x32xf32>
    %cst_136 = arith.constant dense<0.000000e+00> : vector<64x32xf32>
    %264 = tpu.matmul %261, %263, %cst_136 {dimension_numbers = #tpu.dot_dimension_numbers<[1], [0], [0], [1], [0, 0, 1, 1], [], []>} : vector<64x32xf32>, vector<32x32xf32>, vector<64x32xf32> -> vector<64x32xf32>
    %265 = arith.addf %256, %264 : vector<64x32xf32>
    %cst_137 = arith.constant 0.000000e+00 : f32
    %266 = vector.broadcast %cst_137 : f32 to vector<8x32xf32>
    %267 = vector.extract_strided_slice %255 {offsets = [0, 0], sizes = [56, 32], strides = [1, 1]} : vector<64x32xf32> to vector<56x32xf32>
    %268 = tpu.concatenate %266, %267 in 0 : vector<8x32xf32>, vector<56x32xf32> -> vector<64x32xf32>
    %c0_138 = arith.constant 0 : index
    %c1_139 = arith.constant 1 : index
    %c0_140 = arith.constant 0 : index
    %c0_141 = arith.constant 0 : index
    %269 = vector.load %arg15[%c0_138, %c1_139, %c0_140, %c0_141] : memref<3x3x32x32xf32, #tpu.memory_space<vmem>>, vector<1x1x32x32xf32>
    %270 = vector.shape_cast %269 : vector<1x1x32x32xf32> to vector<32x32xf32>
    %cst_142 = arith.constant dense<0.000000e+00> : vector<64x32xf32>
    %271 = tpu.matmul %268, %270, %cst_142 {dimension_numbers = #tpu.dot_dimension_numbers<[1], [0], [0], [1], [0, 0, 1, 1], [], []>} : vector<64x32xf32>, vector<32x32xf32>, vector<64x32xf32> -> vector<64x32xf32>
    %272 = arith.addf %265, %271 : vector<64x32xf32>
    %cst_143 = arith.constant 0.000000e+00 : f32
    %273 = vector.broadcast %cst_143 : f32 to vector<7x32xf32>
    %274 = vector.extract_strided_slice %255 {offsets = [0, 0], sizes = [57, 32], strides = [1, 1]} : vector<64x32xf32> to vector<57x32xf32>
    %275 = tpu.concatenate %273, %274 in 0 : vector<7x32xf32>, vector<57x32xf32> -> vector<64x32xf32>
    %cst_144 = arith.constant 0.000000e+00 : f32
    %276 = vector.broadcast %cst_144 : f32 to vector<64x32xf32>
    %277 = arith.select %22, %275, %276 : vector<64x32xi1>, vector<64x32xf32>
    %c0_145 = arith.constant 0 : index
    %c2_146 = arith.constant 2 : index
    %c0_147 = arith.constant 0 : index
    %c0_148 = arith.constant 0 : index
    %278 = vector.load %arg15[%c0_145, %c2_146, %c0_147, %c0_148] : memref<3x3x32x32xf32, #tpu.memory_space<vmem>>, vector<1x1x32x32xf32>
    %279 = vector.shape_cast %278 : vector<1x1x32x32xf32> to vector<32x32xf32>
    %cst_149 = arith.constant dense<0.000000e+00> : vector<64x32xf32>
    %280 = tpu.matmul %277, %279, %cst_149 {dimension_numbers = #tpu.dot_dimension_numbers<[1], [0], [0], [1], [0, 0, 1, 1], [], []>} : vector<64x32xf32>, vector<32x32xf32>, vector<64x32xf32> -> vector<64x32xf32>
    %281 = arith.addf %272, %280 : vector<64x32xf32>
    %cst_150 = arith.constant 0.000000e+00 : f32
    %282 = vector.broadcast %cst_150 : f32 to vector<1x32xf32>
    %283 = vector.extract_strided_slice %255 {offsets = [0, 0], sizes = [63, 32], strides = [1, 1]} : vector<64x32xf32> to vector<63x32xf32>
    %284 = tpu.concatenate %282, %283 in 0 : vector<1x32xf32>, vector<63x32xf32> -> vector<64x32xf32>
    %cst_151 = arith.constant 0.000000e+00 : f32
    %285 = vector.broadcast %cst_151 : f32 to vector<64x32xf32>
    %286 = arith.select %20, %284, %285 : vector<64x32xi1>, vector<64x32xf32>
    %c1_152 = arith.constant 1 : index
    %c0_153 = arith.constant 0 : index
    %c0_154 = arith.constant 0 : index
    %c0_155 = arith.constant 0 : index
    %287 = vector.load %arg15[%c1_152, %c0_153, %c0_154, %c0_155] : memref<3x3x32x32xf32, #tpu.memory_space<vmem>>, vector<1x1x32x32xf32>
    %288 = vector.shape_cast %287 : vector<1x1x32x32xf32> to vector<32x32xf32>
    %cst_156 = arith.constant dense<0.000000e+00> : vector<64x32xf32>
    %289 = tpu.matmul %286, %288, %cst_156 {dimension_numbers = #tpu.dot_dimension_numbers<[1], [0], [0], [1], [0, 0, 1, 1], [], []>} : vector<64x32xf32>, vector<32x32xf32>, vector<64x32xf32> -> vector<64x32xf32>
    %290 = arith.addf %281, %289 : vector<64x32xf32>
    %c1_157 = arith.constant 1 : index
    %c1_158 = arith.constant 1 : index
    %c0_159 = arith.constant 0 : index
    %c0_160 = arith.constant 0 : index
    %291 = vector.load %arg15[%c1_157, %c1_158, %c0_159, %c0_160] : memref<3x3x32x32xf32, #tpu.memory_space<vmem>>, vector<1x1x32x32xf32>
    %292 = vector.shape_cast %291 : vector<1x1x32x32xf32> to vector<32x32xf32>
    %cst_161 = arith.constant dense<0.000000e+00> : vector<64x32xf32>
    %293 = tpu.matmul %255, %292, %cst_161 {dimension_numbers = #tpu.dot_dimension_numbers<[1], [0], [0], [1], [0, 0, 1, 1], [], []>} : vector<64x32xf32>, vector<32x32xf32>, vector<64x32xf32> -> vector<64x32xf32>
    %294 = arith.addf %290, %293 : vector<64x32xf32>
    %295 = vector.extract_strided_slice %255 {offsets = [1, 0], sizes = [63, 32], strides = [1, 1]} : vector<64x32xf32> to vector<63x32xf32>
    %cst_162 = arith.constant 0.000000e+00 : f32
    %296 = vector.broadcast %cst_162 : f32 to vector<1x32xf32>
    %297 = tpu.concatenate %295, %296 in 0 : vector<63x32xf32>, vector<1x32xf32> -> vector<64x32xf32>
    %cst_163 = arith.constant 0.000000e+00 : f32
    %298 = vector.broadcast %cst_163 : f32 to vector<64x32xf32>
    %299 = arith.select %22, %297, %298 : vector<64x32xi1>, vector<64x32xf32>
    %c1_164 = arith.constant 1 : index
    %c2_165 = arith.constant 2 : index
    %c0_166 = arith.constant 0 : index
    %c0_167 = arith.constant 0 : index
    %300 = vector.load %arg15[%c1_164, %c2_165, %c0_166, %c0_167] : memref<3x3x32x32xf32, #tpu.memory_space<vmem>>, vector<1x1x32x32xf32>
    %301 = vector.shape_cast %300 : vector<1x1x32x32xf32> to vector<32x32xf32>
    %cst_168 = arith.constant dense<0.000000e+00> : vector<64x32xf32>
    %302 = tpu.matmul %299, %301, %cst_168 {dimension_numbers = #tpu.dot_dimension_numbers<[1], [0], [0], [1], [0, 0, 1, 1], [], []>} : vector<64x32xf32>, vector<32x32xf32>, vector<64x32xf32> -> vector<64x32xf32>
    %303 = arith.addf %294, %302 : vector<64x32xf32>
    %304 = vector.extract_strided_slice %255 {offsets = [7, 0], sizes = [57, 32], strides = [1, 1]} : vector<64x32xf32> to vector<57x32xf32>
    %cst_169 = arith.constant 0.000000e+00 : f32
    %305 = vector.broadcast %cst_169 : f32 to vector<7x32xf32>
    %306 = tpu.concatenate %304, %305 in 0 : vector<57x32xf32>, vector<7x32xf32> -> vector<64x32xf32>
    %cst_170 = arith.constant 0.000000e+00 : f32
    %307 = vector.broadcast %cst_170 : f32 to vector<64x32xf32>
    %308 = arith.select %20, %306, %307 : vector<64x32xi1>, vector<64x32xf32>
    %c2_171 = arith.constant 2 : index
    %c0_172 = arith.constant 0 : index
    %c0_173 = arith.constant 0 : index
    %c0_174 = arith.constant 0 : index
    %309 = vector.load %arg15[%c2_171, %c0_172, %c0_173, %c0_174] : memref<3x3x32x32xf32, #tpu.memory_space<vmem>>, vector<1x1x32x32xf32>
    %310 = vector.shape_cast %309 : vector<1x1x32x32xf32> to vector<32x32xf32>
    %cst_175 = arith.constant dense<0.000000e+00> : vector<64x32xf32>
    %311 = tpu.matmul %308, %310, %cst_175 {dimension_numbers = #tpu.dot_dimension_numbers<[1], [0], [0], [1], [0, 0, 1, 1], [], []>} : vector<64x32xf32>, vector<32x32xf32>, vector<64x32xf32> -> vector<64x32xf32>
    %312 = arith.addf %303, %311 : vector<64x32xf32>
    %313 = vector.extract_strided_slice %255 {offsets = [8, 0], sizes = [56, 32], strides = [1, 1]} : vector<64x32xf32> to vector<56x32xf32>
    %cst_176 = arith.constant 0.000000e+00 : f32
    %314 = vector.broadcast %cst_176 : f32 to vector<8x32xf32>
    %315 = tpu.concatenate %313, %314 in 0 : vector<56x32xf32>, vector<8x32xf32> -> vector<64x32xf32>
    %c2_177 = arith.constant 2 : index
    %c1_178 = arith.constant 1 : index
    %c0_179 = arith.constant 0 : index
    %c0_180 = arith.constant 0 : index
    %316 = vector.load %arg15[%c2_177, %c1_178, %c0_179, %c0_180] : memref<3x3x32x32xf32, #tpu.memory_space<vmem>>, vector<1x1x32x32xf32>
    %317 = vector.shape_cast %316 : vector<1x1x32x32xf32> to vector<32x32xf32>
    %cst_181 = arith.constant dense<0.000000e+00> : vector<64x32xf32>
    %318 = tpu.matmul %315, %317, %cst_181 {dimension_numbers = #tpu.dot_dimension_numbers<[1], [0], [0], [1], [0, 0, 1, 1], [], []>} : vector<64x32xf32>, vector<32x32xf32>, vector<64x32xf32> -> vector<64x32xf32>
    %319 = arith.addf %312, %318 : vector<64x32xf32>
    %320 = vector.extract_strided_slice %255 {offsets = [9, 0], sizes = [55, 32], strides = [1, 1]} : vector<64x32xf32> to vector<55x32xf32>
    %cst_182 = arith.constant 0.000000e+00 : f32
    %321 = vector.broadcast %cst_182 : f32 to vector<9x32xf32>
    %322 = tpu.concatenate %320, %321 in 0 : vector<55x32xf32>, vector<9x32xf32> -> vector<64x32xf32>
    %cst_183 = arith.constant 0.000000e+00 : f32
    %323 = vector.broadcast %cst_183 : f32 to vector<64x32xf32>
    %324 = arith.select %22, %322, %323 : vector<64x32xi1>, vector<64x32xf32>
    %c2_184 = arith.constant 2 : index
    %c2_185 = arith.constant 2 : index
    %c0_186 = arith.constant 0 : index
    %c0_187 = arith.constant 0 : index
    %325 = vector.load %arg15[%c2_184, %c2_185, %c0_186, %c0_187] : memref<3x3x32x32xf32, #tpu.memory_space<vmem>>, vector<1x1x32x32xf32>
    %326 = vector.shape_cast %325 : vector<1x1x32x32xf32> to vector<32x32xf32>
    %cst_188 = arith.constant dense<0.000000e+00> : vector<64x32xf32>
    %327 = tpu.matmul %324, %326, %cst_188 {dimension_numbers = #tpu.dot_dimension_numbers<[1], [0], [0], [1], [0, 0, 1, 1], [], []>} : vector<64x32xf32>, vector<32x32xf32>, vector<64x32xf32> -> vector<64x32xf32>
    %328 = arith.addf %319, %327 : vector<64x32xf32>
    %c0_189 = arith.constant 0 : index
    %c0_190 = arith.constant 0 : index
    %329 = vector.load %arg16[%c0_189, %c0_190] : memref<1x32xf32, #tpu.memory_space<vmem>>, vector<1x32xf32>
    %330 = vector.broadcast %329 : vector<1x32xf32> to vector<64x32xf32>
    %331 = arith.addf %328, %330 : vector<64x32xf32>
    %cst_191 = arith.constant dense<0.000000e+00> : vector<32xf32>
    %332 = vector.multi_reduction <add>, %331, %cst_191 [0] : vector<64x32xf32> to vector<32xf32>
    %333 = vector.shape_cast %332 : vector<32xf32> to vector<1x32xf32>
    %cst_192 = arith.constant 6.400000e+01 : f32
    %334 = vector.broadcast %cst_192 : f32 to vector<1x32xf32>
    %335 = arith.divf %333, %334 : vector<1x32xf32>
    %c0_193 = arith.constant 0 : index
    %c0_194 = arith.constant 0 : index
    %336 = vector.load %arg17[%c0_193, %c0_194] : memref<32x2xf32, #tpu.memory_space<vmem>>, vector<32x2xf32>
    %cst_195 = arith.constant dense<0.000000e+00> : vector<1x2xf32>
    %337 = tpu.matmul %335, %336, %cst_195 {dimension_numbers = #tpu.dot_dimension_numbers<[1], [0], [0], [1], [0, 0, 1, 1], [], []>} : vector<1x32xf32>, vector<32x2xf32>, vector<1x2xf32> -> vector<1x2xf32>
    %c0_196 = arith.constant 0 : index
    %c0_197 = arith.constant 0 : index
    %338 = vector.load %arg18[%c0_196, %c0_197] : memref<1x2xf32, #tpu.memory_space<vmem>>, vector<1x2xf32>
    %339 = arith.addf %337, %338 : vector<1x2xf32>
    %cst_198 = arith.constant 0.000000e+00 : f32
    %340 = vector.broadcast %cst_198 : f32 to vector<1x2xf32>
    %341 = arith.maximumf %339, %340 : vector<1x2xf32>
    %c0_199 = arith.constant 0 : index
    %c0_200 = arith.constant 0 : index
    %342 = vector.load %arg19[%c0_199, %c0_200] : memref<2x32xf32, #tpu.memory_space<vmem>>, vector<2x32xf32>
    %cst_201 = arith.constant dense<0.000000e+00> : vector<1x32xf32>
    %343 = tpu.matmul %341, %342, %cst_201 {dimension_numbers = #tpu.dot_dimension_numbers<[1], [0], [0], [1], [0, 0, 1, 1], [], []>} : vector<1x2xf32>, vector<2x32xf32>, vector<1x32xf32> -> vector<1x32xf32>
    %c0_202 = arith.constant 0 : index
    %c0_203 = arith.constant 0 : index
    %344 = vector.load %arg20[%c0_202, %c0_203] : memref<1x32xf32, #tpu.memory_space<vmem>>, vector<1x32xf32>
    %345 = arith.addf %343, %344 : vector<1x32xf32>
    %346 = arith.negf %345 : vector<1x32xf32>
    %347 = math.exp %346 : vector<1x32xf32>
    %cst_204 = arith.constant 1.000000e+00 : f32
    %348 = vector.broadcast %cst_204 : f32 to vector<1x32xf32>
    %349 = arith.addf %348, %347 : vector<1x32xf32>
    %350 = arith.divf %348, %349 : vector<1x32xf32>
    %351 = vector.broadcast %350 : vector<1x32xf32> to vector<64x32xf32>
    %352 = arith.mulf %331, %351 : vector<64x32xf32>
    %353 = arith.addf %352, %1 : vector<64x32xf32>
    %cst_205 = arith.constant 0.000000e+00 : f32
    %354 = vector.broadcast %cst_205 : f32 to vector<64x32xf32>
    %355 = arith.maximumf %353, %354 : vector<64x32xf32>
    %cst_206 = arith.constant 0.000000e+00 : f32
    %356 = vector.broadcast %cst_206 : f32 to vector<64x32xf32>
    %cst_207 = arith.constant 0.000000e+00 : f32
    %357 = vector.broadcast %cst_207 : f32 to vector<9x32xf32>
    %358 = vector.extract_strided_slice %177 {offsets = [0, 0], sizes = [55, 32], strides = [1, 1]} : vector<64x32xf32> to vector<55x32xf32>
    %359 = tpu.concatenate %357, %358 in 0 : vector<9x32xf32>, vector<55x32xf32> -> vector<64x32xf32>
    %cst_208 = arith.constant 0.000000e+00 : f32
    %360 = vector.broadcast %cst_208 : f32 to vector<64x32xf32>
    %361 = arith.select %20, %359, %360 : vector<64x32xi1>, vector<64x32xf32>
    %c0_209 = arith.constant 0 : index
    %c0_210 = arith.constant 0 : index
    %c0_211 = arith.constant 0 : index
    %c0_212 = arith.constant 0 : index
    %362 = vector.load %arg21[%c0_209, %c0_210, %c0_211, %c0_212] : memref<3x3x32x32xf32, #tpu.memory_space<vmem>>, vector<1x1x32x32xf32>
    %363 = vector.shape_cast %362 : vector<1x1x32x32xf32> to vector<32x32xf32>
    %cst_213 = arith.constant dense<0.000000e+00> : vector<64x32xf32>
    %364 = tpu.matmul %361, %363, %cst_213 {dimension_numbers = #tpu.dot_dimension_numbers<[1], [0], [0], [1], [0, 0, 1, 1], [], []>} : vector<64x32xf32>, vector<32x32xf32>, vector<64x32xf32> -> vector<64x32xf32>
    %365 = arith.addf %356, %364 : vector<64x32xf32>
    %cst_214 = arith.constant 0.000000e+00 : f32
    %366 = vector.broadcast %cst_214 : f32 to vector<8x32xf32>
    %367 = vector.extract_strided_slice %177 {offsets = [0, 0], sizes = [56, 32], strides = [1, 1]} : vector<64x32xf32> to vector<56x32xf32>
    %368 = tpu.concatenate %366, %367 in 0 : vector<8x32xf32>, vector<56x32xf32> -> vector<64x32xf32>
    %c0_215 = arith.constant 0 : index
    %c1_216 = arith.constant 1 : index
    %c0_217 = arith.constant 0 : index
    %c0_218 = arith.constant 0 : index
    %369 = vector.load %arg21[%c0_215, %c1_216, %c0_217, %c0_218] : memref<3x3x32x32xf32, #tpu.memory_space<vmem>>, vector<1x1x32x32xf32>
    %370 = vector.shape_cast %369 : vector<1x1x32x32xf32> to vector<32x32xf32>
    %cst_219 = arith.constant dense<0.000000e+00> : vector<64x32xf32>
    %371 = tpu.matmul %368, %370, %cst_219 {dimension_numbers = #tpu.dot_dimension_numbers<[1], [0], [0], [1], [0, 0, 1, 1], [], []>} : vector<64x32xf32>, vector<32x32xf32>, vector<64x32xf32> -> vector<64x32xf32>
    %372 = arith.addf %365, %371 : vector<64x32xf32>
    %cst_220 = arith.constant 0.000000e+00 : f32
    %373 = vector.broadcast %cst_220 : f32 to vector<7x32xf32>
    %374 = vector.extract_strided_slice %177 {offsets = [0, 0], sizes = [57, 32], strides = [1, 1]} : vector<64x32xf32> to vector<57x32xf32>
    %375 = tpu.concatenate %373, %374 in 0 : vector<7x32xf32>, vector<57x32xf32> -> vector<64x32xf32>
    %cst_221 = arith.constant 0.000000e+00 : f32
    %376 = vector.broadcast %cst_221 : f32 to vector<64x32xf32>
    %377 = arith.select %22, %375, %376 : vector<64x32xi1>, vector<64x32xf32>
    %c0_222 = arith.constant 0 : index
    %c2_223 = arith.constant 2 : index
    %c0_224 = arith.constant 0 : index
    %c0_225 = arith.constant 0 : index
    %378 = vector.load %arg21[%c0_222, %c2_223, %c0_224, %c0_225] : memref<3x3x32x32xf32, #tpu.memory_space<vmem>>, vector<1x1x32x32xf32>
    %379 = vector.shape_cast %378 : vector<1x1x32x32xf32> to vector<32x32xf32>
    %cst_226 = arith.constant dense<0.000000e+00> : vector<64x32xf32>
    %380 = tpu.matmul %377, %379, %cst_226 {dimension_numbers = #tpu.dot_dimension_numbers<[1], [0], [0], [1], [0, 0, 1, 1], [], []>} : vector<64x32xf32>, vector<32x32xf32>, vector<64x32xf32> -> vector<64x32xf32>
    %381 = arith.addf %372, %380 : vector<64x32xf32>
    %cst_227 = arith.constant 0.000000e+00 : f32
    %382 = vector.broadcast %cst_227 : f32 to vector<1x32xf32>
    %383 = vector.extract_strided_slice %177 {offsets = [0, 0], sizes = [63, 32], strides = [1, 1]} : vector<64x32xf32> to vector<63x32xf32>
    %384 = tpu.concatenate %382, %383 in 0 : vector<1x32xf32>, vector<63x32xf32> -> vector<64x32xf32>
    %cst_228 = arith.constant 0.000000e+00 : f32
    %385 = vector.broadcast %cst_228 : f32 to vector<64x32xf32>
    %386 = arith.select %20, %384, %385 : vector<64x32xi1>, vector<64x32xf32>
    %c1_229 = arith.constant 1 : index
    %c0_230 = arith.constant 0 : index
    %c0_231 = arith.constant 0 : index
    %c0_232 = arith.constant 0 : index
    %387 = vector.load %arg21[%c1_229, %c0_230, %c0_231, %c0_232] : memref<3x3x32x32xf32, #tpu.memory_space<vmem>>, vector<1x1x32x32xf32>
    %388 = vector.shape_cast %387 : vector<1x1x32x32xf32> to vector<32x32xf32>
    %cst_233 = arith.constant dense<0.000000e+00> : vector<64x32xf32>
    %389 = tpu.matmul %386, %388, %cst_233 {dimension_numbers = #tpu.dot_dimension_numbers<[1], [0], [0], [1], [0, 0, 1, 1], [], []>} : vector<64x32xf32>, vector<32x32xf32>, vector<64x32xf32> -> vector<64x32xf32>
    %390 = arith.addf %381, %389 : vector<64x32xf32>
    %c1_234 = arith.constant 1 : index
    %c1_235 = arith.constant 1 : index
    %c0_236 = arith.constant 0 : index
    %c0_237 = arith.constant 0 : index
    %391 = vector.load %arg21[%c1_234, %c1_235, %c0_236, %c0_237] : memref<3x3x32x32xf32, #tpu.memory_space<vmem>>, vector<1x1x32x32xf32>
    %392 = vector.shape_cast %391 : vector<1x1x32x32xf32> to vector<32x32xf32>
    %cst_238 = arith.constant dense<0.000000e+00> : vector<64x32xf32>
    %393 = tpu.matmul %177, %392, %cst_238 {dimension_numbers = #tpu.dot_dimension_numbers<[1], [0], [0], [1], [0, 0, 1, 1], [], []>} : vector<64x32xf32>, vector<32x32xf32>, vector<64x32xf32> -> vector<64x32xf32>
    %394 = arith.addf %390, %393 : vector<64x32xf32>
    %395 = vector.extract_strided_slice %177 {offsets = [1, 0], sizes = [63, 32], strides = [1, 1]} : vector<64x32xf32> to vector<63x32xf32>
    %cst_239 = arith.constant 0.000000e+00 : f32
    %396 = vector.broadcast %cst_239 : f32 to vector<1x32xf32>
    %397 = tpu.concatenate %395, %396 in 0 : vector<63x32xf32>, vector<1x32xf32> -> vector<64x32xf32>
    %cst_240 = arith.constant 0.000000e+00 : f32
    %398 = vector.broadcast %cst_240 : f32 to vector<64x32xf32>
    %399 = arith.select %22, %397, %398 : vector<64x32xi1>, vector<64x32xf32>
    %c1_241 = arith.constant 1 : index
    %c2_242 = arith.constant 2 : index
    %c0_243 = arith.constant 0 : index
    %c0_244 = arith.constant 0 : index
    %400 = vector.load %arg21[%c1_241, %c2_242, %c0_243, %c0_244] : memref<3x3x32x32xf32, #tpu.memory_space<vmem>>, vector<1x1x32x32xf32>
    %401 = vector.shape_cast %400 : vector<1x1x32x32xf32> to vector<32x32xf32>
    %cst_245 = arith.constant dense<0.000000e+00> : vector<64x32xf32>
    %402 = tpu.matmul %399, %401, %cst_245 {dimension_numbers = #tpu.dot_dimension_numbers<[1], [0], [0], [1], [0, 0, 1, 1], [], []>} : vector<64x32xf32>, vector<32x32xf32>, vector<64x32xf32> -> vector<64x32xf32>
    %403 = arith.addf %394, %402 : vector<64x32xf32>
    %404 = vector.extract_strided_slice %177 {offsets = [7, 0], sizes = [57, 32], strides = [1, 1]} : vector<64x32xf32> to vector<57x32xf32>
    %cst_246 = arith.constant 0.000000e+00 : f32
    %405 = vector.broadcast %cst_246 : f32 to vector<7x32xf32>
    %406 = tpu.concatenate %404, %405 in 0 : vector<57x32xf32>, vector<7x32xf32> -> vector<64x32xf32>
    %cst_247 = arith.constant 0.000000e+00 : f32
    %407 = vector.broadcast %cst_247 : f32 to vector<64x32xf32>
    %408 = arith.select %20, %406, %407 : vector<64x32xi1>, vector<64x32xf32>
    %c2_248 = arith.constant 2 : index
    %c0_249 = arith.constant 0 : index
    %c0_250 = arith.constant 0 : index
    %c0_251 = arith.constant 0 : index
    %409 = vector.load %arg21[%c2_248, %c0_249, %c0_250, %c0_251] : memref<3x3x32x32xf32, #tpu.memory_space<vmem>>, vector<1x1x32x32xf32>
    %410 = vector.shape_cast %409 : vector<1x1x32x32xf32> to vector<32x32xf32>
    %cst_252 = arith.constant dense<0.000000e+00> : vector<64x32xf32>
    %411 = tpu.matmul %408, %410, %cst_252 {dimension_numbers = #tpu.dot_dimension_numbers<[1], [0], [0], [1], [0, 0, 1, 1], [], []>} : vector<64x32xf32>, vector<32x32xf32>, vector<64x32xf32> -> vector<64x32xf32>
    %412 = arith.addf %403, %411 : vector<64x32xf32>
    %413 = vector.extract_strided_slice %177 {offsets = [8, 0], sizes = [56, 32], strides = [1, 1]} : vector<64x32xf32> to vector<56x32xf32>
    %cst_253 = arith.constant 0.000000e+00 : f32
    %414 = vector.broadcast %cst_253 : f32 to vector<8x32xf32>
    %415 = tpu.concatenate %413, %414 in 0 : vector<56x32xf32>, vector<8x32xf32> -> vector<64x32xf32>
    %c2_254 = arith.constant 2 : index
    %c1_255 = arith.constant 1 : index
    %c0_256 = arith.constant 0 : index
    %c0_257 = arith.constant 0 : index
    %416 = vector.load %arg21[%c2_254, %c1_255, %c0_256, %c0_257] : memref<3x3x32x32xf32, #tpu.memory_space<vmem>>, vector<1x1x32x32xf32>
    %417 = vector.shape_cast %416 : vector<1x1x32x32xf32> to vector<32x32xf32>
    %cst_258 = arith.constant dense<0.000000e+00> : vector<64x32xf32>
    %418 = tpu.matmul %415, %417, %cst_258 {dimension_numbers = #tpu.dot_dimension_numbers<[1], [0], [0], [1], [0, 0, 1, 1], [], []>} : vector<64x32xf32>, vector<32x32xf32>, vector<64x32xf32> -> vector<64x32xf32>
    %419 = arith.addf %412, %418 : vector<64x32xf32>
    %420 = vector.extract_strided_slice %177 {offsets = [9, 0], sizes = [55, 32], strides = [1, 1]} : vector<64x32xf32> to vector<55x32xf32>
    %cst_259 = arith.constant 0.000000e+00 : f32
    %421 = vector.broadcast %cst_259 : f32 to vector<9x32xf32>
    %422 = tpu.concatenate %420, %421 in 0 : vector<55x32xf32>, vector<9x32xf32> -> vector<64x32xf32>
    %cst_260 = arith.constant 0.000000e+00 : f32
    %423 = vector.broadcast %cst_260 : f32 to vector<64x32xf32>
    %424 = arith.select %22, %422, %423 : vector<64x32xi1>, vector<64x32xf32>
    %c2_261 = arith.constant 2 : index
    %c2_262 = arith.constant 2 : index
    %c0_263 = arith.constant 0 : index
    %c0_264 = arith.constant 0 : index
    %425 = vector.load %arg21[%c2_261, %c2_262, %c0_263, %c0_264] : memref<3x3x32x32xf32, #tpu.memory_space<vmem>>, vector<1x1x32x32xf32>
    %426 = vector.shape_cast %425 : vector<1x1x32x32xf32> to vector<32x32xf32>
    %cst_265 = arith.constant dense<0.000000e+00> : vector<64x32xf32>
    %427 = tpu.matmul %424, %426, %cst_265 {dimension_numbers = #tpu.dot_dimension_numbers<[1], [0], [0], [1], [0, 0, 1, 1], [], []>} : vector<64x32xf32>, vector<32x32xf32>, vector<64x32xf32> -> vector<64x32xf32>
    %428 = arith.addf %419, %427 : vector<64x32xf32>
    %cst_266 = arith.constant 0.000000e+00 : f32
    %429 = vector.broadcast %cst_266 : f32 to vector<64x32xf32>
    %cst_267 = arith.constant 0.000000e+00 : f32
    %430 = vector.broadcast %cst_267 : f32 to vector<9x32xf32>
    %431 = vector.extract_strided_slice %355 {offsets = [0, 0], sizes = [55, 32], strides = [1, 1]} : vector<64x32xf32> to vector<55x32xf32>
    %432 = tpu.concatenate %430, %431 in 0 : vector<9x32xf32>, vector<55x32xf32> -> vector<64x32xf32>
    %cst_268 = arith.constant 0.000000e+00 : f32
    %433 = vector.broadcast %cst_268 : f32 to vector<64x32xf32>
    %434 = arith.select %20, %432, %433 : vector<64x32xi1>, vector<64x32xf32>
    %c0_269 = arith.constant 0 : index
    %c0_270 = arith.constant 0 : index
    %c0_271 = arith.constant 0 : index
    %c0_272 = arith.constant 0 : index
    %435 = vector.load %arg22[%c0_269, %c0_270, %c0_271, %c0_272] : memref<3x3x32x32xf32, #tpu.memory_space<vmem>>, vector<1x1x32x32xf32>
    %436 = vector.shape_cast %435 : vector<1x1x32x32xf32> to vector<32x32xf32>
    %cst_273 = arith.constant dense<0.000000e+00> : vector<64x32xf32>
    %437 = tpu.matmul %434, %436, %cst_273 {dimension_numbers = #tpu.dot_dimension_numbers<[1], [0], [0], [1], [0, 0, 1, 1], [], []>} : vector<64x32xf32>, vector<32x32xf32>, vector<64x32xf32> -> vector<64x32xf32>
    %438 = arith.addf %429, %437 : vector<64x32xf32>
    %cst_274 = arith.constant 0.000000e+00 : f32
    %439 = vector.broadcast %cst_274 : f32 to vector<8x32xf32>
    %440 = vector.extract_strided_slice %355 {offsets = [0, 0], sizes = [56, 32], strides = [1, 1]} : vector<64x32xf32> to vector<56x32xf32>
    %441 = tpu.concatenate %439, %440 in 0 : vector<8x32xf32>, vector<56x32xf32> -> vector<64x32xf32>
    %c0_275 = arith.constant 0 : index
    %c1_276 = arith.constant 1 : index
    %c0_277 = arith.constant 0 : index
    %c0_278 = arith.constant 0 : index
    %442 = vector.load %arg22[%c0_275, %c1_276, %c0_277, %c0_278] : memref<3x3x32x32xf32, #tpu.memory_space<vmem>>, vector<1x1x32x32xf32>
    %443 = vector.shape_cast %442 : vector<1x1x32x32xf32> to vector<32x32xf32>
    %cst_279 = arith.constant dense<0.000000e+00> : vector<64x32xf32>
    %444 = tpu.matmul %441, %443, %cst_279 {dimension_numbers = #tpu.dot_dimension_numbers<[1], [0], [0], [1], [0, 0, 1, 1], [], []>} : vector<64x32xf32>, vector<32x32xf32>, vector<64x32xf32> -> vector<64x32xf32>
    %445 = arith.addf %438, %444 : vector<64x32xf32>
    %cst_280 = arith.constant 0.000000e+00 : f32
    %446 = vector.broadcast %cst_280 : f32 to vector<7x32xf32>
    %447 = vector.extract_strided_slice %355 {offsets = [0, 0], sizes = [57, 32], strides = [1, 1]} : vector<64x32xf32> to vector<57x32xf32>
    %448 = tpu.concatenate %446, %447 in 0 : vector<7x32xf32>, vector<57x32xf32> -> vector<64x32xf32>
    %cst_281 = arith.constant 0.000000e+00 : f32
    %449 = vector.broadcast %cst_281 : f32 to vector<64x32xf32>
    %450 = arith.select %22, %448, %449 : vector<64x32xi1>, vector<64x32xf32>
    %c0_282 = arith.constant 0 : index
    %c2_283 = arith.constant 2 : index
    %c0_284 = arith.constant 0 : index
    %c0_285 = arith.constant 0 : index
    %451 = vector.load %arg22[%c0_282, %c2_283, %c0_284, %c0_285] : memref<3x3x32x32xf32, #tpu.memory_space<vmem>>, vector<1x1x32x32xf32>
    %452 = vector.shape_cast %451 : vector<1x1x32x32xf32> to vector<32x32xf32>
    %cst_286 = arith.constant dense<0.000000e+00> : vector<64x32xf32>
    %453 = tpu.matmul %450, %452, %cst_286 {dimension_numbers = #tpu.dot_dimension_numbers<[1], [0], [0], [1], [0, 0, 1, 1], [], []>} : vector<64x32xf32>, vector<32x32xf32>, vector<64x32xf32> -> vector<64x32xf32>
    %454 = arith.addf %445, %453 : vector<64x32xf32>
    %cst_287 = arith.constant 0.000000e+00 : f32
    %455 = vector.broadcast %cst_287 : f32 to vector<1x32xf32>
    %456 = vector.extract_strided_slice %355 {offsets = [0, 0], sizes = [63, 32], strides = [1, 1]} : vector<64x32xf32> to vector<63x32xf32>
    %457 = tpu.concatenate %455, %456 in 0 : vector<1x32xf32>, vector<63x32xf32> -> vector<64x32xf32>
    %cst_288 = arith.constant 0.000000e+00 : f32
    %458 = vector.broadcast %cst_288 : f32 to vector<64x32xf32>
    %459 = arith.select %20, %457, %458 : vector<64x32xi1>, vector<64x32xf32>
    %c1_289 = arith.constant 1 : index
    %c0_290 = arith.constant 0 : index
    %c0_291 = arith.constant 0 : index
    %c0_292 = arith.constant 0 : index
    %460 = vector.load %arg22[%c1_289, %c0_290, %c0_291, %c0_292] : memref<3x3x32x32xf32, #tpu.memory_space<vmem>>, vector<1x1x32x32xf32>
    %461 = vector.shape_cast %460 : vector<1x1x32x32xf32> to vector<32x32xf32>
    %cst_293 = arith.constant dense<0.000000e+00> : vector<64x32xf32>
    %462 = tpu.matmul %459, %461, %cst_293 {dimension_numbers = #tpu.dot_dimension_numbers<[1], [0], [0], [1], [0, 0, 1, 1], [], []>} : vector<64x32xf32>, vector<32x32xf32>, vector<64x32xf32> -> vector<64x32xf32>
    %463 = arith.addf %454, %462 : vector<64x32xf32>
    %c1_294 = arith.constant 1 : index
    %c1_295 = arith.constant 1 : index
    %c0_296 = arith.constant 0 : index
    %c0_297 = arith.constant 0 : index
    %464 = vector.load %arg22[%c1_294, %c1_295, %c0_296, %c0_297] : memref<3x3x32x32xf32, #tpu.memory_space<vmem>>, vector<1x1x32x32xf32>
    %465 = vector.shape_cast %464 : vector<1x1x32x32xf32> to vector<32x32xf32>
    %cst_298 = arith.constant dense<0.000000e+00> : vector<64x32xf32>
    %466 = tpu.matmul %355, %465, %cst_298 {dimension_numbers = #tpu.dot_dimension_numbers<[1], [0], [0], [1], [0, 0, 1, 1], [], []>} : vector<64x32xf32>, vector<32x32xf32>, vector<64x32xf32> -> vector<64x32xf32>
    %467 = arith.addf %463, %466 : vector<64x32xf32>
    %468 = vector.extract_strided_slice %355 {offsets = [1, 0], sizes = [63, 32], strides = [1, 1]} : vector<64x32xf32> to vector<63x32xf32>
    %cst_299 = arith.constant 0.000000e+00 : f32
    %469 = vector.broadcast %cst_299 : f32 to vector<1x32xf32>
    %470 = tpu.concatenate %468, %469 in 0 : vector<63x32xf32>, vector<1x32xf32> -> vector<64x32xf32>
    %cst_300 = arith.constant 0.000000e+00 : f32
    %471 = vector.broadcast %cst_300 : f32 to vector<64x32xf32>
    %472 = arith.select %22, %470, %471 : vector<64x32xi1>, vector<64x32xf32>
    %c1_301 = arith.constant 1 : index
    %c2_302 = arith.constant 2 : index
    %c0_303 = arith.constant 0 : index
    %c0_304 = arith.constant 0 : index
    %473 = vector.load %arg22[%c1_301, %c2_302, %c0_303, %c0_304] : memref<3x3x32x32xf32, #tpu.memory_space<vmem>>, vector<1x1x32x32xf32>
    %474 = vector.shape_cast %473 : vector<1x1x32x32xf32> to vector<32x32xf32>
    %cst_305 = arith.constant dense<0.000000e+00> : vector<64x32xf32>
    %475 = tpu.matmul %472, %474, %cst_305 {dimension_numbers = #tpu.dot_dimension_numbers<[1], [0], [0], [1], [0, 0, 1, 1], [], []>} : vector<64x32xf32>, vector<32x32xf32>, vector<64x32xf32> -> vector<64x32xf32>
    %476 = arith.addf %467, %475 : vector<64x32xf32>
    %477 = vector.extract_strided_slice %355 {offsets = [7, 0], sizes = [57, 32], strides = [1, 1]} : vector<64x32xf32> to vector<57x32xf32>
    %cst_306 = arith.constant 0.000000e+00 : f32
    %478 = vector.broadcast %cst_306 : f32 to vector<7x32xf32>
    %479 = tpu.concatenate %477, %478 in 0 : vector<57x32xf32>, vector<7x32xf32> -> vector<64x32xf32>
    %cst_307 = arith.constant 0.000000e+00 : f32
    %480 = vector.broadcast %cst_307 : f32 to vector<64x32xf32>
    %481 = arith.select %20, %479, %480 : vector<64x32xi1>, vector<64x32xf32>
    %c2_308 = arith.constant 2 : index
    %c0_309 = arith.constant 0 : index
    %c0_310 = arith.constant 0 : index
    %c0_311 = arith.constant 0 : index
    %482 = vector.load %arg22[%c2_308, %c0_309, %c0_310, %c0_311] : memref<3x3x32x32xf32, #tpu.memory_space<vmem>>, vector<1x1x32x32xf32>
    %483 = vector.shape_cast %482 : vector<1x1x32x32xf32> to vector<32x32xf32>
    %cst_312 = arith.constant dense<0.000000e+00> : vector<64x32xf32>
    %484 = tpu.matmul %481, %483, %cst_312 {dimension_numbers = #tpu.dot_dimension_numbers<[1], [0], [0], [1], [0, 0, 1, 1], [], []>} : vector<64x32xf32>, vector<32x32xf32>, vector<64x32xf32> -> vector<64x32xf32>
    %485 = arith.addf %476, %484 : vector<64x32xf32>
    %486 = vector.extract_strided_slice %355 {offsets = [8, 0], sizes = [56, 32], strides = [1, 1]} : vector<64x32xf32> to vector<56x32xf32>
    %cst_313 = arith.constant 0.000000e+00 : f32
    %487 = vector.broadcast %cst_313 : f32 to vector<8x32xf32>
    %488 = tpu.concatenate %486, %487 in 0 : vector<56x32xf32>, vector<8x32xf32> -> vector<64x32xf32>
    %c2_314 = arith.constant 2 : index
    %c1_315 = arith.constant 1 : index
    %c0_316 = arith.constant 0 : index
    %c0_317 = arith.constant 0 : index
    %489 = vector.load %arg22[%c2_314, %c1_315, %c0_316, %c0_317] : memref<3x3x32x32xf32, #tpu.memory_space<vmem>>, vector<1x1x32x32xf32>
    %490 = vector.shape_cast %489 : vector<1x1x32x32xf32> to vector<32x32xf32>
    %cst_318 = arith.constant dense<0.000000e+00> : vector<64x32xf32>
    %491 = tpu.matmul %488, %490, %cst_318 {dimension_numbers = #tpu.dot_dimension_numbers<[1], [0], [0], [1], [0, 0, 1, 1], [], []>} : vector<64x32xf32>, vector<32x32xf32>, vector<64x32xf32> -> vector<64x32xf32>
    %492 = arith.addf %485, %491 : vector<64x32xf32>
    %493 = vector.extract_strided_slice %355 {offsets = [9, 0], sizes = [55, 32], strides = [1, 1]} : vector<64x32xf32> to vector<55x32xf32>
    %cst_319 = arith.constant 0.000000e+00 : f32
    %494 = vector.broadcast %cst_319 : f32 to vector<9x32xf32>
    %495 = tpu.concatenate %493, %494 in 0 : vector<55x32xf32>, vector<9x32xf32> -> vector<64x32xf32>
    %cst_320 = arith.constant 0.000000e+00 : f32
    %496 = vector.broadcast %cst_320 : f32 to vector<64x32xf32>
    %497 = arith.select %22, %495, %496 : vector<64x32xi1>, vector<64x32xf32>
    %c2_321 = arith.constant 2 : index
    %c2_322 = arith.constant 2 : index
    %c0_323 = arith.constant 0 : index
    %c0_324 = arith.constant 0 : index
    %498 = vector.load %arg22[%c2_321, %c2_322, %c0_323, %c0_324] : memref<3x3x32x32xf32, #tpu.memory_space<vmem>>, vector<1x1x32x32xf32>
    %499 = vector.shape_cast %498 : vector<1x1x32x32xf32> to vector<32x32xf32>
    %cst_325 = arith.constant dense<0.000000e+00> : vector<64x32xf32>
    %500 = tpu.matmul %497, %499, %cst_325 {dimension_numbers = #tpu.dot_dimension_numbers<[1], [0], [0], [1], [0, 0, 1, 1], [], []>} : vector<64x32xf32>, vector<32x32xf32>, vector<64x32xf32> -> vector<64x32xf32>
    %501 = arith.addf %492, %500 : vector<64x32xf32>
    %502 = arith.addf %428, %501 : vector<64x32xf32>
    %c0_326 = arith.constant 0 : index
    %c0_327 = arith.constant 0 : index
    %c0_328 = arith.constant 0 : index
    %503 = vector.load %arg23[%c0_326, %c0_327, %c0_328] : memref<1x64x32xf32, #tpu.memory_space<vmem>>, vector<1x64x32xf32>
    %504 = vector.shape_cast %503 : vector<1x64x32xf32> to vector<64x32xf32>
    %505 = vector.shape_cast %502 : vector<64x32xf32> to vector<1x64x32xf32>
    tpu.vector_store %arg23[%c0_326, %c0_327, %c0_328], %505 {strides = array<i32>} : memref<1x64x32xf32, #tpu.memory_space<vmem>>, vector<1x64x32xf32>,
    return
  }
  func.func @transform_0(%arg0: i32) -> (i32, i32, i32) {
    %c0_i32 = arith.constant 0 : i32
    %c0_i32_0 = arith.constant 0 : i32
    %c0_i32_1 = arith.constant 0 : i32
    return %arg0, %c0_i32, %c0_i32_0 : i32, i32, i32
  }
  func.func @transform_1(%arg0: i32) -> (i32, i32) {
    %c0_i32 = arith.constant 0 : i32
    %c0_i32_0 = arith.constant 0 : i32
    %c0_i32_1 = arith.constant 0 : i32
    return %c0_i32, %c0_i32_0 : i32, i32
  }
  func.func @transform_2(%arg0: i32) -> (i32, i32) {
    %c0_i32 = arith.constant 0 : i32
    %c0_i32_0 = arith.constant 0 : i32
    %c0_i32_1 = arith.constant 0 : i32
    return %c0_i32, %c0_i32_0 : i32, i32
  }
  func.func @transform_3(%arg0: i32) -> (i32, i32) {
    %c0_i32 = arith.constant 0 : i32
    %c0_i32_0 = arith.constant 0 : i32
    %c0_i32_1 = arith.constant 0 : i32
    return %c0_i32, %c0_i32_0 : i32, i32
  }
  func.func @transform_4(%arg0: i32) -> (i32, i32) {
    %c0_i32 = arith.constant 0 : i32
    %c0_i32_0 = arith.constant 0 : i32
    %c0_i32_1 = arith.constant 0 : i32
    return %c0_i32, %c0_i32_0 : i32, i32
  }
  func.func @transform_5(%arg0: i32) -> (i32, i32) {
    %c0_i32 = arith.constant 0 : i32
    %c0_i32_0 = arith.constant 0 : i32
    %c0_i32_1 = arith.constant 0 : i32
    return %c0_i32, %c0_i32_0 : i32, i32
  }
  func.func @transform_6(%arg0: i32) -> (i32, i32) {
    %c0_i32 = arith.constant 0 : i32
    %c0_i32_0 = arith.constant 0 : i32
    %c0_i32_1 = arith.constant 0 : i32
    return %c0_i32, %c0_i32_0 : i32, i32
  }
  func.func @transform_7(%arg0: i32) -> (i32, i32) {
    %c0_i32 = arith.constant 0 : i32
    %c0_i32_0 = arith.constant 0 : i32
    %c0_i32_1 = arith.constant 0 : i32
    return %c0_i32, %c0_i32_0 : i32, i32
  }
  func.func @transform_8(%arg0: i32) -> (i32, i32) {
    %c0_i32 = arith.constant 0 : i32
    %c0_i32_0 = arith.constant 0 : i32
    %c0_i32_1 = arith.constant 0 : i32
    return %c0_i32, %c0_i32_0 : i32, i32
  }
  func.func @transform_9(%arg0: i32) -> (i32, i32) {
    %c0_i32 = arith.constant 0 : i32
    %c0_i32_0 = arith.constant 0 : i32
    %c0_i32_1 = arith.constant 0 : i32
    return %c0_i32, %c0_i32_0 : i32, i32
  }
  func.func @transform_10(%arg0: i32) -> (i32, i32) {
    %c0_i32 = arith.constant 0 : i32
    %c0_i32_0 = arith.constant 0 : i32
    %c0_i32_1 = arith.constant 0 : i32
    return %c0_i32, %c0_i32_0 : i32, i32
  }
  func.func @transform_11(%arg0: i32) -> (i32, i32) {
    %c0_i32 = arith.constant 0 : i32
    %c0_i32_0 = arith.constant 0 : i32
    %c0_i32_1 = arith.constant 0 : i32
    return %c0_i32, %c0_i32_0 : i32, i32
  }
  func.func @transform_12(%arg0: i32) -> (i32, i32, i32, i32) {
    %c0_i32 = arith.constant 0 : i32
    %c0_i32_0 = arith.constant 0 : i32
    %c0_i32_1 = arith.constant 0 : i32
    %c0_i32_2 = arith.constant 0 : i32
    %c0_i32_3 = arith.constant 0 : i32
    return %c0_i32, %c0_i32_0, %c0_i32_1, %c0_i32_2 : i32, i32, i32, i32
  }
  func.func @transform_13(%arg0: i32) -> (i32, i32) {
    %c0_i32 = arith.constant 0 : i32
    %c0_i32_0 = arith.constant 0 : i32
    %c0_i32_1 = arith.constant 0 : i32
    return %c0_i32, %c0_i32_0 : i32, i32
  }
  func.func @transform_14(%arg0: i32) -> (i32, i32, i32, i32) {
    %c0_i32 = arith.constant 0 : i32
    %c0_i32_0 = arith.constant 0 : i32
    %c0_i32_1 = arith.constant 0 : i32
    %c0_i32_2 = arith.constant 0 : i32
    %c0_i32_3 = arith.constant 0 : i32
    return %c0_i32, %c0_i32_0, %c0_i32_1, %c0_i32_2 : i32, i32, i32, i32
  }
  func.func @transform_15(%arg0: i32) -> (i32, i32) {
    %c0_i32 = arith.constant 0 : i32
    %c0_i32_0 = arith.constant 0 : i32
    %c0_i32_1 = arith.constant 0 : i32
    return %c0_i32, %c0_i32_0 : i32, i32
  }
  func.func @transform_16(%arg0: i32) -> (i32, i32) {
    %c0_i32 = arith.constant 0 : i32
    %c0_i32_0 = arith.constant 0 : i32
    %c0_i32_1 = arith.constant 0 : i32
    return %c0_i32, %c0_i32_0 : i32, i32
  }
  func.func @transform_17(%arg0: i32) -> (i32, i32) {
    %c0_i32 = arith.constant 0 : i32
    %c0_i32_0 = arith.constant 0 : i32
    %c0_i32_1 = arith.constant 0 : i32
    return %c0_i32, %c0_i32_0 : i32, i32
  }
  func.func @transform_18(%arg0: i32) -> (i32, i32) {
    %c0_i32 = arith.constant 0 : i32
    %c0_i32_0 = arith.constant 0 : i32
    %c0_i32_1 = arith.constant 0 : i32
    return %c0_i32, %c0_i32_0 : i32, i32
  }
  func.func @transform_19(%arg0: i32) -> (i32, i32) {
    %c0_i32 = arith.constant 0 : i32
    %c0_i32_0 = arith.constant 0 : i32
    %c0_i32_1 = arith.constant 0 : i32
    return %c0_i32, %c0_i32_0 : i32, i32
  }
  func.func @transform_20(%arg0: i32) -> (i32, i32, i32, i32) {
    %c0_i32 = arith.constant 0 : i32
    %c0_i32_0 = arith.constant 0 : i32
    %c0_i32_1 = arith.constant 0 : i32
    %c0_i32_2 = arith.constant 0 : i32
    %c0_i32_3 = arith.constant 0 : i32
    return %c0_i32, %c0_i32_0, %c0_i32_1, %c0_i32_2 : i32, i32, i32, i32
  }
  func.func @transform_21(%arg0: i32) -> (i32, i32, i32, i32) {
    %c0_i32 = arith.constant 0 : i32
    %c0_i32_0 = arith.constant 0 : i32
    %c0_i32_1 = arith.constant 0 : i32
    %c0_i32_2 = arith.constant 0 : i32
    %c0_i32_3 = arith.constant 0 : i32
    return %c0_i32, %c0_i32_0, %c0_i32_1, %c0_i32_2 : i32, i32, i32, i32
  }
  func.func @transform_22(%arg0: i32) -> (i32, i32, i32) {
    %c0_i32 = arith.constant 0 : i32
    %c0_i32_0 = arith.constant 0 : i32
    %c0_i32_1 = arith.constant 0 : i32
    return %arg0, %c0_i32, %c0_i32_0 : i32, i32, i32
  }
}

</mosaic_0001>

<llo_original>
// kernel: block_forward.1
$region0: #{block_forward.1}
  #allocation0 [shape = 'u32[]', space=smem, size = 0x4, offset = 0x4, fixed_abs, tag = 'smem constant byte address 0x4 - core index']
  #allocation1 [shape = 'u32[72,128]{1,0:T(1,128)}', space=vmem, size = 0x9000, scoped, tag = 'internal scratch']
  %s0 = inlined_call_operand.vmem [shape: f32[2,64,32], index: 0, kind: input, shape index: {}]
  %s1 = inlined_call_operand.vmem [shape: f32[1,32], index: 1, kind: input, shape index: {}]
  %s2 = inlined_call_operand.vmem [shape: f32[1,32], index: 2, kind: input, shape index: {}]
  %s3 = inlined_call_operand.vmem [shape: f32[32,96], index: 3, kind: input, shape index: {}]
  %s4 = inlined_call_operand.vmem [shape: f32[32,32], index: 4, kind: input, shape index: {}]
  %s5 = inlined_call_operand.vmem [shape: f32[1,32], index: 5, kind: input, shape index: {}]
  %s6 = inlined_call_operand.vmem [shape: f32[1,32], index: 6, kind: input, shape index: {}]
  %s7 = inlined_call_operand.vmem [shape: f32[1,32], index: 7, kind: input, shape index: {}]
  %s8 = inlined_call_operand.vmem [shape: f32[32,128], index: 8, kind: input, shape index: {}]
  %s9 = inlined_call_operand.vmem [shape: f32[1,128], index: 9, kind: input, shape index: {}]
  %s10 = inlined_call_operand.vmem [shape: f32[128,32], index: 10, kind: input, shape index: {}]
  %s11 = inlined_call_operand.vmem [shape: f32[1,32], index: 11, kind: input, shape index: {}]
  %s12 = inlined_call_operand.vmem [shape: f32[3,3,32,32], index: 12, kind: input, shape index: {}]
  %s13 = inlined_call_operand.vmem [shape: f32[1,32], index: 13, kind: input, shape index: {}]
  %s14 = inlined_call_operand.vmem [shape: f32[3,3,32,32], index: 14, kind: input, shape index: {}]
  %s15 = inlined_call_operand.vmem [shape: f32[1,32], index: 15, kind: input, shape index: {}]
  %s16 = inlined_call_operand.vmem [shape: f32[32,2], index: 16, kind: input, shape index: {}]
  %s17 = inlined_call_operand.vmem [shape: f32[1,2], index: 17, kind: input, shape index: {}]
  %s18 = inlined_call_operand.vmem [shape: f32[2,32], index: 18, kind: input, shape index: {}]
  %s19 = inlined_call_operand.vmem [shape: f32[1,32], index: 19, kind: input, shape index: {}]
  %s20 = inlined_call_operand.vmem [shape: f32[3,3,32,32], index: 20, kind: input, shape index: {}]
  %s21 = inlined_call_operand.vmem [shape: f32[3,3,32,32], index: 21, kind: input, shape index: {}]
  %s22 = inlined_call_operand.vmem [shape: f32[2,64,32], index: 22, kind: output, shape index: {}]
  %s23 = sld [smem:[#allocation0]]
  $region121: #{block_forward.1} parent=0
    _
  %s25 = ssub.s32 1, %s23
  %s26 = scalar_select 0, %s25, %s23
  loop: start=0, step=1, limit=4
  $region2: #{block_forward.1} parent=0 // loop_pre_header
    _
  $region3: #{block_forward.1} parent=0 // loop_header
    %s28 = sphi 0, %s32
    %p29 = scmp.ge.s32.totalorder %s28, 4
    %s38 = sphi 0, %s40
    %s41 = sphi 0, %s38
    %s42 = sphi 0, %s41
    %s58 = sphi 0, %s42
    %s62 = sphi 0, %s62
    %s64 = sphi 0, %s62
    %s65 = sphi 0, %s64
    %s79 = sphi 0, %s65
    %s83 = sphi 0, %s83
    %s85 = sphi 0, %s83
    %s86 = sphi 0, %s85
    %s100 = sphi 0, %s86
    %s104 = sphi 0, %s104
    %s106 = sphi 0, %s104
    %s107 = sphi 0, %s106
    %s121 = sphi 0, %s107
    %s125 = sphi 0, %s125
    %s127 = sphi 0, %s125
    %s128 = sphi 0, %s127
    %s142 = sphi 0, %s128
    %s146 = sphi 0, %s146
    %s148 = sphi 0, %s146
    %s149 = sphi 0, %s148
    %s163 = sphi 0, %s149
    %s167 = sphi 0, %s167
    %s169 = sphi 0, %s167
    %s170 = sphi 0, %s169
    %s184 = sphi 0, %s170
    %s188 = sphi 0, %s188
    %s190 = sphi 0, %s188
    %s191 = sphi 0, %s190
    %s205 = sphi 0, %s191
    %s209 = sphi 0, %s209
    %s211 = sphi 0, %s209
    %s212 = sphi 0, %s211
    %s226 = sphi 0, %s212
    %s230 = sphi 0, %s230
    %s232 = sphi 0, %s230
    %s233 = sphi 0, %s232
    %s247 = sphi 0, %s233
    %s251 = sphi 0, %s251
    %s253 = sphi 0, %s251
    %s254 = sphi 0, %s253
    %s268 = sphi 0, %s254
    %s272 = sphi 0, %s272
    %s274 = sphi 0, %s272
    %s275 = sphi 0, %s274
    %s289 = sphi 0, %s275
    %s293 = sphi 0, %s293
    %s295 = sphi 0, %s293
    %s296 = sphi 0, %s295
    %s310 = sphi 0, %s296
    %s314 = sphi 0, %s314
    %s316 = sphi 0, %s314
    %s317 = sphi 0, %s316
    %s331 = sphi 0, %s317
    %s335 = sphi 0, %s335
    %s337 = sphi 0, %s335
    %s338 = sphi 0, %s337
    %s352 = sphi 0, %s338
    %s356 = sphi 0, %s356
    %s358 = sphi 0, %s356
    %s359 = sphi 0, %s358
    %s373 = sphi 0, %s359
    %s377 = sphi 0, %s377
    %s379 = sphi 0, %s377
    %s380 = sphi 0, %s379
    %s394 = sphi 0, %s380
    %s398 = sphi 0, %s398
    %s400 = sphi 0, %s398
    %s401 = sphi 0, %s400
    %s415 = sphi 0, %s401
    %s419 = sphi 0, %s419
    %s421 = sphi 0, %s419
    %s422 = sphi 0, %s421
    %s436 = sphi 0, %s422
    %s440 = sphi 0, %s440
    %s442 = sphi 0, %s440
    %s443 = sphi 0, %s442
    %s457 = sphi 0, %s443
    %s461 = sphi 0, %s461
    %s463 = sphi 0, %s461
    %s464 = sphi 0, %s463
    %s478 = sphi 0, %s464
    %s482 = sphi 0, %s482
    %s484 = sphi 0, %s482
    %s485 = sphi 0, %s484
    %s499 = sphi 0, %s485
    %s505 = sphi 0, %s507
    %s508 = sphi 0, %s505
    %s509 = sphi 0, %s508
    %s525 = sphi 0, %s509
  $region4: #{block_forward.1} parent=0 // loop_header_branch
    %31 = sbr.rel (%p29) target = $region8
  $region5: #{block_forward.1} parent=0 // loop_body
    %s33 = ssub.s32 %s28, 1
    %s34 = ssub.s32 %s28, 2
    %s35 = sadd.s32 %s28, 1
    %s36 = ssub.s32 %s28, %s35
    %p37 = scmp.eq.s32.totalorder %s36, 0
    %s39 = sadd.s32 %s38, 1
    %s40 = scalar_select %p37, %s38, %s39
    %p43 = pneg %p37
    %p44 = scmp.eq.s32.totalorder %s28, 1
    %p45 = por %p43, %p44
    %p46 = scmp.ne.s32.totalorder %s38, %s41
    %p47 = scmp.eq.s32.totalorder %s28, 0
    %p48 = por %p46, %p47
    %p49 = scmp.ne.s32.totalorder %s38, %s41
    %p50 = scmp.eq.s32.totalorder %s33, 1
    %p51 = por %p49, %p50
    %p52 = scmp.ne.s32.totalorder %s41, %s42
    %p53 = scmp.eq.s32.totalorder %s33, 0
    %p54 = por %p52, %p53
    %p55 = scmp.ne.s32.totalorder %s41, %s42
    %p56 = scmp.eq.s32.totalorder %s34, 1
    %p57 = por %p55, %p56
    %p59 = scmp.ne.s32.totalorder %s42, %s58
    %p60 = scmp.eq.s32.totalorder %s34, 0
    %p61 = por %p59, %p60
    %s63 = sadd.s32 %s62, 1
    %p66 = scmp.eq.s32.totalorder %s28, 1
    %p67 = scmp.ne.s32.totalorder %s62, %s64
    %p68 = scmp.eq.s32.totalorder %s28, 0
    %p69 = por %p67, %p68
    %p70 = scmp.ne.s32.totalorder %s62, %s64
    %p71 = scmp.eq.s32.totalorder %s33, 1
    %p72 = por %p70, %p71
    %p73 = scmp.ne.s32.totalorder %s64, %s65
    %p74 = scmp.eq.s32.totalorder %s33, 0
    %p75 = por %p73, %p74
    %p76 = scmp.ne.s32.totalorder %s64, %s65
    %p77 = scmp.eq.s32.totalorder %s34, 1
    %p78 = por %p76, %p77
    %p80 = scmp.ne.s32.totalorder %s65, %s79
    %p81 = scmp.eq.s32.totalorder %s34, 0
    %p82 = por %p80, %p81
    %s84 = sadd.s32 %s83, 1
    %p87 = scmp.eq.s32.totalorder %s28, 1
    %p88 = scmp.ne.s32.totalorder %s83, %s85
    %p89 = scmp.eq.s32.totalorder %s28, 0
    %p90 = por %p88, %p89
    %p91 = scmp.ne.s32.totalorder %s83, %s85
    %p92 = scmp.eq.s32.totalorder %s33, 1
    %p93 = por %p91, %p92
    %p94 = scmp.ne.s32.totalorder %s85, %s86
    %p95 = scmp.eq.s32.totalorder %s33, 0
    %p96 = por %p94, %p95
    %p97 = scmp.ne.s32.totalorder %s85, %s86
    %p98 = scmp.eq.s32.totalorder %s34, 1
    %p99 = por %p97, %p98
    %p101 = scmp.ne.s32.totalorder %s86, %s100
    %p102 = scmp.eq.s32.totalorder %s34, 0
    %p103 = por %p101, %p102
    %s105 = sadd.s32 %s104, 1
    %p108 = scmp.eq.s32.totalorder %s28, 1
    %p109 = scmp.ne.s32.totalorder %s104, %s106
    %p110 = scmp.eq.s32.totalorder %s28, 0
    %p111 = por %p109, %p110
    %p112 = scmp.ne.s32.totalorder %s104, %s106
    %p113 = scmp.eq.s32.totalorder %s33, 1
    %p114 = por %p112, %p113
    %p115 = scmp.ne.s32.totalorder %s106, %s107
    %p116 = scmp.eq.s32.totalorder %s33, 0
    %p117 = por %p115, %p116
    %p118 = scmp.ne.s32.totalorder %s106, %s107
    %p119 = scmp.eq.s32.totalorder %s34, 1
    %p120 = por %p118, %p119
    %p122 = scmp.ne.s32.totalorder %s107, %s121
    %p123 = scmp.eq.s32.totalorder %s34, 0
    %p124 = por %p122, %p123
    %s126 = sadd.s32 %s125, 1
    %p129 = scmp.eq.s32.totalorder %s28, 1
    %p130 = scmp.ne.s32.totalorder %s125, %s127
    %p131 = scmp.eq.s32.totalorder %s28, 0
    %p132 = por %p130, %p131
    %p133 = scmp.ne.s32.totalorder %s125, %s127
    %p134 = scmp.eq.s32.totalorder %s33, 1
    %p135 = por %p133, %p134
    %p136 = scmp.ne.s32.totalorder %s127, %s128
    %p137 = scmp.eq.s32.totalorder %s33, 0
    %p138 = por %p136, %p137
    %p139 = scmp.ne.s32.totalorder %s127, %s128
    %p140 = scmp.eq.s32.totalorder %s34, 1
    %p141 = por %p139, %p140
    %p143 = scmp.ne.s32.totalorder %s128, %s142
    %p144 = scmp.eq.s32.totalorder %s34, 0
    %p145 = por %p143, %p144
    %s147 = sadd.s32 %s146, 1
    %p150 = scmp.eq.s32.totalorder %s28, 1
    %p151 = scmp.ne.s32.totalorder %s146, %s148
    %p152 = scmp.eq.s32.totalorder %s28, 0
    %p153 = por %p151, %p152
    %p154 = scmp.ne.s32.totalorder %s146, %s148
    %p155 = scmp.eq.s32.totalorder %s33, 1
    %p156 = por %p154, %p155
    %p157 = scmp.ne.s32.totalorder %s148, %s149
    %p158 = scmp.eq.s32.totalorder %s33, 0
    %p159 = por %p157, %p158
    %p160 = scmp.ne.s32.totalorder %s148, %s149
    %p161 = scmp.eq.s32.totalorder %s34, 1
    %p162 = por %p160, %p161
    %p164 = scmp.ne.s32.totalorder %s149, %s163
    %p165 = scmp.eq.s32.totalorder %s34, 0
    %p166 = por %p164, %p165
    %s168 = sadd.s32 %s167, 1
    %p171 = scmp.eq.s32.totalorder %s28, 1
    %p172 = scmp.ne.s32.totalorder %s167, %s169
    %p173 = scmp.eq.s32.totalorder %s28, 0
    %p174 = por %p172, %p173
    %p175 = scmp.ne.s32.totalorder %s167, %s169
    %p176 = scmp.eq.s32.totalorder %s33, 1
    %p177 = por %p175, %p176
    %p178 = scmp.ne.s32.totalorder %s169, %s170
    %p179 = scmp.eq.s32.totalorder %s33, 0
    %p180 = por %p178, %p179
    %p181 = scmp.ne.s32.totalorder %s169, %s170
    %p182 = scmp.eq.s32.totalorder %s34, 1
    %p183 = por %p181, %p182
    %p185 = scmp.ne.s32.totalorder %s170, %s184
    %p186 = scmp.eq.s32.totalorder %s34, 0
    %p187 = por %p185, %p186
    %s189 = sadd.s32 %s188, 1
    %p192 = scmp.eq.s32.totalorder %s28, 1
    %p193 = scmp.ne.s32.totalorder %s188, %s190
    %p194 = scmp.eq.s32.totalorder %s28, 0
    %p195 = por %p193, %p194
    %p196 = scmp.ne.s32.totalorder %s188, %s190
    %p197 = scmp.eq.s32.totalorder %s33, 1
    %p198 = por %p196, %p197
    %p199 = scmp.ne.s32.totalorder %s190, %s191
    %p200 = scmp.eq.s32.totalorder %s33, 0
    %p201 = por %p199, %p200
    %p202 = scmp.ne.s32.totalorder %s190, %s191
    %p203 = scmp.eq.s32.totalorder %s34, 1
    %p204 = por %p202, %p203
    %p206 = scmp.ne.s32.totalorder %s191, %s205
    %p207 = scmp.eq.s32.totalorder %s34, 0
    %p208 = por %p206, %p207
    %s210 = sadd.s32 %s209, 1
    %p213 = scmp.eq.s32.totalorder %s28, 1
    %p214 = scmp.ne.s32.totalorder %s209, %s211
    %p215 = scmp.eq.s32.totalorder %s28, 0
    %p216 = por %p214, %p215
    %p217 = scmp.ne.s32.totalorder %s209, %s211
    %p218 = scmp.eq.s32.totalorder %s33, 1
    %p219 = por %p217, %p218
    %p220 = scmp.ne.s32.totalorder %s211, %s212
    %p221 = scmp.eq.s32.totalorder %s33, 0
    %p222 = por %p220, %p221
    %p223 = scmp.ne.s32.totalorder %s211, %s212
    %p224 = scmp.eq.s32.totalorder %s34, 1
    %p225 = por %p223, %p224
    %p227 = scmp.ne.s32.totalorder %s212, %s226
    %p228 = scmp.eq.s32.totalorder %s34, 0
    %p229 = por %p227, %p228
    %s231 = sadd.s32 %s230, 1
    %p234 = scmp.eq.s32.totalorder %s28, 1
    %p235 = scmp.ne.s32.totalorder %s230, %s232
    %p236 = scmp.eq.s32.totalorder %s28, 0
    %p237 = por %p235, %p236
    %p238 = scmp.ne.s32.totalorder %s230, %s232
    %p239 = scmp.eq.s32.totalorder %s33, 1
    %p240 = por %p238, %p239
    %p241 = scmp.ne.s32.totalorder %s232, %s233
    %p242 = scmp.eq.s32.totalorder %s33, 0
    %p243 = por %p241, %p242
    %p244 = scmp.ne.s32.totalorder %s232, %s233
    %p245 = scmp.eq.s32.totalorder %s34, 1
    %p246 = por %p244, %p245
    %p248 = scmp.ne.s32.totalorder %s233, %s247
    %p249 = scmp.eq.s32.totalorder %s34, 0
    %p250 = por %p248, %p249
    %s252 = sadd.s32 %s251, 1
    %p255 = scmp.eq.s32.totalorder %s28, 1
    %p256 = scmp.ne.s32.totalorder %s251, %s253
    %p257 = scmp.eq.s32.totalorder %s28, 0
    %p258 = por %p256, %p257
    %p259 = scmp.ne.s32.totalorder %s251, %s253
    %p260 = scmp.eq.s32.totalorder %s33, 1
    %p261 = por %p259, %p260
    %p262 = scmp.ne.s32.totalorder %s253, %s254
    %p263 = scmp.eq.s32.totalorder %s33, 0
    %p264 = por %p262, %p263
    %p265 = scmp.ne.s32.totalorder %s253, %s254
    %p266 = scmp.eq.s32.totalorder %s34, 1
    %p267 = por %p265, %p266
    %p269 = scmp.ne.s32.totalorder %s254, %s268
    %p270 = scmp.eq.s32.totalorder %s34, 0
    %p271 = por %p269, %p270
    %s273 = sadd.s32 %s272, 1
    %p276 = scmp.eq.s32.totalorder %s28, 1
    %p277 = scmp.ne.s32.totalorder %s272, %s274
    %p278 = scmp.eq.s32.totalorder %s28, 0
    %p279 = por %p277, %p278
    %p280 = scmp.ne.s32.totalorder %s272, %s274
    %p281 = scmp.eq.s32.totalorder %s33, 1
    %p282 = por %p280, %p281
    %p283 = scmp.ne.s32.totalorder %s274, %s275
    %p284 = scmp.eq.s32.totalorder %s33, 0
    %p285 = por %p283, %p284
    %p286 = scmp.ne.s32.totalorder %s274, %s275
    %p287 = scmp.eq.s32.totalorder %s34, 1
    %p288 = por %p286, %p287
    %p290 = scmp.ne.s32.totalorder %s275, %s289
    %p291 = scmp.eq.s32.totalorder %s34, 0
    %p292 = por %p290, %p291
    %s294 = sadd.s32 %s293, 1
    %p297 = scmp.eq.s32.totalorder %s28, 1
    %p298 = scmp.ne.s32.totalorder %s293, %s295
    %p299 = scmp.eq.s32.totalorder %s28, 0
    %p300 = por %p298, %p299
    %p301 = scmp.ne.s32.totalorder %s293, %s295
    %p302 = scmp.eq.s32.totalorder %s33, 1
    %p303 = por %p301, %p302
    %p304 = scmp.ne.s32.totalorder %s295, %s296
    %p305 = scmp.eq.s32.totalorder %s33, 0
    %p306 = por %p304, %p305
    %p307 = scmp.ne.s32.totalorder %s295, %s296
    %p308 = scmp.eq.s32.totalorder %s34, 1
    %p309 = por %p307, %p308
    %p311 = scmp.ne.s32.totalorder %s296, %s310
    %p312 = scmp.eq.s32.totalorder %s34, 0
    %p313 = por %p311, %p312
    %s315 = sadd.s32 %s314, 1
    %p318 = scmp.eq.s32.totalorder %s28, 1
    %p319 = scmp.ne.s32.totalorder %s314, %s316
    %p320 = scmp.eq.s32.totalorder %s28, 0
    %p321 = por %p319, %p320
    %p322 = scmp.ne.s32.totalorder %s314, %s316
    %p323 = scmp.eq.s32.totalorder %s33, 1
    %p324 = por %p322, %p323
    %p325 = scmp.ne.s32.totalorder %s316, %s317
    %p326 = scmp.eq.s32.totalorder %s33, 0
    %p327 = por %p325, %p326
    %p328 = scmp.ne.s32.totalorder %s316, %s317
    %p329 = scmp.eq.s32.totalorder %s34, 1
    %p330 = por %p328, %p329
    %p332 = scmp.ne.s32.totalorder %s317, %s331
    %p333 = scmp.eq.s32.totalorder %s34, 0
    %p334 = por %p332, %p333
    %s336 = sadd.s32 %s335, 1
    %p339 = scmp.eq.s32.totalorder %s28, 1
    %p340 = scmp.ne.s32.totalorder %s335, %s337
    %p341 = scmp.eq.s32.totalorder %s28, 0
    %p342 = por %p340, %p341
    %p343 = scmp.ne.s32.totalorder %s335, %s337
    %p344 = scmp.eq.s32.totalorder %s33, 1
    %p345 = por %p343, %p344
    %p346 = scmp.ne.s32.totalorder %s337, %s338
    %p347 = scmp.eq.s32.totalorder %s33, 0
    %p348 = por %p346, %p347
    %p349 = scmp.ne.s32.totalorder %s337, %s338
    %p350 = scmp.eq.s32.totalorder %s34, 1
    %p351 = por %p349, %p350
    %p353 = scmp.ne.s32.totalorder %s338, %s352
    %p354 = scmp.eq.s32.totalorder %s34, 0
    %p355 = por %p353, %p354
    %s357 = sadd.s32 %s356, 1
    %p360 = scmp.eq.s32.totalorder %s28, 1
    %p361 = scmp.ne.s32.totalorder %s356, %s358
    %p362 = scmp.eq.s32.totalorder %s28, 0
    %p363 = por %p361, %p362
    %p364 = scmp.ne.s32.totalorder %s356, %s358
    %p365 = scmp.eq.s32.totalorder %s33, 1
    %p366 = por %p364, %p365
    %p367 = scmp.ne.s32.totalorder %s358, %s359
    %p368 = scmp.eq.s32.totalorder %s33, 0
    %p369 = por %p367, %p368
    %p370 = scmp.ne.s32.totalorder %s358, %s359
    %p371 = scmp.eq.s32.totalorder %s34, 1
    %p372 = por %p370, %p371
    %p374 = scmp.ne.s32.totalorder %s359, %s373
    %p375 = scmp.eq.s32.totalorder %s34, 0
    %p376 = por %p374, %p375
    %s378 = sadd.s32 %s377, 1
    %p381 = scmp.eq.s32.totalorder %s28, 1
    %p382 = scmp.ne.s32.totalorder %s377, %s379
    %p383 = scmp.eq.s32.totalorder %s28, 0
    %p384 = por %p382, %p383
    %p385 = scmp.ne.s32.totalorder %s377, %s379
    %p386 = scmp.eq.s32.totalorder %s33, 1
    %p387 = por %p385, %p386
    %p388 = scmp.ne.s32.totalorder %s379, %s380
    %p389 = scmp.eq.s32.totalorder %s33, 0
    %p390 = por %p388, %p389
    %p391 = scmp.ne.s32.totalorder %s379, %s380
    %p392 = scmp.eq.s32.totalorder %s34, 1
    %p393 = por %p391, %p392
    %p395 = scmp.ne.s32.totalorder %s380, %s394
    %p396 = scmp.eq.s32.totalorder %s34, 0
    %p397 = por %p395, %p396
    %s399 = sadd.s32 %s398, 1
    %p402 = scmp.eq.s32.totalorder %s28, 1
    %p403 = scmp.ne.s32.totalorder %s398, %s400
    %p404 = scmp.eq.s32.totalorder %s28, 0
    %p405 = por %p403, %p404
    %p406 = scmp.ne.s32.totalorder %s398, %s400
    %p407 = scmp.eq.s32.totalorder %s33, 1
    %p408 = por %p406, %p407
    %p409 = scmp.ne.s32.totalorder %s400, %s401
    %p410 = scmp.eq.s32.totalorder %s33, 0
    %p411 = por %p409, %p410
    %p412 = scmp.ne.s32.totalorder %s400, %s401
    %p413 = scmp.eq.s32.totalorder %s34, 1
    %p414 = por %p412, %p413
    %p416 = scmp.ne.s32.totalorder %s401, %s415
    %p417 = scmp.eq.s32.totalorder %s34, 0
    %p418 = por %p416, %p417
    %s420 = sadd.s32 %s419, 1
    %p423 = scmp.eq.s32.totalorder %s28, 1
    %p424 = scmp.ne.s32.totalorder %s419, %s421
    %p425 = scmp.eq.s32.totalorder %s28, 0
    %p426 = por %p424, %p425
    %p427 = scmp.ne.s32.totalorder %s419, %s421
    %p428 = scmp.eq.s32.totalorder %s33, 1
    %p429 = por %p427, %p428
    %p430 = scmp.ne.s32.totalorder %s421, %s422
    %p431 = scmp.eq.s32.totalorder %s33, 0
    %p432 = por %p430, %p431
    %p433 = scmp.ne.s32.totalorder %s421, %s422
    %p434 = scmp.eq.s32.totalorder %s34, 1
    %p435 = por %p433, %p434
    %p437 = scmp.ne.s32.totalorder %s422, %s436
    %p438 = scmp.eq.s32.totalorder %s34, 0
    %p439 = por %p437, %p438
    %s441 = sadd.s32 %s440, 1
    %p444 = scmp.eq.s32.totalorder %s28, 1
    %p445 = scmp.ne.s32.totalorder %s440, %s442
    %p446 = scmp.eq.s32.totalorder %s28, 0
    %p447 = por %p445, %p446
    %p448 = scmp.ne.s32.totalorder %s440, %s442
    %p449 = scmp.eq.s32.totalorder %s33, 1
    %p450 = por %p448, %p449
    %p451 = scmp.ne.s32.totalorder %s442, %s443
    %p452 = scmp.eq.s32.totalorder %s33, 0
    %p453 = por %p451, %p452
    %p454 = scmp.ne.s32.totalorder %s442, %s443
    %p455 = scmp.eq.s32.totalorder %s34, 1
    %p456 = por %p454, %p455
    %p458 = scmp.ne.s32.totalorder %s443, %s457
    %p459 = scmp.eq.s32.totalorder %s34, 0
    %p460 = por %p458, %p459
    %s462 = sadd.s32 %s461, 1
    %p465 = scmp.eq.s32.totalorder %s28, 1
    %p466 = scmp.ne.s32.totalorder %s461, %s463
    %p467 = scmp.eq.s32.totalorder %s28, 0
    %p468 = por %p466, %p467
    %p469 = scmp.ne.s32.totalorder %s461, %s463
    %p470 = scmp.eq.s32.totalorder %s33, 1
    %p471 = por %p469, %p470
    %p472 = scmp.ne.s32.totalorder %s463, %s464
    %p473 = scmp.eq.s32.totalorder %s33, 0
    %p474 = por %p472, %p473
    %p475 = scmp.ne.s32.totalorder %s463, %s464
    %p476 = scmp.eq.s32.totalorder %s34, 1
    %p477 = por %p475, %p476
    %p479 = scmp.ne.s32.totalorder %s464, %s478
    %p480 = scmp.eq.s32.totalorder %s34, 0
    %p481 = por %p479, %p480
    %s483 = sadd.s32 %s482, 1
    %p486 = scmp.eq.s32.totalorder %s28, 1
    %p487 = scmp.ne.s32.totalorder %s482, %s484
    %p488 = scmp.eq.s32.totalorder %s28, 0
    %p489 = por %p487, %p488
    %p490 = scmp.ne.s32.totalorder %s482, %s484
    %p491 = scmp.eq.s32.totalorder %s33, 1
    %p492 = por %p490, %p491
    %p493 = scmp.ne.s32.totalorder %s484, %s485
    %p494 = scmp.eq.s32.totalorder %s33, 0
    %p495 = por %p493, %p494
    %p496 = scmp.ne.s32.totalorder %s484, %s485
    %p497 = scmp.eq.s32.totalorder %s34, 1
    %p498 = por %p496, %p497
    %p500 = scmp.ne.s32.totalorder %s485, %s499
    %p501 = scmp.eq.s32.totalorder %s34, 0
    %p502 = por %p500, %p501
    %s503 = ssub.s32 %s28, %s35
    %p504 = scmp.eq.s32.totalorder %s503, 0
    %s506 = sadd.s32 %s505, 1
    %s507 = scalar_select %p504, %s505, %s506
    %p510 = pneg %p504
    %p511 = scmp.eq.s32.totalorder %s28, 1
    %p512 = por %p510, %p511
    %p513 = scmp.ne.s32.totalorder %s505, %s508
    %p514 = scmp.eq.s32.totalorder %s28, 0
    %p515 = por %p513, %p514
    %p516 = scmp.ne.s32.totalorder %s505, %s508
    %p517 = scmp.eq.s32.totalorder %s33, 1
    %p518 = por %p516, %p517
    %p519 = scmp.ne.s32.totalorder %s508, %s509
    %p520 = scmp.eq.s32.totalorder %s33, 0
    %p521 = por %p519, %p520
    %p522 = scmp.ne.s32.totalorder %s508, %s509
    %p523 = scmp.eq.s32.totalorder %s34, 1
    %p524 = por %p522, %p523
    %p526 = scmp.ne.s32.totalorder %s509, %s525
    %p527 = scmp.eq.s32.totalorder %s34, 0
    %p528 = por %p526, %p527
    %p529 = scmp.le.s32.totalorder 1, %s28
    %p530 = scmp.lt.s32.totalorder %s28, 3
    %p531 = pnand %p529, %p530
    %p532 = pneg %p531
    // Predicated region
    $region9: #{block_forward.1} parent=5 // pred_check
      _
    $region10: #{block_forward.1} parent=5 // pred_check_branch
      %534 = sbr.rel (%p531) target = $region12
    $region11: #{block_forward.1} parent=5 // pred_region
      %s535 = ssub.s32 %s28, 1
      // Predicated region
      $region13: #{block_forward.1} parent=11 // pred_check
        %p536 = pneg %p75
      $region14: #{block_forward.1} parent=11 // pred_check_branch
        %538 = sbr.rel (%p536) target = $region16
      $region15: #{block_forward.1} parent=11 // pred_region
        _
      $region16: #{block_forward.1} parent=11 // pred_fallthru
        _
      // Predicated region
      $region17: #{block_forward.1} parent=11 // pred_check
        %p539 = pneg %p96
      $region18: #{block_forward.1} parent=11 // pred_check_branch
        %541 = sbr.rel (%p539) target = $region20
      $region19: #{block_forward.1} parent=11 // pred_region
        _
      $region20: #{block_forward.1} parent=11 // pred_fallthru
        _
      // Predicated region
      $region21: #{block_forward.1} parent=11 // pred_check
        %p542 = pneg %p117
      $region22: #{block_forward.1} parent=11 // pred_check_branch
        %544 = sbr.rel (%p542) target = $region24
      $region23: #{block_forward.1} parent=11 // pred_region
        _
      $region24: #{block_forward.1} parent=11 // pred_fallthru
        _
      // Predicated region
      $region25: #{block_forward.1} parent=11 // pred_check
        %p545 = pneg %p138
      $region26: #{block_forward.1} parent=11 // pred_check_branch
        %547 = sbr.rel (%p545) target = $region28
      $region27: #{block_forward.1} parent=11 // pred_region
        _
      $region28: #{block_forward.1} parent=11 // pred_fallthru
        _
      // Predicated region
      $region29: #{block_forward.1} parent=11 // pred_check
        %p548 = pneg %p159
      $region30: #{block_forward.1} parent=11 // pred_check_branch
        %550 = sbr.rel (%p548) target = $region32
      $region31: #{block_forward.1} parent=11 // pred_region
        _
      $region32: #{block_forward.1} parent=11 // pred_fallthru
        _
      // Predicated region
      $region33: #{block_forward.1} parent=11 // pred_check
        %p551 = pneg %p180
      $region34: #{block_forward.1} parent=11 // pred_check_branch
        %553 = sbr.rel (%p551) target = $region36
      $region35: #{block_forward.1} parent=11 // pred_region
        _
      $region36: #{block_forward.1} parent=11 // pred_fallthru
        _
      // Predicated region
      $region37: #{block_forward.1} parent=11 // pred_check
        %p554 = pneg %p201
      $region38: #{block_forward.1} parent=11 // pred_check_branch
        %556 = sbr.rel (%p554) target = $region40
      $region39: #{block_forward.1} parent=11 // pred_region
        _
      $region40: #{block_forward.1} parent=11 // pred_fallthru
        _
      // Predicated region
      $region41: #{block_forward.1} parent=11 // pred_check
        %p557 = pneg %p222
      $region42: #{block_forward.1} parent=11 // pred_check_branch
        %559 = sbr.rel (%p557) target = $region44
      $region43: #{block_forward.1} parent=11 // pred_region
        _
      $region44: #{block_forward.1} parent=11 // pred_fallthru
        _
      // Predicated region
      $region45: #{block_forward.1} parent=11 // pred_check
        %p560 = pneg %p243
      $region46: #{block_forward.1} parent=11 // pred_check_branch
        %562 = sbr.rel (%p560) target = $region48
      $region47: #{block_forward.1} parent=11 // pred_region
        _
      $region48: #{block_forward.1} parent=11 // pred_fallthru
        _
      // Predicated region
      $region49: #{block_forward.1} parent=11 // pred_check
        %p563 = pneg %p264
      $region50: #{block_forward.1} parent=11 // pred_check_branch
        %565 = sbr.rel (%p563) target = $region52
      $region51: #{block_forward.1} parent=11 // pred_region
        _
      $region52: #{block_forward.1} parent=11 // pred_fallthru
        _
      // Predicated region
      $region53: #{block_forward.1} parent=11 // pred_check
        %p566 = pneg %p285
      $region54: #{block_forward.1} parent=11 // pred_check_branch
        %568 = sbr.rel (%p566) target = $region56
      $region55: #{block_forward.1} parent=11 // pred_region
        _
      $region56: #{block_forward.1} parent=11 // pred_fallthru
        _
      // Predicated region
      $region57: #{block_forward.1} parent=11 // pred_check
        %p569 = pneg %p306
      $region58: #{block_forward.1} parent=11 // pred_check_branch
        %571 = sbr.rel (%p569) target = $region60
      $region59: #{block_forward.1} parent=11 // pred_region
        _
      $region60: #{block_forward.1} parent=11 // pred_fallthru
        _
      // Predicated region
      $region61: #{block_forward.1} parent=11 // pred_check
        %p572 = pneg %p327
      $region62: #{block_forward.1} parent=11 // pred_check_branch
        %574 = sbr.rel (%p572) target = $region64
      $region63: #{block_forward.1} parent=11 // pred_region
        _
      $region64: #{block_forward.1} parent=11 // pred_fallthru
        _
      // Predicated region
      $region65: #{block_forward.1} parent=11 // pred_check
        %p575 = pneg %p348
      $region66: #{block_forward.1} parent=11 // pred_check_branch
        %577 = sbr.rel (%p575) target = $region68
      $region67: #{block_forward.1} parent=11 // pred_region
        _
      $region68: #{block_forward.1} parent=11 // pred_fallthru
        _
      // Predicated region
      $region69: #{block_forward.1} parent=11 // pred_check
        %p578 = pneg %p369
      $region70: #{block_forward.1} parent=11 // pred_check_branch
        %580 = sbr.rel (%p578) target = $region72
      $region71: #{block_forward.1} parent=11 // pred_region
        _
      $region72: #{block_forward.1} parent=11 // pred_fallthru
        _
      // Predicated region
      $region73: #{block_forward.1} parent=11 // pred_check
        %p581 = pneg %p390
      $region74: #{block_forward.1} parent=11 // pred_check_branch
        %583 = sbr.rel (%p581) target = $region76
      $region75: #{block_forward.1} parent=11 // pred_region
        _
      $region76: #{block_forward.1} parent=11 // pred_fallthru
        _
      // Predicated region
      $region77: #{block_forward.1} parent=11 // pred_check
        %p584 = pneg %p411
      $region78: #{block_forward.1} parent=11 // pred_check_branch
        %586 = sbr.rel (%p584) target = $region80
      $region79: #{block_forward.1} parent=11 // pred_region
        _
      $region80: #{block_forward.1} parent=11 // pred_fallthru
        _
      // Predicated region
      $region81: #{block_forward.1} parent=11 // pred_check
        %p587 = pneg %p432
      $region82: #{block_forward.1} parent=11 // pred_check_branch
        %589 = sbr.rel (%p587) target = $region84
      $region83: #{block_forward.1} parent=11 // pred_region
        _
      $region84: #{block_forward.1} parent=11 // pred_fallthru
        _
      // Predicated region
      $region85: #{block_forward.1} parent=11 // pred_check
        %p590 = pneg %p453
      $region86: #{block_forward.1} parent=11 // pred_check_branch
        %592 = sbr.rel (%p590) target = $region88
      $region87: #{block_forward.1} parent=11 // pred_region
        _
      $region88: #{block_forward.1} parent=11 // pred_fallthru
        _
      // Predicated region
      $region89: #{block_forward.1} parent=11 // pred_check
        %p593 = pneg %p474
      $region90: #{block_forward.1} parent=11 // pred_check_branch
        %595 = sbr.rel (%p593) target = $region92
      $region91: #{block_forward.1} parent=11 // pred_region
        _
      $region92: #{block_forward.1} parent=11 // pred_fallthru
        _
      // Predicated region
      $region93: #{block_forward.1} parent=11 // pred_check
        %p596 = pneg %p495
      $region94: #{block_forward.1} parent=11 // pred_check_branch
        %598 = sbr.rel (%p596) target = $region96
      $region95: #{block_forward.1} parent=11 // pred_region
        _
      $region96: #{block_forward.1} parent=11 // pred_fallthru
        _
    $region12: #{block_forward.1} parent=5 // pred_fallthru
      _
    %p599 = scmp.lt.s32.totalorder %s28, 2
    // Predicated region
    $region97: #{block_forward.1} parent=5 // pred_check
      %p600 = pneg %p599
    $region98: #{block_forward.1} parent=5 // pred_check_branch
      %602 = sbr.rel (%p600) target = $region100
    $region99: #{block_forward.1} parent=5 // pred_region
      // Predicated region
      $region101: #{block_forward.1} parent=99 // pred_check
        %p603 = pneg %p48
      $region102: #{block_forward.1} parent=99 // pred_check_branch
        %605 = sbr.rel (%p603) target = $region104
      $region103: #{block_forward.1} parent=99 // pred_region
        %p606 = scmp.lt.s32.totalorder %s28, 1
        %s607 = scalar_select %p606, %s28, 1
        %s608 = smul.addr %s607, 8
        %s609 = smul.addr %s608, 8
        %s610 = scalar_lea.vmem %s0, %s609
      $region104: #{block_forward.1} parent=99 // pred_fallthru
        _
    $region100: #{block_forward.1} parent=5 // pred_fallthru
      _
    %p611 = scmp.le.s32.totalorder 1, %s28
    %p612 = scmp.lt.s32.totalorder %s28, 3
    %p613 = pnand %p611, %p612
    %p614 = pneg %p613
    // Predicated region
    $region105: #{block_forward.1} parent=5 // pred_check
      _
    $region106: #{block_forward.1} parent=5 // pred_check_branch
      %616 = sbr.rel (%p613) target = $region108
    $region107: #{block_forward.1} parent=5 // pred_region
      %s617 = ssub.s32 %s28, 1
      %p618 = scmp.lt.s32.totalorder %s33, 1
      %s619 = scalar_select %p618, %s33, 1
      %s620 = smul.addr %s619, 8
      %s621 = smul.addr %s620, 8
      %s622 = scalar_lea.vmem %s0, %s621
      %p623 = pneg %p54
      %p624 = pneg %p51
      %p625 = pneg %p75
      %p626 = pneg %p72
      %p627 = pneg %p96
      %p628 = pneg %p93
      %p629 = pneg %p117
      %p630 = pneg %p114
      %p631 = pneg %p138
      %p632 = pneg %p135
      %p633 = pneg %p159
      %p634 = pneg %p156
      %p635 = pneg %p180
      %p636 = pneg %p177
      %p637 = pneg %p201
      %p638 = pneg %p198
      %p639 = pneg %p222
      %p640 = pneg %p219
      %p641 = pneg %p243
      %p642 = pneg %p240
      %p643 = pneg %p264
      %p644 = pneg %p261
      %p645 = pneg %p285
      %p646 = pneg %p282
      %p647 = pneg %p306
      %p648 = pneg %p303
      %p649 = pneg %p327
      %p650 = pneg %p324
      %p651 = pneg %p348
      %p652 = pneg %p345
      %p653 = pneg %p369
      %p654 = pneg %p366
      %p655 = pneg %p390
      %p656 = pneg %p387
      %p657 = pneg %p411
      %p658 = pneg %p408
      %p659 = pneg %p432
      %p660 = pneg %p429
      %p661 = pneg %p453
      %p662 = pneg %p450
      %p663 = pneg %p474
      %p664 = pneg %p471
      %p665 = pneg %p495
      %p666 = pneg %p492
      %p667 = pneg %p521
      %p668 = pneg %p518
      %p669 = scmp.lt.s32.totalorder %s33, 1
      %s670 = scalar_select %p669, %s33, 1
      %s671 = smul.addr %s670, 8
      %s672 = smul.addr %s671, 8
      %s673 = scalar_lea.vmem %s22, %s672
      %p674 = scmp.lt.s32.totalorder %s33, 1
      %s675 = scalar_select %p674, %s33, 1
      %s676 = smul.addr %s675, 8
      %s677 = smul.addr %s676, 8
      %s678 = scalar_lea.vmem %s0, %s677
      %p679 = scmp.lt.s32.totalorder %s33, 1
      %s680 = scalar_select %p679, %s33, 1
      %s681 = smul.addr %s680, 8
      %s682 = smul.addr %s681, 8
      %s683 = scalar_lea.vmem %s22, %s682
      %v684 = vld [vmem:[%s678] sm:$0xff]
      %v685 = vld [vmem:[%s678 + $0x8] sm:$0xff]
      %v686 = vld [vmem:[%s678 + $0x10] sm:$0xff]
      %v687 = vld [vmem:[%s678 + $0x18] sm:$0xff]
      %v688 = vld [vmem:[%s678 + $0x20] sm:$0xff]
      %v689 = vld [vmem:[%s678 + $0x28] sm:$0xff]
      %v690 = vld [vmem:[%s678 + $0x30] sm:$0xff]
      %v691 = vld [vmem:[%s678 + $0x38] sm:$0xff]
      %v692 = vlaneseq
      %v693 = vshrl.u32 %v692, 7
      %v694 = vadd.s32 %v693, 8
      %v695 = vadd.s32 %v693, 16
      %v696 = vadd.s32 %v693, 24
      %v697 = vadd.s32 %v693, 32
      %v698 = vadd.s32 %v693, 40
      %v699 = vadd.s32 %v693, 48
      %v700 = vadd.s32 %v693, 56
      %vm701 = vcmp.lt.s32.totalorder %v693, 0
      %v702 = vsub.s32 0, %v693
      %v703 = vsel %vm701, %v702, %v693
      %v704 = vshrl.u32 %v703, 3
      %v705 = vand.u32 %v703, 7
      %v706 = vsub.s32 0, %v705
      %v707 = vsel %vm701, %v706, %v705
      %vm708 = vcmp.lt.s32.totalorder %v694, 0
      %v709 = vsub.s32 0, %v694
      %v710 = vsel %vm708, %v709, %v694
      %v711 = vshrl.u32 %v710, 3
      %v712 = vand.u32 %v710, 7
      %v713 = vsub.s32 0, %v712
      %v714 = vsel %vm708, %v713, %v712
      %vm715 = vcmp.lt.s32.totalorder %v695, 0
      %v716 = vsub.s32 0, %v695
      %v717 = vsel %vm715, %v716, %v695
      %v718 = vshrl.u32 %v717, 3
      %v719 = vand.u32 %v717, 7
      %v720 = vsub.s32 0, %v719
      %v721 = vsel %vm715, %v720, %v719
      %vm722 = vcmp.lt.s32.totalorder %v696, 0
      %v723 = vsub.s32 0, %v696
      %v724 = vsel %vm722, %v723, %v696
      %v725 = vshrl.u32 %v724, 3
      %v726 = vand.u32 %v724, 7
      %v727 = vsub.s32 0, %v726
      %v728 = vsel %vm722, %v727, %v726
      %vm729 = vcmp.lt.s32.totalorder %v697, 0
      %v730 = vsub.s32 0, %v697
      %v731 = vsel %vm729, %v730, %v697
      %v732 = vshrl.u32 %v731, 3
      %v733 = vand.u32 %v731, 7
      %v734 = vsub.s32 0, %v733
      %v735 = vsel %vm729, %v734, %v733
      %vm736 = vcmp.lt.s32.totalorder %v698, 0
      %v737 = vsub.s32 0, %v698
      %v738 = vsel %vm736, %v737, %v698
      %v739 = vshrl.u32 %v738, 3
      %v740 = vand.u32 %v738, 7
      %v741 = vsub.s32 0, %v740
      %v742 = vsel %vm736, %v741, %v740
      %vm743 = vcmp.lt.s32.totalorder %v699, 0
      %v744 = vsub.s32 0, %v699
      %v745 = vsel %vm743, %v744, %v699
      %v746 = vshrl.u32 %v745, 3
      %v747 = vand.u32 %v745, 7
      %v748 = vsub.s32 0, %v747
      %v749 = vsel %vm743, %v748, %v747
      %vm750 = vcmp.lt.s32.totalorder %v700, 0
      %v751 = vsub.s32 0, %v700
      %v752 = vsel %vm750, %v751, %v700
      %v753 = vshrl.u32 %v752, 3
      %v754 = vand.u32 %v752, 7
      %v755 = vsub.s32 0, %v754
      %v756 = vsel %vm750, %v755, %v754
      %vm757 = vcmp.ne.s32.totalorder %v707, 0
      %vm758 = vcmp.ne.s32.totalorder %v714, 0
      %vm759 = vcmp.ne.s32.totalorder %v721, 0
      %vm760 = vcmp.ne.s32.totalorder %v728, 0
      %vm761 = vcmp.ne.s32.totalorder %v735, 0
      %vm762 = vcmp.ne.s32.totalorder %v742, 0
      %vm763 = vcmp.ne.s32.totalorder %v749, 0
      %vm764 = vcmp.ne.s32.totalorder %v756, 0
      %vm765 = vcmp.lt.s32.totalorder %v707, 0
      %vm766 = vcmp.lt.s32.totalorder %v714, 0
      %vm767 = vcmp.lt.s32.totalorder %v721, 0
      %vm768 = vcmp.lt.s32.totalorder %v728, 0
      %vm769 = vcmp.lt.s32.totalorder %v735, 0
      %vm770 = vcmp.lt.s32.totalorder %v742, 0
      %vm771 = vcmp.lt.s32.totalorder %v749, 0
      %vm772 = vcmp.lt.s32.totalorder %v756, 0
      %vm773 = vmand %vm765, %vm757
      %vm774 = vmand %vm766, %vm758
      %vm775 = vmand %vm767, %vm759
      %vm776 = vmand %vm768, %vm760
      %vm777 = vmand %vm769, %vm761
      %vm778 = vmand %vm770, %vm762
      %vm779 = vmand %vm771, %vm763
      %vm780 = vmand %vm772, %vm764
      %v781 = vadd.s32 %v707, 8
      %v782 = vadd.s32 %v714, 8
      %v783 = vadd.s32 %v721, 8
      %v784 = vadd.s32 %v728, 8
      %v785 = vadd.s32 %v735, 8
      %v786 = vadd.s32 %v742, 8
      %v787 = vadd.s32 %v749, 8
      %v788 = vadd.s32 %v756, 8
      %v789 = vsel %vm773, %v781, %v707
      %v790 = vsel %vm774, %v782, %v714
      %v791 = vsel %vm775, %v783, %v721
      %v792 = vsel %vm776, %v784, %v728
      %v793 = vsel %vm777, %v785, %v735
      %v794 = vsel %vm778, %v786, %v742
      %v795 = vsel %vm779, %v787, %v749
      %v796 = vsel %vm780, %v788, %v756
      %vm797 = vcmp.ge.s32.totalorder %v789, 1
      %vm798 = vcmp.ge.s32.totalorder %v790, 1
      %vm799 = vcmp.ge.s32.totalorder %v791, 1
      %vm800 = vcmp.ge.s32.totalorder %v792, 1
      %vm801 = vcmp.ge.s32.totalorder %v793, 1
      %vm802 = vcmp.ge.s32.totalorder %v794, 1
      %vm803 = vcmp.ge.s32.totalorder %v795, 1
      %vm804 = vcmp.ge.s32.totalorder %v796, 1
      %vm805 = vcmp.le.s32.totalorder %v789, 6
      %vm806 = vcmp.le.s32.totalorder %v790, 6
      %vm807 = vcmp.le.s32.totalorder %v791, 6
      %vm808 = vcmp.le.s32.totalorder %v792, 6
      %vm809 = vcmp.le.s32.totalorder %v793, 6
      %vm810 = vcmp.le.s32.totalorder %v794, 6
      %vm811 = vcmp.le.s32.totalorder %v795, 6
      %vm812 = vcmp.le.s32.totalorder %v796, 6
      %v813 = vld [vmem:[%s1] sm:$0x1]
      %v814 = vld [vmem:[%s2] sm:$0x1]
      %vm815 = vcmask 261120
      %v816 = vsel %vm815, %v684, 0.0
      %817 = vadd.xlane.f32.xlu0 %v816
      %v818 = vpop.xlane.xlu0 %817
      %v819 = vsel %vm815, %v685, 0.0
      %820 = vadd.xlane.f32.xlu0 %v819
      %v821 = vpop.xlane.xlu0 %820
      %v822 = vsel %vm815, %v686, 0.0
      %823 = vadd.xlane.f32.xlu0 %v822
      %v824 = vpop.xlane.xlu0 %823
      %v825 = vsel %vm815, %v687, 0.0
      %826 = vadd.xlane.f32.xlu0 %v825
      %v827 = vpop.xlane.xlu0 %826
      %v828 = vsel %vm815, %v688, 0.0
      %829 = vadd.xlane.f32.xlu0 %v828
      %v830 = vpop.xlane.xlu0 %829
      %v831 = vsel %vm815, %v689, 0.0
      %832 = vadd.xlane.f32.xlu0 %v831
      %v833 = vpop.xlane.xlu0 %832
      %v834 = vsel %vm815, %v690, 0.0
      %835 = vadd.xlane.f32.xlu0 %v834
      %v836 = vpop.xlane.xlu0 %835
      %v837 = vsel %vm815, %v691, 0.0
      %838 = vadd.xlane.f32.xlu0 %v837
      %v839 = vpop.xlane.xlu0 %838
      %v840 = vrcp.pop 32.0
      %v841 = vmul.f32 32.0, %v840
      %v842 = vsub.f32 1.0, %v841
      %v843 = vmul.f32 %v840, %v842
      %v844 = vadd.f32 %v840, %v843
      %vm845 = vweird.f32 %v840
      %v846 = vsel %vm845, %v840, %v844
      %v847 = vmul.f32 %v818, %v846
      %v848 = vmul.f32 %v821, %v846
      %v849 = vmul.f32 %v824, %v846
      %v850 = vmul.f32 %v827, %v846
      %v851 = vmul.f32 %v830, %v846
      %v852 = vmul.f32 %v833, %v846
      %v853 = vmul.f32 %v836, %v846
      %v854 = vmul.f32 %v839, %v846
      %v855 = vsub.f32 %v684, %v847
      %v856 = vsub.f32 %v685, %v848
      %v857 = vsub.f32 %v686, %v849
      %v858 = vsub.f32 %v687, %v850
      %v859 = vsub.f32 %v688, %v851
      %v860 = vsub.f32 %v689, %v852
      %v861 = vsub.f32 %v690, %v853
      %v862 = vsub.f32 %v691, %v854
      %v863 = vmul.f32 %v855, %v855
      %v864 = vmul.f32 %v856, %v856
      %v865 = vmul.f32 %v857, %v857
      %v866 = vmul.f32 %v858, %v858
      %v867 = vmul.f32 %v859, %v859
      %v868 = vmul.f32 %v860, %v860
      %v869 = vmul.f32 %v861, %v861
      %v870 = vmul.f32 %v862, %v862
      %v871 = vsel %vm815, %v863, 0.0
      %872 = vadd.xlane.f32.xlu0 %v871
      %v873 = vpop.xlane.xlu0 %872
      %v874 = vsel %vm815, %v864, 0.0
      %875 = vadd.xlane.f32.xlu0 %v874
      %v876 = vpop.xlane.xlu0 %875
      %v877 = vsel %vm815, %v865, 0.0
      %878 = vadd.xlane.f32.xlu0 %v877
      %v879 = vpop.xlane.xlu0 %878
      %v880 = vsel %vm815, %v866, 0.0
      %881 = vadd.xlane.f32.xlu0 %v880
      %v882 = vpop.xlane.xlu0 %881
      %v883 = vsel %vm815, %v867, 0.0
      %884 = vadd.xlane.f32.xlu0 %v883
      %v885 = vpop.xlane.xlu0 %884
      %v886 = vsel %vm815, %v868, 0.0
      %887 = vadd.xlane.f32.xlu0 %v886
      %v888 = vpop.xlane.xlu0 %887
      %v889 = vsel %vm815, %v869, 0.0
      %890 = vadd.xlane.f32.xlu0 %v889
      %v891 = vpop.xlane.xlu0 %890
      %v892 = vsel %vm815, %v870, 0.0
      %893 = vadd.xlane.f32.xlu0 %v892
      %v894 = vpop.xlane.xlu0 %893
      %v895 = vmul.f32 %v873, %v846
      %v896 = vmul.f32 %v876, %v846
      %v897 = vmul.f32 %v879, %v846
      %v898 = vmul.f32 %v882, %v846
      %v899 = vmul.f32 %v885, %v846
      %v900 = vmul.f32 %v888, %v846
      %v901 = vmul.f32 %v891, %v846
      %v902 = vmul.f32 %v894, %v846
      %v903 = vadd.f32 %v895, 1e-05
      %v904 = vadd.f32 %v896, 1e-05
      %v905 = vadd.f32 %v897, 1e-05
      %v906 = vadd.f32 %v898, 1e-05
      %v907 = vadd.f32 %v899, 1e-05
      %v908 = vadd.f32 %v900, 1e-05
      %v909 = vadd.f32 %v901, 1e-05
      %v910 = vadd.f32 %v902, 1e-05
      %v911 = vrsqrt.pop %v903
      %v912 = vmul.f32 %v911, %v903
      %v913 = vmul.f32 %v912, %v911
      %v914 = vmul.f32 0.5, %v913
      %v915 = vsub.f32 1.5, %v914
      %v916 = vmul.f32 %v911, %v915
      %vm917 = vweird.f32 %v903
      %vm918 = vweird.f32 %v911
      %vm919 = vmor %vm917, %vm918
      %v920 = vsel %vm919, %v911, %v916
      %v921 = vrsqrt.pop %v904
      %v922 = vmul.f32 %v921, %v904
      %v923 = vmul.f32 %v922, %v921
      %v924 = vmul.f32 0.5, %v923
      %v925 = vsub.f32 1.5, %v924
      %v926 = vmul.f32 %v921, %v925
      %vm927 = vweird.f32 %v904
      %vm928 = vweird.f32 %v921
      %vm929 = vmor %vm927, %vm928
      %v930 = vsel %vm929, %v921, %v926
      %v931 = vrsqrt.pop %v905
      %v932 = vmul.f32 %v931, %v905
      %v933 = vmul.f32 %v932, %v931
      %v934 = vmul.f32 0.5, %v933
      %v935 = vsub.f32 1.5, %v934
      %v936 = vmul.f32 %v931, %v935
      %vm937 = vweird.f32 %v905
      %vm938 = vweird.f32 %v931
      %vm939 = vmor %vm937, %vm938
      %v940 = vsel %vm939, %v931, %v936
      %v941 = vrsqrt.pop %v906
      %v942 = vmul.f32 %v941, %v906
      %v943 = vmul.f32 %v942, %v941
      %v944 = vmul.f32 0.5, %v943
      %v945 = vsub.f32 1.5, %v944
      %v946 = vmul.f32 %v941, %v945
      %vm947 = vweird.f32 %v906
      %vm948 = vweird.f32 %v941
      %vm949 = vmor %vm947, %vm948
      %v950 = vsel %vm949, %v941, %v946
      %v951 = vrsqrt.pop %v907
      %v952 = vmul.f32 %v951, %v907
      %v953 = vmul.f32 %v952, %v951
      %v954 = vmul.f32 0.5, %v953
      %v955 = vsub.f32 1.5, %v954
      %v956 = vmul.f32 %v951, %v955
      %vm957 = vweird.f32 %v907
      %vm958 = vweird.f32 %v951
      %vm959 = vmor %vm957, %vm958
      %v960 = vsel %vm959, %v951, %v956
      %v961 = vrsqrt.pop %v908
      %v962 = vmul.f32 %v961, %v908
      %v963 = vmul.f32 %v962, %v961
      %v964 = vmul.f32 0.5, %v963
      %v965 = vsub.f32 1.5, %v964
      %v966 = vmul.f32 %v961, %v965
      %vm967 = vweird.f32 %v908
      %vm968 = vweird.f32 %v961
      %vm969 = vmor %vm967, %vm968
      %v970 = vsel %vm969, %v961, %v966
      %v971 = vrsqrt.pop %v909
      %v972 = vmul.f32 %v971, %v909
      %v973 = vmul.f32 %v972, %v971
      %v974 = vmul.f32 0.5, %v973
      %v975 = vsub.f32 1.5, %v974
      %v976 = vmul.f32 %v971, %v975
      %vm977 = vweird.f32 %v909
      %vm978 = vweird.f32 %v971
      %vm979 = vmor %vm977, %vm978
      %v980 = vsel %vm979, %v971, %v976
      %v981 = vrsqrt.pop %v910
      %v982 = vmul.f32 %v981, %v910
      %v983 = vmul.f32 %v982, %v981
      %v984 = vmul.f32 0.5, %v983
      %v985 = vsub.f32 1.5, %v984
      %v986 = vmul.f32 %v981, %v985
      %vm987 = vweird.f32 %v910
      %vm988 = vweird.f32 %v981
      %vm989 = vmor %vm987, %vm988
      %v990 = vsel %vm989, %v981, %v986
      %v991 = vmul.f32 %v855, %v920
      %v992 = vmul.f32 %v856, %v930
      %v993 = vmul.f32 %v857, %v940
      %v994 = vmul.f32 %v858, %v950
      %v995 = vmul.f32 %v859, %v960
      %v996 = vmul.f32 %v860, %v970
      %v997 = vmul.f32 %v861, %v980
      %v998 = vmul.f32 %v862, %v990
      %v1000 = vperm.slane %v813, 0
      %v1002 = vmul.f32 %v991, %v1000
      %v1003 = vmul.f32 %v992, %v1000
      %v1004 = vmul.f32 %v993, %v1000
      %v1005 = vmul.f32 %v994, %v1000
      %v1006 = vmul.f32 %v995, %v1000
      %v1007 = vmul.f32 %v996, %v1000
      %v1008 = vmul.f32 %v997, %v1000
      %v1009 = vmul.f32 %v998, %v1000
      %v1011 = vperm.slane %v814, 0
      %v1013 = vadd.f32 %v1002, %v1011
      %v1014 = vadd.f32 %v1003, %v1011
      %v1015 = vadd.f32 %v1004, %v1011
      %v1016 = vadd.f32 %v1005, %v1011
      %v1017 = vadd.f32 %v1006, %v1011
      %v1018 = vadd.f32 %v1007, %v1011
      %v1019 = vadd.f32 %v1008, %v1011
      %v1020 = vadd.f32 %v1009, %v1011
      %v1021 = vld [vmem:[%s3] sm:$0xff]
      %v1022 = vld [vmem:[%s3 + $0x8] sm:$0xff]
      %v1023 = vld [vmem:[%s3 + $0x10] sm:$0xff]
      %v1024 = vld [vmem:[%s3 + $0x18] sm:$0xff]
      %v1026 = vsel %vm815, %v1013, 0
      %v1029 = vsel %vm815, %v1014, 0
      %v1032 = vsel %vm815, %v1015, 0
      %v1035 = vsel %vm815, %v1016, 0
      %v1038 = vsel %vm815, %v1017, 0
      %v1041 = vsel %vm815, %v1018, 0
      %v1044 = vsel %vm815, %v1019, 0
      %v1047 = vsel %vm815, %v1020, 0
      %1049 = vmatpush.msra.mxu0 0.0
      %1050 = vmatpush.msra.mxu0 0.0
      %1051 = vmatpush.msra.mxu0 0.0
      %1052 = vmatpush.msra.mxu0 0.0
      %1053 = vmatpush.msra.mxu0 0.0
      %1054 = vmatpush.msra.mxu0 0.0
      %1055 = vmatpush.msra.mxu0 0.0
      %1056 = vmatpush.msra.mxu0 0.0
      %1057 = vmatpush.msra.mxu0 0.0
      %1058 = vmatpush.msra.mxu0 0.0
      %1059 = vmatpush.msra.mxu0 0.0
      %1060 = vmatpush.msra.mxu0 0.0
      %1061 = vmatpush.msra.mxu0 %v1024
      %1062 = vmatpush.msra.mxu0 %v1023
      %1063 = vmatpush.msra.mxu0 %v1022
      %1064 = vmatpush.msra.mxu0 %v1021
      %1065 = vmatmul.f32.gmra.mxu0 %v1026
      %v1066 = vpop.f32.mrf.mxu0
      %v1067 = vadd.f32 0.0, %v1066
      %1068 = vmatmul.f32.gmra.mxu0 %v1029
      %v1069 = vpop.f32.mrf.mxu0
      %v1070 = vadd.f32 0.0, %v1069
      %1071 = vmatmul.f32.gmra.mxu0 %v1032
      %v1072 = vpop.f32.mrf.mxu0
      %v1073 = vadd.f32 0.0, %v1072
      %1074 = vmatmul.f32.gmra.mxu0 %v1035
      %v1075 = vpop.f32.mrf.mxu0
      %v1076 = vadd.f32 0.0, %v1075
      %1077 = vmatmul.f32.gmra.mxu0 %v1038
      %v1078 = vpop.f32.mrf.mxu0
      %v1079 = vadd.f32 0.0, %v1078
      %1080 = vmatmul.f32.gmra.mxu0 %v1041
      %v1081 = vpop.f32.mrf.mxu0
      %v1082 = vadd.f32 0.0, %v1081
      %1083 = vmatmul.f32.gmra.mxu0 %v1044
      %v1084 = vpop.f32.mrf.mxu0
      %v1085 = vadd.f32 0.0, %v1084
      %1086 = vmatmul.f32.gmra.mxu0 %v1047
      %v1087 = vpop.f32.mrf.mxu0
      %v1088 = vadd.f32 0.0, %v1087
      %1089 = vdwg.mxu0
      %v1090 = vld [vmem:[%s4] sm:$0xff]
      %v1091 = vld [vmem:[%s4 + $0x8] sm:$0xff]
      %v1092 = vld [vmem:[%s4 + $0x10] sm:$0xff]
      %v1093 = vld [vmem:[%s4 + $0x18] sm:$0xff]
      %v1094 = vmul.f32 %v1067, 0.35355338
      %v1095 = vmul.f32 %v1070, 0.35355338
      %v1096 = vmul.f32 %v1073, 0.35355338
      %v1097 = vmul.f32 %v1076, 0.35355338
      %v1098 = vmul.f32 %v1079, 0.35355338
      %v1099 = vmul.f32 %v1082, 0.35355338
      %v1100 = vmul.f32 %v1085, 0.35355338
      %v1101 = vmul.f32 %v1088, 0.35355338
      %1110 = vrot.lane.b32.xlu0 %v1067, 96
      %v1111 = vpop.permute.xlu0 %1110
      %1112 = vrot.lane.b32.xlu0 %v1070, 96
      %v1113 = vpop.permute.xlu0 %1112
      %1114 = vrot.lane.b32.xlu0 %v1073, 96
      %v1115 = vpop.permute.xlu0 %1114
      %1116 = vrot.lane.b32.xlu0 %v1076, 96
      %v1117 = vpop.permute.xlu0 %1116
      %1118 = vrot.lane.b32.xlu0 %v1079, 96
      %v1119 = vpop.permute.xlu0 %1118
      %1120 = vrot.lane.b32.xlu0 %v1082, 96
      %v1121 = vpop.permute.xlu0 %1120
      %1122 = vrot.lane.b32.xlu0 %v1085, 96
      %v1123 = vpop.permute.xlu0 %1122
      %1124 = vrot.lane.b32.xlu0 %v1088, 96
      %v1125 = vpop.permute.xlu0 %1124
      %vm1126 = vcmask 64512
      %v1128 = vsel %vm1126, %v1094, 0
      %v1131 = vsel %vm1126, %v1095, 0
      %v1134 = vsel %vm1126, %v1096, 0
      %v1137 = vsel %vm1126, %v1097, 0
      %v1140 = vsel %vm1126, %v1098, 0
      %v1143 = vsel %vm1126, %v1099, 0
      %v1146 = vsel %vm1126, %v1100, 0
      %v1149 = vsel %vm1126, %v1101, 0
      %v1151 = vsel %vm1126, %v1111, 0
      %v1153 = vsel %vm1126, %v1113, 0
      %v1155 = vsel %vm1126, %v1115, 0
      %v1157 = vsel %vm1126, %v1117, 0
      %v1159 = vsel %vm1126, %v1119, 0
      %v1161 = vsel %vm1126, %v1121, 0
      %v1163 = vsel %vm1126, %v1123, 0
      %v1165 = vsel %vm1126, %v1125, 0
      %1167 = vmatpush.xpose.msra.mxu0 0.0
      %1168 = vmatpush.xpose.msra.mxu0 0.0
      %1169 = vmatpush.xpose.msra.mxu0 0.0
      %1170 = vmatpush.xpose.msra.mxu0 0.0
      %1171 = vmatpush.xpose.msra.mxu0 0.0
      %1172 = vmatpush.xpose.msra.mxu0 0.0
      %1173 = vmatpush.xpose.msra.mxu0 0.0
      %1174 = vmatpush.xpose.msra.mxu0 0.0
      %1175 = vmatpush.xpose.msra.mxu0 %v1165
      %1176 = vmatpush.xpose.msra.mxu0 %v1163
      %1177 = vmatpush.xpose.msra.mxu0 %v1161
      %1178 = vmatpush.xpose.msra.mxu0 %v1159
      %1179 = vmatpush.xpose.msra.mxu0 %v1157
      %1180 = vmatpush.xpose.msra.mxu0 %v1155
      %1181 = vmatpush.xpose.msra.mxu0 %v1153
      %1182 = vmatpush.xpose.msra.mxu0 %v1151
      %1183 = vmatmul.f32.gmra.mxu0 %v1128
      %v1184 = vpop.f32.mrf.mxu0
      %v1185 = vadd.f32 0.0, %v1184
      %1186 = vmatmul.f32.gmra.mxu0 %v1131
      %v1187 = vpop.f32.mrf.mxu0
      %v1188 = vadd.f32 0.0, %v1187
      %1189 = vmatmul.f32.gmra.mxu0 %v1134
      %v1190 = vpop.f32.mrf.mxu0
      %v1191 = vadd.f32 0.0, %v1190
      %1192 = vmatmul.f32.gmra.mxu0 %v1137
      %v1193 = vpop.f32.mrf.mxu0
      %v1194 = vadd.f32 0.0, %v1193
      %1195 = vmatmul.f32.gmra.mxu0 %v1140
      %v1196 = vpop.f32.mrf.mxu0
      %v1197 = vadd.f32 0.0, %v1196
      %1198 = vmatmul.f32.gmra.mxu0 %v1143
      %v1199 = vpop.f32.mrf.mxu0
      %v1200 = vadd.f32 0.0, %v1199
      %1201 = vmatmul.f32.gmra.mxu0 %v1146
      %v1202 = vpop.f32.mrf.mxu0
      %v1203 = vadd.f32 0.0, %v1202
      %1204 = vmatmul.f32.gmra.mxu0 %v1149
      %v1205 = vpop.f32.mrf.mxu0
      %v1206 = vadd.f32 0.0, %v1205
      %1207 = vdwg.mxu0
      %vm1208 = vcmask 523264
      %v1209 = vsel %vm1208, %v1185, -inf
      %1210 = vmax.xlane.f32.xlu0 %v1209
      %v1211 = vpop.xlane.xlu0 %1210
      %v1212 = vsel %vm1208, %v1188, -inf
      %1213 = vmax.xlane.f32.xlu0 %v1212
      %v1214 = vpop.xlane.xlu0 %1213
      %v1215 = vsel %vm1208, %v1191, -inf
      %1216 = vmax.xlane.f32.xlu0 %v1215
      %v1217 = vpop.xlane.xlu0 %1216
      %v1218 = vsel %vm1208, %v1194, -inf
      %1219 = vmax.xlane.f32.xlu0 %v1218
      %v1220 = vpop.xlane.xlu0 %1219
      %v1221 = vsel %vm1208, %v1197, -inf
      %1222 = vmax.xlane.f32.xlu0 %v1221
      %v1223 = vpop.xlane.xlu0 %1222
      %v1224 = vsel %vm1208, %v1200, -inf
      %1225 = vmax.xlane.f32.xlu0 %v1224
      %v1226 = vpop.xlane.xlu0 %1225
      %v1227 = vsel %vm1208, %v1203, -inf
      %1228 = vmax.xlane.f32.xlu0 %v1227
      %v1229 = vpop.xlane.xlu0 %1228
      %v1230 = vsel %vm1208, %v1206, -inf
      %1231 = vmax.xlane.f32.xlu0 %v1230
      %v1232 = vpop.xlane.xlu0 %1231
      %v1233 = vsub.f32 %v1185, %v1211
      %v1234 = vsub.f32 %v1188, %v1214
      %v1235 = vsub.f32 %v1191, %v1217
      %v1236 = vsub.f32 %v1194, %v1220
      %v1237 = vsub.f32 %v1197, %v1223
      %v1238 = vsub.f32 %v1200, %v1226
      %v1239 = vsub.f32 %v1203, %v1229
      %v1240 = vsub.f32 %v1206, %v1232
      %v1241 = vmul.f32 %v1233, 1.442695
      %v1242 = vpow.pop %v1241
      %v1243 = vmul.f32 %v1234, 1.442695
      %v1244 = vpow.pop %v1243
      %v1245 = vmul.f32 %v1235, 1.442695
      %v1246 = vpow.pop %v1245
      %v1247 = vmul.f32 %v1236, 1.442695
      %v1248 = vpow.pop %v1247
      %v1249 = vmul.f32 %v1237, 1.442695
      %v1250 = vpow.pop %v1249
      %v1251 = vmul.f32 %v1238, 1.442695
      %v1252 = vpow.pop %v1251
      %v1253 = vmul.f32 %v1239, 1.442695
      %v1254 = vpow.pop %v1253
      %v1255 = vmul.f32 %v1240, 1.442695
      %v1256 = vpow.pop %v1255
      %v1257 = vsel %vm1208, %v1242, 0.0
      %1258 = vadd.xlane.f32.xlu0 %v1257
      %v1259 = vpop.xlane.xlu0 %1258
      %v1260 = vsel %vm1208, %v1244, 0.0
      %1261 = vadd.xlane.f32.xlu0 %v1260
      %v1262 = vpop.xlane.xlu0 %1261
      %v1263 = vsel %vm1208, %v1246, 0.0
      %1264 = vadd.xlane.f32.xlu0 %v1263
      %v1265 = vpop.xlane.xlu0 %1264
      %v1266 = vsel %vm1208, %v1248, 0.0
      %1267 = vadd.xlane.f32.xlu0 %v1266
      %v1268 = vpop.xlane.xlu0 %1267
      %v1269 = vsel %vm1208, %v1250, 0.0
      %1270 = vadd.xlane.f32.xlu0 %v1269
      %v1271 = vpop.xlane.xlu0 %1270
      %v1272 = vsel %vm1208, %v1252, 0.0
      %1273 = vadd.xlane.f32.xlu0 %v1272
      %v1274 = vpop.xlane.xlu0 %1273
      %v1275 = vsel %vm1208, %v1254, 0.0
      %1276 = vadd.xlane.f32.xlu0 %v1275
      %v1277 = vpop.xlane.xlu0 %1276
      %v1278 = vsel %vm1208, %v1256, 0.0
      %1279 = vadd.xlane.f32.xlu0 %v1278
      %v1280 = vpop.xlane.xlu0 %1279
      %v1281 = vrcp.pop %v1259
      %v1282 = vmul.f32 %v1259, %v1281
      %v1283 = vsub.f32 1.0, %v1282
      %v1284 = vmul.f32 %v1281, %v1283
      %v1285 = vadd.f32 %v1281, %v1284
      %vm1286 = vweird.f32 %v1259
      %vm1287 = vweird.f32 %v1281
      %vm1288 = vmor %vm1286, %vm1287
      %v1289 = vsel %vm1288, %v1281, %v1285
      %v1290 = vand.u32 2147483647, %v1259
      %vm1291 = vcmp.eq.f32.partialorder %v1290, 8.507059e+37
      %v1292 = vand.u32 %v1259, 2147483648
      %v1293 = vor.u32 1.1754944e-38, %v1292
      %v1294 = vsel %vm1291, %v1293, %v1289
      %v1295 = vmul.f32 %v1242, %v1294
      %v1296 = vrcp.pop %v1262
      %v1297 = vmul.f32 %v1262, %v1296
      %v1298 = vsub.f32 1.0, %v1297
      %v1299 = vmul.f32 %v1296, %v1298
      %v1300 = vadd.f32 %v1296, %v1299
      %vm1301 = vweird.f32 %v1262
      %vm1302 = vweird.f32 %v1296
      %vm1303 = vmor %vm1301, %vm1302
      %v1304 = vsel %vm1303, %v1296, %v1300
      %v1305 = vand.u32 2147483647, %v1262
      %vm1306 = vcmp.eq.f32.partialorder %v1305, 8.507059e+37
      %v1307 = vand.u32 %v1262, 2147483648
      %v1308 = vor.u32 1.1754944e-38, %v1307
      %v1309 = vsel %vm1306, %v1308, %v1304
      %v1310 = vmul.f32 %v1244, %v1309
      %v1311 = vrcp.pop %v1265
      %v1312 = vmul.f32 %v1265, %v1311
      %v1313 = vsub.f32 1.0, %v1312
      %v1314 = vmul.f32 %v1311, %v1313
      %v1315 = vadd.f32 %v1311, %v1314
      %vm1316 = vweird.f32 %v1265
      %vm1317 = vweird.f32 %v1311
      %vm1318 = vmor %vm1316, %vm1317
      %v1319 = vsel %vm1318, %v1311, %v1315
      %v1320 = vand.u32 2147483647, %v1265
      %vm1321 = vcmp.eq.f32.partialorder %v1320, 8.507059e+37
      %v1322 = vand.u32 %v1265, 2147483648
      %v1323 = vor.u32 1.1754944e-38, %v1322
      %v1324 = vsel %vm1321, %v1323, %v1319
      %v1325 = vmul.f32 %v1246, %v1324
      %v1326 = vrcp.pop %v1268
      %v1327 = vmul.f32 %v1268, %v1326
      %v1328 = vsub.f32 1.0, %v1327
      %v1329 = vmul.f32 %v1326, %v1328
      %v1330 = vadd.f32 %v1326, %v1329
      %vm1331 = vweird.f32 %v1268
      %vm1332 = vweird.f32 %v1326
      %vm1333 = vmor %vm1331, %vm1332
      %v1334 = vsel %vm1333, %v1326, %v1330
      %v1335 = vand.u32 2147483647, %v1268
      %vm1336 = vcmp.eq.f32.partialorder %v1335, 8.507059e+37
      %v1337 = vand.u32 %v1268, 2147483648
      %v1338 = vor.u32 1.1754944e-38, %v1337
      %v1339 = vsel %vm1336, %v1338, %v1334
      %v1340 = vmul.f32 %v1248, %v1339
      %v1341 = vrcp.pop %v1271
      %v1342 = vmul.f32 %v1271, %v1341
      %v1343 = vsub.f32 1.0, %v1342
      %v1344 = vmul.f32 %v1341, %v1343
      %v1345 = vadd.f32 %v1341, %v1344
      %vm1346 = vweird.f32 %v1271
      %vm1347 = vweird.f32 %v1341
      %vm1348 = vmor %vm1346, %vm1347
      %v1349 = vsel %vm1348, %v1341, %v1345
      %v1350 = vand.u32 2147483647, %v1271
      %vm1351 = vcmp.eq.f32.partialorder %v1350, 8.507059e+37
      %v1352 = vand.u32 %v1271, 2147483648
      %v1353 = vor.u32 1.1754944e-38, %v1352
      %v1354 = vsel %vm1351, %v1353, %v1349
      %v1355 = vmul.f32 %v1250, %v1354
      %v1356 = vrcp.pop %v1274
      %v1357 = vmul.f32 %v1274, %v1356
      %v1358 = vsub.f32 1.0, %v1357
      %v1359 = vmul.f32 %v1356, %v1358
      %v1360 = vadd.f32 %v1356, %v1359
      %vm1361 = vweird.f32 %v1274
      %vm1362 = vweird.f32 %v1356
      %vm1363 = vmor %vm1361, %vm1362
      %v1364 = vsel %vm1363, %v1356, %v1360
      %v1365 = vand.u32 2147483647, %v1274
      %vm1366 = vcmp.eq.f32.partialorder %v1365, 8.507059e+37
      %v1367 = vand.u32 %v1274, 2147483648
      %v1368 = vor.u32 1.1754944e-38, %v1367
      %v1369 = vsel %vm1366, %v1368, %v1364
      %v1370 = vmul.f32 %v1252, %v1369
      %v1371 = vrcp.pop %v1277
      %v1372 = vmul.f32 %v1277, %v1371
      %v1373 = vsub.f32 1.0, %v1372
      %v1374 = vmul.f32 %v1371, %v1373
      %v1375 = vadd.f32 %v1371, %v1374
      %vm1376 = vweird.f32 %v1277
      %vm1377 = vweird.f32 %v1371
      %vm1378 = vmor %vm1376, %vm1377
      %v1379 = vsel %vm1378, %v1371, %v1375
      %v1380 = vand.u32 2147483647, %v1277
      %vm1381 = vcmp.eq.f32.partialorder %v1380, 8.507059e+37
      %v1382 = vand.u32 %v1277, 2147483648
      %v1383 = vor.u32 1.1754944e-38, %v1382
      %v1384 = vsel %vm1381, %v1383, %v1379
      %v1385 = vmul.f32 %v1254, %v1384
      %v1386 = vrcp.pop %v1280
      %v1387 = vmul.f32 %v1280, %v1386
      %v1388 = vsub.f32 1.0, %v1387
      %v1389 = vmul.f32 %v1386, %v1388
      %v1390 = vadd.f32 %v1386, %v1389
      %vm1391 = vweird.f32 %v1280
      %vm1392 = vweird.f32 %v1386
      %vm1393 = vmor %vm1391, %vm1392
      %v1394 = vsel %vm1393, %v1386, %v1390
      %v1395 = vand.u32 2147483647, %v1280
      %vm1396 = vcmp.eq.f32.partialorder %v1395, 8.507059e+37
      %v1397 = vand.u32 %v1280, 2147483648
      %v1398 = vor.u32 1.1754944e-38, %v1397
      %v1399 = vsel %vm1396, %v1398, %v1394
      %v1400 = vmul.f32 %v1256, %v1399
      %1401 = vrot.lane.b32.xlu0 %v1067, 64
      %v1402 = vpop.permute.xlu0 %1401
      %1403 = vrot.lane.b32.xlu0 %v1070, 64
      %v1404 = vpop.permute.xlu0 %1403
      %1405 = vrot.lane.b32.xlu0 %v1073, 64
      %v1406 = vpop.permute.xlu0 %1405
      %1407 = vrot.lane.b32.xlu0 %v1076, 64
      %v1408 = vpop.permute.xlu0 %1407
      %1409 = vrot.lane.b32.xlu0 %v1079, 64
      %v1410 = vpop.permute.xlu0 %1409
      %1411 = vrot.lane.b32.xlu0 %v1082, 64
      %v1412 = vpop.permute.xlu0 %1411
      %1413 = vrot.lane.b32.xlu0 %v1085, 64
      %v1414 = vpop.permute.xlu0 %1413
      %1415 = vrot.lane.b32.xlu0 %v1088, 64
      %v1416 = vpop.permute.xlu0 %1415
      %v1426 = vsel %vm1208, %v1295, 0
      %v1429 = vsel %vm1208, %v1310, 0
      %v1432 = vsel %vm1208, %v1325, 0
      %v1435 = vsel %vm1208, %v1340, 0
      %v1438 = vsel %vm1208, %v1355, 0
      %v1441 = vsel %vm1208, %v1370, 0
      %v1444 = vsel %vm1208, %v1385, 0
      %v1447 = vsel %vm1208, %v1400, 0
      %1449 = vmatpush.msra.mxu0 0.0
      %1450 = vmatpush.msra.mxu0 0.0
      %1451 = vmatpush.msra.mxu0 0.0
      %1452 = vmatpush.msra.mxu0 0.0
      %1453 = vmatpush.msra.mxu0 0.0
      %1454 = vmatpush.msra.mxu0 0.0
      %1455 = vmatpush.msra.mxu0 0.0
      %1456 = vmatpush.msra.mxu0 0.0
      %1457 = vmatpush.msra.mxu0 %v1416
      %1458 = vmatpush.msra.mxu0 %v1414
      %1459 = vmatpush.msra.mxu0 %v1412
      %1460 = vmatpush.msra.mxu0 %v1410
      %1461 = vmatpush.msra.mxu0 %v1408
      %1462 = vmatpush.msra.mxu0 %v1406
      %1463 = vmatpush.msra.mxu0 %v1404
      %1464 = vmatpush.msra.mxu0 %v1402
      %1465 = vmatmul.f32.gmra.mxu0 %v1426
      %v1466 = vpop.f32.mrf.mxu0
      %v1467 = vadd.f32 0.0, %v1466
      %1468 = vmatmul.f32.gmra.mxu0 %v1429
      %v1469 = vpop.f32.mrf.mxu0
      %v1470 = vadd.f32 0.0, %v1469
      %1471 = vmatmul.f32.gmra.mxu0 %v1432
      %v1472 = vpop.f32.mrf.mxu0
      %v1473 = vadd.f32 0.0, %v1472
      %1474 = vmatmul.f32.gmra.mxu0 %v1435
      %v1475 = vpop.f32.mrf.mxu0
      %v1476 = vadd.f32 0.0, %v1475
      %1477 = vmatmul.f32.gmra.mxu0 %v1438
      %v1478 = vpop.f32.mrf.mxu0
      %v1479 = vadd.f32 0.0, %v1478
      %1480 = vmatmul.f32.gmra.mxu0 %v1441
      %v1481 = vpop.f32.mrf.mxu0
      %v1482 = vadd.f32 0.0, %v1481
      %1483 = vmatmul.f32.gmra.mxu0 %v1444
      %v1484 = vpop.f32.mrf.mxu0
      %v1485 = vadd.f32 0.0, %v1484
      %1486 = vmatmul.f32.gmra.mxu0 %v1447
      %v1487 = vpop.f32.mrf.mxu0
      %v1488 = vadd.f32 0.0, %v1487
      %1489 = vdwg.mxu0
      %1490 = vrot.lane.b32.xlu0 %v1094, 120
      %v1491 = vpop.permute.xlu0 %1490
      %1492 = vrot.lane.b32.xlu0 %v1095, 120
      %v1493 = vpop.permute.xlu0 %1492
      %1494 = vrot.lane.b32.xlu0 %v1096, 120
      %v1495 = vpop.permute.xlu0 %1494
      %1496 = vrot.lane.b32.xlu0 %v1097, 120
      %v1497 = vpop.permute.xlu0 %1496
      %1498 = vrot.lane.b32.xlu0 %v1098, 120
      %v1499 = vpop.permute.xlu0 %1498
      %1500 = vrot.lane.b32.xlu0 %v1099, 120
      %v1501 = vpop.permute.xlu0 %1500
      %1502 = vrot.lane.b32.xlu0 %v1100, 120
      %v1503 = vpop.permute.xlu0 %1502
      %1504 = vrot.lane.b32.xlu0 %v1101, 120
      %v1505 = vpop.permute.xlu0 %1504
      %1506 = vrot.lane.b32.xlu0 %v1067, 88
      %v1507 = vpop.permute.xlu0 %1506
      %1508 = vrot.lane.b32.xlu0 %v1070, 88
      %v1509 = vpop.permute.xlu0 %1508
      %1510 = vrot.lane.b32.xlu0 %v1073, 88
      %v1511 = vpop.permute.xlu0 %1510
      %1512 = vrot.lane.b32.xlu0 %v1076, 88
      %v1513 = vpop.permute.xlu0 %1512
      %1514 = vrot.lane.b32.xlu0 %v1079, 88
      %v1515 = vpop.permute.xlu0 %1514
      %1516 = vrot.lane.b32.xlu0 %v1082, 88
      %v1517 = vpop.permute.xlu0 %1516
      %1518 = vrot.lane.b32.xlu0 %v1085, 88
      %v1519 = vpop.permute.xlu0 %1518
      %1520 = vrot.lane.b32.xlu0 %v1088, 88
      %v1521 = vpop.permute.xlu0 %1520
      %v1522 = vsel %vm1126, %v1491, 0
      %v1524 = vsel %vm1126, %v1493, 0
      %v1526 = vsel %vm1126, %v1495, 0
      %v1528 = vsel %vm1126, %v1497, 0
      %v1530 = vsel %vm1126, %v1499, 0
      %v1532 = vsel %vm1126, %v1501, 0
      %v1534 = vsel %vm1126, %v1503, 0
      %v1536 = vsel %vm1126, %v1505, 0
      %v1538 = vsel %vm1126, %v1507, 0
      %v1540 = vsel %vm1126, %v1509, 0
      %v1542 = vsel %vm1126, %v1511, 0
      %v1544 = vsel %vm1126, %v1513, 0
      %v1546 = vsel %vm1126, %v1515, 0
      %v1548 = vsel %vm1126, %v1517, 0
      %v1550 = vsel %vm1126, %v1519, 0
      %v1552 = vsel %vm1126, %v1521, 0
      %1554 = vmatpush.xpose.msra.mxu0 0.0
      %1555 = vmatpush.xpose.msra.mxu0 0.0
      %1556 = vmatpush.xpose.msra.mxu0 0.0
      %1557 = vmatpush.xpose.msra.mxu0 0.0
      %1558 = vmatpush.xpose.msra.mxu0 0.0
      %1559 = vmatpush.xpose.msra.mxu0 0.0
      %1560 = vmatpush.xpose.msra.mxu0 0.0
      %1561 = vmatpush.xpose.msra.mxu0 0.0
      %1562 = vmatpush.xpose.msra.mxu0 %v1552
      %1563 = vmatpush.xpose.msra.mxu0 %v1550
      %1564 = vmatpush.xpose.msra.mxu0 %v1548
      %1565 = vmatpush.xpose.msra.mxu0 %v1546
      %1566 = vmatpush.xpose.msra.mxu0 %v1544
      %1567 = vmatpush.xpose.msra.mxu0 %v1542
      %1568 = vmatpush.xpose.msra.mxu0 %v1540
      %1569 = vmatpush.xpose.msra.mxu0 %v1538
      %1570 = vmatmul.f32.gmra.mxu0 %v1522
      %v1571 = vpop.f32.mrf.mxu0
      %v1572 = vadd.f32 0.0, %v1571
      %1573 = vmatmul.f32.gmra.mxu0 %v1524
      %v1574 = vpop.f32.mrf.mxu0
      %v1575 = vadd.f32 0.0, %v1574
      %1576 = vmatmul.f32.gmra.mxu0 %v1526
      %v1577 = vpop.f32.mrf.mxu0
      %v1578 = vadd.f32 0.0, %v1577
      %1579 = vmatmul.f32.gmra.mxu0 %v1528
      %v1580 = vpop.f32.mrf.mxu0
      %v1581 = vadd.f32 0.0, %v1580
      %1582 = vmatmul.f32.gmra.mxu0 %v1530
      %v1583 = vpop.f32.mrf.mxu0
      %v1584 = vadd.f32 0.0, %v1583
      %1585 = vmatmul.f32.gmra.mxu0 %v1532
      %v1586 = vpop.f32.mrf.mxu0
      %v1587 = vadd.f32 0.0, %v1586
      %1588 = vmatmul.f32.gmra.mxu0 %v1534
      %v1589 = vpop.f32.mrf.mxu0
      %v1590 = vadd.f32 0.0, %v1589
      %1591 = vmatmul.f32.gmra.mxu0 %v1536
      %v1592 = vpop.f32.mrf.mxu0
      %v1593 = vadd.f32 0.0, %v1592
      %1594 = vdwg.mxu0
      %v1595 = vsel %vm1208, %v1572, -inf
      %1596 = vmax.xlane.f32.xlu0 %v1595
      %v1597 = vpop.xlane.xlu0 %1596
      %v1598 = vsel %vm1208, %v1575, -inf
      %1599 = vmax.xlane.f32.xlu0 %v1598
      %v1600 = vpop.xlane.xlu0 %1599
      %v1601 = vsel %vm1208, %v1578, -inf
      %1602 = vmax.xlane.f32.xlu0 %v1601
      %v1603 = vpop.xlane.xlu0 %1602
      %v1604 = vsel %vm1208, %v1581, -inf
      %1605 = vmax.xlane.f32.xlu0 %v1604
      %v1606 = vpop.xlane.xlu0 %1605
      %v1607 = vsel %vm1208, %v1584, -inf
      %1608 = vmax.xlane.f32.xlu0 %v1607
      %v1609 = vpop.xlane.xlu0 %1608
      %v1610 = vsel %vm1208, %v1587, -inf
      %1611 = vmax.xlane.f32.xlu0 %v1610
      %v1612 = vpop.xlane.xlu0 %1611
      %v1613 = vsel %vm1208, %v1590, -inf
      %1614 = vmax.xlane.f32.xlu0 %v1613
      %v1615 = vpop.xlane.xlu0 %1614
      %v1616 = vsel %vm1208, %v1593, -inf
      %1617 = vmax.xlane.f32.xlu0 %v1616
      %v1618 = vpop.xlane.xlu0 %1617
      %v1619 = vsub.f32 %v1572, %v1597
      %v1620 = vsub.f32 %v1575, %v1600
      %v1621 = vsub.f32 %v1578, %v1603
      %v1622 = vsub.f32 %v1581, %v1606
      %v1623 = vsub.f32 %v1584, %v1609
      %v1624 = vsub.f32 %v1587, %v1612
      %v1625 = vsub.f32 %v1590, %v1615
      %v1626 = vsub.f32 %v1593, %v1618
      %v1627 = vmul.f32 %v1619, 1.442695
      %v1628 = vpow.pop %v1627
      %v1629 = vmul.f32 %v1620, 1.442695
      %v1630 = vpow.pop %v1629
      %v1631 = vmul.f32 %v1621, 1.442695
      %v1632 = vpow.pop %v1631
      %v1633 = vmul.f32 %v1622, 1.442695
      %v1634 = vpow.pop %v1633
      %v1635 = vmul.f32 %v1623, 1.442695
      %v1636 = vpow.pop %v1635
      %v1637 = vmul.f32 %v1624, 1.442695
      %v1638 = vpow.pop %v1637
      %v1639 = vmul.f32 %v1625, 1.442695
      %v1640 = vpow.pop %v1639
      %v1641 = vmul.f32 %v1626, 1.442695
      %v1642 = vpow.pop %v1641
      %v1643 = vsel %vm1208, %v1628, 0.0
      %1644 = vadd.xlane.f32.xlu0 %v1643
      %v1645 = vpop.xlane.xlu0 %1644
      %v1646 = vsel %vm1208, %v1630, 0.0
      %1647 = vadd.xlane.f32.xlu0 %v1646
      %v1648 = vpop.xlane.xlu0 %1647
      %v1649 = vsel %vm1208, %v1632, 0.0
      %1650 = vadd.xlane.f32.xlu0 %v1649
      %v1651 = vpop.xlane.xlu0 %1650
      %v1652 = vsel %vm1208, %v1634, 0.0
      %1653 = vadd.xlane.f32.xlu0 %v1652
      %v1654 = vpop.xlane.xlu0 %1653
      %v1655 = vsel %vm1208, %v1636, 0.0
      %1656 = vadd.xlane.f32.xlu0 %v1655
      %v1657 = vpop.xlane.xlu0 %1656
      %v1658 = vsel %vm1208, %v1638, 0.0
      %1659 = vadd.xlane.f32.xlu0 %v1658
      %v1660 = vpop.xlane.xlu0 %1659
      %v1661 = vsel %vm1208, %v1640, 0.0
      %1662 = vadd.xlane.f32.xlu0 %v1661
      %v1663 = vpop.xlane.xlu0 %1662
      %v1664 = vsel %vm1208, %v1642, 0.0
      %1665 = vadd.xlane.f32.xlu0 %v1664
      %v1666 = vpop.xlane.xlu0 %1665
      %v1667 = vrcp.pop %v1645
      %v1668 = vmul.f32 %v1645, %v1667
      %v1669 = vsub.f32 1.0, %v1668
      %v1670 = vmul.f32 %v1667, %v1669
      %v1671 = vadd.f32 %v1667, %v1670
      %vm1672 = vweird.f32 %v1645
      %vm1673 = vweird.f32 %v1667
      %vm1674 = vmor %vm1672, %vm1673
      %v1675 = vsel %vm1674, %v1667, %v1671
      %v1676 = vand.u32 2147483647, %v1645
      %vm1677 = vcmp.eq.f32.partialorder %v1676, 8.507059e+37
      %v1678 = vand.u32 %v1645, 2147483648
      %v1679 = vor.u32 1.1754944e-38, %v1678
      %v1680 = vsel %vm1677, %v1679, %v1675
      %v1681 = vmul.f32 %v1628, %v1680
      %v1682 = vrcp.pop %v1648
      %v1683 = vmul.f32 %v1648, %v1682
      %v1684 = vsub.f32 1.0, %v1683
      %v1685 = vmul.f32 %v1682, %v1684
      %v1686 = vadd.f32 %v1682, %v1685
      %vm1687 = vweird.f32 %v1648
      %vm1688 = vweird.f32 %v1682
      %vm1689 = vmor %vm1687, %vm1688
      %v1690 = vsel %vm1689, %v1682, %v1686
      %v1691 = vand.u32 2147483647, %v1648
      %vm1692 = vcmp.eq.f32.partialorder %v1691, 8.507059e+37
      %v1693 = vand.u32 %v1648, 2147483648
      %v1694 = vor.u32 1.1754944e-38, %v1693
      %v1695 = vsel %vm1692, %v1694, %v1690
      %v1696 = vmul.f32 %v1630, %v1695
      %v1697 = vrcp.pop %v1651
      %v1698 = vmul.f32 %v1651, %v1697
      %v1699 = vsub.f32 1.0, %v1698
      %v1700 = vmul.f32 %v1697, %v1699
      %v1701 = vadd.f32 %v1697, %v1700
      %vm1702 = vweird.f32 %v1651
      %vm1703 = vweird.f32 %v1697
      %vm1704 = vmor %vm1702, %vm1703
      %v1705 = vsel %vm1704, %v1697, %v1701
      %v1706 = vand.u32 2147483647, %v1651
      %vm1707 = vcmp.eq.f32.partialorder %v1706, 8.507059e+37
      %v1708 = vand.u32 %v1651, 2147483648
      %v1709 = vor.u32 1.1754944e-38, %v1708
      %v1710 = vsel %vm1707, %v1709, %v1705
      %v1711 = vmul.f32 %v1632, %v1710
      %v1712 = vrcp.pop %v1654
      %v1713 = vmul.f32 %v1654, %v1712
      %v1714 = vsub.f32 1.0, %v1713
      %v1715 = vmul.f32 %v1712, %v1714
      %v1716 = vadd.f32 %v1712, %v1715
      %vm1717 = vweird.f32 %v1654
      %vm1718 = vweird.f32 %v1712
      %vm1719 = vmor %vm1717, %vm1718
      %v1720 = vsel %vm1719, %v1712, %v1716
      %v1721 = vand.u32 2147483647, %v1654
      %vm1722 = vcmp.eq.f32.partialorder %v1721, 8.507059e+37
      %v1723 = vand.u32 %v1654, 2147483648
      %v1724 = vor.u32 1.1754944e-38, %v1723
      %v1725 = vsel %vm1722, %v1724, %v1720
      %v1726 = vmul.f32 %v1634, %v1725
      %v1727 = vrcp.pop %v1657
      %v1728 = vmul.f32 %v1657, %v1727
      %v1729 = vsub.f32 1.0, %v1728
      %v1730 = vmul.f32 %v1727, %v1729
      %v1731 = vadd.f32 %v1727, %v1730
      %vm1732 = vweird.f32 %v1657
      %vm1733 = vweird.f32 %v1727
      %vm1734 = vmor %vm1732, %vm1733
      %v1735 = vsel %vm1734, %v1727, %v1731
      %v1736 = vand.u32 2147483647, %v1657
      %vm1737 = vcmp.eq.f32.partialorder %v1736, 8.507059e+37
      %v1738 = vand.u32 %v1657, 2147483648
      %v1739 = vor.u32 1.1754944e-38, %v1738
      %v1740 = vsel %vm1737, %v1739, %v1735
      %v1741 = vmul.f32 %v1636, %v1740
      %v1742 = vrcp.pop %v1660
      %v1743 = vmul.f32 %v1660, %v1742
      %v1744 = vsub.f32 1.0, %v1743
      %v1745 = vmul.f32 %v1742, %v1744
      %v1746 = vadd.f32 %v1742, %v1745
      %vm1747 = vweird.f32 %v1660
      %vm1748 = vweird.f32 %v1742
      %vm1749 = vmor %vm1747, %vm1748
      %v1750 = vsel %vm1749, %v1742, %v1746
      %v1751 = vand.u32 2147483647, %v1660
      %vm1752 = vcmp.eq.f32.partialorder %v1751, 8.507059e+37
      %v1753 = vand.u32 %v1660, 2147483648
      %v1754 = vor.u32 1.1754944e-38, %v1753
      %v1755 = vsel %vm1752, %v1754, %v1750
      %v1756 = vmul.f32 %v1638, %v1755
      %v1757 = vrcp.pop %v1663
      %v1758 = vmul.f32 %v1663, %v1757
      %v1759 = vsub.f32 1.0, %v1758
      %v1760 = vmul.f32 %v1757, %v1759
      %v1761 = vadd.f32 %v1757, %v1760
      %vm1762 = vweird.f32 %v1663
      %vm1763 = vweird.f32 %v1757
      %vm1764 = vmor %vm1762, %vm1763
      %v1765 = vsel %vm1764, %v1757, %v1761
      %v1766 = vand.u32 2147483647, %v1663
      %vm1767 = vcmp.eq.f32.partialorder %v1766, 8.507059e+37
      %v1768 = vand.u32 %v1663, 2147483648
      %v1769 = vor.u32 1.1754944e-38, %v1768
      %v1770 = vsel %vm1767, %v1769, %v1765
      %v1771 = vmul.f32 %v1640, %v1770
      %v1772 = vrcp.pop %v1666
      %v1773 = vmul.f32 %v1666, %v1772
      %v1774 = vsub.f32 1.0, %v1773
      %v1775 = vmul.f32 %v1772, %v1774
      %v1776 = vadd.f32 %v1772, %v1775
      %vm1777 = vweird.f32 %v1666
      %vm1778 = vweird.f32 %v1772
      %vm1779 = vmor %vm1777, %vm1778
      %v1780 = vsel %vm1779, %v1772, %v1776
      %v1781 = vand.u32 2147483647, %v1666
      %vm1782 = vcmp.eq.f32.partialorder %v1781, 8.507059e+37
      %v1783 = vand.u32 %v1666, 2147483648
      %v1784 = vor.u32 1.1754944e-38, %v1783
      %v1785 = vsel %vm1782, %v1784, %v1780
      %v1786 = vmul.f32 %v1642, %v1785
      %1787 = vrot.lane.b32.xlu0 %v1067, 56
      %v1788 = vpop.permute.xlu0 %1787
      %1789 = vrot.lane.b32.xlu0 %v1070, 56
      %v1790 = vpop.permute.xlu0 %1789
      %1791 = vrot.lane.b32.xlu0 %v1073, 56
      %v1792 = vpop.permute.xlu0 %1791
      %1793 = vrot.lane.b32.xlu0 %v1076, 56
      %v1794 = vpop.permute.xlu0 %1793
      %1795 = vrot.lane.b32.xlu0 %v1079, 56
      %v1796 = vpop.permute.xlu0 %1795
      %1797 = vrot.lane.b32.xlu0 %v1082, 56
      %v1798 = vpop.permute.xlu0 %1797
      %1799 = vrot.lane.b32.xlu0 %v1085, 56
      %v1800 = vpop.permute.xlu0 %1799
      %1801 = vrot.lane.b32.xlu0 %v1088, 56
      %v1802 = vpop.permute.xlu0 %1801
      %v1812 = vsel %vm1208, %v1681, 0
      %v1815 = vsel %vm1208, %v1696, 0
      %v1818 = vsel %vm1208, %v1711, 0
      %v1821 = vsel %vm1208, %v1726, 0
      %v1824 = vsel %vm1208, %v1741, 0
      %v1827 = vsel %vm1208, %v1756, 0
      %v1830 = vsel %vm1208, %v1771, 0
      %v1833 = vsel %vm1208, %v1786, 0
      %1835 = vmatpush.msra.mxu0 0.0
      %1836 = vmatpush.msra.mxu0 0.0
      %1837 = vmatpush.msra.mxu0 0.0
      %1838 = vmatpush.msra.mxu0 0.0
      %1839 = vmatpush.msra.mxu0 0.0
      %1840 = vmatpush.msra.mxu0 0.0
      %1841 = vmatpush.msra.mxu0 0.0
      %1842 = vmatpush.msra.mxu0 0.0
      %1843 = vmatpush.msra.mxu0 %v1802
      %1844 = vmatpush.msra.mxu0 %v1800
      %1845 = vmatpush.msra.mxu0 %v1798
      %1846 = vmatpush.msra.mxu0 %v1796
      %1847 = vmatpush.msra.mxu0 %v1794
      %1848 = vmatpush.msra.mxu0 %v1792
      %1849 = vmatpush.msra.mxu0 %v1790
      %1850 = vmatpush.msra.mxu0 %v1788
      %1851 = vmatmul.f32.gmra.mxu0 %v1812
      %v1852 = vpop.f32.mrf.mxu0
      %v1853 = vadd.f32 0.0, %v1852
      %1854 = vmatmul.f32.gmra.mxu0 %v1815
      %v1855 = vpop.f32.mrf.mxu0
      %v1856 = vadd.f32 0.0, %v1855
      %1857 = vmatmul.f32.gmra.mxu0 %v1818
      %v1858 = vpop.f32.mrf.mxu0
      %v1859 = vadd.f32 0.0, %v1858
      %1860 = vmatmul.f32.gmra.mxu0 %v1821
      %v1861 = vpop.f32.mrf.mxu0
      %v1862 = vadd.f32 0.0, %v1861
      %1863 = vmatmul.f32.gmra.mxu0 %v1824
      %v1864 = vpop.f32.mrf.mxu0
      %v1865 = vadd.f32 0.0, %v1864
      %1866 = vmatmul.f32.gmra.mxu0 %v1827
      %v1867 = vpop.f32.mrf.mxu0
      %v1868 = vadd.f32 0.0, %v1867
      %1869 = vmatmul.f32.gmra.mxu0 %v1830
      %v1870 = vpop.f32.mrf.mxu0
      %v1871 = vadd.f32 0.0, %v1870
      %1872 = vmatmul.f32.gmra.mxu0 %v1833
      %v1873 = vpop.f32.mrf.mxu0
      %v1874 = vadd.f32 0.0, %v1873
      %1875 = vdwg.mxu0
      %v1877 = vsel %vm1126, %v1853, 0
      %v1880 = vsel %vm1126, %v1856, 0
      %v1883 = vsel %vm1126, %v1859, 0
      %v1886 = vsel %vm1126, %v1862, 0
      %v1889 = vsel %vm1126, %v1865, 0
      %v1892 = vsel %vm1126, %v1868, 0
      %v1895 = vsel %vm1126, %v1871, 0
      %v1898 = vsel %vm1126, %v1874, 0
      %1900 = vmatpush.msra.mxu0 0.0
      %1901 = vmatpush.msra.mxu0 0.0
      %1902 = vmatpush.msra.mxu0 0.0
      %1903 = vmatpush.msra.mxu0 0.0
      %1904 = vmatpush.msra.mxu0 0.0
      %1905 = vmatpush.msra.mxu0 0.0
      %1906 = vmatpush.msra.mxu0 0.0
      %1907 = vmatpush.msra.mxu0 0.0
      %1908 = vmatpush.msra.mxu0 0.0
      %1909 = vmatpush.msra.mxu0 0.0
      %1910 = vmatpush.msra.mxu0 0.0
      %1911 = vmatpush.msra.mxu0 0.0
      %1912 = vmatpush.msra.mxu0 0.0
      %1913 = vmatpush.msra.mxu0 0.0
      %1914 = vmatpush.msra.mxu0 0.0
      %1915 = vmatpush.msra.mxu0 %v1091
      %1916 = vmatmul.f32.gmra.mxu0 %v1877
      %v1917 = vpop.f32.mrf.mxu0
      %v1918 = vadd.f32 0.0, %v1917
      %1919 = vmatmul.f32.gmra.mxu0 %v1880
      %v1920 = vpop.f32.mrf.mxu0
      %v1921 = vadd.f32 0.0, %v1920
      %1922 = vmatmul.f32.gmra.mxu0 %v1883
      %v1923 = vpop.f32.mrf.mxu0
      %v1924 = vadd.f32 0.0, %v1923
      %1925 = vmatmul.f32.gmra.mxu0 %v1886
      %v1926 = vpop.f32.mrf.mxu0
      %v1927 = vadd.f32 0.0, %v1926
      %1928 = vmatmul.f32.gmra.mxu0 %v1889
      %v1929 = vpop.f32.mrf.mxu0
      %v1930 = vadd.f32 0.0, %v1929
      %1931 = vmatmul.f32.gmra.mxu0 %v1892
      %v1932 = vpop.f32.mrf.mxu0
      %v1933 = vadd.f32 0.0, %v1932
      %1934 = vmatmul.f32.gmra.mxu0 %v1895
      %v1935 = vpop.f32.mrf.mxu0
      %v1936 = vadd.f32 0.0, %v1935
      %1937 = vmatmul.f32.gmra.mxu0 %v1898
      %v1938 = vpop.f32.mrf.mxu0
      %v1939 = vadd.f32 0.0, %v1938
      %1940 = vdwg.mxu0
      %v1942 = vsel %vm1126, %v1467, 0
      %v1945 = vsel %vm1126, %v1470, 0
      %v1948 = vsel %vm1126, %v1473, 0
      %v1951 = vsel %vm1126, %v1476, 0
      %v1954 = vsel %vm1126, %v1479, 0
      %v1957 = vsel %vm1126, %v1482, 0
      %v1960 = vsel %vm1126, %v1485, 0
      %v1963 = vsel %vm1126, %v1488, 0
      %1965 = vmatpush.msra.mxu0 0.0
      %1966 = vmatpush.msra.mxu0 0.0
      %1967 = vmatpush.msra.mxu0 0.0
      %1968 = vmatpush.msra.mxu0 0.0
      %1969 = vmatpush.msra.mxu0 0.0
      %1970 = vmatpush.msra.mxu0 0.0
      %1971 = vmatpush.msra.mxu0 0.0
      %1972 = vmatpush.msra.mxu0 0.0
      %1973 = vmatpush.msra.mxu0 0.0
      %1974 = vmatpush.msra.mxu0 0.0
      %1975 = vmatpush.msra.mxu0 0.0
      %1976 = vmatpush.msra.mxu0 0.0
      %1977 = vmatpush.msra.mxu0 0.0
      %1978 = vmatpush.msra.mxu0 0.0
      %1979 = vmatpush.msra.mxu0 0.0
      %1980 = vmatpush.msra.mxu0 %v1090
      %1981 = vmatmul.f32.gmra.mxu0 %v1942
      %v1982 = vpop.f32.mrf.mxu0
      %v1983 = vadd.f32 %v1918, %v1982
      %1984 = vmatmul.f32.gmra.mxu0 %v1945
      %v1985 = vpop.f32.mrf.mxu0
      %v1986 = vadd.f32 %v1921, %v1985
      %1987 = vmatmul.f32.gmra.mxu0 %v1948
      %v1988 = vpop.f32.mrf.mxu0
      %v1989 = vadd.f32 %v1924, %v1988
      %1990 = vmatmul.f32.gmra.mxu0 %v1951
      %v1991 = vpop.f32.mrf.mxu0
      %v1992 = vadd.f32 %v1927, %v1991
      %1993 = vmatmul.f32.gmra.mxu0 %v1954
      %v1994 = vpop.f32.mrf.mxu0
      %v1995 = vadd.f32 %v1930, %v1994
      %1996 = vmatmul.f32.gmra.mxu0 %v1957
      %v1997 = vpop.f32.mrf.mxu0
      %v1998 = vadd.f32 %v1933, %v1997
      %1999 = vmatmul.f32.gmra.mxu0 %v1960
      %v2000 = vpop.f32.mrf.mxu0
      %v2001 = vadd.f32 %v1936, %v2000
      %2002 = vmatmul.f32.gmra.mxu0 %v1963
      %v2003 = vpop.f32.mrf.mxu0
      %v2004 = vadd.f32 %v1939, %v2003
      %2005 = vdwg.mxu0
      %2006 = vrot.lane.b32.xlu0 %v1094, 112
      %v2007 = vpop.permute.xlu0 %2006
      %2008 = vrot.lane.b32.xlu0 %v1095, 112
      %v2009 = vpop.permute.xlu0 %2008
      %2010 = vrot.lane.b32.xlu0 %v1096, 112
      %v2011 = vpop.permute.xlu0 %2010
      %2012 = vrot.lane.b32.xlu0 %v1097, 112
      %v2013 = vpop.permute.xlu0 %2012
      %2014 = vrot.lane.b32.xlu0 %v1098, 112
      %v2015 = vpop.permute.xlu0 %2014
      %2016 = vrot.lane.b32.xlu0 %v1099, 112
      %v2017 = vpop.permute.xlu0 %2016
      %2018 = vrot.lane.b32.xlu0 %v1100, 112
      %v2019 = vpop.permute.xlu0 %2018
      %2020 = vrot.lane.b32.xlu0 %v1101, 112
      %v2021 = vpop.permute.xlu0 %2020
      %2022 = vrot.lane.b32.xlu0 %v1067, 80
      %v2023 = vpop.permute.xlu0 %2022
      %2024 = vrot.lane.b32.xlu0 %v1070, 80
      %v2025 = vpop.permute.xlu0 %2024
      %2026 = vrot.lane.b32.xlu0 %v1073, 80
      %v2027 = vpop.permute.xlu0 %2026
      %2028 = vrot.lane.b32.xlu0 %v1076, 80
      %v2029 = vpop.permute.xlu0 %2028
      %2030 = vrot.lane.b32.xlu0 %v1079, 80
      %v2031 = vpop.permute.xlu0 %2030
      %2032 = vrot.lane.b32.xlu0 %v1082, 80
      %v2033 = vpop.permute.xlu0 %2032
      %2034 = vrot.lane.b32.xlu0 %v1085, 80
      %v2035 = vpop.permute.xlu0 %2034
      %2036 = vrot.lane.b32.xlu0 %v1088, 80
      %v2037 = vpop.permute.xlu0 %2036
      %v2038 = vsel %vm1126, %v2007, 0
      %v2040 = vsel %vm1126, %v2009, 0
      %v2042 = vsel %vm1126, %v2011, 0
      %v2044 = vsel %vm1126, %v2013, 0
      %v2046 = vsel %vm1126, %v2015, 0
      %v2048 = vsel %vm1126, %v2017, 0
      %v2050 = vsel %vm1126, %v2019, 0
      %v2052 = vsel %vm1126, %v2021, 0
      %v2054 = vsel %vm1126, %v2023, 0
      %v2056 = vsel %vm1126, %v2025, 0
      %v2058 = vsel %vm1126, %v2027, 0
      %v2060 = vsel %vm1126, %v2029, 0
      %v2062 = vsel %vm1126, %v2031, 0
      %v2064 = vsel %vm1126, %v2033, 0
      %v2066 = vsel %vm1126, %v2035, 0
      %v2068 = vsel %vm1126, %v2037, 0
      %2070 = vmatpush.xpose.msra.mxu0 0.0
      %2071 = vmatpush.xpose.msra.mxu0 0.0
      %2072 = vmatpush.xpose.msra.mxu0 0.0
      %2073 = vmatpush.xpose.msra.mxu0 0.0
      %2074 = vmatpush.xpose.msra.mxu0 0.0
      %2075 = vmatpush.xpose.msra.mxu0 0.0
      %2076 = vmatpush.xpose.msra.mxu0 0.0
      %2077 = vmatpush.xpose.msra.mxu0 0.0
      %2078 = vmatpush.xpose.msra.mxu0 %v2068
      %2079 = vmatpush.xpose.msra.mxu0 %v2066
      %2080 = vmatpush.xpose.msra.mxu0 %v2064
      %2081 = vmatpush.xpose.msra.mxu0 %v2062
      %2082 = vmatpush.xpose.msra.mxu0 %v2060
      %2083 = vmatpush.xpose.msra.mxu0 %v2058
      %2084 = vmatpush.xpose.msra.mxu0 %v2056
      %2085 = vmatpush.xpose.msra.mxu0 %v2054
      %2086 = vmatmul.f32.gmra.mxu0 %v2038
      %v2087 = vpop.f32.mrf.mxu0
      %v2088 = vadd.f32 0.0, %v2087
      %2089 = vmatmul.f32.gmra.mxu0 %v2040
      %v2090 = vpop.f32.mrf.mxu0
      %v2091 = vadd.f32 0.0, %v2090
      %2092 = vmatmul.f32.gmra.mxu0 %v2042
      %v2093 = vpop.f32.mrf.mxu0
      %v2094 = vadd.f32 0.0, %v2093
      %2095 = vmatmul.f32.gmra.mxu0 %v2044
      %v2096 = vpop.f32.mrf.mxu0
      %v2097 = vadd.f32 0.0, %v2096
      %2098 = vmatmul.f32.gmra.mxu0 %v2046
      %v2099 = vpop.f32.mrf.mxu0
      %v2100 = vadd.f32 0.0, %v2099
      %2101 = vmatmul.f32.gmra.mxu0 %v2048
      %v2102 = vpop.f32.mrf.mxu0
      %v2103 = vadd.f32 0.0, %v2102
      %2104 = vmatmul.f32.gmra.mxu0 %v2050
      %v2105 = vpop.f32.mrf.mxu0
      %v2106 = vadd.f32 0.0, %v2105
      %2107 = vmatmul.f32.gmra.mxu0 %v2052
      %v2108 = vpop.f32.mrf.mxu0
      %v2109 = vadd.f32 0.0, %v2108
      %2110 = vdwg.mxu0
      %v2111 = vsel %vm1208, %v2088, -inf
      %2112 = vmax.xlane.f32.xlu0 %v2111
      %v2113 = vpop.xlane.xlu0 %2112
      %v2114 = vsel %vm1208, %v2091, -inf
      %2115 = vmax.xlane.f32.xlu0 %v2114
      %v2116 = vpop.xlane.xlu0 %2115
      %v2117 = vsel %vm1208, %v2094, -inf
      %2118 = vmax.xlane.f32.xlu0 %v2117
      %v2119 = vpop.xlane.xlu0 %2118
      %v2120 = vsel %vm1208, %v2097, -inf
      %2121 = vmax.xlane.f32.xlu0 %v2120
      %v2122 = vpop.xlane.xlu0 %2121
      %v2123 = vsel %vm1208, %v2100, -inf
      %2124 = vmax.xlane.f32.xlu0 %v2123
      %v2125 = vpop.xlane.xlu0 %2124
      %v2126 = vsel %vm1208, %v2103, -inf
      %2127 = vmax.xlane.f32.xlu0 %v2126
      %v2128 = vpop.xlane.xlu0 %2127
      %v2129 = vsel %vm1208, %v2106, -inf
      %2130 = vmax.xlane.f32.xlu0 %v2129
      %v2131 = vpop.xlane.xlu0 %2130
      %v2132 = vsel %vm1208, %v2109, -inf
      %2133 = vmax.xlane.f32.xlu0 %v2132
      %v2134 = vpop.xlane.xlu0 %2133
      %v2135 = vsub.f32 %v2088, %v2113
      %v2136 = vsub.f32 %v2091, %v2116
      %v2137 = vsub.f32 %v2094, %v2119
      %v2138 = vsub.f32 %v2097, %v2122
      %v2139 = vsub.f32 %v2100, %v2125
      %v2140 = vsub.f32 %v2103, %v2128
      %v2141 = vsub.f32 %v2106, %v2131
      %v2142 = vsub.f32 %v2109, %v2134
      %v2143 = vmul.f32 %v2135, 1.442695
      %v2144 = vpow.pop %v2143
      %v2145 = vmul.f32 %v2136, 1.442695
      %v2146 = vpow.pop %v2145
      %v2147 = vmul.f32 %v2137, 1.442695
      %v2148 = vpow.pop %v2147
      %v2149 = vmul.f32 %v2138, 1.442695
      %v2150 = vpow.pop %v2149
      %v2151 = vmul.f32 %v2139, 1.442695
      %v2152 = vpow.pop %v2151
      %v2153 = vmul.f32 %v2140, 1.442695
      %v2154 = vpow.pop %v2153
      %v2155 = vmul.f32 %v2141, 1.442695
      %v2156 = vpow.pop %v2155
      %v2157 = vmul.f32 %v2142, 1.442695
      %v2158 = vpow.pop %v2157
      %v2159 = vsel %vm1208, %v2144, 0.0
      %2160 = vadd.xlane.f32.xlu0 %v2159
      %v2161 = vpop.xlane.xlu0 %2160
      %v2162 = vsel %vm1208, %v2146, 0.0
      %2163 = vadd.xlane.f32.xlu0 %v2162
      %v2164 = vpop.xlane.xlu0 %2163
      %v2165 = vsel %vm1208, %v2148, 0.0
      %2166 = vadd.xlane.f32.xlu0 %v2165
      %v2167 = vpop.xlane.xlu0 %2166
      %v2168 = vsel %vm1208, %v2150, 0.0
      %2169 = vadd.xlane.f32.xlu0 %v2168
      %v2170 = vpop.xlane.xlu0 %2169
      %v2171 = vsel %vm1208, %v2152, 0.0
      %2172 = vadd.xlane.f32.xlu0 %v2171
      %v2173 = vpop.xlane.xlu0 %2172
      %v2174 = vsel %vm1208, %v2154, 0.0
      %2175 = vadd.xlane.f32.xlu0 %v2174
      %v2176 = vpop.xlane.xlu0 %2175
      %v2177 = vsel %vm1208, %v2156, 0.0
      %2178 = vadd.xlane.f32.xlu0 %v2177
      %v2179 = vpop.xlane.xlu0 %2178
      %v2180 = vsel %vm1208, %v2158, 0.0
      %2181 = vadd.xlane.f32.xlu0 %v2180
      %v2182 = vpop.xlane.xlu0 %2181
      %v2183 = vrcp.pop %v2161
      %v2184 = vmul.f32 %v2161, %v2183
      %v2185 = vsub.f32 1.0, %v2184
      %v2186 = vmul.f32 %v2183, %v2185
      %v2187 = vadd.f32 %v2183, %v2186
      %vm2188 = vweird.f32 %v2161
      %vm2189 = vweird.f32 %v2183
      %vm2190 = vmor %vm2188, %vm2189
      %v2191 = vsel %vm2190, %v2183, %v2187
      %v2192 = vand.u32 2147483647, %v2161
      %vm2193 = vcmp.eq.f32.partialorder %v2192, 8.507059e+37
      %v2194 = vand.u32 %v2161, 2147483648
      %v2195 = vor.u32 1.1754944e-38, %v2194
      %v2196 = vsel %vm2193, %v2195, %v2191
      %v2197 = vmul.f32 %v2144, %v2196
      %v2198 = vrcp.pop %v2164
      %v2199 = vmul.f32 %v2164, %v2198
      %v2200 = vsub.f32 1.0, %v2199
      %v2201 = vmul.f32 %v2198, %v2200
      %v2202 = vadd.f32 %v2198, %v2201
      %vm2203 = vweird.f32 %v2164
      %vm2204 = vweird.f32 %v2198
      %vm2205 = vmor %vm2203, %vm2204
      %v2206 = vsel %vm2205, %v2198, %v2202
      %v2207 = vand.u32 2147483647, %v2164
      %vm2208 = vcmp.eq.f32.partialorder %v2207, 8.507059e+37
      %v2209 = vand.u32 %v2164, 2147483648
      %v2210 = vor.u32 1.1754944e-38, %v2209
      %v2211 = vsel %vm2208, %v2210, %v2206
      %v2212 = vmul.f32 %v2146, %v2211
      %v2213 = vrcp.pop %v2167
      %v2214 = vmul.f32 %v2167, %v2213
      %v2215 = vsub.f32 1.0, %v2214
      %v2216 = vmul.f32 %v2213, %v2215
      %v2217 = vadd.f32 %v2213, %v2216
      %vm2218 = vweird.f32 %v2167
      %vm2219 = vweird.f32 %v2213
      %vm2220 = vmor %vm2218, %vm2219
      %v2221 = vsel %vm2220, %v2213, %v2217
      %v2222 = vand.u32 2147483647, %v2167
      %vm2223 = vcmp.eq.f32.partialorder %v2222, 8.507059e+37
      %v2224 = vand.u32 %v2167, 2147483648
      %v2225 = vor.u32 1.1754944e-38, %v2224
      %v2226 = vsel %vm2223, %v2225, %v2221
      %v2227 = vmul.f32 %v2148, %v2226
      %v2228 = vrcp.pop %v2170
      %v2229 = vmul.f32 %v2170, %v2228
      %v2230 = vsub.f32 1.0, %v2229
      %v2231 = vmul.f32 %v2228, %v2230
      %v2232 = vadd.f32 %v2228, %v2231
      %vm2233 = vweird.f32 %v2170
      %vm2234 = vweird.f32 %v2228
      %vm2235 = vmor %vm2233, %vm2234
      %v2236 = vsel %vm2235, %v2228, %v2232
      %v2237 = vand.u32 2147483647, %v2170
      %vm2238 = vcmp.eq.f32.partialorder %v2237, 8.507059e+37
      %v2239 = vand.u32 %v2170, 2147483648
      %v2240 = vor.u32 1.1754944e-38, %v2239
      %v2241 = vsel %vm2238, %v2240, %v2236
      %v2242 = vmul.f32 %v2150, %v2241
      %v2243 = vrcp.pop %v2173
      %v2244 = vmul.f32 %v2173, %v2243
      %v2245 = vsub.f32 1.0, %v2244
      %v2246 = vmul.f32 %v2243, %v2245
      %v2247 = vadd.f32 %v2243, %v2246
      %vm2248 = vweird.f32 %v2173
      %vm2249 = vweird.f32 %v2243
      %vm2250 = vmor %vm2248, %vm2249
      %v2251 = vsel %vm2250, %v2243, %v2247
      %v2252 = vand.u32 2147483647, %v2173
      %vm2253 = vcmp.eq.f32.partialorder %v2252, 8.507059e+37
      %v2254 = vand.u32 %v2173, 2147483648
      %v2255 = vor.u32 1.1754944e-38, %v2254
      %v2256 = vsel %vm2253, %v2255, %v2251
      %v2257 = vmul.f32 %v2152, %v2256
      %v2258 = vrcp.pop %v2176
      %v2259 = vmul.f32 %v2176, %v2258
      %v2260 = vsub.f32 1.0, %v2259
      %v2261 = vmul.f32 %v2258, %v2260
      %v2262 = vadd.f32 %v2258, %v2261
      %vm2263 = vweird.f32 %v2176
      %vm2264 = vweird.f32 %v2258
      %vm2265 = vmor %vm2263, %vm2264
      %v2266 = vsel %vm2265, %v2258, %v2262
      %v2267 = vand.u32 2147483647, %v2176
      %vm2268 = vcmp.eq.f32.partialorder %v2267, 8.507059e+37
      %v2269 = vand.u32 %v2176, 2147483648
      %v2270 = vor.u32 1.1754944e-38, %v2269
      %v2271 = vsel %vm2268, %v2270, %v2266
      %v2272 = vmul.f32 %v2154, %v2271
      %v2273 = vrcp.pop %v2179
      %v2274 = vmul.f32 %v2179, %v2273
      %v2275 = vsub.f32 1.0, %v2274
      %v2276 = vmul.f32 %v2273, %v2275
      %v2277 = vadd.f32 %v2273, %v2276
      %vm2278 = vweird.f32 %v2179
      %vm2279 = vweird.f32 %v2273
      %vm2280 = vmor %vm2278, %vm2279
      %v2281 = vsel %vm2280, %v2273, %v2277
      %v2282 = vand.u32 2147483647, %v2179
      %vm2283 = vcmp.eq.f32.partialorder %v2282, 8.507059e+37
      %v2284 = vand.u32 %v2179, 2147483648
      %v2285 = vor.u32 1.1754944e-38, %v2284
      %v2286 = vsel %vm2283, %v2285, %v2281
      %v2287 = vmul.f32 %v2156, %v2286
      %v2288 = vrcp.pop %v2182
      %v2289 = vmul.f32 %v2182, %v2288
      %v2290 = vsub.f32 1.0, %v2289
      %v2291 = vmul.f32 %v2288, %v2290
      %v2292 = vadd.f32 %v2288, %v2291
      %vm2293 = vweird.f32 %v2182
      %vm2294 = vweird.f32 %v2288
      %vm2295 = vmor %vm2293, %vm2294
      %v2296 = vsel %vm2295, %v2288, %v2292
      %v2297 = vand.u32 2147483647, %v2182
      %vm2298 = vcmp.eq.f32.partialorder %v2297, 8.507059e+37
      %v2299 = vand.u32 %v2182, 2147483648
      %v2300 = vor.u32 1.1754944e-38, %v2299
      %v2301 = vsel %vm2298, %v2300, %v2296
      %v2302 = vmul.f32 %v2158, %v2301
      %2303 = vrot.lane.b32.xlu0 %v1067, 48
      %v2304 = vpop.permute.xlu0 %2303
      %2305 = vrot.lane.b32.xlu0 %v1070, 48
      %v2306 = vpop.permute.xlu0 %2305
      %2307 = vrot.lane.b32.xlu0 %v1073, 48
      %v2308 = vpop.permute.xlu0 %2307
      %2309 = vrot.lane.b32.xlu0 %v1076, 48
      %v2310 = vpop.permute.xlu0 %2309
      %2311 = vrot.lane.b32.xlu0 %v1079, 48
      %v2312 = vpop.permute.xlu0 %2311
      %2313 = vrot.lane.b32.xlu0 %v1082, 48
      %v2314 = vpop.permute.xlu0 %2313
      %2315 = vrot.lane.b32.xlu0 %v1085, 48
      %v2316 = vpop.permute.xlu0 %2315
      %2317 = vrot.lane.b32.xlu0 %v1088, 48
      %v2318 = vpop.permute.xlu0 %2317
      %v2328 = vsel %vm1208, %v2197, 0
      %v2331 = vsel %vm1208, %v2212, 0
      %v2334 = vsel %vm1208, %v2227, 0
      %v2337 = vsel %vm1208, %v2242, 0
      %v2340 = vsel %vm1208, %v2257, 0
      %v2343 = vsel %vm1208, %v2272, 0
      %v2346 = vsel %vm1208, %v2287, 0
      %v2349 = vsel %vm1208, %v2302, 0
      %2351 = vmatpush.msra.mxu0 0.0
      %2352 = vmatpush.msra.mxu0 0.0
      %2353 = vmatpush.msra.mxu0 0.0
      %2354 = vmatpush.msra.mxu0 0.0
      %2355 = vmatpush.msra.mxu0 0.0
      %2356 = vmatpush.msra.mxu0 0.0
      %2357 = vmatpush.msra.mxu0 0.0
      %2358 = vmatpush.msra.mxu0 0.0
      %2359 = vmatpush.msra.mxu0 %v2318
      %2360 = vmatpush.msra.mxu0 %v2316
      %2361 = vmatpush.msra.mxu0 %v2314
      %2362 = vmatpush.msra.mxu0 %v2312
      %2363 = vmatpush.msra.mxu0 %v2310
      %2364 = vmatpush.msra.mxu0 %v2308
      %2365 = vmatpush.msra.mxu0 %v2306
      %2366 = vmatpush.msra.mxu0 %v2304
      %2367 = vmatmul.f32.gmra.mxu0 %v2328
      %v2368 = vpop.f32.mrf.mxu0
      %v2369 = vadd.f32 0.0, %v2368
      %2370 = vmatmul.f32.gmra.mxu0 %v2331
      %v2371 = vpop.f32.mrf.mxu0
      %v2372 = vadd.f32 0.0, %v2371
      %2373 = vmatmul.f32.gmra.mxu0 %v2334
      %v2374 = vpop.f32.mrf.mxu0
      %v2375 = vadd.f32 0.0, %v2374
      %2376 = vmatmul.f32.gmra.mxu0 %v2337
      %v2377 = vpop.f32.mrf.mxu0
      %v2378 = vadd.f32 0.0, %v2377
      %2379 = vmatmul.f32.gmra.mxu0 %v2340
      %v2380 = vpop.f32.mrf.mxu0
      %v2381 = vadd.f32 0.0, %v2380
      %2382 = vmatmul.f32.gmra.mxu0 %v2343
      %v2383 = vpop.f32.mrf.mxu0
      %v2384 = vadd.f32 0.0, %v2383
      %2385 = vmatmul.f32.gmra.mxu0 %v2346
      %v2386 = vpop.f32.mrf.mxu0
      %v2387 = vadd.f32 0.0, %v2386
      %2388 = vmatmul.f32.gmra.mxu0 %v2349
      %v2389 = vpop.f32.mrf.mxu0
      %v2390 = vadd.f32 0.0, %v2389
      %2391 = vdwg.mxu0
      %v2393 = vsel %vm1126, %v2369, 0
      %v2396 = vsel %vm1126, %v2372, 0
      %v2399 = vsel %vm1126, %v2375, 0
      %v2402 = vsel %vm1126, %v2378, 0
      %v2405 = vsel %vm1126, %v2381, 0
      %v2408 = vsel %vm1126, %v2384, 0
      %v2411 = vsel %vm1126, %v2387, 0
      %v2414 = vsel %vm1126, %v2390, 0
      %2416 = vmatpush.msra.mxu0 0.0
      %2417 = vmatpush.msra.mxu0 0.0
      %2418 = vmatpush.msra.mxu0 0.0
      %2419 = vmatpush.msra.mxu0 0.0
      %2420 = vmatpush.msra.mxu0 0.0
      %2421 = vmatpush.msra.mxu0 0.0
      %2422 = vmatpush.msra.mxu0 0.0
      %2423 = vmatpush.msra.mxu0 0.0
      %2424 = vmatpush.msra.mxu0 0.0
      %2425 = vmatpush.msra.mxu0 0.0
      %2426 = vmatpush.msra.mxu0 0.0
      %2427 = vmatpush.msra.mxu0 0.0
      %2428 = vmatpush.msra.mxu0 0.0
      %2429 = vmatpush.msra.mxu0 0.0
      %2430 = vmatpush.msra.mxu0 0.0
      %2431 = vmatpush.msra.mxu0 %v1092
      %2432 = vmatmul.f32.gmra.mxu0 %v2393
      %v2433 = vpop.f32.mrf.mxu0
      %v2434 = vadd.f32 0.0, %v2433
      %2435 = vmatmul.f32.gmra.mxu0 %v2396
      %v2436 = vpop.f32.mrf.mxu0
      %v2437 = vadd.f32 0.0, %v2436
      %2438 = vmatmul.f32.gmra.mxu0 %v2399
      %v2439 = vpop.f32.mrf.mxu0
      %v2440 = vadd.f32 0.0, %v2439
      %2441 = vmatmul.f32.gmra.mxu0 %v2402
      %v2442 = vpop.f32.mrf.mxu0
      %v2443 = vadd.f32 0.0, %v2442
      %2444 = vmatmul.f32.gmra.mxu0 %v2405
      %v2445 = vpop.f32.mrf.mxu0
      %v2446 = vadd.f32 0.0, %v2445
      %2447 = vmatmul.f32.gmra.mxu0 %v2408
      %v2448 = vpop.f32.mrf.mxu0
      %v2449 = vadd.f32 0.0, %v2448
      %2450 = vmatmul.f32.gmra.mxu0 %v2411
      %v2451 = vpop.f32.mrf.mxu0
      %v2452 = vadd.f32 0.0, %v2451
      %2453 = vmatmul.f32.gmra.mxu0 %v2414
      %v2454 = vpop.f32.mrf.mxu0
      %v2455 = vadd.f32 0.0, %v2454
      %2456 = vdwg.mxu0
      %v2457 = vadd.f32 %v1983, %v2434
      %v2458 = vadd.f32 %v1986, %v2437
      %v2459 = vadd.f32 %v1989, %v2440
      %v2460 = vadd.f32 %v1992, %v2443
      %v2461 = vadd.f32 %v1995, %v2446
      %v2462 = vadd.f32 %v1998, %v2449
      %v2463 = vadd.f32 %v2001, %v2452
      %v2464 = vadd.f32 %v2004, %v2455
      %2465 = vrot.lane.b32.xlu0 %v1094, 104
      %v2466 = vpop.permute.xlu0 %2465
      %2467 = vrot.lane.b32.xlu0 %v1095, 104
      %v2468 = vpop.permute.xlu0 %2467
      %2469 = vrot.lane.b32.xlu0 %v1096, 104
      %v2470 = vpop.permute.xlu0 %2469
      %2471 = vrot.lane.b32.xlu0 %v1097, 104
      %v2472 = vpop.permute.xlu0 %2471
      %2473 = vrot.lane.b32.xlu0 %v1098, 104
      %v2474 = vpop.permute.xlu0 %2473
      %2475 = vrot.lane.b32.xlu0 %v1099, 104
      %v2476 = vpop.permute.xlu0 %2475
      %2477 = vrot.lane.b32.xlu0 %v1100, 104
      %v2478 = vpop.permute.xlu0 %2477
      %2479 = vrot.lane.b32.xlu0 %v1101, 104
      %v2480 = vpop.permute.xlu0 %2479
      %2481 = vrot.lane.b32.xlu0 %v1067, 72
      %v2482 = vpop.permute.xlu0 %2481
      %2483 = vrot.lane.b32.xlu0 %v1070, 72
      %v2484 = vpop.permute.xlu0 %2483
      %2485 = vrot.lane.b32.xlu0 %v1073, 72
      %v2486 = vpop.permute.xlu0 %2485
      %2487 = vrot.lane.b32.xlu0 %v1076, 72
      %v2488 = vpop.permute.xlu0 %2487
      %2489 = vrot.lane.b32.xlu0 %v1079, 72
      %v2490 = vpop.permute.xlu0 %2489
      %2491 = vrot.lane.b32.xlu0 %v1082, 72
      %v2492 = vpop.permute.xlu0 %2491
      %2493 = vrot.lane.b32.xlu0 %v1085, 72
      %v2494 = vpop.permute.xlu0 %2493
      %2495 = vrot.lane.b32.xlu0 %v1088, 72
      %v2496 = vpop.permute.xlu0 %2495
      %v2497 = vsel %vm1126, %v2466, 0
      %v2499 = vsel %vm1126, %v2468, 0
      %v2501 = vsel %vm1126, %v2470, 0
      %v2503 = vsel %vm1126, %v2472, 0
      %v2505 = vsel %vm1126, %v2474, 0
      %v2507 = vsel %vm1126, %v2476, 0
      %v2509 = vsel %vm1126, %v2478, 0
      %v2511 = vsel %vm1126, %v2480, 0
      %v2513 = vsel %vm1126, %v2482, 0
      %v2515 = vsel %vm1126, %v2484, 0
      %v2517 = vsel %vm1126, %v2486, 0
      %v2519 = vsel %vm1126, %v2488, 0
      %v2521 = vsel %vm1126, %v2490, 0
      %v2523 = vsel %vm1126, %v2492, 0
      %v2525 = vsel %vm1126, %v2494, 0
      %v2527 = vsel %vm1126, %v2496, 0
      %2529 = vmatpush.xpose.msra.mxu0 0.0
      %2530 = vmatpush.xpose.msra.mxu0 0.0
      %2531 = vmatpush.xpose.msra.mxu0 0.0
      %2532 = vmatpush.xpose.msra.mxu0 0.0
      %2533 = vmatpush.xpose.msra.mxu0 0.0
      %2534 = vmatpush.xpose.msra.mxu0 0.0
      %2535 = vmatpush.xpose.msra.mxu0 0.0
      %2536 = vmatpush.xpose.msra.mxu0 0.0
      %2537 = vmatpush.xpose.msra.mxu0 %v2527
      %2538 = vmatpush.xpose.msra.mxu0 %v2525
      %2539 = vmatpush.xpose.msra.mxu0 %v2523
      %2540 = vmatpush.xpose.msra.mxu0 %v2521
      %2541 = vmatpush.xpose.msra.mxu0 %v2519
      %2542 = vmatpush.xpose.msra.mxu0 %v2517
      %2543 = vmatpush.xpose.msra.mxu0 %v2515
      %2544 = vmatpush.xpose.msra.mxu0 %v2513
      %2545 = vmatmul.f32.gmra.mxu0 %v2497
      %v2546 = vpop.f32.mrf.mxu0
      %v2547 = vadd.f32 0.0, %v2546
      %2548 = vmatmul.f32.gmra.mxu0 %v2499
      %v2549 = vpop.f32.mrf.mxu0
      %v2550 = vadd.f32 0.0, %v2549
      %2551 = vmatmul.f32.gmra.mxu0 %v2501
      %v2552 = vpop.f32.mrf.mxu0
      %v2553 = vadd.f32 0.0, %v2552
      %2554 = vmatmul.f32.gmra.mxu0 %v2503
      %v2555 = vpop.f32.mrf.mxu0
      %v2556 = vadd.f32 0.0, %v2555
      %2557 = vmatmul.f32.gmra.mxu0 %v2505
      %v2558 = vpop.f32.mrf.mxu0
      %v2559 = vadd.f32 0.0, %v2558
      %2560 = vmatmul.f32.gmra.mxu0 %v2507
      %v2561 = vpop.f32.mrf.mxu0
      %v2562 = vadd.f32 0.0, %v2561
      %2563 = vmatmul.f32.gmra.mxu0 %v2509
      %v2564 = vpop.f32.mrf.mxu0
      %v2565 = vadd.f32 0.0, %v2564
      %2566 = vmatmul.f32.gmra.mxu0 %v2511
      %v2567 = vpop.f32.mrf.mxu0
      %v2568 = vadd.f32 0.0, %v2567
      %2569 = vdwg.mxu0
      %v2570 = vsel %vm1208, %v2547, -inf
      %2571 = vmax.xlane.f32.xlu0 %v2570
      %v2572 = vpop.xlane.xlu0 %2571
      %v2573 = vsel %vm1208, %v2550, -inf
      %2574 = vmax.xlane.f32.xlu0 %v2573
      %v2575 = vpop.xlane.xlu0 %2574
      %v2576 = vsel %vm1208, %v2553, -inf
      %2577 = vmax.xlane.f32.xlu0 %v2576
      %v2578 = vpop.xlane.xlu0 %2577
      %v2579 = vsel %vm1208, %v2556, -inf
      %2580 = vmax.xlane.f32.xlu0 %v2579
      %v2581 = vpop.xlane.xlu0 %2580
      %v2582 = vsel %vm1208, %v2559, -inf
      %2583 = vmax.xlane.f32.xlu0 %v2582
      %v2584 = vpop.xlane.xlu0 %2583
      %v2585 = vsel %vm1208, %v2562, -inf
      %2586 = vmax.xlane.f32.xlu0 %v2585
      %v2587 = vpop.xlane.xlu0 %2586
      %v2588 = vsel %vm1208, %v2565, -inf
      %2589 = vmax.xlane.f32.xlu0 %v2588
      %v2590 = vpop.xlane.xlu0 %2589
      %v2591 = vsel %vm1208, %v2568, -inf
      %2592 = vmax.xlane.f32.xlu0 %v2591
      %v2593 = vpop.xlane.xlu0 %2592
      %v2594 = vsub.f32 %v2547, %v2572
      %v2595 = vsub.f32 %v2550, %v2575
      %v2596 = vsub.f32 %v2553, %v2578
      %v2597 = vsub.f32 %v2556, %v2581
      %v2598 = vsub.f32 %v2559, %v2584
      %v2599 = vsub.f32 %v2562, %v2587
      %v2600 = vsub.f32 %v2565, %v2590
      %v2601 = vsub.f32 %v2568, %v2593
      %v2602 = vmul.f32 %v2594, 1.442695
      %v2603 = vpow.pop %v2602
      %v2604 = vmul.f32 %v2595, 1.442695
      %v2605 = vpow.pop %v2604
      %v2606 = vmul.f32 %v2596, 1.442695
      %v2607 = vpow.pop %v2606
      %v2608 = vmul.f32 %v2597, 1.442695
      %v2609 = vpow.pop %v2608
      %v2610 = vmul.f32 %v2598, 1.442695
      %v2611 = vpow.pop %v2610
      %v2612 = vmul.f32 %v2599, 1.442695
      %v2613 = vpow.pop %v2612
      %v2614 = vmul.f32 %v2600, 1.442695
      %v2615 = vpow.pop %v2614
      %v2616 = vmul.f32 %v2601, 1.442695
      %v2617 = vpow.pop %v2616
      %v2618 = vsel %vm1208, %v2603, 0.0
      %2619 = vadd.xlane.f32.xlu0 %v2618
      %v2620 = vpop.xlane.xlu0 %2619
      %v2621 = vsel %vm1208, %v2605, 0.0
      %2622 = vadd.xlane.f32.xlu0 %v2621
      %v2623 = vpop.xlane.xlu0 %2622
      %v2624 = vsel %vm1208, %v2607, 0.0
      %2625 = vadd.xlane.f32.xlu0 %v2624
      %v2626 = vpop.xlane.xlu0 %2625
      %v2627 = vsel %vm1208, %v2609, 0.0
      %2628 = vadd.xlane.f32.xlu0 %v2627
      %v2629 = vpop.xlane.xlu0 %2628
      %v2630 = vsel %vm1208, %v2611, 0.0
      %2631 = vadd.xlane.f32.xlu0 %v2630
      %v2632 = vpop.xlane.xlu0 %2631
      %v2633 = vsel %vm1208, %v2613, 0.0
      %2634 = vadd.xlane.f32.xlu0 %v2633
      %v2635 = vpop.xlane.xlu0 %2634
      %v2636 = vsel %vm1208, %v2615, 0.0
      %2637 = vadd.xlane.f32.xlu0 %v2636
      %v2638 = vpop.xlane.xlu0 %2637
      %v2639 = vsel %vm1208, %v2617, 0.0
      %2640 = vadd.xlane.f32.xlu0 %v2639
      %v2641 = vpop.xlane.xlu0 %2640
      %v2642 = vrcp.pop %v2620
      %v2643 = vmul.f32 %v2620, %v2642
      %v2644 = vsub.f32 1.0, %v2643
      %v2645 = vmul.f32 %v2642, %v2644
      %v2646 = vadd.f32 %v2642, %v2645
      %vm2647 = vweird.f32 %v2620
      %vm2648 = vweird.f32 %v2642
      %vm2649 = vmor %vm2647, %vm2648
      %v2650 = vsel %vm2649, %v2642, %v2646
      %v2651 = vand.u32 2147483647, %v2620
      %vm2652 = vcmp.eq.f32.partialorder %v2651, 8.507059e+37
      %v2653 = vand.u32 %v2620, 2147483648
      %v2654 = vor.u32 1.1754944e-38, %v2653
      %v2655 = vsel %vm2652, %v2654, %v2650
      %v2656 = vmul.f32 %v2603, %v2655
      %v2657 = vrcp.pop %v2623
      %v2658 = vmul.f32 %v2623, %v2657
      %v2659 = vsub.f32 1.0, %v2658
      %v2660 = vmul.f32 %v2657, %v2659
      %v2661 = vadd.f32 %v2657, %v2660
      %vm2662 = vweird.f32 %v2623
      %vm2663 = vweird.f32 %v2657
      %vm2664 = vmor %vm2662, %vm2663
      %v2665 = vsel %vm2664, %v2657, %v2661
      %v2666 = vand.u32 2147483647, %v2623
      %vm2667 = vcmp.eq.f32.partialorder %v2666, 8.507059e+37
      %v2668 = vand.u32 %v2623, 2147483648
      %v2669 = vor.u32 1.1754944e-38, %v2668
      %v2670 = vsel %vm2667, %v2669, %v2665
      %v2671 = vmul.f32 %v2605, %v2670
      %v2672 = vrcp.pop %v2626
      %v2673 = vmul.f32 %v2626, %v2672
      %v2674 = vsub.f32 1.0, %v2673
      %v2675 = vmul.f32 %v2672, %v2674
      %v2676 = vadd.f32 %v2672, %v2675
      %vm2677 = vweird.f32 %v2626
      %vm2678 = vweird.f32 %v2672
      %vm2679 = vmor %vm2677, %vm2678
      %v2680 = vsel %vm2679, %v2672, %v2676
      %v2681 = vand.u32 2147483647, %v2626
      %vm2682 = vcmp.eq.f32.partialorder %v2681, 8.507059e+37
      %v2683 = vand.u32 %v2626, 2147483648
      %v2684 = vor.u32 1.1754944e-38, %v2683
      %v2685 = vsel %vm2682, %v2684, %v2680
      %v2686 = vmul.f32 %v2607, %v2685
      %v2687 = vrcp.pop %v2629
      %v2688 = vmul.f32 %v2629, %v2687
      %v2689 = vsub.f32 1.0, %v2688
      %v2690 = vmul.f32 %v2687, %v2689
      %v2691 = vadd.f32 %v2687, %v2690
      %vm2692 = vweird.f32 %v2629
      %vm2693 = vweird.f32 %v2687
      %vm2694 = vmor %vm2692, %vm2693
      %v2695 = vsel %vm2694, %v2687, %v2691
      %v2696 = vand.u32 2147483647, %v2629
      %vm2697 = vcmp.eq.f32.partialorder %v2696, 8.507059e+37
      %v2698 = vand.u32 %v2629, 2147483648
      %v2699 = vor.u32 1.1754944e-38, %v2698
      %v2700 = vsel %vm2697, %v2699, %v2695
      %v2701 = vmul.f32 %v2609, %v2700
      %v2702 = vrcp.pop %v2632
      %v2703 = vmul.f32 %v2632, %v2702
      %v2704 = vsub.f32 1.0, %v2703
      %v2705 = vmul.f32 %v2702, %v2704
      %v2706 = vadd.f32 %v2702, %v2705
      %vm2707 = vweird.f32 %v2632
      %vm2708 = vweird.f32 %v2702
      %vm2709 = vmor %vm2707, %vm2708
      %v2710 = vsel %vm2709, %v2702, %v2706
      %v2711 = vand.u32 2147483647, %v2632
      %vm2712 = vcmp.eq.f32.partialorder %v2711, 8.507059e+37
      %v2713 = vand.u32 %v2632, 2147483648
      %v2714 = vor.u32 1.1754944e-38, %v2713
      %v2715 = vsel %vm2712, %v2714, %v2710
      %v2716 = vmul.f32 %v2611, %v2715
      %v2717 = vrcp.pop %v2635
      %v2718 = vmul.f32 %v2635, %v2717
      %v2719 = vsub.f32 1.0, %v2718
      %v2720 = vmul.f32 %v2717, %v2719
      %v2721 = vadd.f32 %v2717, %v2720
      %vm2722 = vweird.f32 %v2635
      %vm2723 = vweird.f32 %v2717
      %vm2724 = vmor %vm2722, %vm2723
      %v2725 = vsel %vm2724, %v2717, %v2721
      %v2726 = vand.u32 2147483647, %v2635
      %vm2727 = vcmp.eq.f32.partialorder %v2726, 8.507059e+37
      %v2728 = vand.u32 %v2635, 2147483648
      %v2729 = vor.u32 1.1754944e-38, %v2728
      %v2730 = vsel %vm2727, %v2729, %v2725
      %v2731 = vmul.f32 %v2613, %v2730
      %v2732 = vrcp.pop %v2638
      %v2733 = vmul.f32 %v2638, %v2732
      %v2734 = vsub.f32 1.0, %v2733
      %v2735 = vmul.f32 %v2732, %v2734
      %v2736 = vadd.f32 %v2732, %v2735
      %vm2737 = vweird.f32 %v2638
      %vm2738 = vweird.f32 %v2732
      %vm2739 = vmor %vm2737, %vm2738
      %v2740 = vsel %vm2739, %v2732, %v2736
      %v2741 = vand.u32 2147483647, %v2638
      %vm2742 = vcmp.eq.f32.partialorder %v2741, 8.507059e+37
      %v2743 = vand.u32 %v2638, 2147483648
      %v2744 = vor.u32 1.1754944e-38, %v2743
      %v2745 = vsel %vm2742, %v2744, %v2740
      %v2746 = vmul.f32 %v2615, %v2745
      %v2747 = vrcp.pop %v2641
      %v2748 = vmul.f32 %v2641, %v2747
      %v2749 = vsub.f32 1.0, %v2748
      %v2750 = vmul.f32 %v2747, %v2749
      %v2751 = vadd.f32 %v2747, %v2750
      %vm2752 = vweird.f32 %v2641
      %vm2753 = vweird.f32 %v2747
      %vm2754 = vmor %vm2752, %vm2753
      %v2755 = vsel %vm2754, %v2747, %v2751
      %v2756 = vand.u32 2147483647, %v2641
      %vm2757 = vcmp.eq.f32.partialorder %v2756, 8.507059e+37
      %v2758 = vand.u32 %v2641, 2147483648
      %v2759 = vor.u32 1.1754944e-38, %v2758
      %v2760 = vsel %vm2757, %v2759, %v2755
      %v2761 = vmul.f32 %v2617, %v2760
      %2762 = vrot.lane.b32.xlu0 %v1067, 40
      %v2763 = vpop.permute.xlu0 %2762
      %2764 = vrot.lane.b32.xlu0 %v1070, 40
      %v2765 = vpop.permute.xlu0 %2764
      %2766 = vrot.lane.b32.xlu0 %v1073, 40
      %v2767 = vpop.permute.xlu0 %2766
      %2768 = vrot.lane.b32.xlu0 %v1076, 40
      %v2769 = vpop.permute.xlu0 %2768
      %2770 = vrot.lane.b32.xlu0 %v1079, 40
      %v2771 = vpop.permute.xlu0 %2770
      %2772 = vrot.lane.b32.xlu0 %v1082, 40
      %v2773 = vpop.permute.xlu0 %2772
      %2774 = vrot.lane.b32.xlu0 %v1085, 40
      %v2775 = vpop.permute.xlu0 %2774
      %2776 = vrot.lane.b32.xlu0 %v1088, 40
      %v2777 = vpop.permute.xlu0 %2776
      %v2787 = vsel %vm1208, %v2656, 0
      %v2790 = vsel %vm1208, %v2671, 0
      %v2793 = vsel %vm1208, %v2686, 0
      %v2796 = vsel %vm1208, %v2701, 0
      %v2799 = vsel %vm1208, %v2716, 0
      %v2802 = vsel %vm1208, %v2731, 0
      %v2805 = vsel %vm1208, %v2746, 0
      %v2808 = vsel %vm1208, %v2761, 0
      %2810 = vmatpush.msra.mxu0 0.0
      %2811 = vmatpush.msra.mxu0 0.0
      %2812 = vmatpush.msra.mxu0 0.0
      %2813 = vmatpush.msra.mxu0 0.0
      %2814 = vmatpush.msra.mxu0 0.0
      %2815 = vmatpush.msra.mxu0 0.0
      %2816 = vmatpush.msra.mxu0 0.0
      %2817 = vmatpush.msra.mxu0 0.0
      %2818 = vmatpush.msra.mxu0 %v2777
      %2819 = vmatpush.msra.mxu0 %v2775
      %2820 = vmatpush.msra.mxu0 %v2773
      %2821 = vmatpush.msra.mxu0 %v2771
      %2822 = vmatpush.msra.mxu0 %v2769
      %2823 = vmatpush.msra.mxu0 %v2767
      %2824 = vmatpush.msra.mxu0 %v2765
      %2825 = vmatpush.msra.mxu0 %v2763
      %2826 = vmatmul.f32.gmra.mxu0 %v2787
      %v2827 = vpop.f32.mrf.mxu0
      %v2828 = vadd.f32 0.0, %v2827
      %2829 = vmatmul.f32.gmra.mxu0 %v2790
      %v2830 = vpop.f32.mrf.mxu0
      %v2831 = vadd.f32 0.0, %v2830
      %2832 = vmatmul.f32.gmra.mxu0 %v2793
      %v2833 = vpop.f32.mrf.mxu0
      %v2834 = vadd.f32 0.0, %v2833
      %2835 = vmatmul.f32.gmra.mxu0 %v2796
      %v2836 = vpop.f32.mrf.mxu0
      %v2837 = vadd.f32 0.0, %v2836
      %2838 = vmatmul.f32.gmra.mxu0 %v2799
      %v2839 = vpop.f32.mrf.mxu0
      %v2840 = vadd.f32 0.0, %v2839
      %2841 = vmatmul.f32.gmra.mxu0 %v2802
      %v2842 = vpop.f32.mrf.mxu0
      %v2843 = vadd.f32 0.0, %v2842
      %2844 = vmatmul.f32.gmra.mxu0 %v2805
      %v2845 = vpop.f32.mrf.mxu0
      %v2846 = vadd.f32 0.0, %v2845
      %2847 = vmatmul.f32.gmra.mxu0 %v2808
      %v2848 = vpop.f32.mrf.mxu0
      %v2849 = vadd.f32 0.0, %v2848
      %2850 = vdwg.mxu0
      %v2852 = vsel %vm1126, %v2828, 0
      %v2855 = vsel %vm1126, %v2831, 0
      %v2858 = vsel %vm1126, %v2834, 0
      %v2861 = vsel %vm1126, %v2837, 0
      %v2864 = vsel %vm1126, %v2840, 0
      %v2867 = vsel %vm1126, %v2843, 0
      %v2870 = vsel %vm1126, %v2846, 0
      %v2873 = vsel %vm1126, %v2849, 0
      %2875 = vmatpush.msra.mxu0 0.0
      %2876 = vmatpush.msra.mxu0 0.0
      %2877 = vmatpush.msra.mxu0 0.0
      %2878 = vmatpush.msra.mxu0 0.0
      %2879 = vmatpush.msra.mxu0 0.0
      %2880 = vmatpush.msra.mxu0 0.0
      %2881 = vmatpush.msra.mxu0 0.0
      %2882 = vmatpush.msra.mxu0 0.0
      %2883 = vmatpush.msra.mxu0 0.0
      %2884 = vmatpush.msra.mxu0 0.0
      %2885 = vmatpush.msra.mxu0 0.0
      %2886 = vmatpush.msra.mxu0 0.0
      %2887 = vmatpush.msra.mxu0 0.0
      %2888 = vmatpush.msra.mxu0 0.0
      %2889 = vmatpush.msra.mxu0 0.0
      %2890 = vmatpush.msra.mxu0 %v1093
      %2891 = vmatmul.f32.gmra.mxu0 %v2852
      %v2892 = vpop.f32.mrf.mxu0
      %v2893 = vadd.f32 0.0, %v2892
      %2894 = vmatmul.f32.gmra.mxu0 %v2855
      %v2895 = vpop.f32.mrf.mxu0
      %v2896 = vadd.f32 0.0, %v2895
      %2897 = vmatmul.f32.gmra.mxu0 %v2858
      %v2898 = vpop.f32.mrf.mxu0
      %v2899 = vadd.f32 0.0, %v2898
      %2900 = vmatmul.f32.gmra.mxu0 %v2861
      %v2901 = vpop.f32.mrf.mxu0
      %v2902 = vadd.f32 0.0, %v2901
      %2903 = vmatmul.f32.gmra.mxu0 %v2864
      %v2904 = vpop.f32.mrf.mxu0
      %v2905 = vadd.f32 0.0, %v2904
      %2906 = vmatmul.f32.gmra.mxu0 %v2867
      %v2907 = vpop.f32.mrf.mxu0
      %v2908 = vadd.f32 0.0, %v2907
      %2909 = vmatmul.f32.gmra.mxu0 %v2870
      %v2910 = vpop.f32.mrf.mxu0
      %v2911 = vadd.f32 0.0, %v2910
      %2912 = vmatmul.f32.gmra.mxu0 %v2873
      %v2913 = vpop.f32.mrf.mxu0
      %v2914 = vadd.f32 0.0, %v2913
      %2915 = vdwg.mxu0
      %v2916 = vadd.f32 %v2457, %v2893
      %v2917 = vadd.f32 %v2458, %v2896
      %v2918 = vadd.f32 %v2459, %v2899
      %v2919 = vadd.f32 %v2460, %v2902
      %v2920 = vadd.f32 %v2461, %v2905
      %v2921 = vadd.f32 %v2462, %v2908
      %v2922 = vadd.f32 %v2463, %v2911
      %v2923 = vadd.f32 %v2464, %v2914
      %v2924 = vadd.f32 %v684, %v2916
      %v2925 = vadd.f32 %v685, %v2917
      %v2926 = vadd.f32 %v686, %v2918
      %v2927 = vadd.f32 %v687, %v2919
      %v2928 = vadd.f32 %v688, %v2920
      %v2929 = vadd.f32 %v689, %v2921
      %v2930 = vadd.f32 %v690, %v2922
      %v2931 = vadd.f32 %v691, %v2923
      %v2932 = vld [vmem:[%s5] sm:$0x1]
      %v2934 = vperm.slane %v2932, 0
      %v2936 = vadd.f32 %v2924, %v2934
      %v2937 = vadd.f32 %v2925, %v2934
      %v2938 = vadd.f32 %v2926, %v2934
      %v2939 = vadd.f32 %v2927, %v2934
      %v2940 = vadd.f32 %v2928, %v2934
      %v2941 = vadd.f32 %v2929, %v2934
      %v2942 = vadd.f32 %v2930, %v2934
      %v2943 = vadd.f32 %v2931, %v2934
      %v2944 = vld [vmem:[%s6] sm:$0x1]
      %v2945 = vld [vmem:[%s7] sm:$0x1]
      %v2946 = vsel %vm815, %v2936, 0.0
      %2947 = vadd.xlane.f32.xlu0 %v2946
      %v2948 = vpop.xlane.xlu0 %2947
      %v2949 = vsel %vm815, %v2937, 0.0
      %2950 = vadd.xlane.f32.xlu0 %v2949
      %v2951 = vpop.xlane.xlu0 %2950
      %v2952 = vsel %vm815, %v2938, 0.0
      %2953 = vadd.xlane.f32.xlu0 %v2952
      %v2954 = vpop.xlane.xlu0 %2953
      %v2955 = vsel %vm815, %v2939, 0.0
      %2956 = vadd.xlane.f32.xlu0 %v2955
      %v2957 = vpop.xlane.xlu0 %2956
      %v2958 = vsel %vm815, %v2940, 0.0
      %2959 = vadd.xlane.f32.xlu0 %v2958
      %v2960 = vpop.xlane.xlu0 %2959
      %v2961 = vsel %vm815, %v2941, 0.0
      %2962 = vadd.xlane.f32.xlu0 %v2961
      %v2963 = vpop.xlane.xlu0 %2962
      %v2964 = vsel %vm815, %v2942, 0.0
      %2965 = vadd.xlane.f32.xlu0 %v2964
      %v2966 = vpop.xlane.xlu0 %2965
      %v2967 = vsel %vm815, %v2943, 0.0
      %2968 = vadd.xlane.f32.xlu0 %v2967
      %v2969 = vpop.xlane.xlu0 %2968
      %v2970 = vmul.f32 %v2948, %v846
      %v2971 = vmul.f32 %v2951, %v846
      %v2972 = vmul.f32 %v2954, %v846
      %v2973 = vmul.f32 %v2957, %v846
      %v2974 = vmul.f32 %v2960, %v846
      %v2975 = vmul.f32 %v2963, %v846
      %v2976 = vmul.f32 %v2966, %v846
      %v2977 = vmul.f32 %v2969, %v846
      %v2978 = vsub.f32 %v2936, %v2970
      %v2979 = vsub.f32 %v2937, %v2971
      %v2980 = vsub.f32 %v2938, %v2972
      %v2981 = vsub.f32 %v2939, %v2973
      %v2982 = vsub.f32 %v2940, %v2974
      %v2983 = vsub.f32 %v2941, %v2975
      %v2984 = vsub.f32 %v2942, %v2976
      %v2985 = vsub.f32 %v2943, %v2977
      %v2986 = vmul.f32 %v2978, %v2978
      %v2987 = vmul.f32 %v2979, %v2979
      %v2988 = vmul.f32 %v2980, %v2980
      %v2989 = vmul.f32 %v2981, %v2981
      %v2990 = vmul.f32 %v2982, %v2982
      %v2991 = vmul.f32 %v2983, %v2983
      %v2992 = vmul.f32 %v2984, %v2984
      %v2993 = vmul.f32 %v2985, %v2985
      %v2994 = vsel %vm815, %v2986, 0.0
      %2995 = vadd.xlane.f32.xlu0 %v2994
      %v2996 = vpop.xlane.xlu0 %2995
      %v2997 = vsel %vm815, %v2987, 0.0
      %2998 = vadd.xlane.f32.xlu0 %v2997
      %v2999 = vpop.xlane.xlu0 %2998
      %v3000 = vsel %vm815, %v2988, 0.0
      %3001 = vadd.xlane.f32.xlu0 %v3000
      %v3002 = vpop.xlane.xlu0 %3001
      %v3003 = vsel %vm815, %v2989, 0.0
      %3004 = vadd.xlane.f32.xlu0 %v3003
      %v3005 = vpop.xlane.xlu0 %3004
      %v3006 = vsel %vm815, %v2990, 0.0
      %3007 = vadd.xlane.f32.xlu0 %v3006
      %v3008 = vpop.xlane.xlu0 %3007
      %v3009 = vsel %vm815, %v2991, 0.0
      %3010 = vadd.xlane.f32.xlu0 %v3009
      %v3011 = vpop.xlane.xlu0 %3010
      %v3012 = vsel %vm815, %v2992, 0.0
      %3013 = vadd.xlane.f32.xlu0 %v3012
      %v3014 = vpop.xlane.xlu0 %3013
      %v3015 = vsel %vm815, %v2993, 0.0
      %3016 = vadd.xlane.f32.xlu0 %v3015
      %v3017 = vpop.xlane.xlu0 %3016
      %v3018 = vmul.f32 %v2996, %v846
      %v3019 = vmul.f32 %v2999, %v846
      %v3020 = vmul.f32 %v3002, %v846
      %v3021 = vmul.f32 %v3005, %v846
      %v3022 = vmul.f32 %v3008, %v846
      %v3023 = vmul.f32 %v3011, %v846
      %v3024 = vmul.f32 %v3014, %v846
      %v3025 = vmul.f32 %v3017, %v846
      %v3026 = vadd.f32 %v3018, 1e-05
      %v3027 = vadd.f32 %v3019, 1e-05
      %v3028 = vadd.f32 %v3020, 1e-05
      %v3029 = vadd.f32 %v3021, 1e-05
      %v3030 = vadd.f32 %v3022, 1e-05
      %v3031 = vadd.f32 %v3023, 1e-05
      %v3032 = vadd.f32 %v3024, 1e-05
      %v3033 = vadd.f32 %v3025, 1e-05
      %v3034 = vrsqrt.pop %v3026
      %v3035 = vmul.f32 %v3034, %v3026
      %v3036 = vmul.f32 %v3035, %v3034
      %v3037 = vmul.f32 0.5, %v3036
      %v3038 = vsub.f32 1.5, %v3037
      %v3039 = vmul.f32 %v3034, %v3038
      %vm3040 = vweird.f32 %v3026
      %vm3041 = vweird.f32 %v3034
      %vm3042 = vmor %vm3040, %vm3041
      %v3043 = vsel %vm3042, %v3034, %v3039
      %v3044 = vrsqrt.pop %v3027
      %v3045 = vmul.f32 %v3044, %v3027
      %v3046 = vmul.f32 %v3045, %v3044
      %v3047 = vmul.f32 0.5, %v3046
      %v3048 = vsub.f32 1.5, %v3047
      %v3049 = vmul.f32 %v3044, %v3048
      %vm3050 = vweird.f32 %v3027
      %vm3051 = vweird.f32 %v3044
      %vm3052 = vmor %vm3050, %vm3051
      %v3053 = vsel %vm3052, %v3044, %v3049
      %v3054 = vrsqrt.pop %v3028
      %v3055 = vmul.f32 %v3054, %v3028
      %v3056 = vmul.f32 %v3055, %v3054
      %v3057 = vmul.f32 0.5, %v3056
      %v3058 = vsub.f32 1.5, %v3057
      %v3059 = vmul.f32 %v3054, %v3058
      %vm3060 = vweird.f32 %v3028
      %vm3061 = vweird.f32 %v3054
      %vm3062 = vmor %vm3060, %vm3061
      %v3063 = vsel %vm3062, %v3054, %v3059
      %v3064 = vrsqrt.pop %v3029
      %v3065 = vmul.f32 %v3064, %v3029
      %v3066 = vmul.f32 %v3065, %v3064
      %v3067 = vmul.f32 0.5, %v3066
      %v3068 = vsub.f32 1.5, %v3067
      %v3069 = vmul.f32 %v3064, %v3068
      %vm3070 = vweird.f32 %v3029
      %vm3071 = vweird.f32 %v3064
      %vm3072 = vmor %vm3070, %vm3071
      %v3073 = vsel %vm3072, %v3064, %v3069
      %v3074 = vrsqrt.pop %v3030
      %v3075 = vmul.f32 %v3074, %v3030
      %v3076 = vmul.f32 %v3075, %v3074
      %v3077 = vmul.f32 0.5, %v3076
      %v3078 = vsub.f32 1.5, %v3077
      %v3079 = vmul.f32 %v3074, %v3078
      %vm3080 = vweird.f32 %v3030
      %vm3081 = vweird.f32 %v3074
      %vm3082 = vmor %vm3080, %vm3081
      %v3083 = vsel %vm3082, %v3074, %v3079
      %v3084 = vrsqrt.pop %v3031
      %v3085 = vmul.f32 %v3084, %v3031
      %v3086 = vmul.f32 %v3085, %v3084
      %v3087 = vmul.f32 0.5, %v3086
      %v3088 = vsub.f32 1.5, %v3087
      %v3089 = vmul.f32 %v3084, %v3088
      %vm3090 = vweird.f32 %v3031
      %vm3091 = vweird.f32 %v3084
      %vm3092 = vmor %vm3090, %vm3091
      %v3093 = vsel %vm3092, %v3084, %v3089
      %v3094 = vrsqrt.pop %v3032
      %v3095 = vmul.f32 %v3094, %v3032
      %v3096 = vmul.f32 %v3095, %v3094
      %v3097 = vmul.f32 0.5, %v3096
      %v3098 = vsub.f32 1.5, %v3097
      %v3099 = vmul.f32 %v3094, %v3098
      %vm3100 = vweird.f32 %v3032
      %vm3101 = vweird.f32 %v3094
      %vm3102 = vmor %vm3100, %vm3101
      %v3103 = vsel %vm3102, %v3094, %v3099
      %v3104 = vrsqrt.pop %v3033
      %v3105 = vmul.f32 %v3104, %v3033
      %v3106 = vmul.f32 %v3105, %v3104
      %v3107 = vmul.f32 0.5, %v3106
      %v3108 = vsub.f32 1.5, %v3107
      %v3109 = vmul.f32 %v3104, %v3108
      %vm3110 = vweird.f32 %v3033
      %vm3111 = vweird.f32 %v3104
      %vm3112 = vmor %vm3110, %vm3111
      %v3113 = vsel %vm3112, %v3104, %v3109
      %v3114 = vmul.f32 %v2978, %v3043
      %v3115 = vmul.f32 %v2979, %v3053
      %v3116 = vmul.f32 %v2980, %v3063
      %v3117 = vmul.f32 %v2981, %v3073
      %v3118 = vmul.f32 %v2982, %v3083
      %v3119 = vmul.f32 %v2983, %v3093
      %v3120 = vmul.f32 %v2984, %v3103
      %v3121 = vmul.f32 %v2985, %v3113
      %v3123 = vperm.slane %v2944, 0
      %v3125 = vmul.f32 %v3114, %v3123
      %v3126 = vmul.f32 %v3115, %v3123
      %v3127 = vmul.f32 %v3116, %v3123
      %v3128 = vmul.f32 %v3117, %v3123
      %v3129 = vmul.f32 %v3118, %v3123
      %v3130 = vmul.f32 %v3119, %v3123
      %v3131 = vmul.f32 %v3120, %v3123
      %v3132 = vmul.f32 %v3121, %v3123
      %v3134 = vperm.slane %v2945, 0
      %v3136 = vadd.f32 %v3125, %v3134
      %v3137 = vadd.f32 %v3126, %v3134
      %v3138 = vadd.f32 %v3127, %v3134
      %v3139 = vadd.f32 %v3128, %v3134
      %v3140 = vadd.f32 %v3129, %v3134
      %v3141 = vadd.f32 %v3130, %v3134
      %v3142 = vadd.f32 %v3131, %v3134
      %v3143 = vadd.f32 %v3132, %v3134
      %v3144 = vld [vmem:[%s8] sm:$0xff]
      %v3145 = vld [vmem:[%s8 + $0x8] sm:$0xff]
      %v3146 = vld [vmem:[%s8 + $0x10] sm:$0xff]
      %v3147 = vld [vmem:[%s8 + $0x18] sm:$0xff]
      %v3148 = vld [vmem:[%s9] sm:$0x1]
      %v3150 = vperm.slane %v3148, 0
      %v3153 = vsel %vm815, %v3136, 0
      %v3156 = vsel %vm815, %v3137, 0
      %v3159 = vsel %vm815, %v3138, 0
      %v3162 = vsel %vm815, %v3139, 0
      %v3165 = vsel %vm815, %v3140, 0
      %v3168 = vsel %vm815, %v3141, 0
      %v3171 = vsel %vm815, %v3142, 0
      %v3174 = vsel %vm815, %v3143, 0
      %3176 = vmatpush.msra.mxu0 0.0
      %3177 = vmatpush.msra.mxu0 0.0
      %3178 = vmatpush.msra.mxu0 0.0
      %3179 = vmatpush.msra.mxu0 0.0
      %3180 = vmatpush.msra.mxu0 0.0
      %3181 = vmatpush.msra.mxu0 0.0
      %3182 = vmatpush.msra.mxu0 0.0
      %3183 = vmatpush.msra.mxu0 0.0
      %3184 = vmatpush.msra.mxu0 0.0
      %3185 = vmatpush.msra.mxu0 0.0
      %3186 = vmatpush.msra.mxu0 0.0
      %3187 = vmatpush.msra.mxu0 0.0
      %3188 = vmatpush.msra.mxu0 %v3147
      %3189 = vmatpush.msra.mxu0 %v3146
      %3190 = vmatpush.msra.mxu0 %v3145
      %3191 = vmatpush.msra.mxu0 %v3144
      %3192 = vmatmul.f32.gmra.mxu0 %v3153
      %v3193 = vpop.f32.mrf.mxu0
      %v3194 = vadd.f32 %v3150, %v3193
      %3195 = vmatmul.f32.gmra.mxu0 %v3156
      %v3196 = vpop.f32.mrf.mxu0
      %v3197 = vadd.f32 %v3150, %v3196
      %3198 = vmatmul.f32.gmra.mxu0 %v3159
      %v3199 = vpop.f32.mrf.mxu0
      %v3200 = vadd.f32 %v3150, %v3199
      %3201 = vmatmul.f32.gmra.mxu0 %v3162
      %v3202 = vpop.f32.mrf.mxu0
      %v3203 = vadd.f32 %v3150, %v3202
      %3204 = vmatmul.f32.gmra.mxu0 %v3165
      %v3205 = vpop.f32.mrf.mxu0
      %v3206 = vadd.f32 %v3150, %v3205
      %3207 = vmatmul.f32.gmra.mxu0 %v3168
      %v3208 = vpop.f32.mrf.mxu0
      %v3209 = vadd.f32 %v3150, %v3208
      %3210 = vmatmul.f32.gmra.mxu0 %v3171
      %v3211 = vpop.f32.mrf.mxu0
      %v3212 = vadd.f32 %v3150, %v3211
      %3213 = vmatmul.f32.gmra.mxu0 %v3174
      %v3214 = vpop.f32.mrf.mxu0
      %v3215 = vadd.f32 %v3150, %v3214
      %3216 = vdwg.mxu0
      %v3217 = vmul.f32 %v3194, 0.5
      %v3218 = vmul.f32 %v3197, 0.5
      %v3219 = vmul.f32 %v3200, 0.5
      %v3220 = vmul.f32 %v3203, 0.5
      %v3221 = vmul.f32 %v3206, 0.5
      %v3222 = vmul.f32 %v3209, 0.5
      %v3223 = vmul.f32 %v3212, 0.5
      %v3224 = vmul.f32 %v3215, 0.5
      %v3225 = vmul.f32 %v3194, 0.70710677
      %v3226 = vmul.f32 %v3197, 0.70710677
      %v3227 = vmul.f32 %v3200, 0.70710677
      %v3228 = vmul.f32 %v3203, 0.70710677
      %v3229 = vmul.f32 %v3206, 0.70710677
      %v3230 = vmul.f32 %v3209, 0.70710677
      %v3231 = vmul.f32 %v3212, 0.70710677
      %v3232 = vmul.f32 %v3215, 0.70710677
      %v3233 = vmul.f32 %v3225, %v3225
      %v3234 = vmin.f32 16.0, %v3233
      %v3235 = vmul.f32 %v3234, 2.1237322e-06
      %v3236 = vadd.f32 %v3235, 0.00028619796
      %v3237 = vmul.f32 %v3234, %v3236
      %v3238 = vadd.f32 %v3237, 0.0036580483
      %v3239 = vmul.f32 %v3234, %v3238
      %v3240 = vadd.f32 %v3239, 0.05243302
      %v3241 = vmul.f32 %v3234, %v3240
      %v3242 = vadd.f32 %v3241, 0.18741608
      %v3243 = vmul.f32 %v3234, %v3242
      %v3244 = vadd.f32 %v3243, 1.1283791
      %v3245 = vmul.f32 %v3225, %v3244
      %v3246 = vmul.f32 %v3234, 3.8918573e-05
      %v3247 = vadd.f32 %v3246, 0.001143296
      %v3248 = vmul.f32 %v3234, %v3247
      %v3249 = vadd.f32 %v3248, 0.014752088
      %v3250 = vmul.f32 %v3234, %v3249
      %v3251 = vadd.f32 %v3250, 0.112945676
      %v3252 = vmul.f32 %v3234, %v3251
      %v3253 = vadd.f32 %v3252, 0.4994258
      %v3254 = vmul.f32 %v3234, %v3253
      %v3255 = vadd.f32 %v3254, 1.0
      %v3256 = vrcp.pop %v3255
      %v3257 = vmul.f32 %v3255, %v3256
      %v3258 = vsub.f32 1.0, %v3257
      %v3259 = vmul.f32 %v3256, %v3258
      %v3260 = vadd.f32 %v3256, %v3259
      %vm3261 = vweird.f32 %v3255
      %vm3262 = vweird.f32 %v3256
      %vm3263 = vmor %vm3261, %vm3262
      %v3264 = vsel %vm3263, %v3256, %v3260
      %v3265 = vand.u32 2147483647, %v3255
      %vm3266 = vcmp.eq.f32.partialorder %v3265, 8.507059e+37
      %v3267 = vand.u32 %v3255, 2147483648
      %v3268 = vor.u32 1.1754944e-38, %v3267
      %v3269 = vsel %vm3266, %v3268, %v3264
      %v3270 = vmul.f32 %v3245, %v3269
      %v3271 = vmin.f32 %v3270, 1.0
      %v3272 = vmax.f32 %v3271, -1.0
      %v3273 = vmul.f32 %v3226, %v3226
      %v3274 = vmin.f32 16.0, %v3273
      %v3275 = vmul.f32 %v3274, 2.1237322e-06
      %v3276 = vadd.f32 %v3275, 0.00028619796
      %v3277 = vmul.f32 %v3274, %v3276
      %v3278 = vadd.f32 %v3277, 0.0036580483
      %v3279 = vmul.f32 %v3274, %v3278
      %v3280 = vadd.f32 %v3279, 0.05243302
      %v3281 = vmul.f32 %v3274, %v3280
      %v3282 = vadd.f32 %v3281, 0.18741608
      %v3283 = vmul.f32 %v3274, %v3282
      %v3284 = vadd.f32 %v3283, 1.1283791
      %v3285 = vmul.f32 %v3226, %v3284
      %v3286 = vmul.f32 %v3274, 3.8918573e-05
      %v3287 = vadd.f32 %v3286, 0.001143296
      %v3288 = vmul.f32 %v3274, %v3287
      %v3289 = vadd.f32 %v3288, 0.014752088
      %v3290 = vmul.f32 %v3274, %v3289
      %v3291 = vadd.f32 %v3290, 0.112945676
      %v3292 = vmul.f32 %v3274, %v3291
      %v3293 = vadd.f32 %v3292, 0.4994258
      %v3294 = vmul.f32 %v3274, %v3293
      %v3295 = vadd.f32 %v3294, 1.0
      %v3296 = vrcp.pop %v3295
      %v3297 = vmul.f32 %v3295, %v3296
      %v3298 = vsub.f32 1.0, %v3297
      %v3299 = vmul.f32 %v3296, %v3298
      %v3300 = vadd.f32 %v3296, %v3299
      %vm3301 = vweird.f32 %v3295
      %vm3302 = vweird.f32 %v3296
      %vm3303 = vmor %vm3301, %vm3302
      %v3304 = vsel %vm3303, %v3296, %v3300
      %v3305 = vand.u32 2147483647, %v3295
      %vm3306 = vcmp.eq.f32.partialorder %v3305, 8.507059e+37
      %v3307 = vand.u32 %v3295, 2147483648
      %v3308 = vor.u32 1.1754944e-38, %v3307
      %v3309 = vsel %vm3306, %v3308, %v3304
      %v3310 = vmul.f32 %v3285, %v3309
      %v3311 = vmin.f32 %v3310, 1.0
      %v3312 = vmax.f32 %v3311, -1.0
      %v3313 = vmul.f32 %v3227, %v3227
      %v3314 = vmin.f32 16.0, %v3313
      %v3315 = vmul.f32 %v3314, 2.1237322e-06
      %v3316 = vadd.f32 %v3315, 0.00028619796
      %v3317 = vmul.f32 %v3314, %v3316
      %v3318 = vadd.f32 %v3317, 0.0036580483
      %v3319 = vmul.f32 %v3314, %v3318
      %v3320 = vadd.f32 %v3319, 0.05243302
      %v3321 = vmul.f32 %v3314, %v3320
      %v3322 = vadd.f32 %v3321, 0.18741608
      %v3323 = vmul.f32 %v3314, %v3322
      %v3324 = vadd.f32 %v3323, 1.1283791
      %v3325 = vmul.f32 %v3227, %v3324
      %v3326 = vmul.f32 %v3314, 3.8918573e-05
      %v3327 = vadd.f32 %v3326, 0.001143296
      %v3328 = vmul.f32 %v3314, %v3327
      %v3329 = vadd.f32 %v3328, 0.014752088
      %v3330 = vmul.f32 %v3314, %v3329
      %v3331 = vadd.f32 %v3330, 0.112945676
      %v3332 = vmul.f32 %v3314, %v3331
      %v3333 = vadd.f32 %v3332, 0.4994258
      %v3334 = vmul.f32 %v3314, %v3333
      %v3335 = vadd.f32 %v3334, 1.0
      %v3336 = vrcp.pop %v3335
      %v3337 = vmul.f32 %v3335, %v3336
      %v3338 = vsub.f32 1.0, %v3337
      %v3339 = vmul.f32 %v3336, %v3338
      %v3340 = vadd.f32 %v3336, %v3339
      %vm3341 = vweird.f32 %v3335
      %vm3342 = vweird.f32 %v3336
      %vm3343 = vmor %vm3341, %vm3342
      %v3344 = vsel %vm3343, %v3336, %v3340
      %v3345 = vand.u32 2147483647, %v3335
      %vm3346 = vcmp.eq.f32.partialorder %v3345, 8.507059e+37
      %v3347 = vand.u32 %v3335, 2147483648
      %v3348 = vor.u32 1.1754944e-38, %v3347
      %v3349 = vsel %vm3346, %v3348, %v3344
      %v3350 = vmul.f32 %v3325, %v3349
      %v3351 = vmin.f32 %v3350, 1.0
      %v3352 = vmax.f32 %v3351, -1.0
      %v3353 = vmul.f32 %v3228, %v3228
      %v3354 = vmin.f32 16.0, %v3353
      %v3355 = vmul.f32 %v3354, 2.1237322e-06
      %v3356 = vadd.f32 %v3355, 0.00028619796
      %v3357 = vmul.f32 %v3354, %v3356
      %v3358 = vadd.f32 %v3357, 0.0036580483
      %v3359 = vmul.f32 %v3354, %v3358
      %v3360 = vadd.f32 %v3359, 0.05243302
      %v3361 = vmul.f32 %v3354, %v3360
      %v3362 = vadd.f32 %v3361, 0.18741608
      %v3363 = vmul.f32 %v3354, %v3362
      %v3364 = vadd.f32 %v3363, 1.1283791
      %v3365 = vmul.f32 %v3228, %v3364
      %v3366 = vmul.f32 %v3354, 3.8918573e-05
      %v3367 = vadd.f32 %v3366, 0.001143296
      %v3368 = vmul.f32 %v3354, %v3367
      %v3369 = vadd.f32 %v3368, 0.014752088
      %v3370 = vmul.f32 %v3354, %v3369
      %v3371 = vadd.f32 %v3370, 0.112945676
      %v3372 = vmul.f32 %v3354, %v3371
      %v3373 = vadd.f32 %v3372, 0.4994258
      %v3374 = vmul.f32 %v3354, %v3373
      %v3375 = vadd.f32 %v3374, 1.0
      %v3376 = vrcp.pop %v3375
      %v3377 = vmul.f32 %v3375, %v3376
      %v3378 = vsub.f32 1.0, %v3377
      %v3379 = vmul.f32 %v3376, %v3378
      %v3380 = vadd.f32 %v3376, %v3379
      %vm3381 = vweird.f32 %v3375
      %vm3382 = vweird.f32 %v3376
      %vm3383 = vmor %vm3381, %vm3382
      %v3384 = vsel %vm3383, %v3376, %v3380
      %v3385 = vand.u32 2147483647, %v3375
      %vm3386 = vcmp.eq.f32.partialorder %v3385, 8.507059e+37
      %v3387 = vand.u32 %v3375, 2147483648
      %v3388 = vor.u32 1.1754944e-38, %v3387
      %v3389 = vsel %vm3386, %v3388, %v3384
      %v3390 = vmul.f32 %v3365, %v3389
      %v3391 = vmin.f32 %v3390, 1.0
      %v3392 = vmax.f32 %v3391, -1.0
      %v3393 = vmul.f32 %v3229, %v3229
      %v3394 = vmin.f32 16.0, %v3393
      %v3395 = vmul.f32 %v3394, 2.1237322e-06
      %v3396 = vadd.f32 %v3395, 0.00028619796
      %v3397 = vmul.f32 %v3394, %v3396
      %v3398 = vadd.f32 %v3397, 0.0036580483
      %v3399 = vmul.f32 %v3394, %v3398
      %v3400 = vadd.f32 %v3399, 0.05243302
      %v3401 = vmul.f32 %v3394, %v3400
      %v3402 = vadd.f32 %v3401, 0.18741608
      %v3403 = vmul.f32 %v3394, %v3402
      %v3404 = vadd.f32 %v3403, 1.1283791
      %v3405 = vmul.f32 %v3229, %v3404
      %v3406 = vmul.f32 %v3394, 3.8918573e-05
      %v3407 = vadd.f32 %v3406, 0.001143296
      %v3408 = vmul.f32 %v3394, %v3407
      %v3409 = vadd.f32 %v3408, 0.014752088
      %v3410 = vmul.f32 %v3394, %v3409
      %v3411 = vadd.f32 %v3410, 0.112945676
      %v3412 = vmul.f32 %v3394, %v3411
      %v3413 = vadd.f32 %v3412, 0.4994258
      %v3414 = vmul.f32 %v3394, %v3413
      %v3415 = vadd.f32 %v3414, 1.0
      %v3416 = vrcp.pop %v3415
      %v3417 = vmul.f32 %v3415, %v3416
      %v3418 = vsub.f32 1.0, %v3417
      %v3419 = vmul.f32 %v3416, %v3418
      %v3420 = vadd.f32 %v3416, %v3419
      %vm3421 = vweird.f32 %v3415
      %vm3422 = vweird.f32 %v3416
      %vm3423 = vmor %vm3421, %vm3422
      %v3424 = vsel %vm3423, %v3416, %v3420
      %v3425 = vand.u32 2147483647, %v3415
      %vm3426 = vcmp.eq.f32.partialorder %v3425, 8.507059e+37
      %v3427 = vand.u32 %v3415, 2147483648
      %v3428 = vor.u32 1.1754944e-38, %v3427
      %v3429 = vsel %vm3426, %v3428, %v3424
      %v3430 = vmul.f32 %v3405, %v3429
      %v3431 = vmin.f32 %v3430, 1.0
      %v3432 = vmax.f32 %v3431, -1.0
      %v3433 = vmul.f32 %v3230, %v3230
      %v3434 = vmin.f32 16.0, %v3433
      %v3435 = vmul.f32 %v3434, 2.1237322e-06
      %v3436 = vadd.f32 %v3435, 0.00028619796
      %v3437 = vmul.f32 %v3434, %v3436
      %v3438 = vadd.f32 %v3437, 0.0036580483
      %v3439 = vmul.f32 %v3434, %v3438
      %v3440 = vadd.f32 %v3439, 0.05243302
      %v3441 = vmul.f32 %v3434, %v3440
      %v3442 = vadd.f32 %v3441, 0.18741608
      %v3443 = vmul.f32 %v3434, %v3442
      %v3444 = vadd.f32 %v3443, 1.1283791
      %v3445 = vmul.f32 %v3230, %v3444
      %v3446 = vmul.f32 %v3434, 3.8918573e-05
      %v3447 = vadd.f32 %v3446, 0.001143296
      %v3448 = vmul.f32 %v3434, %v3447
      %v3449 = vadd.f32 %v3448, 0.014752088
      %v3450 = vmul.f32 %v3434, %v3449
      %v3451 = vadd.f32 %v3450, 0.112945676
      %v3452 = vmul.f32 %v3434, %v3451
      %v3453 = vadd.f32 %v3452, 0.4994258
      %v3454 = vmul.f32 %v3434, %v3453
      %v3455 = vadd.f32 %v3454, 1.0
      %v3456 = vrcp.pop %v3455
      %v3457 = vmul.f32 %v3455, %v3456
      %v3458 = vsub.f32 1.0, %v3457
      %v3459 = vmul.f32 %v3456, %v3458
      %v3460 = vadd.f32 %v3456, %v3459
      %vm3461 = vweird.f32 %v3455
      %vm3462 = vweird.f32 %v3456
      %vm3463 = vmor %vm3461, %vm3462
      %v3464 = vsel %vm3463, %v3456, %v3460
      %v3465 = vand.u32 2147483647, %v3455
      %vm3466 = vcmp.eq.f32.partialorder %v3465, 8.507059e+37
      %v3467 = vand.u32 %v3455, 2147483648
      %v3468 = vor.u32 1.1754944e-38, %v3467
      %v3469 = vsel %vm3466, %v3468, %v3464
      %v3470 = vmul.f32 %v3445, %v3469
      %v3471 = vmin.f32 %v3470, 1.0
      %v3472 = vmax.f32 %v3471, -1.0
      %v3473 = vmul.f32 %v3231, %v3231
      %v3474 = vmin.f32 16.0, %v3473
      %v3475 = vmul.f32 %v3474, 2.1237322e-06
      %v3476 = vadd.f32 %v3475, 0.00028619796
      %v3477 = vmul.f32 %v3474, %v3476
      %v3478 = vadd.f32 %v3477, 0.0036580483
      %v3479 = vmul.f32 %v3474, %v3478
      %v3480 = vadd.f32 %v3479, 0.05243302
      %v3481 = vmul.f32 %v3474, %v3480
      %v3482 = vadd.f32 %v3481, 0.18741608
      %v3483 = vmul.f32 %v3474, %v3482
      %v3484 = vadd.f32 %v3483, 1.1283791
      %v3485 = vmul.f32 %v3231, %v3484
      %v3486 = vmul.f32 %v3474, 3.8918573e-05
      %v3487 = vadd.f32 %v3486, 0.001143296
      %v3488 = vmul.f32 %v3474, %v3487
      %v3489 = vadd.f32 %v3488, 0.014752088
      %v3490 = vmul.f32 %v3474, %v3489
      %v3491 = vadd.f32 %v3490, 0.112945676
      %v3492 = vmul.f32 %v3474, %v3491
      %v3493 = vadd.f32 %v3492, 0.4994258
      %v3494 = vmul.f32 %v3474, %v3493
      %v3495 = vadd.f32 %v3494, 1.0
      %v3496 = vrcp.pop %v3495
      %v3497 = vmul.f32 %v3495, %v3496
      %v3498 = vsub.f32 1.0, %v3497
      %v3499 = vmul.f32 %v3496, %v3498
      %v3500 = vadd.f32 %v3496, %v3499
      %vm3501 = vweird.f32 %v3495
      %vm3502 = vweird.f32 %v3496
      %vm3503 = vmor %vm3501, %vm3502
      %v3504 = vsel %vm3503, %v3496, %v3500
      %v3505 = vand.u32 2147483647, %v3495
      %vm3506 = vcmp.eq.f32.partialorder %v3505, 8.507059e+37
      %v3507 = vand.u32 %v3495, 2147483648
      %v3508 = vor.u32 1.1754944e-38, %v3507
      %v3509 = vsel %vm3506, %v3508, %v3504
      %v3510 = vmul.f32 %v3485, %v3509
      %v3511 = vmin.f32 %v3510, 1.0
      %v3512 = vmax.f32 %v3511, -1.0
      %v3513 = vmul.f32 %v3232, %v3232
      %v3514 = vmin.f32 16.0, %v3513
      %v3515 = vmul.f32 %v3514, 2.1237322e-06
      %v3516 = vadd.f32 %v3515, 0.00028619796
      %v3517 = vmul.f32 %v3514, %v3516
      %v3518 = vadd.f32 %v3517, 0.0036580483
      %v3519 = vmul.f32 %v3514, %v3518
      %v3520 = vadd.f32 %v3519, 0.05243302
      %v3521 = vmul.f32 %v3514, %v3520
      %v3522 = vadd.f32 %v3521, 0.18741608
      %v3523 = vmul.f32 %v3514, %v3522
      %v3524 = vadd.f32 %v3523, 1.1283791
      %v3525 = vmul.f32 %v3232, %v3524
      %v3526 = vmul.f32 %v3514, 3.8918573e-05
      %v3527 = vadd.f32 %v3526, 0.001143296
      %v3528 = vmul.f32 %v3514, %v3527
      %v3529 = vadd.f32 %v3528, 0.014752088
      %v3530 = vmul.f32 %v3514, %v3529
      %v3531 = vadd.f32 %v3530, 0.112945676
      %v3532 = vmul.f32 %v3514, %v3531
      %v3533 = vadd.f32 %v3532, 0.4994258
      %v3534 = vmul.f32 %v3514, %v3533
      %v3535 = vadd.f32 %v3534, 1.0
      %v3536 = vrcp.pop %v3535
      %v3537 = vmul.f32 %v3535, %v3536
      %v3538 = vsub.f32 1.0, %v3537
      %v3539 = vmul.f32 %v3536, %v3538
      %v3540 = vadd.f32 %v3536, %v3539
      %vm3541 = vweird.f32 %v3535
      %vm3542 = vweird.f32 %v3536
      %vm3543 = vmor %vm3541, %vm3542
      %v3544 = vsel %vm3543, %v3536, %v3540
      %v3545 = vand.u32 2147483647, %v3535
      %vm3546 = vcmp.eq.f32.partialorder %v3545, 8.507059e+37
      %v3547 = vand.u32 %v3535, 2147483648
      %v3548 = vor.u32 1.1754944e-38, %v3547
      %v3549 = vsel %vm3546, %v3548, %v3544
      %v3550 = vmul.f32 %v3525, %v3549
      %v3551 = vmin.f32 %v3550, 1.0
      %v3552 = vmax.f32 %v3551, -1.0
      %v3553 = vadd.f32 %v3272, 1.0
      %v3554 = vadd.f32 %v3312, 1.0
      %v3555 = vadd.f32 %v3352, 1.0
      %v3556 = vadd.f32 %v3392, 1.0
      %v3557 = vadd.f32 %v3432, 1.0
      %v3558 = vadd.f32 %v3472, 1.0
      %v3559 = vadd.f32 %v3512, 1.0
      %v3560 = vadd.f32 %v3552, 1.0
      %v3561 = vmul.f32 %v3217, %v3553
      %v3562 = vmul.f32 %v3218, %v3554
      %v3563 = vmul.f32 %v3219, %v3555
      %v3564 = vmul.f32 %v3220, %v3556
      %v3565 = vmul.f32 %v3221, %v3557
      %v3566 = vmul.f32 %v3222, %v3558
      %v3567 = vmul.f32 %v3223, %v3559
      %v3568 = vmul.f32 %v3224, %v3560
      %v3569 = vld [vmem:[%s10] sm:$0xff]
      %v3570 = vld [vmem:[%s10 + $0x8] sm:$0xff]
      %v3571 = vld [vmem:[%s10 + $0x10] sm:$0xff]
      %v3572 = vld [vmem:[%s10 + $0x18] sm:$0xff]
      %v3573 = vld [vmem:[%s10 + $0x20] sm:$0xff]
      %v3574 = vld [vmem:[%s10 + $0x28] sm:$0xff]
      %v3575 = vld [vmem:[%s10 + $0x30] sm:$0xff]
      %v3576 = vld [vmem:[%s10 + $0x38] sm:$0xff]
      %v3577 = vld [vmem:[%s10 + $0x40] sm:$0xff]
      %v3578 = vld [vmem:[%s10 + $0x48] sm:$0xff]
      %v3579 = vld [vmem:[%s10 + $0x50] sm:$0xff]
      %v3580 = vld [vmem:[%s10 + $0x58] sm:$0xff]
      %v3581 = vld [vmem:[%s10 + $0x60] sm:$0xff]
      %v3582 = vld [vmem:[%s10 + $0x68] sm:$0xff]
      %v3583 = vld [vmem:[%s10 + $0x70] sm:$0xff]
      %v3584 = vld [vmem:[%s10 + $0x78] sm:$0xff]
      %3585 = vmatpush.msra.mxu0 %v3584
      %3586 = vmatpush.msra.mxu0 %v3583
      %3587 = vmatpush.msra.mxu0 %v3582
      %3588 = vmatpush.msra.mxu0 %v3581
      %3589 = vmatpush.msra.mxu0 %v3580
      %3590 = vmatpush.msra.mxu0 %v3579
      %3591 = vmatpush.msra.mxu0 %v3578
      %3592 = vmatpush.msra.mxu0 %v3577
      %3593 = vmatpush.msra.mxu0 %v3576
      %3594 = vmatpush.msra.mxu0 %v3575
      %3595 = vmatpush.msra.mxu0 %v3574
      %3596 = vmatpush.msra.mxu0 %v3573
      %3597 = vmatpush.msra.mxu0 %v3572
      %3598 = vmatpush.msra.mxu0 %v3571
      %3599 = vmatpush.msra.mxu0 %v3570
      %3600 = vmatpush.msra.mxu0 %v3569
      %3601 = vmatmul.f32.gmra.mxu0 %v3561
      %v3602 = vpop.f32.mrf.mxu0
      %v3603 = vadd.f32 0.0, %v3602
      %3604 = vmatmul.f32.gmra.mxu0 %v3562
      %v3605 = vpop.f32.mrf.mxu0
      %v3606 = vadd.f32 0.0, %v3605
      %3607 = vmatmul.f32.gmra.mxu0 %v3563
      %v3608 = vpop.f32.mrf.mxu0
      %v3609 = vadd.f32 0.0, %v3608
      %3610 = vmatmul.f32.gmra.mxu0 %v3564
      %v3611 = vpop.f32.mrf.mxu0
      %v3612 = vadd.f32 0.0, %v3611
      %3613 = vmatmul.f32.gmra.mxu0 %v3565
      %v3614 = vpop.f32.mrf.mxu0
      %v3615 = vadd.f32 0.0, %v3614
      %3616 = vmatmul.f32.gmra.mxu0 %v3566
      %v3617 = vpop.f32.mrf.mxu0
      %v3618 = vadd.f32 0.0, %v3617
      %3619 = vmatmul.f32.gmra.mxu0 %v3567
      %v3620 = vpop.f32.mrf.mxu0
      %v3621 = vadd.f32 0.0, %v3620
      %3622 = vmatmul.f32.gmra.mxu0 %v3568
      %v3623 = vpop.f32.mrf.mxu0
      %v3624 = vadd.f32 0.0, %v3623
      %3625 = vdwg.mxu0
      %v3626 = vadd.f32 %v2936, %v3603
      %v3627 = vadd.f32 %v2937, %v3606
      %v3628 = vadd.f32 %v2938, %v3609
      %v3629 = vadd.f32 %v2939, %v3612
      %v3630 = vadd.f32 %v2940, %v3615
      %v3631 = vadd.f32 %v2941, %v3618
      %v3632 = vadd.f32 %v2942, %v3621
      %v3633 = vadd.f32 %v2943, %v3624
      %v3634 = vld [vmem:[%s11] sm:$0x1]
      %v3636 = vperm.slane %v3634, 0
      %v3638 = vadd.f32 %v3626, %v3636
      %v3639 = vadd.f32 %v3627, %v3636
      %v3640 = vadd.f32 %v3628, %v3636
      %v3641 = vadd.f32 %v3629, %v3636
      %v3642 = vadd.f32 %v3630, %v3636
      %v3643 = vadd.f32 %v3631, %v3636
      %v3644 = vadd.f32 %v3632, %v3636
      %v3645 = vadd.f32 %v3633, %v3636
      %vm3653 = vcmask 1040384
      %v3654 = vrot.slane %v684, 7
      %v3655 = vrot.slane %v685, 7
      %v3656 = vsel %vm3653, %v3654, %v3655
      %v3657 = vrot.slane %v686, 7
      %v3658 = vsel %vm3653, %v3655, %v3657
      %v3659 = vrot.slane %v687, 7
      %v3660 = vsel %vm3653, %v3657, %v3659
      %v3661 = vrot.slane %v688, 7
      %v3662 = vsel %vm3653, %v3659, %v3661
      %v3663 = vrot.slane %v689, 7
      %v3664 = vsel %vm3653, %v3661, %v3663
      %v3665 = vrot.slane %v690, 7
      %v3666 = vsel %vm3653, %v3663, %v3665
      %v3674 = vsel %vm3653, 0.0, %v3654
      %v3675 = vsel %vm798, %v3674, 0.0
      %v3676 = vsel %vm799, %v3656, 0.0
      %v3677 = vsel %vm800, %v3658, 0.0
      %v3678 = vsel %vm801, %v3660, 0.0
      %v3679 = vsel %vm802, %v3662, 0.0
      %v3680 = vsel %vm803, %v3664, 0.0
      %v3681 = vsel %vm804, %v3666, 0.0
      %v3682 = vld [vmem:[%s12] sm:$0xff]
      %v3683 = vld [vmem:[%s12 + $0x8] sm:$0xff]
      %v3684 = vld [vmem:[%s12 + $0x10] sm:$0xff]
      %v3685 = vld [vmem:[%s12 + $0x18] sm:$0xff]
      %s3686 = scalar_lea.vmem %s12, 32
      %v3687 = vld [vmem:[%s3686] sm:$0xff]
      %v3688 = vld [vmem:[%s3686 + $0x8] sm:$0xff]
      %v3689 = vld [vmem:[%s3686 + $0x10] sm:$0xff]
      %v3690 = vld [vmem:[%s3686 + $0x18] sm:$0xff]
      %v3692 = vsel %vm815, 0.0, 0
      %v3694 = vsel %vm815, %v684, 0
      %v3696 = vsel %vm815, %v685, 0
      %v3698 = vsel %vm815, %v686, 0
      %v3700 = vsel %vm815, %v687, 0
      %v3702 = vsel %vm815, %v688, 0
      %v3704 = vsel %vm815, %v689, 0
      %v3706 = vsel %vm815, %v690, 0
      %3708 = vmatpush.msra.mxu0 0.0
      %3709 = vmatpush.msra.mxu0 0.0
      %3710 = vmatpush.msra.mxu0 0.0
      %3711 = vmatpush.msra.mxu0 0.0
      %3712 = vmatpush.msra.mxu0 0.0
      %3713 = vmatpush.msra.mxu0 0.0
      %3714 = vmatpush.msra.mxu0 0.0
      %3715 = vmatpush.msra.mxu0 0.0
      %3716 = vmatpush.msra.mxu0 0.0
      %3717 = vmatpush.msra.mxu0 0.0
      %3718 = vmatpush.msra.mxu0 0.0
      %3719 = vmatpush.msra.mxu0 0.0
      %3720 = vmatpush.msra.mxu0 %v3690
      %3721 = vmatpush.msra.mxu0 %v3689
      %3722 = vmatpush.msra.mxu0 %v3688
      %3723 = vmatpush.msra.mxu0 %v3687
      %3724 = vmatmul.f32.gmra.mxu0 %v3692
      %v3725 = vpop.f32.mrf.mxu0
      %v3726 = vadd.f32 0.0, %v3725
      %3727 = vmatmul.f32.gmra.mxu0 %v3694
      %v3728 = vpop.f32.mrf.mxu0
      %v3729 = vadd.f32 0.0, %v3728
      %3730 = vmatmul.f32.gmra.mxu0 %v3696
      %v3731 = vpop.f32.mrf.mxu0
      %v3732 = vadd.f32 0.0, %v3731
      %3733 = vmatmul.f32.gmra.mxu0 %v3698
      %v3734 = vpop.f32.mrf.mxu0
      %v3735 = vadd.f32 0.0, %v3734
      %3736 = vmatmul.f32.gmra.mxu0 %v3700
      %v3737 = vpop.f32.mrf.mxu0
      %v3738 = vadd.f32 0.0, %v3737
      %3739 = vmatmul.f32.gmra.mxu0 %v3702
      %v3740 = vpop.f32.mrf.mxu0
      %v3741 = vadd.f32 0.0, %v3740
      %3742 = vmatmul.f32.gmra.mxu0 %v3704
      %v3743 = vpop.f32.mrf.mxu0
      %v3744 = vadd.f32 0.0, %v3743
      %3745 = vmatmul.f32.gmra.mxu0 %v3706
      %v3746 = vpop.f32.mrf.mxu0
      %v3747 = vadd.f32 0.0, %v3746
      %3748 = vdwg.mxu0
      %v3750 = vsel %vm815, %v3675, 0
      %v3753 = vsel %vm815, %v3676, 0
      %v3756 = vsel %vm815, %v3677, 0
      %v3759 = vsel %vm815, %v3678, 0
      %v3762 = vsel %vm815, %v3679, 0
      %v3765 = vsel %vm815, %v3680, 0
      %v3768 = vsel %vm815, %v3681, 0
      %3770 = vmatpush.msra.mxu0 0.0
      %3771 = vmatpush.msra.mxu0 0.0
      %3772 = vmatpush.msra.mxu0 0.0
      %3773 = vmatpush.msra.mxu0 0.0
      %3774 = vmatpush.msra.mxu0 0.0
      %3775 = vmatpush.msra.mxu0 0.0
      %3776 = vmatpush.msra.mxu0 0.0
      %3777 = vmatpush.msra.mxu0 0.0
      %3778 = vmatpush.msra.mxu0 0.0
      %3779 = vmatpush.msra.mxu0 0.0
      %3780 = vmatpush.msra.mxu0 0.0
      %3781 = vmatpush.msra.mxu0 0.0
      %3782 = vmatpush.msra.mxu0 %v3685
      %3783 = vmatpush.msra.mxu0 %v3684
      %3784 = vmatpush.msra.mxu0 %v3683
      %3785 = vmatpush.msra.mxu0 %v3682
      %3786 = vmatmul.f32.gmra.mxu0 %v3692
      %v3787 = vpop.f32.mrf.mxu0
      %v3788 = vadd.f32 %v3726, %v3787
      %3789 = vmatmul.f32.gmra.mxu0 %v3750
      %v3790 = vpop.f32.mrf.mxu0
      %v3791 = vadd.f32 %v3729, %v3790
      %3792 = vmatmul.f32.gmra.mxu0 %v3753
      %v3793 = vpop.f32.mrf.mxu0
      %v3794 = vadd.f32 %v3732, %v3793
      %3795 = vmatmul.f32.gmra.mxu0 %v3756
      %v3796 = vpop.f32.mrf.mxu0
      %v3797 = vadd.f32 %v3735, %v3796
      %3798 = vmatmul.f32.gmra.mxu0 %v3759
      %v3799 = vpop.f32.mrf.mxu0
      %v3800 = vadd.f32 %v3738, %v3799
      %3801 = vmatmul.f32.gmra.mxu0 %v3762
      %v3802 = vpop.f32.mrf.mxu0
      %v3803 = vadd.f32 %v3741, %v3802
      %3804 = vmatmul.f32.gmra.mxu0 %v3765
      %v3805 = vpop.f32.mrf.mxu0
      %v3806 = vadd.f32 %v3744, %v3805
      %3807 = vmatmul.f32.gmra.mxu0 %v3768
      %v3808 = vpop.f32.mrf.mxu0
      %v3809 = vadd.f32 %v3747, %v3808
      %3810 = vdwg.mxu0
      %vm3812 = vcmask 1046528
      %v3813 = vrot.slane %v684, 1
      %v3814 = vrot.slane %v685, 1
      %v3815 = vsel %vm3812, %v3813, %v3814
      %v3816 = vrot.slane %v686, 1
      %v3817 = vsel %vm3812, %v3814, %v3816
      %v3818 = vrot.slane %v687, 1
      %v3819 = vsel %vm3812, %v3816, %v3818
      %v3820 = vrot.slane %v688, 1
      %v3821 = vsel %vm3812, %v3818, %v3820
      %v3822 = vrot.slane %v689, 1
      %v3823 = vsel %vm3812, %v3820, %v3822
      %v3824 = vrot.slane %v690, 1
      %v3825 = vsel %vm3812, %v3822, %v3824
      %v3826 = vrot.slane %v691, 1
      %v3827 = vsel %vm3812, %v3824, %v3826
      %v3836 = vsel %vm3812, 0.0, %v3813
      %v3837 = vsel %vm805, %v3836, 0.0
      %v3838 = vsel %vm806, %v3815, 0.0
      %v3839 = vsel %vm807, %v3817, 0.0
      %v3840 = vsel %vm808, %v3819, 0.0
      %v3841 = vsel %vm809, %v3821, 0.0
      %v3842 = vsel %vm810, %v3823, 0.0
      %v3843 = vsel %vm811, %v3825, 0.0
      %v3844 = vsel %vm812, %v3827, 0.0
      %s3845 = scalar_lea.vmem %s12, 64
      %v3846 = vld [vmem:[%s3845] sm:$0xff]
      %v3847 = vld [vmem:[%s3845 + $0x8] sm:$0xff]
      %v3848 = vld [vmem:[%s3845 + $0x10] sm:$0xff]
      %v3849 = vld [vmem:[%s3845 + $0x18] sm:$0xff]
      %v3851 = vsel %vm815, %v3837, 0
      %v3854 = vsel %vm815, %v3838, 0
      %v3857 = vsel %vm815, %v3839, 0
      %v3860 = vsel %vm815, %v3840, 0
      %v3863 = vsel %vm815, %v3841, 0
      %v3866 = vsel %vm815, %v3842, 0
      %v3869 = vsel %vm815, %v3843, 0
      %v3872 = vsel %vm815, %v3844, 0
      %3874 = vmatpush.msra.mxu0 0.0
      %3875 = vmatpush.msra.mxu0 0.0
      %3876 = vmatpush.msra.mxu0 0.0
      %3877 = vmatpush.msra.mxu0 0.0
      %3878 = vmatpush.msra.mxu0 0.0
      %3879 = vmatpush.msra.mxu0 0.0
      %3880 = vmatpush.msra.mxu0 0.0
      %3881 = vmatpush.msra.mxu0 0.0
      %3882 = vmatpush.msra.mxu0 0.0
      %3883 = vmatpush.msra.mxu0 0.0
      %3884 = vmatpush.msra.mxu0 0.0
      %3885 = vmatpush.msra.mxu0 0.0
      %3886 = vmatpush.msra.mxu0 %v3849
      %3887 = vmatpush.msra.mxu0 %v3848
      %3888 = vmatpush.msra.mxu0 %v3847
      %3889 = vmatpush.msra.mxu0 %v3846
      %3890 = vmatmul.f32.gmra.mxu0 %v3851
      %v3891 = vpop.f32.mrf.mxu0
      %v3892 = vadd.f32 0.0, %v3891
      %3893 = vmatmul.f32.gmra.mxu0 %v3854
      %v3894 = vpop.f32.mrf.mxu0
      %v3895 = vadd.f32 0.0, %v3894
      %3896 = vmatmul.f32.gmra.mxu0 %v3857
      %v3897 = vpop.f32.mrf.mxu0
      %v3898 = vadd.f32 0.0, %v3897
      %3899 = vmatmul.f32.gmra.mxu0 %v3860
      %v3900 = vpop.f32.mrf.mxu0
      %v3901 = vadd.f32 0.0, %v3900
      %3902 = vmatmul.f32.gmra.mxu0 %v3863
      %v3903 = vpop.f32.mrf.mxu0
      %v3904 = vadd.f32 0.0, %v3903
      %3905 = vmatmul.f32.gmra.mxu0 %v3866
      %v3906 = vpop.f32.mrf.mxu0
      %v3907 = vadd.f32 0.0, %v3906
      %3908 = vmatmul.f32.gmra.mxu0 %v3869
      %v3909 = vpop.f32.mrf.mxu0
      %v3910 = vadd.f32 0.0, %v3909
      %3911 = vmatmul.f32.gmra.mxu0 %v3872
      %v3912 = vpop.f32.mrf.mxu0
      %v3913 = vadd.f32 0.0, %v3912
      %3914 = vdwg.mxu0
      %v3915 = vadd.f32 %v3788, %v3892
      %v3916 = vadd.f32 %v3791, %v3895
      %v3917 = vadd.f32 %v3794, %v3898
      %v3918 = vadd.f32 %v3797, %v3901
      %v3919 = vadd.f32 %v3800, %v3904
      %v3920 = vadd.f32 %v3803, %v3907
      %v3921 = vadd.f32 %v3806, %v3910
      %v3922 = vadd.f32 %v3809, %v3913
      %v3923 = vrot.slane %v691, 7
      %v3924 = vsel %vm3653, %v3665, %v3923
      %v3926 = vsel %vm797, %v3674, 0.0
      %v3927 = vsel %vm798, %v3656, 0.0
      %v3928 = vsel %vm799, %v3658, 0.0
      %v3929 = vsel %vm800, %v3660, 0.0
      %v3930 = vsel %vm801, %v3662, 0.0
      %v3931 = vsel %vm802, %v3664, 0.0
      %v3932 = vsel %vm803, %v3666, 0.0
      %v3933 = vsel %vm804, %v3924, 0.0
      %s3934 = scalar_lea.vmem %s12, 96
      %v3935 = vld [vmem:[%s3934] sm:$0xff]
      %v3936 = vld [vmem:[%s3934 + $0x8] sm:$0xff]
      %v3937 = vld [vmem:[%s3934 + $0x10] sm:$0xff]
      %v3938 = vld [vmem:[%s3934 + $0x18] sm:$0xff]
      %v3940 = vsel %vm815, %v3926, 0
      %v3943 = vsel %vm815, %v3927, 0
      %v3946 = vsel %vm815, %v3928, 0
      %v3949 = vsel %vm815, %v3929, 0
      %v3952 = vsel %vm815, %v3930, 0
      %v3955 = vsel %vm815, %v3931, 0
      %v3958 = vsel %vm815, %v3932, 0
      %v3961 = vsel %vm815, %v3933, 0
      %3963 = vmatpush.msra.mxu0 0.0
      %3964 = vmatpush.msra.mxu0 0.0
      %3965 = vmatpush.msra.mxu0 0.0
      %3966 = vmatpush.msra.mxu0 0.0
      %3967 = vmatpush.msra.mxu0 0.0
      %3968 = vmatpush.msra.mxu0 0.0
      %3969 = vmatpush.msra.mxu0 0.0
      %3970 = vmatpush.msra.mxu0 0.0
      %3971 = vmatpush.msra.mxu0 0.0
      %3972 = vmatpush.msra.mxu0 0.0
      %3973 = vmatpush.msra.mxu0 0.0
      %3974 = vmatpush.msra.mxu0 0.0
      %3975 = vmatpush.msra.mxu0 %v3938
      %3976 = vmatpush.msra.mxu0 %v3937
      %3977 = vmatpush.msra.mxu0 %v3936
      %3978 = vmatpush.msra.mxu0 %v3935
      %3979 = vmatmul.f32.gmra.mxu0 %v3940
      %v3980 = vpop.f32.mrf.mxu0
      %v3981 = vadd.f32 0.0, %v3980
      %3982 = vmatmul.f32.gmra.mxu0 %v3943
      %v3983 = vpop.f32.mrf.mxu0
      %v3984 = vadd.f32 0.0, %v3983
      %3985 = vmatmul.f32.gmra.mxu0 %v3946
      %v3986 = vpop.f32.mrf.mxu0
      %v3987 = vadd.f32 0.0, %v3986
      %3988 = vmatmul.f32.gmra.mxu0 %v3949
      %v3989 = vpop.f32.mrf.mxu0
      %v3990 = vadd.f32 0.0, %v3989
      %3991 = vmatmul.f32.gmra.mxu0 %v3952
      %v3992 = vpop.f32.mrf.mxu0
      %v3993 = vadd.f32 0.0, %v3992
      %3994 = vmatmul.f32.gmra.mxu0 %v3955
      %v3995 = vpop.f32.mrf.mxu0
      %v3996 = vadd.f32 0.0, %v3995
      %3997 = vmatmul.f32.gmra.mxu0 %v3958
      %v3998 = vpop.f32.mrf.mxu0
      %v3999 = vadd.f32 0.0, %v3998
      %4000 = vmatmul.f32.gmra.mxu0 %v3961
      %v4001 = vpop.f32.mrf.mxu0
      %v4002 = vadd.f32 0.0, %v4001
      %4003 = vdwg.mxu0
      %v4004 = vadd.f32 %v3915, %v3981
      %v4005 = vadd.f32 %v3916, %v3984
      %v4006 = vadd.f32 %v3917, %v3987
      %v4007 = vadd.f32 %v3918, %v3990
      %v4008 = vadd.f32 %v3919, %v3993
      %v4009 = vadd.f32 %v3920, %v3996
      %v4010 = vadd.f32 %v3921, %v3999
      %v4011 = vadd.f32 %v3922, %v4002
      %s4012 = scalar_lea.vmem %s12, 128
      %v4013 = vld [vmem:[%s4012] sm:$0xff]
      %v4014 = vld [vmem:[%s4012 + $0x8] sm:$0xff]
      %v4015 = vld [vmem:[%s4012 + $0x10] sm:$0xff]
      %v4016 = vld [vmem:[%s4012 + $0x18] sm:$0xff]
      %v4017 = vsel %vm815, %v691, 0
      %4019 = vmatpush.msra.mxu0 0.0
      %4020 = vmatpush.msra.mxu0 0.0
      %4021 = vmatpush.msra.mxu0 0.0
      %4022 = vmatpush.msra.mxu0 0.0
      %4023 = vmatpush.msra.mxu0 0.0
      %4024 = vmatpush.msra.mxu0 0.0
      %4025 = vmatpush.msra.mxu0 0.0
      %4026 = vmatpush.msra.mxu0 0.0
      %4027 = vmatpush.msra.mxu0 0.0
      %4028 = vmatpush.msra.mxu0 0.0
      %4029 = vmatpush.msra.mxu0 0.0
      %4030 = vmatpush.msra.mxu0 0.0
      %4031 = vmatpush.msra.mxu0 %v4016
      %4032 = vmatpush.msra.mxu0 %v4015
      %4033 = vmatpush.msra.mxu0 %v4014
      %4034 = vmatpush.msra.mxu0 %v4013
      %4035 = vmatmul.f32.gmra.mxu0 %v3694
      %v4036 = vpop.f32.mrf.mxu0
      %v4037 = vadd.f32 0.0, %v4036
      %4038 = vmatmul.f32.gmra.mxu0 %v3696
      %v4039 = vpop.f32.mrf.mxu0
      %v4040 = vadd.f32 0.0, %v4039
      %4041 = vmatmul.f32.gmra.mxu0 %v3698
      %v4042 = vpop.f32.mrf.mxu0
      %v4043 = vadd.f32 0.0, %v4042
      %4044 = vmatmul.f32.gmra.mxu0 %v3700
      %v4045 = vpop.f32.mrf.mxu0
      %v4046 = vadd.f32 0.0, %v4045
      %4047 = vmatmul.f32.gmra.mxu0 %v3702
      %v4048 = vpop.f32.mrf.mxu0
      %v4049 = vadd.f32 0.0, %v4048
      %4050 = vmatmul.f32.gmra.mxu0 %v3704
      %v4051 = vpop.f32.mrf.mxu0
      %v4052 = vadd.f32 0.0, %v4051
      %4053 = vmatmul.f32.gmra.mxu0 %v3706
      %v4054 = vpop.f32.mrf.mxu0
      %v4055 = vadd.f32 0.0, %v4054
      %4056 = vmatmul.f32.gmra.mxu0 %v4017
      %v4057 = vpop.f32.mrf.mxu0
      %v4058 = vadd.f32 0.0, %v4057
      %4059 = vdwg.mxu0
      %v4060 = vadd.f32 %v4004, %v4037
      %v4061 = vadd.f32 %v4005, %v4040
      %v4062 = vadd.f32 %v4006, %v4043
      %v4063 = vadd.f32 %v4007, %v4046
      %v4064 = vadd.f32 %v4008, %v4049
      %v4065 = vadd.f32 %v4009, %v4052
      %v4066 = vadd.f32 %v4010, %v4055
      %v4067 = vadd.f32 %v4011, %v4058
      %v4069 = vsel %vm3812, %v3826, 0.0
      %v4070 = vsel %vm805, %v3815, 0.0
      %v4071 = vsel %vm806, %v3817, 0.0
      %v4072 = vsel %vm807, %v3819, 0.0
      %v4073 = vsel %vm808, %v3821, 0.0
      %v4074 = vsel %vm809, %v3823, 0.0
      %v4075 = vsel %vm810, %v3825, 0.0
      %v4076 = vsel %vm811, %v3827, 0.0
      %v4077 = vsel %vm812, %v4069, 0.0
      %s4078 = scalar_lea.vmem %s12, 160
      %v4079 = vld [vmem:[%s4078] sm:$0xff]
      %v4080 = vld [vmem:[%s4078 + $0x8] sm:$0xff]
      %v4081 = vld [vmem:[%s4078 + $0x10] sm:$0xff]
      %v4082 = vld [vmem:[%s4078 + $0x18] sm:$0xff]
      %v4084 = vsel %vm815, %v4070, 0
      %v4087 = vsel %vm815, %v4071, 0
      %v4090 = vsel %vm815, %v4072, 0
      %v4093 = vsel %vm815, %v4073, 0
      %v4096 = vsel %vm815, %v4074, 0
      %v4099 = vsel %vm815, %v4075, 0
      %v4102 = vsel %vm815, %v4076, 0
      %v4105 = vsel %vm815, %v4077, 0
      %4107 = vmatpush.msra.mxu0 0.0
      %4108 = vmatpush.msra.mxu0 0.0
      %4109 = vmatpush.msra.mxu0 0.0
      %4110 = vmatpush.msra.mxu0 0.0
      %4111 = vmatpush.msra.mxu0 0.0
      %4112 = vmatpush.msra.mxu0 0.0
      %4113 = vmatpush.msra.mxu0 0.0
      %4114 = vmatpush.msra.mxu0 0.0
      %4115 = vmatpush.msra.mxu0 0.0
      %4116 = vmatpush.msra.mxu0 0.0
      %4117 = vmatpush.msra.mxu0 0.0
      %4118 = vmatpush.msra.mxu0 0.0
      %4119 = vmatpush.msra.mxu0 %v4082
      %4120 = vmatpush.msra.mxu0 %v4081
      %4121 = vmatpush.msra.mxu0 %v4080
      %4122 = vmatpush.msra.mxu0 %v4079
      %4123 = vmatmul.f32.gmra.mxu0 %v4084
      %v4124 = vpop.f32.mrf.mxu0
      %v4125 = vadd.f32 0.0, %v4124
      %4126 = vmatmul.f32.gmra.mxu0 %v4087
      %v4127 = vpop.f32.mrf.mxu0
      %v4128 = vadd.f32 0.0, %v4127
      %4129 = vmatmul.f32.gmra.mxu0 %v4090
      %v4130 = vpop.f32.mrf.mxu0
      %v4131 = vadd.f32 0.0, %v4130
      %4132 = vmatmul.f32.gmra.mxu0 %v4093
      %v4133 = vpop.f32.mrf.mxu0
      %v4134 = vadd.f32 0.0, %v4133
      %4135 = vmatmul.f32.gmra.mxu0 %v4096
      %v4136 = vpop.f32.mrf.mxu0
      %v4137 = vadd.f32 0.0, %v4136
      %4138 = vmatmul.f32.gmra.mxu0 %v4099
      %v4139 = vpop.f32.mrf.mxu0
      %v4140 = vadd.f32 0.0, %v4139
      %4141 = vmatmul.f32.gmra.mxu0 %v4102
      %v4142 = vpop.f32.mrf.mxu0
      %v4143 = vadd.f32 0.0, %v4142
      %4144 = vmatmul.f32.gmra.mxu0 %v4105
      %v4145 = vpop.f32.mrf.mxu0
      %v4146 = vadd.f32 0.0, %v4145
      %4147 = vdwg.mxu0
      %v4148 = vadd.f32 %v4060, %v4125
      %v4149 = vadd.f32 %v4061, %v4128
      %v4150 = vadd.f32 %v4062, %v4131
      %v4151 = vadd.f32 %v4063, %v4134
      %v4152 = vadd.f32 %v4064, %v4137
      %v4153 = vadd.f32 %v4065, %v4140
      %v4154 = vadd.f32 %v4066, %v4143
      %v4155 = vadd.f32 %v4067, %v4146
      %v4157 = vsel %vm3653, %v3923, 0.0
      %v4158 = vsel %vm797, %v3656, 0.0
      %v4159 = vsel %vm798, %v3658, 0.0
      %v4160 = vsel %vm799, %v3660, 0.0
      %v4161 = vsel %vm800, %v3662, 0.0
      %v4162 = vsel %vm801, %v3664, 0.0
      %v4163 = vsel %vm802, %v3666, 0.0
      %v4164 = vsel %vm803, %v3924, 0.0
      %v4165 = vsel %vm804, %v4157, 0.0
      %s4166 = scalar_lea.vmem %s12, 192
      %v4167 = vld [vmem:[%s4166] sm:$0xff]
      %v4168 = vld [vmem:[%s4166 + $0x8] sm:$0xff]
      %v4169 = vld [vmem:[%s4166 + $0x10] sm:$0xff]
      %v4170 = vld [vmem:[%s4166 + $0x18] sm:$0xff]
      %v4172 = vsel %vm815, %v4158, 0
      %v4175 = vsel %vm815, %v4159, 0
      %v4178 = vsel %vm815, %v4160, 0
      %v4181 = vsel %vm815, %v4161, 0
      %v4184 = vsel %vm815, %v4162, 0
      %v4187 = vsel %vm815, %v4163, 0
      %v4190 = vsel %vm815, %v4164, 0
      %v4193 = vsel %vm815, %v4165, 0
      %4195 = vmatpush.msra.mxu0 0.0
      %4196 = vmatpush.msra.mxu0 0.0
      %4197 = vmatpush.msra.mxu0 0.0
      %4198 = vmatpush.msra.mxu0 0.0
      %4199 = vmatpush.msra.mxu0 0.0
      %4200 = vmatpush.msra.mxu0 0.0
      %4201 = vmatpush.msra.mxu0 0.0
      %4202 = vmatpush.msra.mxu0 0.0
      %4203 = vmatpush.msra.mxu0 0.0
      %4204 = vmatpush.msra.mxu0 0.0
      %4205 = vmatpush.msra.mxu0 0.0
      %4206 = vmatpush.msra.mxu0 0.0
      %4207 = vmatpush.msra.mxu0 %v4170
      %4208 = vmatpush.msra.mxu0 %v4169
      %4209 = vmatpush.msra.mxu0 %v4168
      %4210 = vmatpush.msra.mxu0 %v4167
      %4211 = vmatmul.f32.gmra.mxu0 %v4172
      %v4212 = vpop.f32.mrf.mxu0
      %v4213 = vadd.f32 0.0, %v4212
      %4214 = vmatmul.f32.gmra.mxu0 %v4175
      %v4215 = vpop.f32.mrf.mxu0
      %v4216 = vadd.f32 0.0, %v4215
      %4217 = vmatmul.f32.gmra.mxu0 %v4178
      %v4218 = vpop.f32.mrf.mxu0
      %v4219 = vadd.f32 0.0, %v4218
      %4220 = vmatmul.f32.gmra.mxu0 %v4181
      %v4221 = vpop.f32.mrf.mxu0
      %v4222 = vadd.f32 0.0, %v4221
      %4223 = vmatmul.f32.gmra.mxu0 %v4184
      %v4224 = vpop.f32.mrf.mxu0
      %v4225 = vadd.f32 0.0, %v4224
      %4226 = vmatmul.f32.gmra.mxu0 %v4187
      %v4227 = vpop.f32.mrf.mxu0
      %v4228 = vadd.f32 0.0, %v4227
      %4229 = vmatmul.f32.gmra.mxu0 %v4190
      %v4230 = vpop.f32.mrf.mxu0
      %v4231 = vadd.f32 0.0, %v4230
      %4232 = vmatmul.f32.gmra.mxu0 %v4193
      %v4233 = vpop.f32.mrf.mxu0
      %v4234 = vadd.f32 0.0, %v4233
      %4235 = vdwg.mxu0
      %v4236 = vadd.f32 %v4148, %v4213
      %v4237 = vadd.f32 %v4149, %v4216
      %v4238 = vadd.f32 %v4150, %v4219
      %v4239 = vadd.f32 %v4151, %v4222
      %v4240 = vadd.f32 %v4152, %v4225
      %v4241 = vadd.f32 %v4153, %v4228
      %v4242 = vadd.f32 %v4154, %v4231
      %v4243 = vadd.f32 %v4155, %v4234
      %s4244 = scalar_lea.vmem %s12, 224
      %v4245 = vld [vmem:[%s4244] sm:$0xff]
      %v4246 = vld [vmem:[%s4244 + $0x8] sm:$0xff]
      %v4247 = vld [vmem:[%s4244 + $0x10] sm:$0xff]
      %v4248 = vld [vmem:[%s4244 + $0x18] sm:$0xff]
      %4249 = vmatpush.msra.mxu0 0.0
      %4250 = vmatpush.msra.mxu0 0.0
      %4251 = vmatpush.msra.mxu0 0.0
      %4252 = vmatpush.msra.mxu0 0.0
      %4253 = vmatpush.msra.mxu0 0.0
      %4254 = vmatpush.msra.mxu0 0.0
      %4255 = vmatpush.msra.mxu0 0.0
      %4256 = vmatpush.msra.mxu0 0.0
      %4257 = vmatpush.msra.mxu0 0.0
      %4258 = vmatpush.msra.mxu0 0.0
      %4259 = vmatpush.msra.mxu0 0.0
      %4260 = vmatpush.msra.mxu0 0.0
      %4261 = vmatpush.msra.mxu0 %v4248
      %4262 = vmatpush.msra.mxu0 %v4247
      %4263 = vmatpush.msra.mxu0 %v4246
      %4264 = vmatpush.msra.mxu0 %v4245
      %4265 = vmatmul.f32.gmra.mxu0 %v3696
      %v4266 = vpop.f32.mrf.mxu0
      %v4267 = vadd.f32 0.0, %v4266
      %4268 = vmatmul.f32.gmra.mxu0 %v3698
      %v4269 = vpop.f32.mrf.mxu0
      %v4270 = vadd.f32 0.0, %v4269
      %4271 = vmatmul.f32.gmra.mxu0 %v3700
      %v4272 = vpop.f32.mrf.mxu0
      %v4273 = vadd.f32 0.0, %v4272
      %4274 = vmatmul.f32.gmra.mxu0 %v3702
      %v4275 = vpop.f32.mrf.mxu0
      %v4276 = vadd.f32 0.0, %v4275
      %4277 = vmatmul.f32.gmra.mxu0 %v3704
      %v4278 = vpop.f32.mrf.mxu0
      %v4279 = vadd.f32 0.0, %v4278
      %4280 = vmatmul.f32.gmra.mxu0 %v3706
      %v4281 = vpop.f32.mrf.mxu0
      %v4282 = vadd.f32 0.0, %v4281
      %4283 = vmatmul.f32.gmra.mxu0 %v4017
      %v4284 = vpop.f32.mrf.mxu0
      %v4285 = vadd.f32 0.0, %v4284
      %4286 = vmatmul.f32.gmra.mxu0 %v3692
      %v4287 = vpop.f32.mrf.mxu0
      %v4288 = vadd.f32 0.0, %v4287
      %4289 = vdwg.mxu0
      %v4290 = vadd.f32 %v4236, %v4267
      %v4291 = vadd.f32 %v4237, %v4270
      %v4292 = vadd.f32 %v4238, %v4273
      %v4293 = vadd.f32 %v4239, %v4276
      %v4294 = vadd.f32 %v4240, %v4279
      %v4295 = vadd.f32 %v4241, %v4282
      %v4296 = vadd.f32 %v4242, %v4285
      %v4297 = vadd.f32 %v4243, %v4288
      %v4298 = vsel %vm805, %v3817, 0.0
      %v4299 = vsel %vm806, %v3819, 0.0
      %v4300 = vsel %vm807, %v3821, 0.0
      %v4301 = vsel %vm808, %v3823, 0.0
      %v4302 = vsel %vm809, %v3825, 0.0
      %v4303 = vsel %vm810, %v3827, 0.0
      %v4304 = vsel %vm811, %v4069, 0.0
      %s4305 = scalar_lea.vmem %s12, 256
      %v4306 = vld [vmem:[%s4305] sm:$0xff]
      %v4307 = vld [vmem:[%s4305 + $0x8] sm:$0xff]
      %v4308 = vld [vmem:[%s4305 + $0x10] sm:$0xff]
      %v4309 = vld [vmem:[%s4305 + $0x18] sm:$0xff]
      %v4311 = vsel %vm815, %v4298, 0
      %v4314 = vsel %vm815, %v4299, 0
      %v4317 = vsel %vm815, %v4300, 0
      %v4320 = vsel %vm815, %v4301, 0
      %v4323 = vsel %vm815, %v4302, 0
      %v4326 = vsel %vm815, %v4303, 0
      %v4329 = vsel %vm815, %v4304, 0
      %4331 = vmatpush.msra.mxu0 0.0
      %4332 = vmatpush.msra.mxu0 0.0
      %4333 = vmatpush.msra.mxu0 0.0
      %4334 = vmatpush.msra.mxu0 0.0
      %4335 = vmatpush.msra.mxu0 0.0
      %4336 = vmatpush.msra.mxu0 0.0
      %4337 = vmatpush.msra.mxu0 0.0
      %4338 = vmatpush.msra.mxu0 0.0
      %4339 = vmatpush.msra.mxu0 0.0
      %4340 = vmatpush.msra.mxu0 0.0
      %4341 = vmatpush.msra.mxu0 0.0
      %4342 = vmatpush.msra.mxu0 0.0
      %4343 = vmatpush.msra.mxu0 %v4309
      %4344 = vmatpush.msra.mxu0 %v4308
      %4345 = vmatpush.msra.mxu0 %v4307
      %4346 = vmatpush.msra.mxu0 %v4306
      %4347 = vmatmul.f32.gmra.mxu0 %v4311
      %v4348 = vpop.f32.mrf.mxu0
      %v4349 = vadd.f32 0.0, %v4348
      %4350 = vmatmul.f32.gmra.mxu0 %v4314
      %v4351 = vpop.f32.mrf.mxu0
      %v4352 = vadd.f32 0.0, %v4351
      %4353 = vmatmul.f32.gmra.mxu0 %v4317
      %v4354 = vpop.f32.mrf.mxu0
      %v4355 = vadd.f32 0.0, %v4354
      %4356 = vmatmul.f32.gmra.mxu0 %v4320
      %v4357 = vpop.f32.mrf.mxu0
      %v4358 = vadd.f32 0.0, %v4357
      %4359 = vmatmul.f32.gmra.mxu0 %v4323
      %v4360 = vpop.f32.mrf.mxu0
      %v4361 = vadd.f32 0.0, %v4360
      %4362 = vmatmul.f32.gmra.mxu0 %v4326
      %v4363 = vpop.f32.mrf.mxu0
      %v4364 = vadd.f32 0.0, %v4363
      %4365 = vmatmul.f32.gmra.mxu0 %v4329
      %v4366 = vpop.f32.mrf.mxu0
      %v4367 = vadd.f32 0.0, %v4366
      %4368 = vmatmul.f32.gmra.mxu0 %v3692
      %v4369 = vpop.f32.mrf.mxu0
      %v4370 = vadd.f32 0.0, %v4369
      %4371 = vdwg.mxu0
      %v4372 = vadd.f32 %v4290, %v4349
      %v4373 = vadd.f32 %v4291, %v4352
      %v4374 = vadd.f32 %v4292, %v4355
      %v4375 = vadd.f32 %v4293, %v4358
      %v4376 = vadd.f32 %v4294, %v4361
      %v4377 = vadd.f32 %v4295, %v4364
      %v4378 = vadd.f32 %v4296, %v4367
      %v4379 = vadd.f32 %v4297, %v4370
      %v4380 = vld [vmem:[%s13] sm:$0x1]
      %v4382 = vperm.slane %v4380, 0
      %v4384 = vadd.f32 %v4372, %v4382
      %v4385 = vadd.f32 %v4373, %v4382
      %v4386 = vadd.f32 %v4374, %v4382
      %v4387 = vadd.f32 %v4375, %v4382
      %v4388 = vadd.f32 %v4376, %v4382
      %v4389 = vadd.f32 %v4377, %v4382
      %v4390 = vadd.f32 %v4378, %v4382
      %v4391 = vadd.f32 %v4379, %v4382
      %v4392 = vmax.f32 %v4384, 0.0
      %v4393 = vmax.f32 %v4385, 0.0
      %v4394 = vmax.f32 %v4386, 0.0
      %v4395 = vmax.f32 %v4387, 0.0
      %v4396 = vmax.f32 %v4388, 0.0
      %v4397 = vmax.f32 %v4389, 0.0
      %v4398 = vmax.f32 %v4390, 0.0
      %v4399 = vmax.f32 %v4391, 0.0
      %v4407 = vrot.slane %v4392, 7
      %v4408 = vrot.slane %v4393, 7
      %v4409 = vsel %vm3653, %v4407, %v4408
      %v4410 = vrot.slane %v4394, 7
      %v4411 = vsel %vm3653, %v4408, %v4410
      %v4412 = vrot.slane %v4395, 7
      %v4413 = vsel %vm3653, %v4410, %v4412
      %v4414 = vrot.slane %v4396, 7
      %v4415 = vsel %vm3653, %v4412, %v4414
      %v4416 = vrot.slane %v4397, 7
      %v4417 = vsel %vm3653, %v4414, %v4416
      %v4418 = vrot.slane %v4398, 7
      %v4419 = vsel %vm3653, %v4416, %v4418
      %v4427 = vsel %vm3653, 0.0, %v4407
      %v4428 = vsel %vm798, %v4427, 0.0
      %v4429 = vsel %vm799, %v4409, 0.0
      %v4430 = vsel %vm800, %v4411, 0.0
      %v4431 = vsel %vm801, %v4413, 0.0
      %v4432 = vsel %vm802, %v4415, 0.0
      %v4433 = vsel %vm803, %v4417, 0.0
      %v4434 = vsel %vm804, %v4419, 0.0
      %v4435 = vld [vmem:[%s14] sm:$0xff]
      %v4436 = vld [vmem:[%s14 + $0x8] sm:$0xff]
      %v4437 = vld [vmem:[%s14 + $0x10] sm:$0xff]
      %v4438 = vld [vmem:[%s14 + $0x18] sm:$0xff]
      %s4439 = scalar_lea.vmem %s14, 32
      %v4440 = vld [vmem:[%s4439] sm:$0xff]
      %v4441 = vld [vmem:[%s4439 + $0x8] sm:$0xff]
      %v4442 = vld [vmem:[%s4439 + $0x10] sm:$0xff]
      %v4443 = vld [vmem:[%s4439 + $0x18] sm:$0xff]
      %v4444 = vsel %vm815, %v4392, 0
      %v4446 = vsel %vm815, %v4393, 0
      %v4448 = vsel %vm815, %v4394, 0
      %v4450 = vsel %vm815, %v4395, 0
      %v4452 = vsel %vm815, %v4396, 0
      %v4454 = vsel %vm815, %v4397, 0
      %v4456 = vsel %vm815, %v4398, 0
      %4458 = vmatpush.msra.mxu0 0.0
      %4459 = vmatpush.msra.mxu0 0.0
      %4460 = vmatpush.msra.mxu0 0.0
      %4461 = vmatpush.msra.mxu0 0.0
      %4462 = vmatpush.msra.mxu0 0.0
      %4463 = vmatpush.msra.mxu0 0.0
      %4464 = vmatpush.msra.mxu0 0.0
      %4465 = vmatpush.msra.mxu0 0.0
      %4466 = vmatpush.msra.mxu0 0.0
      %4467 = vmatpush.msra.mxu0 0.0
      %4468 = vmatpush.msra.mxu0 0.0
      %4469 = vmatpush.msra.mxu0 0.0
      %4470 = vmatpush.msra.mxu0 %v4443
      %4471 = vmatpush.msra.mxu0 %v4442
      %4472 = vmatpush.msra.mxu0 %v4441
      %4473 = vmatpush.msra.mxu0 %v4440
      %4474 = vmatmul.f32.gmra.mxu0 %v3692
      %v4475 = vpop.f32.mrf.mxu0
      %v4476 = vadd.f32 0.0, %v4475
      %4477 = vmatmul.f32.gmra.mxu0 %v4444
      %v4478 = vpop.f32.mrf.mxu0
      %v4479 = vadd.f32 0.0, %v4478
      %4480 = vmatmul.f32.gmra.mxu0 %v4446
      %v4481 = vpop.f32.mrf.mxu0
      %v4482 = vadd.f32 0.0, %v4481
      %4483 = vmatmul.f32.gmra.mxu0 %v4448
      %v4484 = vpop.f32.mrf.mxu0
      %v4485 = vadd.f32 0.0, %v4484
      %4486 = vmatmul.f32.gmra.mxu0 %v4450
      %v4487 = vpop.f32.mrf.mxu0
      %v4488 = vadd.f32 0.0, %v4487
      %4489 = vmatmul.f32.gmra.mxu0 %v4452
      %v4490 = vpop.f32.mrf.mxu0
      %v4491 = vadd.f32 0.0, %v4490
      %4492 = vmatmul.f32.gmra.mxu0 %v4454
      %v4493 = vpop.f32.mrf.mxu0
      %v4494 = vadd.f32 0.0, %v4493
      %4495 = vmatmul.f32.gmra.mxu0 %v4456
      %v4496 = vpop.f32.mrf.mxu0
      %v4497 = vadd.f32 0.0, %v4496
      %4498 = vdwg.mxu0
      %v4500 = vsel %vm815, %v4428, 0
      %v4503 = vsel %vm815, %v4429, 0
      %v4506 = vsel %vm815, %v4430, 0
      %v4509 = vsel %vm815, %v4431, 0
      %v4512 = vsel %vm815, %v4432, 0
      %v4515 = vsel %vm815, %v4433, 0
      %v4518 = vsel %vm815, %v4434, 0
      %4520 = vmatpush.msra.mxu0 0.0
      %4521 = vmatpush.msra.mxu0 0.0
      %4522 = vmatpush.msra.mxu0 0.0
      %4523 = vmatpush.msra.mxu0 0.0
      %4524 = vmatpush.msra.mxu0 0.0
      %4525 = vmatpush.msra.mxu0 0.0
      %4526 = vmatpush.msra.mxu0 0.0
      %4527 = vmatpush.msra.mxu0 0.0
      %4528 = vmatpush.msra.mxu0 0.0
      %4529 = vmatpush.msra.mxu0 0.0
      %4530 = vmatpush.msra.mxu0 0.0
      %4531 = vmatpush.msra.mxu0 0.0
      %4532 = vmatpush.msra.mxu0 %v4438
      %4533 = vmatpush.msra.mxu0 %v4437
      %4534 = vmatpush.msra.mxu0 %v4436
      %4535 = vmatpush.msra.mxu0 %v4435
      %4536 = vmatmul.f32.gmra.mxu0 %v3692
      %v4537 = vpop.f32.mrf.mxu0
      %v4538 = vadd.f32 %v4476, %v4537
      %4539 = vmatmul.f32.gmra.mxu0 %v4500
      %v4540 = vpop.f32.mrf.mxu0
      %v4541 = vadd.f32 %v4479, %v4540
      %4542 = vmatmul.f32.gmra.mxu0 %v4503
      %v4543 = vpop.f32.mrf.mxu0
      %v4544 = vadd.f32 %v4482, %v4543
      %4545 = vmatmul.f32.gmra.mxu0 %v4506
      %v4546 = vpop.f32.mrf.mxu0
      %v4547 = vadd.f32 %v4485, %v4546
      %4548 = vmatmul.f32.gmra.mxu0 %v4509
      %v4549 = vpop.f32.mrf.mxu0
      %v4550 = vadd.f32 %v4488, %v4549
      %4551 = vmatmul.f32.gmra.mxu0 %v4512
      %v4552 = vpop.f32.mrf.mxu0
      %v4553 = vadd.f32 %v4491, %v4552
      %4554 = vmatmul.f32.gmra.mxu0 %v4515
      %v4555 = vpop.f32.mrf.mxu0
      %v4556 = vadd.f32 %v4494, %v4555
      %4557 = vmatmul.f32.gmra.mxu0 %v4518
      %v4558 = vpop.f32.mrf.mxu0
      %v4559 = vadd.f32 %v4497, %v4558
      %4560 = vdwg.mxu0
      %v4562 = vrot.slane %v4392, 1
      %v4563 = vrot.slane %v4393, 1
      %v4564 = vsel %vm3812, %v4562, %v4563
      %v4565 = vrot.slane %v4394, 1
      %v4566 = vsel %vm3812, %v4563, %v4565
      %v4567 = vrot.slane %v4395, 1
      %v4568 = vsel %vm3812, %v4565, %v4567
      %v4569 = vrot.slane %v4396, 1
      %v4570 = vsel %vm3812, %v4567, %v4569
      %v4571 = vrot.slane %v4397, 1
      %v4572 = vsel %vm3812, %v4569, %v4571
      %v4573 = vrot.slane %v4398, 1
      %v4574 = vsel %vm3812, %v4571, %v4573
      %v4575 = vrot.slane %v4399, 1
      %v4576 = vsel %vm3812, %v4573, %v4575
      %v4585 = vsel %vm3812, 0.0, %v4562
      %v4586 = vsel %vm805, %v4585, 0.0
      %v4587 = vsel %vm806, %v4564, 0.0
      %v4588 = vsel %vm807, %v4566, 0.0
      %v4589 = vsel %vm808, %v4568, 0.0
      %v4590 = vsel %vm809, %v4570, 0.0
      %v4591 = vsel %vm810, %v4572, 0.0
      %v4592 = vsel %vm811, %v4574, 0.0
      %v4593 = vsel %vm812, %v4576, 0.0
      %s4594 = scalar_lea.vmem %s14, 64
      %v4595 = vld [vmem:[%s4594] sm:$0xff]
      %v4596 = vld [vmem:[%s4594 + $0x8] sm:$0xff]
      %v4597 = vld [vmem:[%s4594 + $0x10] sm:$0xff]
      %v4598 = vld [vmem:[%s4594 + $0x18] sm:$0xff]
      %v4600 = vsel %vm815, %v4586, 0
      %v4603 = vsel %vm815, %v4587, 0
      %v4606 = vsel %vm815, %v4588, 0
      %v4609 = vsel %vm815, %v4589, 0
      %v4612 = vsel %vm815, %v4590, 0
      %v4615 = vsel %vm815, %v4591, 0
      %v4618 = vsel %vm815, %v4592, 0
      %v4621 = vsel %vm815, %v4593, 0
      %4623 = vmatpush.msra.mxu0 0.0
      %4624 = vmatpush.msra.mxu0 0.0
      %4625 = vmatpush.msra.mxu0 0.0
      %4626 = vmatpush.msra.mxu0 0.0
      %4627 = vmatpush.msra.mxu0 0.0
      %4628 = vmatpush.msra.mxu0 0.0
      %4629 = vmatpush.msra.mxu0 0.0
      %4630 = vmatpush.msra.mxu0 0.0
      %4631 = vmatpush.msra.mxu0 0.0
      %4632 = vmatpush.msra.mxu0 0.0
      %4633 = vmatpush.msra.mxu0 0.0
      %4634 = vmatpush.msra.mxu0 0.0
      %4635 = vmatpush.msra.mxu0 %v4598
      %4636 = vmatpush.msra.mxu0 %v4597
      %4637 = vmatpush.msra.mxu0 %v4596
      %4638 = vmatpush.msra.mxu0 %v4595
      %4639 = vmatmul.f32.gmra.mxu0 %v4600
      %v4640 = vpop.f32.mrf.mxu0
      %v4641 = vadd.f32 0.0, %v4640
      %4642 = vmatmul.f32.gmra.mxu0 %v4603
      %v4643 = vpop.f32.mrf.mxu0
      %v4644 = vadd.f32 0.0, %v4643
      %4645 = vmatmul.f32.gmra.mxu0 %v4606
      %v4646 = vpop.f32.mrf.mxu0
      %v4647 = vadd.f32 0.0, %v4646
      %4648 = vmatmul.f32.gmra.mxu0 %v4609
      %v4649 = vpop.f32.mrf.mxu0
      %v4650 = vadd.f32 0.0, %v4649
      %4651 = vmatmul.f32.gmra.mxu0 %v4612
      %v4652 = vpop.f32.mrf.mxu0
      %v4653 = vadd.f32 0.0, %v4652
      %4654 = vmatmul.f32.gmra.mxu0 %v4615
      %v4655 = vpop.f32.mrf.mxu0
      %v4656 = vadd.f32 0.0, %v4655
      %4657 = vmatmul.f32.gmra.mxu0 %v4618
      %v4658 = vpop.f32.mrf.mxu0
      %v4659 = vadd.f32 0.0, %v4658
      %4660 = vmatmul.f32.gmra.mxu0 %v4621
      %v4661 = vpop.f32.mrf.mxu0
      %v4662 = vadd.f32 0.0, %v4661
      %4663 = vdwg.mxu0
      %v4664 = vadd.f32 %v4538, %v4641
      %v4665 = vadd.f32 %v4541, %v4644
      %v4666 = vadd.f32 %v4544, %v4647
      %v4667 = vadd.f32 %v4547, %v4650
      %v4668 = vadd.f32 %v4550, %v4653
      %v4669 = vadd.f32 %v4553, %v4656
      %v4670 = vadd.f32 %v4556, %v4659
      %v4671 = vadd.f32 %v4559, %v4662
      %v4672 = vrot.slane %v4399, 7
      %v4673 = vsel %vm3653, %v4418, %v4672
      %v4675 = vsel %vm797, %v4427, 0.0
      %v4676 = vsel %vm798, %v4409, 0.0
      %v4677 = vsel %vm799, %v4411, 0.0
      %v4678 = vsel %vm800, %v4413, 0.0
      %v4679 = vsel %vm801, %v4415, 0.0
      %v4680 = vsel %vm802, %v4417, 0.0
      %v4681 = vsel %vm803, %v4419, 0.0
      %v4682 = vsel %vm804, %v4673, 0.0
      %s4683 = scalar_lea.vmem %s14, 96
      %v4684 = vld [vmem:[%s4683] sm:$0xff]
      %v4685 = vld [vmem:[%s4683 + $0x8] sm:$0xff]
      %v4686 = vld [vmem:[%s4683 + $0x10] sm:$0xff]
      %v4687 = vld [vmem:[%s4683 + $0x18] sm:$0xff]
      %v4689 = vsel %vm815, %v4675, 0
      %v4692 = vsel %vm815, %v4676, 0
      %v4695 = vsel %vm815, %v4677, 0
      %v4698 = vsel %vm815, %v4678, 0
      %v4701 = vsel %vm815, %v4679, 0
      %v4704 = vsel %vm815, %v4680, 0
      %v4707 = vsel %vm815, %v4681, 0
      %v4710 = vsel %vm815, %v4682, 0
      %4712 = vmatpush.msra.mxu0 0.0
      %4713 = vmatpush.msra.mxu0 0.0
      %4714 = vmatpush.msra.mxu0 0.0
      %4715 = vmatpush.msra.mxu0 0.0
      %4716 = vmatpush.msra.mxu0 0.0
      %4717 = vmatpush.msra.mxu0 0.0
      %4718 = vmatpush.msra.mxu0 0.0
      %4719 = vmatpush.msra.mxu0 0.0
      %4720 = vmatpush.msra.mxu0 0.0
      %4721 = vmatpush.msra.mxu0 0.0
      %4722 = vmatpush.msra.mxu0 0.0
      %4723 = vmatpush.msra.mxu0 0.0
      %4724 = vmatpush.msra.mxu0 %v4687
      %4725 = vmatpush.msra.mxu0 %v4686
      %4726 = vmatpush.msra.mxu0 %v4685
      %4727 = vmatpush.msra.mxu0 %v4684
      %4728 = vmatmul.f32.gmra.mxu0 %v4689
      %v4729 = vpop.f32.mrf.mxu0
      %v4730 = vadd.f32 0.0, %v4729
      %4731 = vmatmul.f32.gmra.mxu0 %v4692
      %v4732 = vpop.f32.mrf.mxu0
      %v4733 = vadd.f32 0.0, %v4732
      %4734 = vmatmul.f32.gmra.mxu0 %v4695
      %v4735 = vpop.f32.mrf.mxu0
      %v4736 = vadd.f32 0.0, %v4735
      %4737 = vmatmul.f32.gmra.mxu0 %v4698
      %v4738 = vpop.f32.mrf.mxu0
      %v4739 = vadd.f32 0.0, %v4738
      %4740 = vmatmul.f32.gmra.mxu0 %v4701
      %v4741 = vpop.f32.mrf.mxu0
      %v4742 = vadd.f32 0.0, %v4741
      %4743 = vmatmul.f32.gmra.mxu0 %v4704
      %v4744 = vpop.f32.mrf.mxu0
      %v4745 = vadd.f32 0.0, %v4744
      %4746 = vmatmul.f32.gmra.mxu0 %v4707
      %v4747 = vpop.f32.mrf.mxu0
      %v4748 = vadd.f32 0.0, %v4747
      %4749 = vmatmul.f32.gmra.mxu0 %v4710
      %v4750 = vpop.f32.mrf.mxu0
      %v4751 = vadd.f32 0.0, %v4750
      %4752 = vdwg.mxu0
      %v4753 = vadd.f32 %v4664, %v4730
      %v4754 = vadd.f32 %v4665, %v4733
      %v4755 = vadd.f32 %v4666, %v4736
      %v4756 = vadd.f32 %v4667, %v4739
      %v4757 = vadd.f32 %v4668, %v4742
      %v4758 = vadd.f32 %v4669, %v4745
      %v4759 = vadd.f32 %v4670, %v4748
      %v4760 = vadd.f32 %v4671, %v4751
      %s4761 = scalar_lea.vmem %s14, 128
      %v4762 = vld [vmem:[%s4761] sm:$0xff]
      %v4763 = vld [vmem:[%s4761 + $0x8] sm:$0xff]
      %v4764 = vld [vmem:[%s4761 + $0x10] sm:$0xff]
      %v4765 = vld [vmem:[%s4761 + $0x18] sm:$0xff]
      %v4766 = vsel %vm815, %v4399, 0
      %4768 = vmatpush.msra.mxu0 0.0
      %4769 = vmatpush.msra.mxu0 0.0
      %4770 = vmatpush.msra.mxu0 0.0
      %4771 = vmatpush.msra.mxu0 0.0
      %4772 = vmatpush.msra.mxu0 0.0
      %4773 = vmatpush.msra.mxu0 0.0
      %4774 = vmatpush.msra.mxu0 0.0
      %4775 = vmatpush.msra.mxu0 0.0
      %4776 = vmatpush.msra.mxu0 0.0
      %4777 = vmatpush.msra.mxu0 0.0
      %4778 = vmatpush.msra.mxu0 0.0
      %4779 = vmatpush.msra.mxu0 0.0
      %4780 = vmatpush.msra.mxu0 %v4765
      %4781 = vmatpush.msra.mxu0 %v4764
      %4782 = vmatpush.msra.mxu0 %v4763
      %4783 = vmatpush.msra.mxu0 %v4762
      %4784 = vmatmul.f32.gmra.mxu0 %v4444
      %v4785 = vpop.f32.mrf.mxu0
      %v4786 = vadd.f32 0.0, %v4785
      %4787 = vmatmul.f32.gmra.mxu0 %v4446
      %v4788 = vpop.f32.mrf.mxu0
      %v4789 = vadd.f32 0.0, %v4788
      %4790 = vmatmul.f32.gmra.mxu0 %v4448
      %v4791 = vpop.f32.mrf.mxu0
      %v4792 = vadd.f32 0.0, %v4791
      %4793 = vmatmul.f32.gmra.mxu0 %v4450
      %v4794 = vpop.f32.mrf.mxu0
      %v4795 = vadd.f32 0.0, %v4794
      %4796 = vmatmul.f32.gmra.mxu0 %v4452
      %v4797 = vpop.f32.mrf.mxu0
      %v4798 = vadd.f32 0.0, %v4797
      %4799 = vmatmul.f32.gmra.mxu0 %v4454
      %v4800 = vpop.f32.mrf.mxu0
      %v4801 = vadd.f32 0.0, %v4800
      %4802 = vmatmul.f32.gmra.mxu0 %v4456
      %v4803 = vpop.f32.mrf.mxu0
      %v4804 = vadd.f32 0.0, %v4803
      %4805 = vmatmul.f32.gmra.mxu0 %v4766
      %v4806 = vpop.f32.mrf.mxu0
      %v4807 = vadd.f32 0.0, %v4806
      %4808 = vdwg.mxu0
      %v4809 = vadd.f32 %v4753, %v4786
      %v4810 = vadd.f32 %v4754, %v4789
      %v4811 = vadd.f32 %v4755, %v4792
      %v4812 = vadd.f32 %v4756, %v4795
      %v4813 = vadd.f32 %v4757, %v4798
      %v4814 = vadd.f32 %v4758, %v4801
      %v4815 = vadd.f32 %v4759, %v4804
      %v4816 = vadd.f32 %v4760, %v4807
      %v4818 = vsel %vm3812, %v4575, 0.0
      %v4819 = vsel %vm805, %v4564, 0.0
      %v4820 = vsel %vm806, %v4566, 0.0
      %v4821 = vsel %vm807, %v4568, 0.0
      %v4822 = vsel %vm808, %v4570, 0.0
      %v4823 = vsel %vm809, %v4572, 0.0
      %v4824 = vsel %vm810, %v4574, 0.0
      %v4825 = vsel %vm811, %v4576, 0.0
      %v4826 = vsel %vm812, %v4818, 0.0
      %s4827 = scalar_lea.vmem %s14, 160
      %v4828 = vld [vmem:[%s4827] sm:$0xff]
      %v4829 = vld [vmem:[%s4827 + $0x8] sm:$0xff]
      %v4830 = vld [vmem:[%s4827 + $0x10] sm:$0xff]
      %v4831 = vld [vmem:[%s4827 + $0x18] sm:$0xff]
      %v4833 = vsel %vm815, %v4819, 0
      %v4836 = vsel %vm815, %v4820, 0
      %v4839 = vsel %vm815, %v4821, 0
      %v4842 = vsel %vm815, %v4822, 0
      %v4845 = vsel %vm815, %v4823, 0
      %v4848 = vsel %vm815, %v4824, 0
      %v4851 = vsel %vm815, %v4825, 0
      %v4854 = vsel %vm815, %v4826, 0
      %4856 = vmatpush.msra.mxu0 0.0
      %4857 = vmatpush.msra.mxu0 0.0
      %4858 = vmatpush.msra.mxu0 0.0
      %4859 = vmatpush.msra.mxu0 0.0
      %4860 = vmatpush.msra.mxu0 0.0
      %4861 = vmatpush.msra.mxu0 0.0
      %4862 = vmatpush.msra.mxu0 0.0
      %4863 = vmatpush.msra.mxu0 0.0
      %4864 = vmatpush.msra.mxu0 0.0
      %4865 = vmatpush.msra.mxu0 0.0
      %4866 = vmatpush.msra.mxu0 0.0
      %4867 = vmatpush.msra.mxu0 0.0
      %4868 = vmatpush.msra.mxu0 %v4831
      %4869 = vmatpush.msra.mxu0 %v4830
      %4870 = vmatpush.msra.mxu0 %v4829
      %4871 = vmatpush.msra.mxu0 %v4828
      %4872 = vmatmul.f32.gmra.mxu0 %v4833
      %v4873 = vpop.f32.mrf.mxu0
      %v4874 = vadd.f32 0.0, %v4873
      %4875 = vmatmul.f32.gmra.mxu0 %v4836
      %v4876 = vpop.f32.mrf.mxu0
      %v4877 = vadd.f32 0.0, %v4876
      %4878 = vmatmul.f32.gmra.mxu0 %v4839
      %v4879 = vpop.f32.mrf.mxu0
      %v4880 = vadd.f32 0.0, %v4879
      %4881 = vmatmul.f32.gmra.mxu0 %v4842
      %v4882 = vpop.f32.mrf.mxu0
      %v4883 = vadd.f32 0.0, %v4882
      %4884 = vmatmul.f32.gmra.mxu0 %v4845
      %v4885 = vpop.f32.mrf.mxu0
      %v4886 = vadd.f32 0.0, %v4885
      %4887 = vmatmul.f32.gmra.mxu0 %v4848
      %v4888 = vpop.f32.mrf.mxu0
      %v4889 = vadd.f32 0.0, %v4888
      %4890 = vmatmul.f32.gmra.mxu0 %v4851
      %v4891 = vpop.f32.mrf.mxu0
      %v4892 = vadd.f32 0.0, %v4891
      %4893 = vmatmul.f32.gmra.mxu0 %v4854
      %v4894 = vpop.f32.mrf.mxu0
      %v4895 = vadd.f32 0.0, %v4894
      %4896 = vdwg.mxu0
      %v4897 = vadd.f32 %v4809, %v4874
      %v4898 = vadd.f32 %v4810, %v4877
      %v4899 = vadd.f32 %v4811, %v4880
      %v4900 = vadd.f32 %v4812, %v4883
      %v4901 = vadd.f32 %v4813, %v4886
      %v4902 = vadd.f32 %v4814, %v4889
      %v4903 = vadd.f32 %v4815, %v4892
      %v4904 = vadd.f32 %v4816, %v4895
      %v4906 = vsel %vm3653, %v4672, 0.0
      %v4907 = vsel %vm797, %v4409, 0.0
      %v4908 = vsel %vm798, %v4411, 0.0
      %v4909 = vsel %vm799, %v4413, 0.0
      %v4910 = vsel %vm800, %v4415, 0.0
      %v4911 = vsel %vm801, %v4417, 0.0
      %v4912 = vsel %vm802, %v4419, 0.0
      %v4913 = vsel %vm803, %v4673, 0.0
      %v4914 = vsel %vm804, %v4906, 0.0
      %s4915 = scalar_lea.vmem %s14, 192
      %v4916 = vld [vmem:[%s4915] sm:$0xff]
      %v4917 = vld [vmem:[%s4915 + $0x8] sm:$0xff]
      %v4918 = vld [vmem:[%s4915 + $0x10] sm:$0xff]
      %v4919 = vld [vmem:[%s4915 + $0x18] sm:$0xff]
      %v4921 = vsel %vm815, %v4907, 0
      %v4924 = vsel %vm815, %v4908, 0
      %v4927 = vsel %vm815, %v4909, 0
      %v4930 = vsel %vm815, %v4910, 0
      %v4933 = vsel %vm815, %v4911, 0
      %v4936 = vsel %vm815, %v4912, 0
      %v4939 = vsel %vm815, %v4913, 0
      %v4942 = vsel %vm815, %v4914, 0
      %4944 = vmatpush.msra.mxu0 0.0
      %4945 = vmatpush.msra.mxu0 0.0
      %4946 = vmatpush.msra.mxu0 0.0
      %4947 = vmatpush.msra.mxu0 0.0
      %4948 = vmatpush.msra.mxu0 0.0
      %4949 = vmatpush.msra.mxu0 0.0
      %4950 = vmatpush.msra.mxu0 0.0
      %4951 = vmatpush.msra.mxu0 0.0
      %4952 = vmatpush.msra.mxu0 0.0
      %4953 = vmatpush.msra.mxu0 0.0
      %4954 = vmatpush.msra.mxu0 0.0
      %4955 = vmatpush.msra.mxu0 0.0
      %4956 = vmatpush.msra.mxu0 %v4919
      %4957 = vmatpush.msra.mxu0 %v4918
      %4958 = vmatpush.msra.mxu0 %v4917
      %4959 = vmatpush.msra.mxu0 %v4916
      %4960 = vmatmul.f32.gmra.mxu0 %v4921
      %v4961 = vpop.f32.mrf.mxu0
      %v4962 = vadd.f32 0.0, %v4961
      %4963 = vmatmul.f32.gmra.mxu0 %v4924
      %v4964 = vpop.f32.mrf.mxu0
      %v4965 = vadd.f32 0.0, %v4964
      %4966 = vmatmul.f32.gmra.mxu0 %v4927
      %v4967 = vpop.f32.mrf.mxu0
      %v4968 = vadd.f32 0.0, %v4967
      %4969 = vmatmul.f32.gmra.mxu0 %v4930
      %v4970 = vpop.f32.mrf.mxu0
      %v4971 = vadd.f32 0.0, %v4970
      %4972 = vmatmul.f32.gmra.mxu0 %v4933
      %v4973 = vpop.f32.mrf.mxu0
      %v4974 = vadd.f32 0.0, %v4973
      %4975 = vmatmul.f32.gmra.mxu0 %v4936
      %v4976 = vpop.f32.mrf.mxu0
      %v4977 = vadd.f32 0.0, %v4976
      %4978 = vmatmul.f32.gmra.mxu0 %v4939
      %v4979 = vpop.f32.mrf.mxu0
      %v4980 = vadd.f32 0.0, %v4979
      %4981 = vmatmul.f32.gmra.mxu0 %v4942
      %v4982 = vpop.f32.mrf.mxu0
      %v4983 = vadd.f32 0.0, %v4982
      %4984 = vdwg.mxu0
      %v4985 = vadd.f32 %v4897, %v4962
      %v4986 = vadd.f32 %v4898, %v4965
      %v4987 = vadd.f32 %v4899, %v4968
      %v4988 = vadd.f32 %v4900, %v4971
      %v4989 = vadd.f32 %v4901, %v4974
      %v4990 = vadd.f32 %v4902, %v4977
      %v4991 = vadd.f32 %v4903, %v4980
      %v4992 = vadd.f32 %v4904, %v4983
      %s4993 = scalar_lea.vmem %s14, 224
      %v4994 = vld [vmem:[%s4993] sm:$0xff]
      %v4995 = vld [vmem:[%s4993 + $0x8] sm:$0xff]
      %v4996 = vld [vmem:[%s4993 + $0x10] sm:$0xff]
      %v4997 = vld [vmem:[%s4993 + $0x18] sm:$0xff]
      %4998 = vmatpush.msra.mxu0 0.0
      %4999 = vmatpush.msra.mxu0 0.0
      %5000 = vmatpush.msra.mxu0 0.0
      %5001 = vmatpush.msra.mxu0 0.0
      %5002 = vmatpush.msra.mxu0 0.0
      %5003 = vmatpush.msra.mxu0 0.0
      %5004 = vmatpush.msra.mxu0 0.0
      %5005 = vmatpush.msra.mxu0 0.0
      %5006 = vmatpush.msra.mxu0 0.0
      %5007 = vmatpush.msra.mxu0 0.0
      %5008 = vmatpush.msra.mxu0 0.0
      %5009 = vmatpush.msra.mxu0 0.0
      %5010 = vmatpush.msra.mxu0 %v4997
      %5011 = vmatpush.msra.mxu0 %v4996
      %5012 = vmatpush.msra.mxu0 %v4995
      %5013 = vmatpush.msra.mxu0 %v4994
      %5014 = vmatmul.f32.gmra.mxu0 %v4446
      %v5015 = vpop.f32.mrf.mxu0
      %v5016 = vadd.f32 0.0, %v5015
      %5017 = vmatmul.f32.gmra.mxu0 %v4448
      %v5018 = vpop.f32.mrf.mxu0
      %v5019 = vadd.f32 0.0, %v5018
      %5020 = vmatmul.f32.gmra.mxu0 %v4450
      %v5021 = vpop.f32.mrf.mxu0
      %v5022 = vadd.f32 0.0, %v5021
      %5023 = vmatmul.f32.gmra.mxu0 %v4452
      %v5024 = vpop.f32.mrf.mxu0
      %v5025 = vadd.f32 0.0, %v5024
      %5026 = vmatmul.f32.gmra.mxu0 %v4454
      %v5027 = vpop.f32.mrf.mxu0
      %v5028 = vadd.f32 0.0, %v5027
      %5029 = vmatmul.f32.gmra.mxu0 %v4456
      %v5030 = vpop.f32.mrf.mxu0
      %v5031 = vadd.f32 0.0, %v5030
      %5032 = vmatmul.f32.gmra.mxu0 %v4766
      %v5033 = vpop.f32.mrf.mxu0
      %v5034 = vadd.f32 0.0, %v5033
      %5035 = vmatmul.f32.gmra.mxu0 %v3692
      %v5036 = vpop.f32.mrf.mxu0
      %v5037 = vadd.f32 0.0, %v5036
      %5038 = vdwg.mxu0
      %v5039 = vadd.f32 %v4985, %v5016
      %v5040 = vadd.f32 %v4986, %v5019
      %v5041 = vadd.f32 %v4987, %v5022
      %v5042 = vadd.f32 %v4988, %v5025
      %v5043 = vadd.f32 %v4989, %v5028
      %v5044 = vadd.f32 %v4990, %v5031
      %v5045 = vadd.f32 %v4991, %v5034
      %v5046 = vadd.f32 %v4992, %v5037
      %v5047 = vsel %vm805, %v4566, 0.0
      %v5048 = vsel %vm806, %v4568, 0.0
      %v5049 = vsel %vm807, %v4570, 0.0
      %v5050 = vsel %vm808, %v4572, 0.0
      %v5051 = vsel %vm809, %v4574, 0.0
      %v5052 = vsel %vm810, %v4576, 0.0
      %v5053 = vsel %vm811, %v4818, 0.0
      %s5054 = scalar_lea.vmem %s14, 256
      %v5055 = vld [vmem:[%s5054] sm:$0xff]
      %v5056 = vld [vmem:[%s5054 + $0x8] sm:$0xff]
      %v5057 = vld [vmem:[%s5054 + $0x10] sm:$0xff]
      %v5058 = vld [vmem:[%s5054 + $0x18] sm:$0xff]
      %v5060 = vsel %vm815, %v5047, 0
      %v5063 = vsel %vm815, %v5048, 0
      %v5066 = vsel %vm815, %v5049, 0
      %v5069 = vsel %vm815, %v5050, 0
      %v5072 = vsel %vm815, %v5051, 0
      %v5075 = vsel %vm815, %v5052, 0
      %v5078 = vsel %vm815, %v5053, 0
      %5080 = vmatpush.msra.mxu0 0.0
      %5081 = vmatpush.msra.mxu0 0.0
      %5082 = vmatpush.msra.mxu0 0.0
      %5083 = vmatpush.msra.mxu0 0.0
      %5084 = vmatpush.msra.mxu0 0.0
      %5085 = vmatpush.msra.mxu0 0.0
      %5086 = vmatpush.msra.mxu0 0.0
      %5087 = vmatpush.msra.mxu0 0.0
      %5088 = vmatpush.msra.mxu0 0.0
      %5089 = vmatpush.msra.mxu0 0.0
      %5090 = vmatpush.msra.mxu0 0.0
      %5091 = vmatpush.msra.mxu0 0.0
      %5092 = vmatpush.msra.mxu0 %v5058
      %5093 = vmatpush.msra.mxu0 %v5057
      %5094 = vmatpush.msra.mxu0 %v5056
      %5095 = vmatpush.msra.mxu0 %v5055
      %5096 = vmatmul.f32.gmra.mxu0 %v5060
      %v5097 = vpop.f32.mrf.mxu0
      %v5098 = vadd.f32 0.0, %v5097
      %5099 = vmatmul.f32.gmra.mxu0 %v5063
      %v5100 = vpop.f32.mrf.mxu0
      %v5101 = vadd.f32 0.0, %v5100
      %5102 = vmatmul.f32.gmra.mxu0 %v5066
      %v5103 = vpop.f32.mrf.mxu0
      %v5104 = vadd.f32 0.0, %v5103
      %5105 = vmatmul.f32.gmra.mxu0 %v5069
      %v5106 = vpop.f32.mrf.mxu0
      %v5107 = vadd.f32 0.0, %v5106
      %5108 = vmatmul.f32.gmra.mxu0 %v5072
      %v5109 = vpop.f32.mrf.mxu0
      %v5110 = vadd.f32 0.0, %v5109
      %5111 = vmatmul.f32.gmra.mxu0 %v5075
      %v5112 = vpop.f32.mrf.mxu0
      %v5113 = vadd.f32 0.0, %v5112
      %5114 = vmatmul.f32.gmra.mxu0 %v5078
      %v5115 = vpop.f32.mrf.mxu0
      %v5116 = vadd.f32 0.0, %v5115
      %5117 = vmatmul.f32.gmra.mxu0 %v3692
      %v5118 = vpop.f32.mrf.mxu0
      %v5119 = vadd.f32 0.0, %v5118
      %5120 = vdwg.mxu0
      %v5121 = vadd.f32 %v5039, %v5098
      %v5122 = vadd.f32 %v5040, %v5101
      %v5123 = vadd.f32 %v5041, %v5104
      %v5124 = vadd.f32 %v5042, %v5107
      %v5125 = vadd.f32 %v5043, %v5110
      %v5126 = vadd.f32 %v5044, %v5113
      %v5127 = vadd.f32 %v5045, %v5116
      %v5128 = vadd.f32 %v5046, %v5119
      %v5129 = vld [vmem:[%s15] sm:$0x1]
      %v5131 = vperm.slane %v5129, 0
      %v5133 = vadd.f32 %v5121, %v5131
      %v5134 = vadd.f32 %v5122, %v5131
      %v5135 = vadd.f32 %v5123, %v5131
      %v5136 = vadd.f32 %v5124, %v5131
      %v5137 = vadd.f32 %v5125, %v5131
      %v5138 = vadd.f32 %v5126, %v5131
      %v5139 = vadd.f32 %v5127, %v5131
      %v5140 = vadd.f32 %v5128, %v5131
      %v5141 = vsel %vm815, %v5133, 0.0
      %v5142 = vsel %vm815, %v5134, 0.0
      %v5143 = vadd.f32 %v5141, %v5142
      %v5144 = vsel %vm815, %v5135, 0.0
      %v5145 = vadd.f32 %v5143, %v5144
      %v5146 = vsel %vm815, %v5136, 0.0
      %v5147 = vadd.f32 %v5145, %v5146
      %v5148 = vsel %vm815, %v5137, 0.0
      %v5149 = vadd.f32 %v5147, %v5148
      %v5150 = vsel %vm815, %v5138, 0.0
      %v5151 = vadd.f32 %v5149, %v5150
      %v5152 = vsel %vm815, %v5139, 0.0
      %v5153 = vadd.f32 %v5151, %v5152
      %v5154 = vsel %vm815, %v5140, 0.0
      %v5155 = vadd.f32 %v5153, %v5154
      %v5156 = vrot.slane %v5155, 4
      %v5157 = vadd.f32 %v5155, %v5156
      %v5158 = vrot.slane %v5157, 2
      %v5159 = vadd.f32 %v5157, %v5158
      %v5160 = vrot.slane %v5159, 1
      %v5161 = vadd.f32 %v5159, %v5160
      %v5162 = vrcp.pop 64.0
      %v5163 = vmul.f32 64.0, %v5162
      %v5164 = vsub.f32 1.0, %v5163
      %v5165 = vmul.f32 %v5162, %v5164
      %v5166 = vadd.f32 %v5162, %v5165
      %vm5167 = vweird.f32 %v5162
      %v5168 = vsel %vm5167, %v5162, %v5166
      %v5169 = vmul.f32 %v5161, %v5168
      %v5170 = vld [vmem:[%s16] sm:$0xff]
      %v5171 = vld [vmem:[%s16 + $0x8] sm:$0xff]
      %v5172 = vld [vmem:[%s16 + $0x10] sm:$0xff]
      %v5173 = vld [vmem:[%s16 + $0x18] sm:$0xff]
      %v5174 = vld [vmem:[%s17] sm:$0x1]
      %v5176 = vsel %vm815, %v5169, 0
      %5178 = vmatpush.msra.mxu0 0.0
      %5179 = vmatpush.msra.mxu0 0.0
      %5180 = vmatpush.msra.mxu0 0.0
      %5181 = vmatpush.msra.mxu0 0.0
      %5182 = vmatpush.msra.mxu0 0.0
      %5183 = vmatpush.msra.mxu0 0.0
      %5184 = vmatpush.msra.mxu0 0.0
      %5185 = vmatpush.msra.mxu0 0.0
      %5186 = vmatpush.msra.mxu0 0.0
      %5187 = vmatpush.msra.mxu0 0.0
      %5188 = vmatpush.msra.mxu0 0.0
      %5189 = vmatpush.msra.mxu0 0.0
      %5190 = vmatpush.msra.mxu0 %v5173
      %5191 = vmatpush.msra.mxu0 %v5172
      %5192 = vmatpush.msra.mxu0 %v5171
      %5193 = vmatpush.msra.mxu0 %v5170
      %5194 = vmatmul.f32.gmra.mxu0 %v5176
      %v5195 = vpop.f32.mrf.mxu0
      %v5196 = vadd.f32 %v5174, %v5195
      %5197 = vdwg.mxu0
      %v5198 = vmax.f32 %v5196, 0.0
      %v5199 = vld [vmem:[%s18] sm:$0x3]
      %v5200 = vld [vmem:[%s19] sm:$0x1]
      %vm5201 = vcmask 15360
      %v5203 = vsel %vm5201, %v5198, 0
      %vm5205 = vcmask 1041408
      %v5207 = vsel %vm5205, %v5199, 0
      %5209 = vmatpush.msra.mxu0 0.0
      %5210 = vmatpush.msra.mxu0 0.0
      %5211 = vmatpush.msra.mxu0 0.0
      %5212 = vmatpush.msra.mxu0 0.0
      %5213 = vmatpush.msra.mxu0 0.0
      %5214 = vmatpush.msra.mxu0 0.0
      %5215 = vmatpush.msra.mxu0 0.0
      %5216 = vmatpush.msra.mxu0 0.0
      %5217 = vmatpush.msra.mxu0 0.0
      %5218 = vmatpush.msra.mxu0 0.0
      %5219 = vmatpush.msra.mxu0 0.0
      %5220 = vmatpush.msra.mxu0 0.0
      %5221 = vmatpush.msra.mxu0 0.0
      %5222 = vmatpush.msra.mxu0 0.0
      %5223 = vmatpush.msra.mxu0 0.0
      %5224 = vmatpush.msra.mxu0 %v5207
      %5225 = vmatmul.f32.gmra.mxu0 %v5203
      %v5226 = vpop.f32.mrf.mxu0
      %v5227 = vadd.f32 %v5200, %v5226
      %5228 = vdwg.mxu0
      %v5229 = vxor.u32 %v5227, 2147483648
      %v5230 = vmul.f32 %v5229, 1.442695
      %v5231 = vpow.pop %v5230
      %v5232 = vadd.f32 %v5231, 1.0
      %v5233 = vrcp.pop %v5232
      %v5234 = vmul.f32 %v5232, %v5233
      %v5235 = vsub.f32 1.0, %v5234
      %v5236 = vmul.f32 %v5233, %v5235
      %v5237 = vadd.f32 %v5233, %v5236
      %vm5238 = vweird.f32 %v5232
      %vm5239 = vweird.f32 %v5233
      %vm5240 = vmor %vm5238, %vm5239
      %v5241 = vsel %vm5240, %v5233, %v5237
      %v5242 = vand.u32 2147483647, %v5232
      %vm5243 = vcmp.eq.f32.partialorder %v5242, 8.507059e+37
      %v5244 = vand.u32 %v5232, 2147483648
      %v5245 = vor.u32 1.1754944e-38, %v5244
      %v5246 = vsel %vm5243, %v5245, %v5241
      %v5247 = vmul.f32 1.0, %v5246
      %v5248 = vperm.slane %v5247, 0
      %v5249 = vmul.f32 %v5133, %v5248
      %v5250 = vmul.f32 %v5134, %v5248
      %v5251 = vmul.f32 %v5135, %v5248
      %v5252 = vmul.f32 %v5136, %v5248
      %v5253 = vmul.f32 %v5137, %v5248
      %v5254 = vmul.f32 %v5138, %v5248
      %v5255 = vmul.f32 %v5139, %v5248
      %v5256 = vmul.f32 %v5140, %v5248
      %v5257 = vadd.f32 %v5249, %v684
      %v5258 = vadd.f32 %v5250, %v685
      %v5259 = vadd.f32 %v5251, %v686
      %v5260 = vadd.f32 %v5252, %v687
      %v5261 = vadd.f32 %v5253, %v688
      %v5262 = vadd.f32 %v5254, %v689
      %v5263 = vadd.f32 %v5255, %v690
      %v5264 = vadd.f32 %v5256, %v691
      %v5265 = vmax.f32 %v5257, 0.0
      %v5266 = vmax.f32 %v5258, 0.0
      %v5267 = vmax.f32 %v5259, 0.0
      %v5268 = vmax.f32 %v5260, 0.0
      %v5269 = vmax.f32 %v5261, 0.0
      %v5270 = vmax.f32 %v5262, 0.0
      %v5271 = vmax.f32 %v5263, 0.0
      %v5272 = vmax.f32 %v5264, 0.0
      %v5280 = vrot.slane %v3638, 7
      %v5281 = vrot.slane %v3639, 7
      %v5282 = vsel %vm3653, %v5280, %v5281
      %v5283 = vrot.slane %v3640, 7
      %v5284 = vsel %vm3653, %v5281, %v5283
      %v5285 = vrot.slane %v3641, 7
      %v5286 = vsel %vm3653, %v5283, %v5285
      %v5287 = vrot.slane %v3642, 7
      %v5288 = vsel %vm3653, %v5285, %v5287
      %v5289 = vrot.slane %v3643, 7
      %v5290 = vsel %vm3653, %v5287, %v5289
      %v5291 = vrot.slane %v3644, 7
      %v5292 = vsel %vm3653, %v5289, %v5291
      %v5300 = vsel %vm3653, 0.0, %v5280
      %v5301 = vsel %vm798, %v5300, 0.0
      %v5302 = vsel %vm799, %v5282, 0.0
      %v5303 = vsel %vm800, %v5284, 0.0
      %v5304 = vsel %vm801, %v5286, 0.0
      %v5305 = vsel %vm802, %v5288, 0.0
      %v5306 = vsel %vm803, %v5290, 0.0
      %v5307 = vsel %vm804, %v5292, 0.0
      %v5308 = vld [vmem:[%s20] sm:$0xff]
      %v5309 = vld [vmem:[%s20 + $0x8] sm:$0xff]
      %v5310 = vld [vmem:[%s20 + $0x10] sm:$0xff]
      %v5311 = vld [vmem:[%s20 + $0x18] sm:$0xff]
      %s5312 = scalar_lea.vmem %s20, 32
      %v5313 = vld [vmem:[%s5312] sm:$0xff]
      %v5314 = vld [vmem:[%s5312 + $0x8] sm:$0xff]
      %v5315 = vld [vmem:[%s5312 + $0x10] sm:$0xff]
      %v5316 = vld [vmem:[%s5312 + $0x18] sm:$0xff]
      %v5317 = vsel %vm815, %v3638, 0
      %v5319 = vsel %vm815, %v3639, 0
      %v5321 = vsel %vm815, %v3640, 0
      %v5323 = vsel %vm815, %v3641, 0
      %v5325 = vsel %vm815, %v3642, 0
      %v5327 = vsel %vm815, %v3643, 0
      %v5329 = vsel %vm815, %v3644, 0
      %5331 = vmatpush.msra.mxu0 0.0
      %5332 = vmatpush.msra.mxu0 0.0
      %5333 = vmatpush.msra.mxu0 0.0
      %5334 = vmatpush.msra.mxu0 0.0
      %5335 = vmatpush.msra.mxu0 0.0
      %5336 = vmatpush.msra.mxu0 0.0
      %5337 = vmatpush.msra.mxu0 0.0
      %5338 = vmatpush.msra.mxu0 0.0
      %5339 = vmatpush.msra.mxu0 0.0
      %5340 = vmatpush.msra.mxu0 0.0
      %5341 = vmatpush.msra.mxu0 0.0
      %5342 = vmatpush.msra.mxu0 0.0
      %5343 = vmatpush.msra.mxu0 %v5316
      %5344 = vmatpush.msra.mxu0 %v5315
      %5345 = vmatpush.msra.mxu0 %v5314
      %5346 = vmatpush.msra.mxu0 %v5313
      %5347 = vmatmul.f32.gmra.mxu0 %v3692
      %v5348 = vpop.f32.mrf.mxu0
      %v5349 = vadd.f32 0.0, %v5348
      %5350 = vmatmul.f32.gmra.mxu0 %v5317
      %v5351 = vpop.f32.mrf.mxu0
      %v5352 = vadd.f32 0.0, %v5351
      %5353 = vmatmul.f32.gmra.mxu0 %v5319
      %v5354 = vpop.f32.mrf.mxu0
      %v5355 = vadd.f32 0.0, %v5354
      %5356 = vmatmul.f32.gmra.mxu0 %v5321
      %v5357 = vpop.f32.mrf.mxu0
      %v5358 = vadd.f32 0.0, %v5357
      %5359 = vmatmul.f32.gmra.mxu0 %v5323
      %v5360 = vpop.f32.mrf.mxu0
      %v5361 = vadd.f32 0.0, %v5360
      %5362 = vmatmul.f32.gmra.mxu0 %v5325
      %v5363 = vpop.f32.mrf.mxu0
      %v5364 = vadd.f32 0.0, %v5363
      %5365 = vmatmul.f32.gmra.mxu0 %v5327
      %v5366 = vpop.f32.mrf.mxu0
      %v5367 = vadd.f32 0.0, %v5366
      %5368 = vmatmul.f32.gmra.mxu0 %v5329
      %v5369 = vpop.f32.mrf.mxu0
      %v5370 = vadd.f32 0.0, %v5369
      %5371 = vdwg.mxu0
      %v5373 = vsel %vm815, %v5301, 0
      %v5376 = vsel %vm815, %v5302, 0
      %v5379 = vsel %vm815, %v5303, 0
      %v5382 = vsel %vm815, %v5304, 0
      %v5385 = vsel %vm815, %v5305, 0
      %v5388 = vsel %vm815, %v5306, 0
      %v5391 = vsel %vm815, %v5307, 0
      %5393 = vmatpush.msra.mxu0 0.0
      %5394 = vmatpush.msra.mxu0 0.0
      %5395 = vmatpush.msra.mxu0 0.0
      %5396 = vmatpush.msra.mxu0 0.0
      %5397 = vmatpush.msra.mxu0 0.0
      %5398 = vmatpush.msra.mxu0 0.0
      %5399 = vmatpush.msra.mxu0 0.0
      %5400 = vmatpush.msra.mxu0 0.0
      %5401 = vmatpush.msra.mxu0 0.0
      %5402 = vmatpush.msra.mxu0 0.0
      %5403 = vmatpush.msra.mxu0 0.0
      %5404 = vmatpush.msra.mxu0 0.0
      %5405 = vmatpush.msra.mxu0 %v5311
      %5406 = vmatpush.msra.mxu0 %v5310
      %5407 = vmatpush.msra.mxu0 %v5309
      %5408 = vmatpush.msra.mxu0 %v5308
      %5409 = vmatmul.f32.gmra.mxu0 %v3692
      %v5410 = vpop.f32.mrf.mxu0
      %v5411 = vadd.f32 %v5349, %v5410
      %5412 = vmatmul.f32.gmra.mxu0 %v5373
      %v5413 = vpop.f32.mrf.mxu0
      %v5414 = vadd.f32 %v5352, %v5413
      %5415 = vmatmul.f32.gmra.mxu0 %v5376
      %v5416 = vpop.f32.mrf.mxu0
      %v5417 = vadd.f32 %v5355, %v5416
      %5418 = vmatmul.f32.gmra.mxu0 %v5379
      %v5419 = vpop.f32.mrf.mxu0
      %v5420 = vadd.f32 %v5358, %v5419
      %5421 = vmatmul.f32.gmra.mxu0 %v5382
      %v5422 = vpop.f32.mrf.mxu0
      %v5423 = vadd.f32 %v5361, %v5422
      %5424 = vmatmul.f32.gmra.mxu0 %v5385
      %v5425 = vpop.f32.mrf.mxu0
      %v5426 = vadd.f32 %v5364, %v5425
      %5427 = vmatmul.f32.gmra.mxu0 %v5388
      %v5428 = vpop.f32.mrf.mxu0
      %v5429 = vadd.f32 %v5367, %v5428
      %5430 = vmatmul.f32.gmra.mxu0 %v5391
      %v5431 = vpop.f32.mrf.mxu0
      %v5432 = vadd.f32 %v5370, %v5431
      %5433 = vdwg.mxu0
      %v5435 = vrot.slane %v3638, 1
      %v5436 = vrot.slane %v3639, 1
      %v5437 = vsel %vm3812, %v5435, %v5436
      %v5438 = vrot.slane %v3640, 1
      %v5439 = vsel %vm3812, %v5436, %v5438
      %v5440 = vrot.slane %v3641, 1
      %v5441 = vsel %vm3812, %v5438, %v5440
      %v5442 = vrot.slane %v3642, 1
      %v5443 = vsel %vm3812, %v5440, %v5442
      %v5444 = vrot.slane %v3643, 1
      %v5445 = vsel %vm3812, %v5442, %v5444
      %v5446 = vrot.slane %v3644, 1
      %v5447 = vsel %vm3812, %v5444, %v5446
      %v5448 = vrot.slane %v3645, 1
      %v5449 = vsel %vm3812, %v5446, %v5448
      %v5458 = vsel %vm3812, 0.0, %v5435
      %v5459 = vsel %vm805, %v5458, 0.0
      %v5460 = vsel %vm806, %v5437, 0.0
      %v5461 = vsel %vm807, %v5439, 0.0
      %v5462 = vsel %vm808, %v5441, 0.0
      %v5463 = vsel %vm809, %v5443, 0.0
      %v5464 = vsel %vm810, %v5445, 0.0
      %v5465 = vsel %vm811, %v5447, 0.0
      %v5466 = vsel %vm812, %v5449, 0.0
      %s5467 = scalar_lea.vmem %s20, 64
      %v5468 = vld [vmem:[%s5467] sm:$0xff]
      %v5469 = vld [vmem:[%s5467 + $0x8] sm:$0xff]
      %v5470 = vld [vmem:[%s5467 + $0x10] sm:$0xff]
      %v5471 = vld [vmem:[%s5467 + $0x18] sm:$0xff]
      %v5473 = vsel %vm815, %v5459, 0
      %v5476 = vsel %vm815, %v5460, 0
      %v5479 = vsel %vm815, %v5461, 0
      %v5482 = vsel %vm815, %v5462, 0
      %v5485 = vsel %vm815, %v5463, 0
      %v5488 = vsel %vm815, %v5464, 0
      %v5491 = vsel %vm815, %v5465, 0
      %v5494 = vsel %vm815, %v5466, 0
      %5496 = vmatpush.msra.mxu0 0.0
      %5497 = vmatpush.msra.mxu0 0.0
      %5498 = vmatpush.msra.mxu0 0.0
      %5499 = vmatpush.msra.mxu0 0.0
      %5500 = vmatpush.msra.mxu0 0.0
      %5501 = vmatpush.msra.mxu0 0.0
      %5502 = vmatpush.msra.mxu0 0.0
      %5503 = vmatpush.msra.mxu0 0.0
      %5504 = vmatpush.msra.mxu0 0.0
      %5505 = vmatpush.msra.mxu0 0.0
      %5506 = vmatpush.msra.mxu0 0.0
      %5507 = vmatpush.msra.mxu0 0.0
      %5508 = vmatpush.msra.mxu0 %v5471
      %5509 = vmatpush.msra.mxu0 %v5470
      %5510 = vmatpush.msra.mxu0 %v5469
      %5511 = vmatpush.msra.mxu0 %v5468
      %5512 = vmatmul.f32.gmra.mxu0 %v5473
      %v5513 = vpop.f32.mrf.mxu0
      %v5514 = vadd.f32 0.0, %v5513
      %5515 = vmatmul.f32.gmra.mxu0 %v5476
      %v5516 = vpop.f32.mrf.mxu0
      %v5517 = vadd.f32 0.0, %v5516
      %5518 = vmatmul.f32.gmra.mxu0 %v5479
      %v5519 = vpop.f32.mrf.mxu0
      %v5520 = vadd.f32 0.0, %v5519
      %5521 = vmatmul.f32.gmra.mxu0 %v5482
      %v5522 = vpop.f32.mrf.mxu0
      %v5523 = vadd.f32 0.0, %v5522
      %5524 = vmatmul.f32.gmra.mxu0 %v5485
      %v5525 = vpop.f32.mrf.mxu0
      %v5526 = vadd.f32 0.0, %v5525
      %5527 = vmatmul.f32.gmra.mxu0 %v5488
      %v5528 = vpop.f32.mrf.mxu0
      %v5529 = vadd.f32 0.0, %v5528
      %5530 = vmatmul.f32.gmra.mxu0 %v5491
      %v5531 = vpop.f32.mrf.mxu0
      %v5532 = vadd.f32 0.0, %v5531
      %5533 = vmatmul.f32.gmra.mxu0 %v5494
      %v5534 = vpop.f32.mrf.mxu0
      %v5535 = vadd.f32 0.0, %v5534
      %5536 = vdwg.mxu0
      %v5537 = vadd.f32 %v5411, %v5514
      %v5538 = vadd.f32 %v5414, %v5517
      %v5539 = vadd.f32 %v5417, %v5520
      %v5540 = vadd.f32 %v5420, %v5523
      %v5541 = vadd.f32 %v5423, %v5526
      %v5542 = vadd.f32 %v5426, %v5529
      %v5543 = vadd.f32 %v5429, %v5532
      %v5544 = vadd.f32 %v5432, %v5535
      %v5545 = vrot.slane %v3645, 7
      %v5546 = vsel %vm3653, %v5291, %v5545
      %v5548 = vsel %vm797, %v5300, 0.0
      %v5549 = vsel %vm798, %v5282, 0.0
      %v5550 = vsel %vm799, %v5284, 0.0
      %v5551 = vsel %vm800, %v5286, 0.0
      %v5552 = vsel %vm801, %v5288, 0.0
      %v5553 = vsel %vm802, %v5290, 0.0
      %v5554 = vsel %vm803, %v5292, 0.0
      %v5555 = vsel %vm804, %v5546, 0.0
      %s5556 = scalar_lea.vmem %s20, 96
      %v5557 = vld [vmem:[%s5556] sm:$0xff]
      %v5558 = vld [vmem:[%s5556 + $0x8] sm:$0xff]
      %v5559 = vld [vmem:[%s5556 + $0x10] sm:$0xff]
      %v5560 = vld [vmem:[%s5556 + $0x18] sm:$0xff]
      %v5562 = vsel %vm815, %v5548, 0
      %v5565 = vsel %vm815, %v5549, 0
      %v5568 = vsel %vm815, %v5550, 0
      %v5571 = vsel %vm815, %v5551, 0
      %v5574 = vsel %vm815, %v5552, 0
      %v5577 = vsel %vm815, %v5553, 0
      %v5580 = vsel %vm815, %v5554, 0
      %v5583 = vsel %vm815, %v5555, 0
      %5585 = vmatpush.msra.mxu0 0.0
      %5586 = vmatpush.msra.mxu0 0.0
      %5587 = vmatpush.msra.mxu0 0.0
      %5588 = vmatpush.msra.mxu0 0.0
      %5589 = vmatpush.msra.mxu0 0.0
      %5590 = vmatpush.msra.mxu0 0.0
      %5591 = vmatpush.msra.mxu0 0.0
      %5592 = vmatpush.msra.mxu0 0.0
      %5593 = vmatpush.msra.mxu0 0.0
      %5594 = vmatpush.msra.mxu0 0.0
      %5595 = vmatpush.msra.mxu0 0.0
      %5596 = vmatpush.msra.mxu0 0.0
      %5597 = vmatpush.msra.mxu0 %v5560
      %5598 = vmatpush.msra.mxu0 %v5559
      %5599 = vmatpush.msra.mxu0 %v5558
      %5600 = vmatpush.msra.mxu0 %v5557
      %5601 = vmatmul.f32.gmra.mxu0 %v5562
      %v5602 = vpop.f32.mrf.mxu0
      %v5603 = vadd.f32 0.0, %v5602
      %5604 = vmatmul.f32.gmra.mxu0 %v5565
      %v5605 = vpop.f32.mrf.mxu0
      %v5606 = vadd.f32 0.0, %v5605
      %5607 = vmatmul.f32.gmra.mxu0 %v5568
      %v5608 = vpop.f32.mrf.mxu0
      %v5609 = vadd.f32 0.0, %v5608
      %5610 = vmatmul.f32.gmra.mxu0 %v5571
      %v5611 = vpop.f32.mrf.mxu0
      %v5612 = vadd.f32 0.0, %v5611
      %5613 = vmatmul.f32.gmra.mxu0 %v5574
      %v5614 = vpop.f32.mrf.mxu0
      %v5615 = vadd.f32 0.0, %v5614
      %5616 = vmatmul.f32.gmra.mxu0 %v5577
      %v5617 = vpop.f32.mrf.mxu0
      %v5618 = vadd.f32 0.0, %v5617
      %5619 = vmatmul.f32.gmra.mxu0 %v5580
      %v5620 = vpop.f32.mrf.mxu0
      %v5621 = vadd.f32 0.0, %v5620
      %5622 = vmatmul.f32.gmra.mxu0 %v5583
      %v5623 = vpop.f32.mrf.mxu0
      %v5624 = vadd.f32 0.0, %v5623
      %5625 = vdwg.mxu0
      %v5626 = vadd.f32 %v5537, %v5603
      %v5627 = vadd.f32 %v5538, %v5606
      %v5628 = vadd.f32 %v5539, %v5609
      %v5629 = vadd.f32 %v5540, %v5612
      %v5630 = vadd.f32 %v5541, %v5615
      %v5631 = vadd.f32 %v5542, %v5618
      %v5632 = vadd.f32 %v5543, %v5621
      %v5633 = vadd.f32 %v5544, %v5624
      %s5634 = scalar_lea.vmem %s20, 128
      %v5635 = vld [vmem:[%s5634] sm:$0xff]
      %v5636 = vld [vmem:[%s5634 + $0x8] sm:$0xff]
      %v5637 = vld [vmem:[%s5634 + $0x10] sm:$0xff]
      %v5638 = vld [vmem:[%s5634 + $0x18] sm:$0xff]
      %v5639 = vsel %vm815, %v3645, 0
      %5641 = vmatpush.msra.mxu0 0.0
      %5642 = vmatpush.msra.mxu0 0.0
      %5643 = vmatpush.msra.mxu0 0.0
      %5644 = vmatpush.msra.mxu0 0.0
      %5645 = vmatpush.msra.mxu0 0.0
      %5646 = vmatpush.msra.mxu0 0.0
      %5647 = vmatpush.msra.mxu0 0.0
      %5648 = vmatpush.msra.mxu0 0.0
      %5649 = vmatpush.msra.mxu0 0.0
      %5650 = vmatpush.msra.mxu0 0.0
      %5651 = vmatpush.msra.mxu0 0.0
      %5652 = vmatpush.msra.mxu0 0.0
      %5653 = vmatpush.msra.mxu0 %v5638
      %5654 = vmatpush.msra.mxu0 %v5637
      %5655 = vmatpush.msra.mxu0 %v5636
      %5656 = vmatpush.msra.mxu0 %v5635
      %5657 = vmatmul.f32.gmra.mxu0 %v5317
      %v5658 = vpop.f32.mrf.mxu0
      %v5659 = vadd.f32 0.0, %v5658
      %5660 = vmatmul.f32.gmra.mxu0 %v5319
      %v5661 = vpop.f32.mrf.mxu0
      %v5662 = vadd.f32 0.0, %v5661
      %5663 = vmatmul.f32.gmra.mxu0 %v5321
      %v5664 = vpop.f32.mrf.mxu0
      %v5665 = vadd.f32 0.0, %v5664
      %5666 = vmatmul.f32.gmra.mxu0 %v5323
      %v5667 = vpop.f32.mrf.mxu0
      %v5668 = vadd.f32 0.0, %v5667
      %5669 = vmatmul.f32.gmra.mxu0 %v5325
      %v5670 = vpop.f32.mrf.mxu0
      %v5671 = vadd.f32 0.0, %v5670
      %5672 = vmatmul.f32.gmra.mxu0 %v5327
      %v5673 = vpop.f32.mrf.mxu0
      %v5674 = vadd.f32 0.0, %v5673
      %5675 = vmatmul.f32.gmra.mxu0 %v5329
      %v5676 = vpop.f32.mrf.mxu0
      %v5677 = vadd.f32 0.0, %v5676
      %5678 = vmatmul.f32.gmra.mxu0 %v5639
      %v5679 = vpop.f32.mrf.mxu0
      %v5680 = vadd.f32 0.0, %v5679
      %5681 = vdwg.mxu0
      %v5682 = vadd.f32 %v5626, %v5659
      %v5683 = vadd.f32 %v5627, %v5662
      %v5684 = vadd.f32 %v5628, %v5665
      %v5685 = vadd.f32 %v5629, %v5668
      %v5686 = vadd.f32 %v5630, %v5671
      %v5687 = vadd.f32 %v5631, %v5674
      %v5688 = vadd.f32 %v5632, %v5677
      %v5689 = vadd.f32 %v5633, %v5680
      %v5691 = vsel %vm3812, %v5448, 0.0
      %v5692 = vsel %vm805, %v5437, 0.0
      %v5693 = vsel %vm806, %v5439, 0.0
      %v5694 = vsel %vm807, %v5441, 0.0
      %v5695 = vsel %vm808, %v5443, 0.0
      %v5696 = vsel %vm809, %v5445, 0.0
      %v5697 = vsel %vm810, %v5447, 0.0
      %v5698 = vsel %vm811, %v5449, 0.0
      %v5699 = vsel %vm812, %v5691, 0.0
      %s5700 = scalar_lea.vmem %s20, 160
      %v5701 = vld [vmem:[%s5700] sm:$0xff]
      %v5702 = vld [vmem:[%s5700 + $0x8] sm:$0xff]
      %v5703 = vld [vmem:[%s5700 + $0x10] sm:$0xff]
      %v5704 = vld [vmem:[%s5700 + $0x18] sm:$0xff]
      %v5706 = vsel %vm815, %v5692, 0
      %v5709 = vsel %vm815, %v5693, 0
      %v5712 = vsel %vm815, %v5694, 0
      %v5715 = vsel %vm815, %v5695, 0
      %v5718 = vsel %vm815, %v5696, 0
      %v5721 = vsel %vm815, %v5697, 0
      %v5724 = vsel %vm815, %v5698, 0
      %v5727 = vsel %vm815, %v5699, 0
      %5729 = vmatpush.msra.mxu0 0.0
      %5730 = vmatpush.msra.mxu0 0.0
      %5731 = vmatpush.msra.mxu0 0.0
      %5732 = vmatpush.msra.mxu0 0.0
      %5733 = vmatpush.msra.mxu0 0.0
      %5734 = vmatpush.msra.mxu0 0.0
      %5735 = vmatpush.msra.mxu0 0.0
      %5736 = vmatpush.msra.mxu0 0.0
      %5737 = vmatpush.msra.mxu0 0.0
      %5738 = vmatpush.msra.mxu0 0.0
      %5739 = vmatpush.msra.mxu0 0.0
      %5740 = vmatpush.msra.mxu0 0.0
      %5741 = vmatpush.msra.mxu0 %v5704
      %5742 = vmatpush.msra.mxu0 %v5703
      %5743 = vmatpush.msra.mxu0 %v5702
      %5744 = vmatpush.msra.mxu0 %v5701
      %5745 = vmatmul.f32.gmra.mxu0 %v5706
      %v5746 = vpop.f32.mrf.mxu0
      %v5747 = vadd.f32 0.0, %v5746
      %5748 = vmatmul.f32.gmra.mxu0 %v5709
      %v5749 = vpop.f32.mrf.mxu0
      %v5750 = vadd.f32 0.0, %v5749
      %5751 = vmatmul.f32.gmra.mxu0 %v5712
      %v5752 = vpop.f32.mrf.mxu0
      %v5753 = vadd.f32 0.0, %v5752
      %5754 = vmatmul.f32.gmra.mxu0 %v5715
      %v5755 = vpop.f32.mrf.mxu0
      %v5756 = vadd.f32 0.0, %v5755
      %5757 = vmatmul.f32.gmra.mxu0 %v5718
      %v5758 = vpop.f32.mrf.mxu0
      %v5759 = vadd.f32 0.0, %v5758
      %5760 = vmatmul.f32.gmra.mxu0 %v5721
      %v5761 = vpop.f32.mrf.mxu0
      %v5762 = vadd.f32 0.0, %v5761
      %5763 = vmatmul.f32.gmra.mxu0 %v5724
      %v5764 = vpop.f32.mrf.mxu0
      %v5765 = vadd.f32 0.0, %v5764
      %5766 = vmatmul.f32.gmra.mxu0 %v5727
      %v5767 = vpop.f32.mrf.mxu0
      %v5768 = vadd.f32 0.0, %v5767
      %5769 = vdwg.mxu0
      %v5770 = vadd.f32 %v5682, %v5747
      %v5771 = vadd.f32 %v5683, %v5750
      %v5772 = vadd.f32 %v5684, %v5753
      %v5773 = vadd.f32 %v5685, %v5756
      %v5774 = vadd.f32 %v5686, %v5759
      %v5775 = vadd.f32 %v5687, %v5762
      %v5776 = vadd.f32 %v5688, %v5765
      %v5777 = vadd.f32 %v5689, %v5768
      %v5779 = vsel %vm3653, %v5545, 0.0
      %v5780 = vsel %vm797, %v5282, 0.0
      %v5781 = vsel %vm798, %v5284, 0.0
      %v5782 = vsel %vm799, %v5286, 0.0
      %v5783 = vsel %vm800, %v5288, 0.0
      %v5784 = vsel %vm801, %v5290, 0.0
      %v5785 = vsel %vm802, %v5292, 0.0
      %v5786 = vsel %vm803, %v5546, 0.0
      %v5787 = vsel %vm804, %v5779, 0.0
      %s5788 = scalar_lea.vmem %s20, 192
      %v5789 = vld [vmem:[%s5788] sm:$0xff]
      %v5790 = vld [vmem:[%s5788 + $0x8] sm:$0xff]
      %v5791 = vld [vmem:[%s5788 + $0x10] sm:$0xff]
      %v5792 = vld [vmem:[%s5788 + $0x18] sm:$0xff]
      %v5794 = vsel %vm815, %v5780, 0
      %v5797 = vsel %vm815, %v5781, 0
      %v5800 = vsel %vm815, %v5782, 0
      %v5803 = vsel %vm815, %v5783, 0
      %v5806 = vsel %vm815, %v5784, 0
      %v5809 = vsel %vm815, %v5785, 0
      %v5812 = vsel %vm815, %v5786, 0
      %v5815 = vsel %vm815, %v5787, 0
      %5817 = vmatpush.msra.mxu0 0.0
      %5818 = vmatpush.msra.mxu0 0.0
      %5819 = vmatpush.msra.mxu0 0.0
      %5820 = vmatpush.msra.mxu0 0.0
      %5821 = vmatpush.msra.mxu0 0.0
      %5822 = vmatpush.msra.mxu0 0.0
      %5823 = vmatpush.msra.mxu0 0.0
      %5824 = vmatpush.msra.mxu0 0.0
      %5825 = vmatpush.msra.mxu0 0.0
      %5826 = vmatpush.msra.mxu0 0.0
      %5827 = vmatpush.msra.mxu0 0.0
      %5828 = vmatpush.msra.mxu0 0.0
      %5829 = vmatpush.msra.mxu0 %v5792
      %5830 = vmatpush.msra.mxu0 %v5791
      %5831 = vmatpush.msra.mxu0 %v5790
      %5832 = vmatpush.msra.mxu0 %v5789
      %5833 = vmatmul.f32.gmra.mxu0 %v5794
      %v5834 = vpop.f32.mrf.mxu0
      %v5835 = vadd.f32 0.0, %v5834
      %5836 = vmatmul.f32.gmra.mxu0 %v5797
      %v5837 = vpop.f32.mrf.mxu0
      %v5838 = vadd.f32 0.0, %v5837
      %5839 = vmatmul.f32.gmra.mxu0 %v5800
      %v5840 = vpop.f32.mrf.mxu0
      %v5841 = vadd.f32 0.0, %v5840
      %5842 = vmatmul.f32.gmra.mxu0 %v5803
      %v5843 = vpop.f32.mrf.mxu0
      %v5844 = vadd.f32 0.0, %v5843
      %5845 = vmatmul.f32.gmra.mxu0 %v5806
      %v5846 = vpop.f32.mrf.mxu0
      %v5847 = vadd.f32 0.0, %v5846
      %5848 = vmatmul.f32.gmra.mxu0 %v5809
      %v5849 = vpop.f32.mrf.mxu0
      %v5850 = vadd.f32 0.0, %v5849
      %5851 = vmatmul.f32.gmra.mxu0 %v5812
      %v5852 = vpop.f32.mrf.mxu0
      %v5853 = vadd.f32 0.0, %v5852
      %5854 = vmatmul.f32.gmra.mxu0 %v5815
      %v5855 = vpop.f32.mrf.mxu0
      %v5856 = vadd.f32 0.0, %v5855
      %5857 = vdwg.mxu0
      %v5858 = vadd.f32 %v5770, %v5835
      %v5859 = vadd.f32 %v5771, %v5838
      %v5860 = vadd.f32 %v5772, %v5841
      %v5861 = vadd.f32 %v5773, %v5844
      %v5862 = vadd.f32 %v5774, %v5847
      %v5863 = vadd.f32 %v5775, %v5850
      %v5864 = vadd.f32 %v5776, %v5853
      %v5865 = vadd.f32 %v5777, %v5856
      %s5866 = scalar_lea.vmem %s20, 224
      %v5867 = vld [vmem:[%s5866] sm:$0xff]
      %v5868 = vld [vmem:[%s5866 + $0x8] sm:$0xff]
      %v5869 = vld [vmem:[%s5866 + $0x10] sm:$0xff]
      %v5870 = vld [vmem:[%s5866 + $0x18] sm:$0xff]
      %5871 = vmatpush.msra.mxu0 0.0
      %5872 = vmatpush.msra.mxu0 0.0
      %5873 = vmatpush.msra.mxu0 0.0
      %5874 = vmatpush.msra.mxu0 0.0
      %5875 = vmatpush.msra.mxu0 0.0
      %5876 = vmatpush.msra.mxu0 0.0
      %5877 = vmatpush.msra.mxu0 0.0
      %5878 = vmatpush.msra.mxu0 0.0
      %5879 = vmatpush.msra.mxu0 0.0
      %5880 = vmatpush.msra.mxu0 0.0
      %5881 = vmatpush.msra.mxu0 0.0
      %5882 = vmatpush.msra.mxu0 0.0
      %5883 = vmatpush.msra.mxu0 %v5870
      %5884 = vmatpush.msra.mxu0 %v5869
      %5885 = vmatpush.msra.mxu0 %v5868
      %5886 = vmatpush.msra.mxu0 %v5867
      %5887 = vmatmul.f32.gmra.mxu0 %v5319
      %v5888 = vpop.f32.mrf.mxu0
      %v5889 = vadd.f32 0.0, %v5888
      %5890 = vmatmul.f32.gmra.mxu0 %v5321
      %v5891 = vpop.f32.mrf.mxu0
      %v5892 = vadd.f32 0.0, %v5891
      %5893 = vmatmul.f32.gmra.mxu0 %v5323
      %v5894 = vpop.f32.mrf.mxu0
      %v5895 = vadd.f32 0.0, %v5894
      %5896 = vmatmul.f32.gmra.mxu0 %v5325
      %v5897 = vpop.f32.mrf.mxu0
      %v5898 = vadd.f32 0.0, %v5897
      %5899 = vmatmul.f32.gmra.mxu0 %v5327
      %v5900 = vpop.f32.mrf.mxu0
      %v5901 = vadd.f32 0.0, %v5900
      %5902 = vmatmul.f32.gmra.mxu0 %v5329
      %v5903 = vpop.f32.mrf.mxu0
      %v5904 = vadd.f32 0.0, %v5903
      %5905 = vmatmul.f32.gmra.mxu0 %v5639
      %v5906 = vpop.f32.mrf.mxu0
      %v5907 = vadd.f32 0.0, %v5906
      %5908 = vmatmul.f32.gmra.mxu0 %v3692
      %v5909 = vpop.f32.mrf.mxu0
      %v5910 = vadd.f32 0.0, %v5909
      %5911 = vdwg.mxu0
      %v5912 = vadd.f32 %v5858, %v5889
      %v5913 = vadd.f32 %v5859, %v5892
      %v5914 = vadd.f32 %v5860, %v5895
      %v5915 = vadd.f32 %v5861, %v5898
      %v5916 = vadd.f32 %v5862, %v5901
      %v5917 = vadd.f32 %v5863, %v5904
      %v5918 = vadd.f32 %v5864, %v5907
      %v5919 = vadd.f32 %v5865, %v5910
      %v5920 = vsel %vm805, %v5439, 0.0
      %v5921 = vsel %vm806, %v5441, 0.0
      %v5922 = vsel %vm807, %v5443, 0.0
      %v5923 = vsel %vm808, %v5445, 0.0
      %v5924 = vsel %vm809, %v5447, 0.0
      %v5925 = vsel %vm810, %v5449, 0.0
      %v5926 = vsel %vm811, %v5691, 0.0
      %s5927 = scalar_lea.vmem %s20, 256
      %v5928 = vld [vmem:[%s5927] sm:$0xff]
      %v5929 = vld [vmem:[%s5927 + $0x8] sm:$0xff]
      %v5930 = vld [vmem:[%s5927 + $0x10] sm:$0xff]
      %v5931 = vld [vmem:[%s5927 + $0x18] sm:$0xff]
      %v5933 = vsel %vm815, %v5920, 0
      %v5936 = vsel %vm815, %v5921, 0
      %v5939 = vsel %vm815, %v5922, 0
      %v5942 = vsel %vm815, %v5923, 0
      %v5945 = vsel %vm815, %v5924, 0
      %v5948 = vsel %vm815, %v5925, 0
      %v5951 = vsel %vm815, %v5926, 0
      %5953 = vmatpush.msra.mxu0 0.0
      %5954 = vmatpush.msra.mxu0 0.0
      %5955 = vmatpush.msra.mxu0 0.0
      %5956 = vmatpush.msra.mxu0 0.0
      %5957 = vmatpush.msra.mxu0 0.0
      %5958 = vmatpush.msra.mxu0 0.0
      %5959 = vmatpush.msra.mxu0 0.0
      %5960 = vmatpush.msra.mxu0 0.0
      %5961 = vmatpush.msra.mxu0 0.0
      %5962 = vmatpush.msra.mxu0 0.0
      %5963 = vmatpush.msra.mxu0 0.0
      %5964 = vmatpush.msra.mxu0 0.0
      %5965 = vmatpush.msra.mxu0 %v5931
      %5966 = vmatpush.msra.mxu0 %v5930
      %5967 = vmatpush.msra.mxu0 %v5929
      %5968 = vmatpush.msra.mxu0 %v5928
      %5969 = vmatmul.f32.gmra.mxu0 %v5933
      %v5970 = vpop.f32.mrf.mxu0
      %v5971 = vadd.f32 0.0, %v5970
      %5972 = vmatmul.f32.gmra.mxu0 %v5936
      %v5973 = vpop.f32.mrf.mxu0
      %v5974 = vadd.f32 0.0, %v5973
      %5975 = vmatmul.f32.gmra.mxu0 %v5939
      %v5976 = vpop.f32.mrf.mxu0
      %v5977 = vadd.f32 0.0, %v5976
      %5978 = vmatmul.f32.gmra.mxu0 %v5942
      %v5979 = vpop.f32.mrf.mxu0
      %v5980 = vadd.f32 0.0, %v5979
      %5981 = vmatmul.f32.gmra.mxu0 %v5945
      %v5982 = vpop.f32.mrf.mxu0
      %v5983 = vadd.f32 0.0, %v5982
      %5984 = vmatmul.f32.gmra.mxu0 %v5948
      %v5985 = vpop.f32.mrf.mxu0
      %v5986 = vadd.f32 0.0, %v5985
      %5987 = vmatmul.f32.gmra.mxu0 %v5951
      %v5988 = vpop.f32.mrf.mxu0
      %v5989 = vadd.f32 0.0, %v5988
      %5990 = vmatmul.f32.gmra.mxu0 %v3692
      %v5991 = vpop.f32.mrf.mxu0
      %v5992 = vadd.f32 0.0, %v5991
      %5993 = vdwg.mxu0
      %v5994 = vadd.f32 %v5912, %v5971
      %v5995 = vadd.f32 %v5913, %v5974
      %v5996 = vadd.f32 %v5914, %v5977
      %v5997 = vadd.f32 %v5915, %v5980
      %v5998 = vadd.f32 %v5916, %v5983
      %v5999 = vadd.f32 %v5917, %v5986
      %v6000 = vadd.f32 %v5918, %v5989
      %v6001 = vadd.f32 %v5919, %v5992
      %v6009 = vrot.slane %v5265, 7
      %v6010 = vrot.slane %v5266, 7
      %v6011 = vsel %vm3653, %v6009, %v6010
      %v6012 = vrot.slane %v5267, 7
      %v6013 = vsel %vm3653, %v6010, %v6012
      %v6014 = vrot.slane %v5268, 7
      %v6015 = vsel %vm3653, %v6012, %v6014
      %v6016 = vrot.slane %v5269, 7
      %v6017 = vsel %vm3653, %v6014, %v6016
      %v6018 = vrot.slane %v5270, 7
      %v6019 = vsel %vm3653, %v6016, %v6018
      %v6020 = vrot.slane %v5271, 7
      %v6021 = vsel %vm3653, %v6018, %v6020
      %v6029 = vsel %vm3653, 0.0, %v6009
      %v6030 = vsel %vm798, %v6029, 0.0
      %v6031 = vsel %vm799, %v6011, 0.0
      %v6032 = vsel %vm800, %v6013, 0.0
      %v6033 = vsel %vm801, %v6015, 0.0
      %v6034 = vsel %vm802, %v6017, 0.0
      %v6035 = vsel %vm803, %v6019, 0.0
      %v6036 = vsel %vm804, %v6021, 0.0
      %v6037 = vld [vmem:[%s21] sm:$0xff]
      %v6038 = vld [vmem:[%s21 + $0x8] sm:$0xff]
      %v6039 = vld [vmem:[%s21 + $0x10] sm:$0xff]
      %v6040 = vld [vmem:[%s21 + $0x18] sm:$0xff]
      %s6041 = scalar_lea.vmem %s21, 32
      %v6042 = vld [vmem:[%s6041] sm:$0xff]
      %v6043 = vld [vmem:[%s6041 + $0x8] sm:$0xff]
      %v6044 = vld [vmem:[%s6041 + $0x10] sm:$0xff]
      %v6045 = vld [vmem:[%s6041 + $0x18] sm:$0xff]
      %v6046 = vsel %vm815, %v5265, 0
      %v6048 = vsel %vm815, %v5266, 0
      %v6050 = vsel %vm815, %v5267, 0
      %v6052 = vsel %vm815, %v5268, 0
      %v6054 = vsel %vm815, %v5269, 0
      %v6056 = vsel %vm815, %v5270, 0
      %v6058 = vsel %vm815, %v5271, 0
      %6060 = vmatpush.msra.mxu0 0.0
      %6061 = vmatpush.msra.mxu0 0.0
      %6062 = vmatpush.msra.mxu0 0.0
      %6063 = vmatpush.msra.mxu0 0.0
      %6064 = vmatpush.msra.mxu0 0.0
      %6065 = vmatpush.msra.mxu0 0.0
      %6066 = vmatpush.msra.mxu0 0.0
      %6067 = vmatpush.msra.mxu0 0.0
      %6068 = vmatpush.msra.mxu0 0.0
      %6069 = vmatpush.msra.mxu0 0.0
      %6070 = vmatpush.msra.mxu0 0.0
      %6071 = vmatpush.msra.mxu0 0.0
      %6072 = vmatpush.msra.mxu0 %v6045
      %6073 = vmatpush.msra.mxu0 %v6044
      %6074 = vmatpush.msra.mxu0 %v6043
      %6075 = vmatpush.msra.mxu0 %v6042
      %6076 = vmatmul.f32.gmra.mxu0 %v3692
      %v6077 = vpop.f32.mrf.mxu0
      %v6078 = vadd.f32 0.0, %v6077
      %6079 = vmatmul.f32.gmra.mxu0 %v6046
      %v6080 = vpop.f32.mrf.mxu0
      %v6081 = vadd.f32 0.0, %v6080
      %6082 = vmatmul.f32.gmra.mxu0 %v6048
      %v6083 = vpop.f32.mrf.mxu0
      %v6084 = vadd.f32 0.0, %v6083
      %6085 = vmatmul.f32.gmra.mxu0 %v6050
      %v6086 = vpop.f32.mrf.mxu0
      %v6087 = vadd.f32 0.0, %v6086
      %6088 = vmatmul.f32.gmra.mxu0 %v6052
      %v6089 = vpop.f32.mrf.mxu0
      %v6090 = vadd.f32 0.0, %v6089
      %6091 = vmatmul.f32.gmra.mxu0 %v6054
      %v6092 = vpop.f32.mrf.mxu0
      %v6093 = vadd.f32 0.0, %v6092
      %6094 = vmatmul.f32.gmra.mxu0 %v6056
      %v6095 = vpop.f32.mrf.mxu0
      %v6096 = vadd.f32 0.0, %v6095
      %6097 = vmatmul.f32.gmra.mxu0 %v6058
      %v6098 = vpop.f32.mrf.mxu0
      %v6099 = vadd.f32 0.0, %v6098
      %6100 = vdwg.mxu0
      %v6102 = vsel %vm815, %v6030, 0
      %v6105 = vsel %vm815, %v6031, 0
      %v6108 = vsel %vm815, %v6032, 0
      %v6111 = vsel %vm815, %v6033, 0
      %v6114 = vsel %vm815, %v6034, 0
      %v6117 = vsel %vm815, %v6035, 0
      %v6120 = vsel %vm815, %v6036, 0
      %6122 = vmatpush.msra.mxu0 0.0
      %6123 = vmatpush.msra.mxu0 0.0
      %6124 = vmatpush.msra.mxu0 0.0
      %6125 = vmatpush.msra.mxu0 0.0
      %6126 = vmatpush.msra.mxu0 0.0
      %6127 = vmatpush.msra.mxu0 0.0
      %6128 = vmatpush.msra.mxu0 0.0
      %6129 = vmatpush.msra.mxu0 0.0
      %6130 = vmatpush.msra.mxu0 0.0
      %6131 = vmatpush.msra.mxu0 0.0
      %6132 = vmatpush.msra.mxu0 0.0
      %6133 = vmatpush.msra.mxu0 0.0
      %6134 = vmatpush.msra.mxu0 %v6040
      %6135 = vmatpush.msra.mxu0 %v6039
      %6136 = vmatpush.msra.mxu0 %v6038
      %6137 = vmatpush.msra.mxu0 %v6037
      %6138 = vmatmul.f32.gmra.mxu0 %v3692
      %v6139 = vpop.f32.mrf.mxu0
      %v6140 = vadd.f32 %v6078, %v6139
      %6141 = vmatmul.f32.gmra.mxu0 %v6102
      %v6142 = vpop.f32.mrf.mxu0
      %v6143 = vadd.f32 %v6081, %v6142
      %6144 = vmatmul.f32.gmra.mxu0 %v6105
      %v6145 = vpop.f32.mrf.mxu0
      %v6146 = vadd.f32 %v6084, %v6145
      %6147 = vmatmul.f32.gmra.mxu0 %v6108
      %v6148 = vpop.f32.mrf.mxu0
      %v6149 = vadd.f32 %v6087, %v6148
      %6150 = vmatmul.f32.gmra.mxu0 %v6111
      %v6151 = vpop.f32.mrf.mxu0
      %v6152 = vadd.f32 %v6090, %v6151
      %6153 = vmatmul.f32.gmra.mxu0 %v6114
      %v6154 = vpop.f32.mrf.mxu0
      %v6155 = vadd.f32 %v6093, %v6154
      %6156 = vmatmul.f32.gmra.mxu0 %v6117
      %v6157 = vpop.f32.mrf.mxu0
      %v6158 = vadd.f32 %v6096, %v6157
      %6159 = vmatmul.f32.gmra.mxu0 %v6120
      %v6160 = vpop.f32.mrf.mxu0
      %v6161 = vadd.f32 %v6099, %v6160
      %6162 = vdwg.mxu0
      %v6164 = vrot.slane %v5265, 1
      %v6165 = vrot.slane %v5266, 1
      %v6166 = vsel %vm3812, %v6164, %v6165
      %v6167 = vrot.slane %v5267, 1
      %v6168 = vsel %vm3812, %v6165, %v6167
      %v6169 = vrot.slane %v5268, 1
      %v6170 = vsel %vm3812, %v6167, %v6169
      %v6171 = vrot.slane %v5269, 1
      %v6172 = vsel %vm3812, %v6169, %v6171
      %v6173 = vrot.slane %v5270, 1
      %v6174 = vsel %vm3812, %v6171, %v6173
      %v6175 = vrot.slane %v5271, 1
      %v6176 = vsel %vm3812, %v6173, %v6175
      %v6177 = vrot.slane %v5272, 1
      %v6178 = vsel %vm3812, %v6175, %v6177
      %v6187 = vsel %vm3812, 0.0, %v6164
      %v6188 = vsel %vm805, %v6187, 0.0
      %v6189 = vsel %vm806, %v6166, 0.0
      %v6190 = vsel %vm807, %v6168, 0.0
      %v6191 = vsel %vm808, %v6170, 0.0
      %v6192 = vsel %vm809, %v6172, 0.0
      %v6193 = vsel %vm810, %v6174, 0.0
      %v6194 = vsel %vm811, %v6176, 0.0
      %v6195 = vsel %vm812, %v6178, 0.0
      %s6196 = scalar_lea.vmem %s21, 64
      %v6197 = vld [vmem:[%s6196] sm:$0xff]
      %v6198 = vld [vmem:[%s6196 + $0x8] sm:$0xff]
      %v6199 = vld [vmem:[%s6196 + $0x10] sm:$0xff]
      %v6200 = vld [vmem:[%s6196 + $0x18] sm:$0xff]
      %v6202 = vsel %vm815, %v6188, 0
      %v6205 = vsel %vm815, %v6189, 0
      %v6208 = vsel %vm815, %v6190, 0
      %v6211 = vsel %vm815, %v6191, 0
      %v6214 = vsel %vm815, %v6192, 0
      %v6217 = vsel %vm815, %v6193, 0
      %v6220 = vsel %vm815, %v6194, 0
      %v6223 = vsel %vm815, %v6195, 0
      %6225 = vmatpush.msra.mxu0 0.0
      %6226 = vmatpush.msra.mxu0 0.0
      %6227 = vmatpush.msra.mxu0 0.0
      %6228 = vmatpush.msra.mxu0 0.0
      %6229 = vmatpush.msra.mxu0 0.0
      %6230 = vmatpush.msra.mxu0 0.0
      %6231 = vmatpush.msra.mxu0 0.0
      %6232 = vmatpush.msra.mxu0 0.0
      %6233 = vmatpush.msra.mxu0 0.0
      %6234 = vmatpush.msra.mxu0 0.0
      %6235 = vmatpush.msra.mxu0 0.0
      %6236 = vmatpush.msra.mxu0 0.0
      %6237 = vmatpush.msra.mxu0 %v6200
      %6238 = vmatpush.msra.mxu0 %v6199
      %6239 = vmatpush.msra.mxu0 %v6198
      %6240 = vmatpush.msra.mxu0 %v6197
      %6241 = vmatmul.f32.gmra.mxu0 %v6202
      %v6242 = vpop.f32.mrf.mxu0
      %v6243 = vadd.f32 0.0, %v6242
      %6244 = vmatmul.f32.gmra.mxu0 %v6205
      %v6245 = vpop.f32.mrf.mxu0
      %v6246 = vadd.f32 0.0, %v6245
      %6247 = vmatmul.f32.gmra.mxu0 %v6208
      %v6248 = vpop.f32.mrf.mxu0
      %v6249 = vadd.f32 0.0, %v6248
      %6250 = vmatmul.f32.gmra.mxu0 %v6211
      %v6251 = vpop.f32.mrf.mxu0
      %v6252 = vadd.f32 0.0, %v6251
      %6253 = vmatmul.f32.gmra.mxu0 %v6214
      %v6254 = vpop.f32.mrf.mxu0
      %v6255 = vadd.f32 0.0, %v6254
      %6256 = vmatmul.f32.gmra.mxu0 %v6217
      %v6257 = vpop.f32.mrf.mxu0
      %v6258 = vadd.f32 0.0, %v6257
      %6259 = vmatmul.f32.gmra.mxu0 %v6220
      %v6260 = vpop.f32.mrf.mxu0
      %v6261 = vadd.f32 0.0, %v6260
      %6262 = vmatmul.f32.gmra.mxu0 %v6223
      %v6263 = vpop.f32.mrf.mxu0
      %v6264 = vadd.f32 0.0, %v6263
      %6265 = vdwg.mxu0
      %v6266 = vadd.f32 %v6140, %v6243
      %v6267 = vadd.f32 %v6143, %v6246
      %v6268 = vadd.f32 %v6146, %v6249
      %v6269 = vadd.f32 %v6149, %v6252
      %v6270 = vadd.f32 %v6152, %v6255
      %v6271 = vadd.f32 %v6155, %v6258
      %v6272 = vadd.f32 %v6158, %v6261
      %v6273 = vadd.f32 %v6161, %v6264
      %v6274 = vrot.slane %v5272, 7
      %v6275 = vsel %vm3653, %v6020, %v6274
      %v6277 = vsel %vm797, %v6029, 0.0
      %v6278 = vsel %vm798, %v6011, 0.0
      %v6279 = vsel %vm799, %v6013, 0.0
      %v6280 = vsel %vm800, %v6015, 0.0
      %v6281 = vsel %vm801, %v6017, 0.0
      %v6282 = vsel %vm802, %v6019, 0.0
      %v6283 = vsel %vm803, %v6021, 0.0
      %v6284 = vsel %vm804, %v6275, 0.0
      %s6285 = scalar_lea.vmem %s21, 96
      %v6286 = vld [vmem:[%s6285] sm:$0xff]
      %v6287 = vld [vmem:[%s6285 + $0x8] sm:$0xff]
      %v6288 = vld [vmem:[%s6285 + $0x10] sm:$0xff]
      %v6289 = vld [vmem:[%s6285 + $0x18] sm:$0xff]
      %v6291 = vsel %vm815, %v6277, 0
      %v6294 = vsel %vm815, %v6278, 0
      %v6297 = vsel %vm815, %v6279, 0
      %v6300 = vsel %vm815, %v6280, 0
      %v6303 = vsel %vm815, %v6281, 0
      %v6306 = vsel %vm815, %v6282, 0
      %v6309 = vsel %vm815, %v6283, 0
      %v6312 = vsel %vm815, %v6284, 0
      %6314 = vmatpush.msra.mxu0 0.0
      %6315 = vmatpush.msra.mxu0 0.0
      %6316 = vmatpush.msra.mxu0 0.0
      %6317 = vmatpush.msra.mxu0 0.0
      %6318 = vmatpush.msra.mxu0 0.0
      %6319 = vmatpush.msra.mxu0 0.0
      %6320 = vmatpush.msra.mxu0 0.0
      %6321 = vmatpush.msra.mxu0 0.0
      %6322 = vmatpush.msra.mxu0 0.0
      %6323 = vmatpush.msra.mxu0 0.0
      %6324 = vmatpush.msra.mxu0 0.0
      %6325 = vmatpush.msra.mxu0 0.0
      %6326 = vmatpush.msra.mxu0 %v6289
      %6327 = vmatpush.msra.mxu0 %v6288
      %6328 = vmatpush.msra.mxu0 %v6287
      %6329 = vmatpush.msra.mxu0 %v6286
      %6330 = vmatmul.f32.gmra.mxu0 %v6291
      %v6331 = vpop.f32.mrf.mxu0
      %v6332 = vadd.f32 0.0, %v6331
      %6333 = vmatmul.f32.gmra.mxu0 %v6294
      %v6334 = vpop.f32.mrf.mxu0
      %v6335 = vadd.f32 0.0, %v6334
      %6336 = vmatmul.f32.gmra.mxu0 %v6297
      %v6337 = vpop.f32.mrf.mxu0
      %v6338 = vadd.f32 0.0, %v6337
      %6339 = vmatmul.f32.gmra.mxu0 %v6300
      %v6340 = vpop.f32.mrf.mxu0
      %v6341 = vadd.f32 0.0, %v6340
      %6342 = vmatmul.f32.gmra.mxu0 %v6303
      %v6343 = vpop.f32.mrf.mxu0
      %v6344 = vadd.f32 0.0, %v6343
      %6345 = vmatmul.f32.gmra.mxu0 %v6306
      %v6346 = vpop.f32.mrf.mxu0
      %v6347 = vadd.f32 0.0, %v6346
      %6348 = vmatmul.f32.gmra.mxu0 %v6309
      %v6349 = vpop.f32.mrf.mxu0
      %v6350 = vadd.f32 0.0, %v6349
      %6351 = vmatmul.f32.gmra.mxu0 %v6312
      %v6352 = vpop.f32.mrf.mxu0
      %v6353 = vadd.f32 0.0, %v6352
      %6354 = vdwg.mxu0
      %v6355 = vadd.f32 %v6266, %v6332
      %v6356 = vadd.f32 %v6267, %v6335
      %v6357 = vadd.f32 %v6268, %v6338
      %v6358 = vadd.f32 %v6269, %v6341
      %v6359 = vadd.f32 %v6270, %v6344
      %v6360 = vadd.f32 %v6271, %v6347
      %v6361 = vadd.f32 %v6272, %v6350
      %v6362 = vadd.f32 %v6273, %v6353
      %s6363 = scalar_lea.vmem %s21, 128
      %v6364 = vld [vmem:[%s6363] sm:$0xff]
      %v6365 = vld [vmem:[%s6363 + $0x8] sm:$0xff]
      %v6366 = vld [vmem:[%s6363 + $0x10] sm:$0xff]
      %v6367 = vld [vmem:[%s6363 + $0x18] sm:$0xff]
      %v6368 = vsel %vm815, %v5272, 0
      %6370 = vmatpush.msra.mxu0 0.0
      %6371 = vmatpush.msra.mxu0 0.0
      %6372 = vmatpush.msra.mxu0 0.0
      %6373 = vmatpush.msra.mxu0 0.0
      %6374 = vmatpush.msra.mxu0 0.0
      %6375 = vmatpush.msra.mxu0 0.0
      %6376 = vmatpush.msra.mxu0 0.0
      %6377 = vmatpush.msra.mxu0 0.0
      %6378 = vmatpush.msra.mxu0 0.0
      %6379 = vmatpush.msra.mxu0 0.0
      %6380 = vmatpush.msra.mxu0 0.0
      %6381 = vmatpush.msra.mxu0 0.0
      %6382 = vmatpush.msra.mxu0 %v6367
      %6383 = vmatpush.msra.mxu0 %v6366
      %6384 = vmatpush.msra.mxu0 %v6365
      %6385 = vmatpush.msra.mxu0 %v6364
      %6386 = vmatmul.f32.gmra.mxu0 %v6046
      %v6387 = vpop.f32.mrf.mxu0
      %v6388 = vadd.f32 0.0, %v6387
      %6389 = vmatmul.f32.gmra.mxu0 %v6048
      %v6390 = vpop.f32.mrf.mxu0
      %v6391 = vadd.f32 0.0, %v6390
      %6392 = vmatmul.f32.gmra.mxu0 %v6050
      %v6393 = vpop.f32.mrf.mxu0
      %v6394 = vadd.f32 0.0, %v6393
      %6395 = vmatmul.f32.gmra.mxu0 %v6052
      %v6396 = vpop.f32.mrf.mxu0
      %v6397 = vadd.f32 0.0, %v6396
      %6398 = vmatmul.f32.gmra.mxu0 %v6054
      %v6399 = vpop.f32.mrf.mxu0
      %v6400 = vadd.f32 0.0, %v6399
      %6401 = vmatmul.f32.gmra.mxu0 %v6056
      %v6402 = vpop.f32.mrf.mxu0
      %v6403 = vadd.f32 0.0, %v6402
      %6404 = vmatmul.f32.gmra.mxu0 %v6058
      %v6405 = vpop.f32.mrf.mxu0
      %v6406 = vadd.f32 0.0, %v6405
      %6407 = vmatmul.f32.gmra.mxu0 %v6368
      %v6408 = vpop.f32.mrf.mxu0
      %v6409 = vadd.f32 0.0, %v6408
      %6410 = vdwg.mxu0
      %v6411 = vadd.f32 %v6355, %v6388
      %v6412 = vadd.f32 %v6356, %v6391
      %v6413 = vadd.f32 %v6357, %v6394
      %v6414 = vadd.f32 %v6358, %v6397
      %v6415 = vadd.f32 %v6359, %v6400
      %v6416 = vadd.f32 %v6360, %v6403
      %v6417 = vadd.f32 %v6361, %v6406
      %v6418 = vadd.f32 %v6362, %v6409
      %v6420 = vsel %vm3812, %v6177, 0.0
      %v6421 = vsel %vm805, %v6166, 0.0
      %v6422 = vsel %vm806, %v6168, 0.0
      %v6423 = vsel %vm807, %v6170, 0.0
      %v6424 = vsel %vm808, %v6172, 0.0
      %v6425 = vsel %vm809, %v6174, 0.0
      %v6426 = vsel %vm810, %v6176, 0.0
      %v6427 = vsel %vm811, %v6178, 0.0
      %v6428 = vsel %vm812, %v6420, 0.0
      %s6429 = scalar_lea.vmem %s21, 160
      %v6430 = vld [vmem:[%s6429] sm:$0xff]
      %v6431 = vld [vmem:[%s6429 + $0x8] sm:$0xff]
      %v6432 = vld [vmem:[%s6429 + $0x10] sm:$0xff]
      %v6433 = vld [vmem:[%s6429 + $0x18] sm:$0xff]
      %v6435 = vsel %vm815, %v6421, 0
      %v6438 = vsel %vm815, %v6422, 0
      %v6441 = vsel %vm815, %v6423, 0
      %v6444 = vsel %vm815, %v6424, 0
      %v6447 = vsel %vm815, %v6425, 0
      %v6450 = vsel %vm815, %v6426, 0
      %v6453 = vsel %vm815, %v6427, 0
      %v6456 = vsel %vm815, %v6428, 0
      %6458 = vmatpush.msra.mxu0 0.0
      %6459 = vmatpush.msra.mxu0 0.0
      %6460 = vmatpush.msra.mxu0 0.0
      %6461 = vmatpush.msra.mxu0 0.0
      %6462 = vmatpush.msra.mxu0 0.0
      %6463 = vmatpush.msra.mxu0 0.0
      %6464 = vmatpush.msra.mxu0 0.0
      %6465 = vmatpush.msra.mxu0 0.0
      %6466 = vmatpush.msra.mxu0 0.0
      %6467 = vmatpush.msra.mxu0 0.0
      %6468 = vmatpush.msra.mxu0 0.0
      %6469 = vmatpush.msra.mxu0 0.0
      %6470 = vmatpush.msra.mxu0 %v6433
      %6471 = vmatpush.msra.mxu0 %v6432
      %6472 = vmatpush.msra.mxu0 %v6431
      %6473 = vmatpush.msra.mxu0 %v6430
      %6474 = vmatmul.f32.gmra.mxu0 %v6435
      %v6475 = vpop.f32.mrf.mxu0
      %v6476 = vadd.f32 0.0, %v6475
      %6477 = vmatmul.f32.gmra.mxu0 %v6438
      %v6478 = vpop.f32.mrf.mxu0
      %v6479 = vadd.f32 0.0, %v6478
      %6480 = vmatmul.f32.gmra.mxu0 %v6441
      %v6481 = vpop.f32.mrf.mxu0
      %v6482 = vadd.f32 0.0, %v6481
      %6483 = vmatmul.f32.gmra.mxu0 %v6444
      %v6484 = vpop.f32.mrf.mxu0
      %v6485 = vadd.f32 0.0, %v6484
      %6486 = vmatmul.f32.gmra.mxu0 %v6447
      %v6487 = vpop.f32.mrf.mxu0
      %v6488 = vadd.f32 0.0, %v6487
      %6489 = vmatmul.f32.gmra.mxu0 %v6450
      %v6490 = vpop.f32.mrf.mxu0
      %v6491 = vadd.f32 0.0, %v6490
      %6492 = vmatmul.f32.gmra.mxu0 %v6453
      %v6493 = vpop.f32.mrf.mxu0
      %v6494 = vadd.f32 0.0, %v6493
      %6495 = vmatmul.f32.gmra.mxu0 %v6456
      %v6496 = vpop.f32.mrf.mxu0
      %v6497 = vadd.f32 0.0, %v6496
      %6498 = vdwg.mxu0
      %v6499 = vadd.f32 %v6411, %v6476
      %v6500 = vadd.f32 %v6412, %v6479
      %v6501 = vadd.f32 %v6413, %v6482
      %v6502 = vadd.f32 %v6414, %v6485
      %v6503 = vadd.f32 %v6415, %v6488
      %v6504 = vadd.f32 %v6416, %v6491
      %v6505 = vadd.f32 %v6417, %v6494
      %v6506 = vadd.f32 %v6418, %v6497
      %v6508 = vsel %vm3653, %v6274, 0.0
      %v6509 = vsel %vm797, %v6011, 0.0
      %v6510 = vsel %vm798, %v6013, 0.0
      %v6511 = vsel %vm799, %v6015, 0.0
      %v6512 = vsel %vm800, %v6017, 0.0
      %v6513 = vsel %vm801, %v6019, 0.0
      %v6514 = vsel %vm802, %v6021, 0.0
      %v6515 = vsel %vm803, %v6275, 0.0
      %v6516 = vsel %vm804, %v6508, 0.0
      %s6517 = scalar_lea.vmem %s21, 192
      %v6518 = vld [vmem:[%s6517] sm:$0xff]
      %v6519 = vld [vmem:[%s6517 + $0x8] sm:$0xff]
      %v6520 = vld [vmem:[%s6517 + $0x10] sm:$0xff]
      %v6521 = vld [vmem:[%s6517 + $0x18] sm:$0xff]
      %v6523 = vsel %vm815, %v6509, 0
      %v6526 = vsel %vm815, %v6510, 0
      %v6529 = vsel %vm815, %v6511, 0
      %v6532 = vsel %vm815, %v6512, 0
      %v6535 = vsel %vm815, %v6513, 0
      %v6538 = vsel %vm815, %v6514, 0
      %v6541 = vsel %vm815, %v6515, 0
      %v6544 = vsel %vm815, %v6516, 0
      %6546 = vmatpush.msra.mxu0 0.0
      %6547 = vmatpush.msra.mxu0 0.0
      %6548 = vmatpush.msra.mxu0 0.0
      %6549 = vmatpush.msra.mxu0 0.0
      %6550 = vmatpush.msra.mxu0 0.0
      %6551 = vmatpush.msra.mxu0 0.0
      %6552 = vmatpush.msra.mxu0 0.0
      %6553 = vmatpush.msra.mxu0 0.0
      %6554 = vmatpush.msra.mxu0 0.0
      %6555 = vmatpush.msra.mxu0 0.0
      %6556 = vmatpush.msra.mxu0 0.0
      %6557 = vmatpush.msra.mxu0 0.0
      %6558 = vmatpush.msra.mxu0 %v6521
      %6559 = vmatpush.msra.mxu0 %v6520
      %6560 = vmatpush.msra.mxu0 %v6519
      %6561 = vmatpush.msra.mxu0 %v6518
      %6562 = vmatmul.f32.gmra.mxu0 %v6523
      %v6563 = vpop.f32.mrf.mxu0
      %v6564 = vadd.f32 0.0, %v6563
      %6565 = vmatmul.f32.gmra.mxu0 %v6526
      %v6566 = vpop.f32.mrf.mxu0
      %v6567 = vadd.f32 0.0, %v6566
      %6568 = vmatmul.f32.gmra.mxu0 %v6529
      %v6569 = vpop.f32.mrf.mxu0
      %v6570 = vadd.f32 0.0, %v6569
      %6571 = vmatmul.f32.gmra.mxu0 %v6532
      %v6572 = vpop.f32.mrf.mxu0
      %v6573 = vadd.f32 0.0, %v6572
      %6574 = vmatmul.f32.gmra.mxu0 %v6535
      %v6575 = vpop.f32.mrf.mxu0
      %v6576 = vadd.f32 0.0, %v6575
      %6577 = vmatmul.f32.gmra.mxu0 %v6538
      %v6578 = vpop.f32.mrf.mxu0
      %v6579 = vadd.f32 0.0, %v6578
      %6580 = vmatmul.f32.gmra.mxu0 %v6541
      %v6581 = vpop.f32.mrf.mxu0
      %v6582 = vadd.f32 0.0, %v6581
      %6583 = vmatmul.f32.gmra.mxu0 %v6544
      %v6584 = vpop.f32.mrf.mxu0
      %v6585 = vadd.f32 0.0, %v6584
      %6586 = vdwg.mxu0
      %v6587 = vadd.f32 %v6499, %v6564
      %v6588 = vadd.f32 %v6500, %v6567
      %v6589 = vadd.f32 %v6501, %v6570
      %v6590 = vadd.f32 %v6502, %v6573
      %v6591 = vadd.f32 %v6503, %v6576
      %v6592 = vadd.f32 %v6504, %v6579
      %v6593 = vadd.f32 %v6505, %v6582
      %v6594 = vadd.f32 %v6506, %v6585
      %s6595 = scalar_lea.vmem %s21, 224
      %v6596 = vld [vmem:[%s6595] sm:$0xff]
      %v6597 = vld [vmem:[%s6595 + $0x8] sm:$0xff]
      %v6598 = vld [vmem:[%s6595 + $0x10] sm:$0xff]
      %v6599 = vld [vmem:[%s6595 + $0x18] sm:$0xff]
      %6600 = vmatpush.msra.mxu0 0.0
      %6601 = vmatpush.msra.mxu0 0.0
      %6602 = vmatpush.msra.mxu0 0.0
      %6603 = vmatpush.msra.mxu0 0.0
      %6604 = vmatpush.msra.mxu0 0.0
      %6605 = vmatpush.msra.mxu0 0.0
      %6606 = vmatpush.msra.mxu0 0.0
      %6607 = vmatpush.msra.mxu0 0.0
      %6608 = vmatpush.msra.mxu0 0.0
      %6609 = vmatpush.msra.mxu0 0.0
      %6610 = vmatpush.msra.mxu0 0.0
      %6611 = vmatpush.msra.mxu0 0.0
      %6612 = vmatpush.msra.mxu0 %v6599
      %6613 = vmatpush.msra.mxu0 %v6598
      %6614 = vmatpush.msra.mxu0 %v6597
      %6615 = vmatpush.msra.mxu0 %v6596
      %6616 = vmatmul.f32.gmra.mxu0 %v6048
      %v6617 = vpop.f32.mrf.mxu0
      %v6618 = vadd.f32 0.0, %v6617
      %6619 = vmatmul.f32.gmra.mxu0 %v6050
      %v6620 = vpop.f32.mrf.mxu0
      %v6621 = vadd.f32 0.0, %v6620
      %6622 = vmatmul.f32.gmra.mxu0 %v6052
      %v6623 = vpop.f32.mrf.mxu0
      %v6624 = vadd.f32 0.0, %v6623
      %6625 = vmatmul.f32.gmra.mxu0 %v6054
      %v6626 = vpop.f32.mrf.mxu0
      %v6627 = vadd.f32 0.0, %v6626
      %6628 = vmatmul.f32.gmra.mxu0 %v6056
      %v6629 = vpop.f32.mrf.mxu0
      %v6630 = vadd.f32 0.0, %v6629
      %6631 = vmatmul.f32.gmra.mxu0 %v6058
      %v6632 = vpop.f32.mrf.mxu0
      %v6633 = vadd.f32 0.0, %v6632
      %6634 = vmatmul.f32.gmra.mxu0 %v6368
      %v6635 = vpop.f32.mrf.mxu0
      %v6636 = vadd.f32 0.0, %v6635
      %6637 = vmatmul.f32.gmra.mxu0 %v3692
      %v6638 = vpop.f32.mrf.mxu0
      %v6639 = vadd.f32 0.0, %v6638
      %6640 = vdwg.mxu0
      %v6641 = vadd.f32 %v6587, %v6618
      %v6642 = vadd.f32 %v6588, %v6621
      %v6643 = vadd.f32 %v6589, %v6624
      %v6644 = vadd.f32 %v6590, %v6627
      %v6645 = vadd.f32 %v6591, %v6630
      %v6646 = vadd.f32 %v6592, %v6633
      %v6647 = vadd.f32 %v6593, %v6636
      %v6648 = vadd.f32 %v6594, %v6639
      %v6649 = vsel %vm805, %v6168, 0.0
      %v6650 = vsel %vm806, %v6170, 0.0
      %v6651 = vsel %vm807, %v6172, 0.0
      %v6652 = vsel %vm808, %v6174, 0.0
      %v6653 = vsel %vm809, %v6176, 0.0
      %v6654 = vsel %vm810, %v6178, 0.0
      %v6655 = vsel %vm811, %v6420, 0.0
      %s6656 = scalar_lea.vmem %s21, 256
      %v6657 = vld [vmem:[%s6656] sm:$0xff]
      %v6658 = vld [vmem:[%s6656 + $0x8] sm:$0xff]
      %v6659 = vld [vmem:[%s6656 + $0x10] sm:$0xff]
      %v6660 = vld [vmem:[%s6656 + $0x18] sm:$0xff]
      %v6662 = vsel %vm815, %v6649, 0
      %v6665 = vsel %vm815, %v6650, 0
      %v6668 = vsel %vm815, %v6651, 0
      %v6671 = vsel %vm815, %v6652, 0
      %v6674 = vsel %vm815, %v6653, 0
      %v6677 = vsel %vm815, %v6654, 0
      %v6680 = vsel %vm815, %v6655, 0
      %6682 = vmatpush.msra.mxu0 0.0
      %6683 = vmatpush.msra.mxu0 0.0
      %6684 = vmatpush.msra.mxu0 0.0
      %6685 = vmatpush.msra.mxu0 0.0
      %6686 = vmatpush.msra.mxu0 0.0
      %6687 = vmatpush.msra.mxu0 0.0
      %6688 = vmatpush.msra.mxu0 0.0
      %6689 = vmatpush.msra.mxu0 0.0
      %6690 = vmatpush.msra.mxu0 0.0
      %6691 = vmatpush.msra.mxu0 0.0
      %6692 = vmatpush.msra.mxu0 0.0
      %6693 = vmatpush.msra.mxu0 0.0
      %6694 = vmatpush.msra.mxu0 %v6660
      %6695 = vmatpush.msra.mxu0 %v6659
      %6696 = vmatpush.msra.mxu0 %v6658
      %6697 = vmatpush.msra.mxu0 %v6657
      %6698 = vmatmul.f32.gmra.mxu0 %v6662
      %v6699 = vpop.f32.mrf.mxu0
      %v6700 = vadd.f32 0.0, %v6699
      %6701 = vmatmul.f32.gmra.mxu0 %v6665
      %v6702 = vpop.f32.mrf.mxu0
      %v6703 = vadd.f32 0.0, %v6702
      %6704 = vmatmul.f32.gmra.mxu0 %v6668
      %v6705 = vpop.f32.mrf.mxu0
      %v6706 = vadd.f32 0.0, %v6705
      %6707 = vmatmul.f32.gmra.mxu0 %v6671
      %v6708 = vpop.f32.mrf.mxu0
      %v6709 = vadd.f32 0.0, %v6708
      %6710 = vmatmul.f32.gmra.mxu0 %v6674
      %v6711 = vpop.f32.mrf.mxu0
      %v6712 = vadd.f32 0.0, %v6711
      %6713 = vmatmul.f32.gmra.mxu0 %v6677
      %v6714 = vpop.f32.mrf.mxu0
      %v6715 = vadd.f32 0.0, %v6714
      %6716 = vmatmul.f32.gmra.mxu0 %v6680
      %v6717 = vpop.f32.mrf.mxu0
      %v6718 = vadd.f32 0.0, %v6717
      %6719 = vmatmul.f32.gmra.mxu0 %v3692
      %v6720 = vpop.f32.mrf.mxu0
      %v6721 = vadd.f32 0.0, %v6720
      %6722 = vdwg.mxu0
      %v6723 = vadd.f32 %v6641, %v6700
      %v6724 = vadd.f32 %v6642, %v6703
      %v6725 = vadd.f32 %v6643, %v6706
      %v6726 = vadd.f32 %v6644, %v6709
      %v6727 = vadd.f32 %v6645, %v6712
      %v6728 = vadd.f32 %v6646, %v6715
      %v6729 = vadd.f32 %v6647, %v6718
      %v6730 = vadd.f32 %v6648, %v6721
      %v6731 = vadd.f32 %v5994, %v6723
      %v6732 = vadd.f32 %v5995, %v6724
      %v6733 = vadd.f32 %v5996, %v6725
      %v6734 = vadd.f32 %v5997, %v6726
      %v6735 = vadd.f32 %v5998, %v6727
      %v6736 = vadd.f32 %v5999, %v6728
      %v6737 = vadd.f32 %v6000, %v6729
      %v6738 = vadd.f32 %v6001, %v6730
      %6739 = vst.msk [vmem:[%s683] sm:$0xff] %vm815, %v6731
      %6740 = vst.msk [vmem:[%s683 + $0x8] sm:$0xff] %vm815, %v6732
      %6741 = vst.msk [vmem:[%s683 + $0x10] sm:$0xff] %vm815, %v6733
      %6742 = vst.msk [vmem:[%s683 + $0x18] sm:$0xff] %vm815, %v6734
      %6743 = vst.msk [vmem:[%s683 + $0x20] sm:$0xff] %vm815, %v6735
      %6744 = vst.msk [vmem:[%s683 + $0x28] sm:$0xff] %vm815, %v6736
      %6745 = vst.msk [vmem:[%s683 + $0x30] sm:$0xff] %vm815, %v6737
      %6746 = vst.msk [vmem:[%s683 + $0x38] sm:$0xff] %vm815, %v6738
      %p6747 = scmp.lt.s32.totalorder %s33, 1
      %s6748 = scalar_select %p6747, %s33, 1
      %s6749 = smul.addr %s6748, 8
      %s6750 = smul.addr %s6749, 8
      %s6751 = scalar_lea.vmem %s22, %s6750
      // Predicated region
      $region109: #{block_forward.1} parent=107 // pred_check
        %p6752 = pneg %p518
      $region110: #{block_forward.1} parent=107 // pred_check_branch
        %6754 = sbr.rel (%p6752) target = $region112
      $region111: #{block_forward.1} parent=107 // pred_region
        _
      $region112: #{block_forward.1} parent=107 // pred_fallthru
        _
    $region108: #{block_forward.1} parent=5 // pred_fallthru
      _
    %p6755 = scmp.le.s32.totalorder 2, %s28
    // Predicated region
    $region113: #{block_forward.1} parent=5 // pred_check
      %p6756 = pneg %p6755
    $region114: #{block_forward.1} parent=5 // pred_check_branch
      %6758 = sbr.rel (%p6756) target = $region116
    $region115: #{block_forward.1} parent=5 // pred_region
      %s6759 = ssub.s32 %s28, 2
      // Predicated region
      $region117: #{block_forward.1} parent=115 // pred_check
        %p6760 = pneg %p524
      $region118: #{block_forward.1} parent=115 // pred_check_branch
        %6762 = sbr.rel (%p6760) target = $region120
      $region119: #{block_forward.1} parent=115 // pred_region
        %p6763 = scmp.lt.s32.totalorder %s34, 1
        %s6764 = scalar_select %p6763, %s34, 1
        %s6765 = smul.addr %s6764, 8
        %s6766 = smul.addr %s6765, 8
        %s6767 = scalar_lea.vmem %s22, %s6766
      $region120: #{block_forward.1} parent=115 // pred_fallthru
        _
    $region116: #{block_forward.1} parent=5 // pred_fallthru
      _
  $region6: #{block_forward.1} parent=0 // loop_footer
    %s32 = sadd.s32 1, %s28
  $region7: #{block_forward.1} parent=0 // loop_footer_branch
    %27 = sbr.rel target = $region3
  $region8: #{block_forward.1} parent=0 // loop_exit
    _

</llo_original>
